<compile_context>
chip_gen: v7x
topology: tpu7x:2x2x1
jax: 0.10.0
libtpu: 0.0.40
codegen_flags: <defaults>
</compile_context>

<pallas_src>
import math

import jax
import jax.numpy as jnp
from jax import lax
from jax.experimental import pallas as pl
from jax.experimental.pallas import tpu as pltpu

# ----------------------- model hyper-parameters (small demo) -----------------------
SEQ_LEN   = 8                      # L1, history length  (= in_features of embedding)
PRED_LEN  = 8                      # L2, forecast horizon
N_VARS    = 4                      # N, number of time series
N_FEATS   = 4                      # C, feature 0 = value, 1..C-1 = time marks
D_MODEL   = 32
D_FF      = 32
D_STATE   = 16
E_LAYERS  = 2
D_CONV    = 2                      # Mamba(d_conv=2)
EXPAND    = 1                      # Mamba(expand=1)
D_INNER   = EXPAND * D_MODEL
DT_RANK   = math.ceil(D_MODEL / 16)
TOD_SIZE  = 288                    # time_of_day_size
ACTIVATION = "relu"
USE_NORM  = True

N_MARKS = N_FEATS - 1
L_TOK   = N_VARS + N_MARKS         # encoder "sequence" length (variate + mark tokens)
NS      = D_INNER * D_STATE        # flattened (d_inner, d_state) scan width = 512 (4*128)

# batch elements packed per grid step (matmul M = BATCH_TILE * L_TOK = 896, a
# multiple of 128 -> lane-dense output store + good MXU fill).  Small batches
# fall back to a multiple-of-8 tile so the demo does not pad 64x.
BATCH_TILE = 128
MXU_DTYPE  = jnp.bfloat16          # matmul operand dtype for the big per-layer matmuls

KERNEL_PARAM_ORDER = ["emb_w", "emb_b", "in_w", "conv_w", "conv_b", "xpr_w", "dt_b",
                      "ea", "ed", "es", "red", "dpar", "out_w",
                      "ffn1_w", "ffn1_b", "ffn2_w", "ffn2_b",
                      "ln1_g", "ln1_b", "ln2_g", "ln2_b",
                      "fln_g", "fln_b", "prj_w", "prj_b"]


# ----------------------------- in-kernel helpers ------------------------------------
def _silu(x):
    return x * jax.nn.sigmoid(x)


def _softplus(x):
    # matches torch.nn.functional.softplus (threshold=20)
    return jnp.where(x > 20.0, x, jnp.log(1.0 + jnp.exp(jnp.minimum(x, 20.0))))


def _layer_norm(x, g, b, eps=1e-5):
    mu = jnp.mean(x, axis=-1, keepdims=True)
    xc = x - mu
    var = jnp.mean(xc * xc, axis=-1, keepdims=True)
    return xc / jnp.sqrt(var + eps) * g + b


# ----------------------------------- kernel -----------------------------------------
def s_mamba_kernel(tok_ref,
                   emb_w_ref, emb_b_ref,
                   in_w_ref, conv_w_ref, conv_b_ref, xpr_w_ref, dt_b_ref,
                   ea_ref, ed_ref, es_ref, red_ref,
                   dpar_ref, out_w_ref,
                   ffn1_w_ref, ffn1_b_ref, ffn2_w_ref, ffn2_b_ref,
                   ln1_g_ref, ln1_b_ref, ln2_g_ref, ln2_b_ref,
                   fln_g_ref, fln_b_ref, prj_w_ref, prj_b_ref,
                   out_ref):
    f32 = jnp.float32
    rows = tok_ref.shape[1]                     # Bt * L_TOK  (sequence-major packing)
    bt = rows // L_TOK

    def mxu(a, w):                              # bf16 operands, f32 accumulation
        return jnp.dot(a.astype(MXU_DTYPE), w, preferred_element_type=f32)

    def f32dot(a, w):                           # small, accuracy-sensitive matmuls
        return jnp.dot(a, w, preferred_element_type=f32)

    tok = tok_ref[0]                                           # (rows, L1)

    # ---- use_norm: per-series instance normalization over the history axis ----
    # computed for every packed row; mark-token rows are masked to identity.
    mu = jnp.mean(tok, axis=1, keepdims=True)                  # (rows, 1)
    cen = tok - mu
    var = jnp.mean(cen * cen, axis=1, keepdims=True)
    std = jnp.sqrt(var + 1e-5)
    row_id = lax.broadcasted_iota(jnp.int32, (rows, 1), 0)
    is_var = row_id < N_VARS * bt                              # variate-token rows
    if USE_NORM:
        shift = jnp.where(is_var, mu, 0.0)
        scale = jnp.where(is_var, std, 1.0)
        tok = (tok - shift) / scale

    # ---- DataEmbedding_inverted: Linear(seq_len -> d_model) on every token row ----
    x = f32dot(tok, emb_w_ref[...]) + emb_b_ref[...]           # (rows, D), f32 matmul

    ed = ed_ref[...]                                           # (Din, NS)   0/1 expand
    es = es_ref[...]                                           # (S,   NS)   0/1 expand
    red = red_ref[...]                                         # (NS, Din)   0/1 reduce

    def mamba_pair(xv, l):
        """Forward + (flip-free) reverse Mamba for layer l; returns fwd + bwd."""
        # fused in_proj for both directions: (rows, 4*Din) = 128 lanes.
        xz = mxu(xv, in_w_ref[l])                              # [x_f | z_f | x_b | z_b]

        pre = []
        for d in (0, 1):                                       # 0 = fwd, 1 = reverse
            reverse = d == 1
            base = d * 2 * D_INNER
            xi = xz[:, base:base + D_INNER]                    # (rows, Din)
            z = xz[:, base + D_INNER:base + 2 * D_INNER]       # (rows, Din)

            # depthwise causal (fwd) / anti-causal (bwd) conv along the token axis.
            # packed row = t*bt + b, so a time shift of s is a row shift of s*bt and
            # the zero fill lands exactly on the out-of-range time steps (no mask).
            conv_w = conv_w_ref[l, d]                          # (Dconv, Din)
            acc = xi * conv_w[D_CONV - 1:D_CONV, :]
            for k in range(D_CONV - 1):
                s = (D_CONV - 1 - k) * bt
                pad = jnp.zeros((s, D_INNER), f32)
                if not reverse:
                    sh = jnp.concatenate([pad, xi[:rows - s, :]], axis=0)
                else:
                    sh = jnp.concatenate([xi[s:, :], pad], axis=0)
                acc = acc + sh * conv_w[k:k + 1, :]
            xa = _silu(acc + conv_b_ref[l, d])                 # (rows, Din)

            # x_proj with dt_proj folded in: [delta_pre(Din) | B(S) | C(S)]
            xdbl = mxu(xa, xpr_w_ref[l, d])                    # (rows, Din + 2S)
            delta = _softplus(xdbl[:, :D_INNER] + dt_b_ref[l, d])
            Bm = xdbl[:, D_INNER:D_INNER + D_STATE]            # (rows, S)
            Cm = xdbl[:, D_INNER + D_STATE:]                   # (rows, S)

            # lane-dense flattened scan tensors, built via expansion matmuls:
            #   dA [r, i*S+s] = exp(delta[r,i] * A[i,s])
            #   dBu[r, i*S+s] = delta[r,i]*x[r,i] * B[r,s]
            dA = jnp.exp(f32dot(delta, ea_ref[l, d]))          # (rows, NS)
            dBu = f32dot(delta * xa, ed) * f32dot(Bm, es)      # (rows, NS)
            c_exp = f32dot(Cm, es)                             # (rows, NS)
            pre.append((xa, z, dA, dBu, c_exp))

        xa_f, z_f, dA_f, dBu_f, ce_f = pre[0]
        xa_b, z_b, dA_b, dBu_b, ce_b = pre[1]

        # selective scans: forward and reverse-time recurrences are independent
        # chains; interleave them in one unrolled loop (the reverse scan is the
        # flip-free equivalent of flip -> Mamba -> flip).
        st_f = jnp.zeros((bt, NS), f32)
        st_b = jnp.zeros((bt, NS), f32)
        sf, sb = [], []
        for t in range(L_TOK):                                 # small & static
            rf = t * bt
            rb = (L_TOK - 1 - t) * bt
            st_f = dA_f[rf:rf + bt] * st_f + dBu_f[rf:rf + bt]
            st_b = dA_b[rb:rb + bt] * st_b + dBu_b[rb:rb + bt]
            sf.append(st_f)
            sb.append(st_b)
        states_f = jnp.concatenate(sf, axis=0)                 # (rows, NS), time order
        states_b = jnp.concatenate(sb[::-1], axis=0)           # (rows, NS), time order

        # C contraction in one matmul per direction, then D skip + gate.
        y_f = f32dot(states_f * ce_f, red)                     # (rows, Din)
        y_b = f32dot(states_b * ce_b, red)
        y_f = (y_f + xa_f * dpar_ref[l, 0]) * _silu(z_f)
        y_b = (y_b + xa_b * dpar_ref[l, 1]) * _silu(z_b)

        # fused out_proj + residual sum of the two directions.
        y = jnp.concatenate([y_f, y_b], axis=-1)               # (rows, 2*Din)
        return mxu(y, out_w_ref[l])                            # = y_f@W_f + y_b@W_b

    # ---- encoder layers: bidirectional Mamba + 1x1-conv FFN ----
    for l in range(E_LAYERS):
        x = _layer_norm(x + mamba_pair(x, l), ln1_g_ref[l], ln1_b_ref[l])
        y = mxu(x, ffn1_w_ref[l]) + ffn1_b_ref[l]
        if ACTIVATION == "relu":
            y = jnp.maximum(y, 0.0)
        else:
            y = jax.nn.gelu(y, approximate=False)
        y = mxu(y, ffn2_w_ref[l]) + ffn2_b_ref[l]
        x = _layer_norm(x + y, ln2_g_ref[l], ln2_b_ref[l])

    # ---- final encoder LayerNorm + projector Linear(d_model -> pred_len) ----
    x = _layer_norm(x, fln_g_ref[...], fln_b_ref[...])
    dec = f32dot(x, prj_w_ref[...]) + prj_b_ref[...]           # (rows, PRED), f32 matmul
    if USE_NORM:
        dec = dec * scale + shift                              # de-normalize variate rows
    out_ref[0] = dec.T                                         # (PRED, rows) lane-dense store


# ------------------------------- wrapper (glue) --------------------------------------
def _full_spec(shape):
    nd = len(shape)
    return pl.BlockSpec(shape, lambda g, nd=nd: (0,) * nd)


def _prep_weights(params):
    md, f32 = MXU_DTYPE, jnp.float32

    # fuse fwd/bwd in_proj:  (E, D, 4*Din)
    in_w = params["in_w"]
    in_w_fused = jnp.concatenate([in_w[:, 0], in_w[:, 1]], axis=-1).astype(md)

    # fold dt_proj into x_proj:  (E, 2, Din, Din + 2*S)
    dt_full = jnp.einsum("ldir,ldrj->ldij",
                         params["xpr_w"][..., :DT_RANK], params["dt_w"])
    xpr_fused = jnp.concatenate([dt_full, params["xpr_w"][..., DT_RANK:]],
                                axis=-1).astype(md)

    # fuse fwd/bwd out_proj (+ residual sum):  (E, 2*Din, D)
    out_w = params["out_w"]
    out_w_fused = jnp.concatenate([out_w[:, 0], out_w[:, 1]], axis=1).astype(md)

    # lane-dense scan helpers: expansion / reduction matrices for the d*S+s layout
    e_d = jnp.kron(jnp.eye(D_INNER, dtype=f32), jnp.ones((1, D_STATE), f32))  # (Din, NS)
    e_s = jnp.kron(jnp.ones((1, D_INNER), f32), jnp.eye(D_STATE, dtype=f32))  # (S,   NS)
    A = -jnp.exp(params["alog"])                                              # (E,2,Din,S)
    ea = e_d[None, None] * A.reshape(E_LAYERS, 2, 1, NS)                      # (E,2,Din,NS)

    prep = {
        "emb_w": params["emb_w"],                    # f32 (accuracy-sensitive, tiny)
        "emb_b": params["emb_b"],
        "in_w": in_w_fused,
        "conv_w": params["conv_w"],
        "conv_b": params["conv_b"][:, :, None, :],   # (E,2,1,Din) -> 2-D loads in kernel
        "xpr_w": xpr_fused,
        "dt_b": params["dt_b"][:, :, None, :],
        "ea": ea, "ed": e_d, "es": e_s, "red": e_d.T,
        "dpar": params["dpar"][:, :, None, :],
        "out_w": out_w_fused,
        "ffn1_w": params["ffn1_w"].astype(md),
        "ffn1_b": params["ffn1_b"][:, None, :],
        "ffn2_w": params["ffn2_w"].astype(md),
        "ffn2_b": params["ffn2_b"][:, None, :],
        "ln1_g": params["ln1_g"][:, None, :], "ln1_b": params["ln1_b"][:, None, :],
        "ln2_g": params["ln2_g"][:, None, :], "ln2_b": params["ln2_b"][:, None, :],
        "fln_g": params["fln_g"], "fln_b": params["fln_b"],
        "prj_w": params["prj_w"],                    # f32 (accuracy-sensitive, tiny)
        "prj_b": params["prj_b"],
    }
    return [prep[k] for k in KERNEL_PARAM_ORDER]


@jax.jit
def s_mamba_forward(history_data, future_data, params):
    """history_data: (B, L1, N, C);  returns (B, L2, N, 1)."""
    del future_data  # x_dec / x_mark_dec are never consumed by the encoder-only model
    B = history_data.shape[0]

    # history_data[..., 1] = history_data[..., 1]*tod // (tod/24) / 23.0
    tod_feat = history_data[..., 1] * TOD_SIZE
    tod_feat = jnp.floor_divide(tod_feat, TOD_SIZE / 24.0) / 23.0
    history_data = history_data.at[..., 1].set(tod_feat)

    # data_transformation_4_xformer (start_token_len = 0)
    x_enc = history_data[..., 0]                 # (B, L1, N)
    x_mark = history_data[:, :, 0, 1:]           # (B, L1, C-1)

    x_var = jnp.transpose(x_enc, (0, 2, 1)).astype(jnp.float32)      # (B, N, L1)
    x_mrk = jnp.transpose(x_mark, (0, 2, 1)).astype(jnp.float32)     # (B, M, L1)
    tokens = jnp.concatenate([x_var, x_mrk], axis=1)                 # (B, L_TOK, L1)

    # ---- batch tiling: bt multiple of 8 (sublane-aligned scan slabs); for large
    # batches bt = 128 so rows = 896 is a multiple of 128 (lane-dense output) and
    # nb >= 2 lets the "parallel" grid axis shard across v7x's two TensorCores.
    bt = BATCH_TILE if B >= BATCH_TILE else -(-B // 8) * 8
    nb = -(-B // bt)
    b_pad = nb * bt
    if b_pad != B:
        tokens = jnp.pad(tokens, ((0, b_pad - B), (0, 0), (0, 0)))

    # sequence-major packing inside each batch tile: packed row = t*bt + b_local,
    # so each conv shift / scan time-step is a contiguous static row slice.
    tok_packed = (tokens.reshape(nb, bt, L_TOK, SEQ_LEN)
                        .transpose(0, 2, 1, 3)
                        .reshape(nb, L_TOK * bt, SEQ_LEN))

    weights = _prep_weights(params)
    rows = L_TOK * bt

    out = pl.pallas_call(
        s_mamba_kernel,
        out_shape=jax.ShapeDtypeStruct((nb, PRED_LEN, rows), jnp.float32),
        grid=(nb,),
        in_specs=[pl.BlockSpec((1, rows, SEQ_LEN), lambda g: (g, 0, 0))]
                 + [_full_spec(w.shape) for w in weights],
        out_specs=pl.BlockSpec((1, PRED_LEN, rows), lambda g: (g, 0, 0)),
        compiler_params=pltpu.CompilerParams(
            dimension_semantics=("parallel",),       # batch tiles are independent
            vmem_limit_bytes=64 * 1024 * 1024,       # headroom for rows=896 flattened scan
        ),
    )(tok_packed, *weights)

    # (nb, PRED, L_TOK*bt) -> (B, PRED, N, 1)   (matches prediction.unsqueeze(-1))
    out = out.reshape(nb, PRED_LEN, L_TOK, bt).transpose(0, 3, 1, 2)
    out = out.reshape(b_pad, PRED_LEN, L_TOK)[:B, :, :N_VARS]
    return out[..., None]


# ------------------------- deterministic parameter init ------------------------------
def init_params(key):
    keys = iter(jax.random.split(key, 64))

    def nrm(shape, scale=0.1):
        return (scale * jax.random.normal(next(keys), shape)).astype(jnp.float32)

    p = {}
    # DataEmbedding_inverted.value_embedding (Linear seq_len -> d_model), pre-transposed
    p["emb_w"] = nrm((SEQ_LEN, D_MODEL))
    p["emb_b"] = nrm((1, D_MODEL))
    # Mamba blocks: stacked over (layer, direction = fwd/rev), all weights pre-transposed
    p["in_w"] = nrm((E_LAYERS, 2, D_MODEL, 2 * D_INNER))            # in_proj.weight.T
    p["conv_w"] = nrm((E_LAYERS, 2, D_CONV, D_INNER))               # conv1d.weight (k, ch)
    p["conv_b"] = nrm((E_LAYERS, 2, D_INNER))
    p["xpr_w"] = nrm((E_LAYERS, 2, D_INNER, DT_RANK + 2 * D_STATE))  # x_proj.weight.T
    p["dt_w"] = nrm((E_LAYERS, 2, DT_RANK, D_INNER))                # dt_proj.weight.T
    p["dt_b"] = nrm((E_LAYERS, 2, D_INNER), scale=0.05)             # dt_proj.bias
    a_log = jnp.log(jnp.arange(1, D_STATE + 1, dtype=jnp.float32))  # S4D-real init
    p["alog"] = jnp.broadcast_to(a_log, (E_LAYERS, 2, D_INNER, D_STATE)).astype(jnp.float32)
    p["dpar"] = jnp.ones((E_LAYERS, 2, D_INNER), jnp.float32)       # D skip parameter
    p["out_w"] = nrm((E_LAYERS, 2, D_INNER, D_MODEL))               # out_proj.weight.T
    # EncoderLayer FFN (1x1 convs == pointwise linears) + LayerNorms
    p["ffn1_w"] = nrm((E_LAYERS, D_MODEL, D_FF))
    p["ffn1_b"] = nrm((E_LAYERS, D_FF))
    p["ffn2_w"] = nrm((E_LAYERS, D_FF, D_MODEL))
    p["ffn2_b"] = nrm((E_LAYERS, D_MODEL))
    p["ln1_g"] = jnp.ones((E_LAYERS, D_MODEL), jnp.float32)
    p["ln1_b"] = jnp.zeros((E_LAYERS, D_MODEL), jnp.float32)
    p["ln2_g"] = jnp.ones((E_LAYERS, D_MODEL), jnp.float32)
    p["ln2_b"] = jnp.zeros((E_LAYERS, D_MODEL), jnp.float32)
    # Encoder final LayerNorm + projector Linear(d_model -> pred_len)
    p["fln_g"] = jnp.ones((1, D_MODEL), jnp.float32)
    p["fln_b"] = jnp.zeros((1, D_MODEL), jnp.float32)
    p["prj_w"] = nrm((D_MODEL, PRED_LEN))
    p["prj_b"] = nrm((1, PRED_LEN))
    return p


if __name__ == "__main__":
    key = jax.random.PRNGKey(0)
    k_hist, k_fut, k_par = jax.random.split(key, 3)
    B = 2
    history_data = jax.random.uniform(k_hist, (B, SEQ_LEN, N_VARS, N_FEATS), jnp.float32)
    future_data = jax.random.uniform(k_fut, (B, PRED_LEN, N_VARS, N_FEATS), jnp.float32)
    params = init_params(k_par)

    pred = s_mamba_forward(history_data, future_data, params)
    pred = jax.block_until_ready(pred)
    assert pred.shape == (B, PRED_LEN, N_VARS, 1), pred.shape
    assert bool(jnp.all(jnp.isfinite(pred)))
    print("KERNEL_OK")
</pallas_src>

<mosaic_0001>
module attributes {stable_mosaic.version = 11 : i64} {
  func.func @s_mamba_kernel(%arg0: i32, %arg1: memref<1x56x8xf32, #tpu.memory_space<vmem>>, %arg2: memref<8x32xf32, #tpu.memory_space<vmem>>, %arg3: memref<1x32xf32, #tpu.memory_space<vmem>>, %arg4: memref<2x32x128xbf16, #tpu.memory_space<vmem>>, %arg5: memref<2x2x2x32xf32, #tpu.memory_space<vmem>>, %arg6: memref<2x2x1x32xf32, #tpu.memory_space<vmem>>, %arg7: memref<2x2x32x64xbf16, #tpu.memory_space<vmem>>, %arg8: memref<2x2x1x32xf32, #tpu.memory_space<vmem>>, %arg9: memref<2x2x32x512xf32, #tpu.memory_space<vmem>>, %arg10: memref<32x512xf32, #tpu.memory_space<vmem>>, %arg11: memref<16x512xf32, #tpu.memory_space<vmem>>, %arg12: memref<512x32xf32, #tpu.memory_space<vmem>>, %arg13: memref<2x2x1x32xf32, #tpu.memory_space<vmem>>, %arg14: memref<2x64x32xbf16, #tpu.memory_space<vmem>>, %arg15: memref<2x32x32xbf16, #tpu.memory_space<vmem>>, %arg16: memref<2x1x32xf32, #tpu.memory_space<vmem>>, %arg17: memref<2x32x32xbf16, #tpu.memory_space<vmem>>, %arg18: memref<2x1x32xf32, #tpu.memory_space<vmem>>, %arg19: memref<2x1x32xf32, #tpu.memory_space<vmem>>, %arg20: memref<2x1x32xf32, #tpu.memory_space<vmem>>, %arg21: memref<2x1x32xf32, #tpu.memory_space<vmem>>, %arg22: memref<2x1x32xf32, #tpu.memory_space<vmem>>, %arg23: memref<1x32xf32, #tpu.memory_space<vmem>>, %arg24: memref<1x32xf32, #tpu.memory_space<vmem>>, %arg25: memref<32x8xf32, #tpu.memory_space<vmem>>, %arg26: memref<1x8xf32, #tpu.memory_space<vmem>>, %arg27: memref<1x8x56xf32, #tpu.memory_space<vmem>>) attributes {dimension_semantics = [#tpu.dimension_semantics<parallel>], iteration_bounds = array<i64: 1>, scalar_prefetch = 0 : i64, scratch_operands = 0 : i64, tpu.core_type = #tpu.core_type<tc>, window_params = [{transform_indices = @transform_0, window_bounds = array<i64: 1, 56, 8>}, {pipeline_mode = #tpu.pipeline_mode<synchronous>, transform_indices = @transform_1, window_bounds = array<i64: 8, 32>}, {pipeline_mode = #tpu.pipeline_mode<synchronous>, transform_indices = @transform_2, window_bounds = array<i64: 1, 32>}, {pipeline_mode = #tpu.pipeline_mode<synchronous>, transform_indices = @transform_3, window_bounds = array<i64: 2, 32, 128>}, {pipeline_mode = #tpu.pipeline_mode<synchronous>, transform_indices = @transform_4, window_bounds = array<i64: 2, 2, 2, 32>}, {pipeline_mode = #tpu.pipeline_mode<synchronous>, transform_indices = @transform_5, window_bounds = array<i64: 2, 2, 1, 32>}, {pipeline_mode = #tpu.pipeline_mode<synchronous>, transform_indices = @transform_6, window_bounds = array<i64: 2, 2, 32, 64>}, {pipeline_mode = #tpu.pipeline_mode<synchronous>, transform_indices = @transform_7, window_bounds = array<i64: 2, 2, 1, 32>}, {pipeline_mode = #tpu.pipeline_mode<synchronous>, transform_indices = @transform_8, window_bounds = array<i64: 2, 2, 32, 512>}, {pipeline_mode = #tpu.pipeline_mode<synchronous>, transform_indices = @transform_9, window_bounds = array<i64: 32, 512>}, {pipeline_mode = #tpu.pipeline_mode<synchronous>, transform_indices = @transform_10, window_bounds = array<i64: 16, 512>}, {pipeline_mode = #tpu.pipeline_mode<synchronous>, transform_indices = @transform_11, window_bounds = array<i64: 512, 32>}, {pipeline_mode = #tpu.pipeline_mode<synchronous>, transform_indices = @transform_12, window_bounds = array<i64: 2, 2, 1, 32>}, {pipeline_mode = #tpu.pipeline_mode<synchronous>, transform_indices = @transform_13, window_bounds = array<i64: 2, 64, 32>}, {pipeline_mode = #tpu.pipeline_mode<synchronous>, transform_indices = @transform_14, window_bounds = array<i64: 2, 32, 32>}, {pipeline_mode = #tpu.pipeline_mode<synchronous>, transform_indices = @transform_15, window_bounds = array<i64: 2, 1, 32>}, {pipeline_mode = #tpu.pipeline_mode<synchronous>, transform_indices = @transform_16, window_bounds = array<i64: 2, 32, 32>}, {pipeline_mode = #tpu.pipeline_mode<synchronous>, transform_indices = @transform_17, window_bounds = array<i64: 2, 1, 32>}, {pipeline_mode = #tpu.pipeline_mode<synchronous>, transform_indices = @transform_18, window_bounds = array<i64: 2, 1, 32>}, {pipeline_mode = #tpu.pipeline_mode<synchronous>, transform_indices = @transform_19, window_bounds = array<i64: 2, 1, 32>}, {pipeline_mode = #tpu.pipeline_mode<synchronous>, transform_indices = @transform_20, window_bounds = array<i64: 2, 1, 32>}, {pipeline_mode = #tpu.pipeline_mode<synchronous>, transform_indices = @transform_21, window_bounds = array<i64: 2, 1, 32>}, {pipeline_mode = #tpu.pipeline_mode<synchronous>, transform_indices = @transform_22, window_bounds = array<i64: 1, 32>}, {pipeline_mode = #tpu.pipeline_mode<synchronous>, transform_indices = @transform_23, window_bounds = array<i64: 1, 32>}, {pipeline_mode = #tpu.pipeline_mode<synchronous>, transform_indices = @transform_24, window_bounds = array<i64: 32, 8>}, {pipeline_mode = #tpu.pipeline_mode<synchronous>, transform_indices = @transform_25, window_bounds = array<i64: 1, 8>}, {transform_indices = @transform_26, window_bounds = array<i64: 1, 8, 56>}]} {
    %c0 = arith.constant 0 : index
    %c0_0 = arith.constant 0 : index
    %c0_1 = arith.constant 0 : index
    %0 = vector.load %arg1[%c0, %c0_0, %c0_1] : memref<1x56x8xf32, #tpu.memory_space<vmem>>, vector<1x56x8xf32>
    %1 = vector.shape_cast %0 : vector<1x56x8xf32> to vector<56x8xf32>
    %cst = arith.constant dense<0.000000e+00> : vector<56xf32>
    %2 = vector.multi_reduction <add>, %1, %cst [1] : vector<56x8xf32> to vector<56xf32>
    %3 = vector.shape_cast %2 : vector<56xf32> to vector<56x1xf32>
    %cst_2 = arith.constant 8.000000e+00 : f32
    %4 = vector.broadcast %cst_2 : f32 to vector<56x1xf32>
    %5 = arith.divf %3, %4 : vector<56x1xf32>
    %6 = vector.broadcast %5 : vector<56x1xf32> to vector<56x8xf32>
    %7 = arith.subf %1, %6 : vector<56x8xf32>
    %8 = arith.mulf %7, %7 : vector<56x8xf32>
    %cst_3 = arith.constant dense<0.000000e+00> : vector<56xf32>
    %9 = vector.multi_reduction <add>, %8, %cst_3 [1] : vector<56x8xf32> to vector<56xf32>
    %10 = vector.shape_cast %9 : vector<56xf32> to vector<56x1xf32>
    %cst_4 = arith.constant 8.000000e+00 : f32
    %11 = vector.broadcast %cst_4 : f32 to vector<56x1xf32>
    %12 = arith.divf %10, %11 : vector<56x1xf32>
    %cst_5 = arith.constant 9.99999974E-6 : f32
    %13 = vector.broadcast %cst_5 : f32 to vector<56x1xf32>
    %14 = arith.addf %12, %13 : vector<56x1xf32>
    %15 = math.sqrt %14 : vector<56x1xf32>
    %16 = tpu.iota {dimensions = array<i32: 0>} : vector<56x1xi32>
    %c32_i32 = arith.constant 32 : i32
    %17 = vector.broadcast %c32_i32 : i32 to vector<56x1xi32>
    %18 = arith.cmpi slt, %16, %17 : vector<56x1xi32>
    %cst_6 = arith.constant 0.000000e+00 : f32
    %19 = vector.broadcast %cst_6 : f32 to vector<56x1xf32>
    %20 = arith.select %18, %5, %19 : vector<56x1xi1>, vector<56x1xf32>
    %cst_7 = arith.constant 1.000000e+00 : f32
    %21 = vector.broadcast %cst_7 : f32 to vector<56x1xf32>
    %22 = arith.select %18, %15, %21 : vector<56x1xi1>, vector<56x1xf32>
    %23 = vector.broadcast %20 : vector<56x1xf32> to vector<56x8xf32>
    %24 = arith.subf %1, %23 : vector<56x8xf32>
    %25 = vector.broadcast %22 : vector<56x1xf32> to vector<56x8xf32>
    %26 = arith.divf %24, %25 : vector<56x8xf32>
    %c0_8 = arith.constant 0 : index
    %c0_9 = arith.constant 0 : index
    %27 = vector.load %arg2[%c0_8, %c0_9] : memref<8x32xf32, #tpu.memory_space<vmem>>, vector<8x32xf32>
    %cst_10 = arith.constant dense<0.000000e+00> : vector<56x32xf32>
    %28 = tpu.matmul %26, %27, %cst_10 {dimension_numbers = #tpu.dot_dimension_numbers<[1], [0], [0], [1], [0, 0, 1, 1], [], []>} : vector<56x8xf32>, vector<8x32xf32>, vector<56x32xf32> -> vector<56x32xf32>
    %c0_11 = arith.constant 0 : index
    %c0_12 = arith.constant 0 : index
    %29 = vector.load %arg3[%c0_11, %c0_12] : memref<1x32xf32, #tpu.memory_space<vmem>>, vector<1x32xf32>
    %30 = vector.broadcast %29 : vector<1x32xf32> to vector<56x32xf32>
    %31 = arith.addf %28, %30 : vector<56x32xf32>
    %c0_13 = arith.constant 0 : index
    %c0_14 = arith.constant 0 : index
    %32 = vector.load %arg10[%c0_13, %c0_14] : memref<32x512xf32, #tpu.memory_space<vmem>>, vector<32x512xf32>
    %c0_15 = arith.constant 0 : index
    %c0_16 = arith.constant 0 : index
    %33 = vector.load %arg11[%c0_15, %c0_16] : memref<16x512xf32, #tpu.memory_space<vmem>>, vector<16x512xf32>
    %c0_17 = arith.constant 0 : index
    %c0_18 = arith.constant 0 : index
    %34 = vector.load %arg12[%c0_17, %c0_18] : memref<512x32xf32, #tpu.memory_space<vmem>>, vector<512x32xf32>
    %c0_19 = arith.constant 0 : index
    %c0_20 = arith.constant 0 : index
    %c0_21 = arith.constant 0 : index
    %35 = vector.load %arg4[%c0_19, %c0_20, %c0_21] : memref<2x32x128xbf16, #tpu.memory_space<vmem>>, vector<1x32x128xbf16>
    %36 = vector.shape_cast %35 : vector<1x32x128xbf16> to vector<32x128xbf16>
    %37 = arith.truncf %31 : vector<56x32xf32> to vector<56x32xbf16>
    %cst_22 = arith.constant dense<0.000000e+00> : vector<56x128xf32>
    %38 = tpu.matmul %37, %36, %cst_22 {dimension_numbers = #tpu.dot_dimension_numbers<[1], [0], [0], [1], [0, 0, 1, 1], [], []>} : vector<56x32xbf16>, vector<32x128xbf16>, vector<56x128xf32> -> vector<56x128xf32>
    %39 = vector.extract_strided_slice %38 {offsets = [0, 0], sizes = [56, 32], strides = [1, 1]} : vector<56x128xf32> to vector<56x32xf32>
    %40 = vector.extract_strided_slice %38 {offsets = [0, 32], sizes = [56, 32], strides = [1, 1]} : vector<56x128xf32> to vector<56x32xf32>
    %c0_23 = arith.constant 0 : index
    %c0_24 = arith.constant 0 : index
    %c0_25 = arith.constant 0 : index
    %c0_26 = arith.constant 0 : index
    %41 = vector.load %arg5[%c0_23, %c0_24, %c0_25, %c0_26] : memref<2x2x2x32xf32, #tpu.memory_space<vmem>>, vector<1x1x2x32xf32>
    %42 = vector.shape_cast %41 : vector<1x1x2x32xf32> to vector<2x32xf32>
    %43 = vector.extract_strided_slice %42 {offsets = [1, 0], sizes = [1, 32], strides = [1, 1]} : vector<2x32xf32> to vector<1x32xf32>
    %44 = vector.broadcast %43 : vector<1x32xf32> to vector<56x32xf32>
    %45 = arith.mulf %39, %44 : vector<56x32xf32>
    %cst_27 = arith.constant 0.000000e+00 : f32
    %46 = vector.broadcast %cst_27 : f32 to vector<8x32xf32>
    %47 = vector.extract_strided_slice %39 {offsets = [0, 0], sizes = [48, 32], strides = [1, 1]} : vector<56x32xf32> to vector<48x32xf32>
    %48 = tpu.concatenate %46, %47 in 0 : vector<8x32xf32>, vector<48x32xf32> -> vector<56x32xf32>
    %49 = vector.extract_strided_slice %42 {offsets = [0, 0], sizes = [1, 32], strides = [1, 1]} : vector<2x32xf32> to vector<1x32xf32>
    %50 = vector.broadcast %49 : vector<1x32xf32> to vector<56x32xf32>
    %51 = arith.mulf %48, %50 : vector<56x32xf32>
    %52 = arith.addf %45, %51 : vector<56x32xf32>
    %c0_28 = arith.constant 0 : index
    %c0_29 = arith.constant 0 : index
    %c0_30 = arith.constant 0 : index
    %c0_31 = arith.constant 0 : index
    %53 = vector.load %arg6[%c0_28, %c0_29, %c0_30, %c0_31] : memref<2x2x1x32xf32, #tpu.memory_space<vmem>>, vector<1x1x1x32xf32>
    %54 = vector.shape_cast %53 : vector<1x1x1x32xf32> to vector<1x32xf32>
    %55 = vector.broadcast %54 : vector<1x32xf32> to vector<56x32xf32>
    %56 = arith.addf %52, %55 : vector<56x32xf32>
    %57 = arith.negf %56 : vector<56x32xf32>
    %58 = math.exp %57 : vector<56x32xf32>
    %cst_32 = arith.constant 1.000000e+00 : f32
    %59 = vector.broadcast %cst_32 : f32 to vector<56x32xf32>
    %60 = arith.addf %59, %58 : vector<56x32xf32>
    %61 = arith.divf %59, %60 : vector<56x32xf32>
    %62 = arith.mulf %56, %61 : vector<56x32xf32>
    %c0_33 = arith.constant 0 : index
    %c0_34 = arith.constant 0 : index
    %c0_35 = arith.constant 0 : index
    %c0_36 = arith.constant 0 : index
    %63 = vector.load %arg7[%c0_33, %c0_34, %c0_35, %c0_36] : memref<2x2x32x64xbf16, #tpu.memory_space<vmem>>, vector<1x1x32x64xbf16>
    %64 = vector.shape_cast %63 : vector<1x1x32x64xbf16> to vector<32x64xbf16>
    %65 = arith.truncf %62 : vector<56x32xf32> to vector<56x32xbf16>
    %cst_37 = arith.constant dense<0.000000e+00> : vector<56x64xf32>
    %66 = tpu.matmul %65, %64, %cst_37 {dimension_numbers = #tpu.dot_dimension_numbers<[1], [0], [0], [1], [0, 0, 1, 1], [], []>} : vector<56x32xbf16>, vector<32x64xbf16>, vector<56x64xf32> -> vector<56x64xf32>
    %67 = vector.extract_strided_slice %66 {offsets = [0, 0], sizes = [56, 32], strides = [1, 1]} : vector<56x64xf32> to vector<56x32xf32>
    %c0_38 = arith.constant 0 : index
    %c0_39 = arith.constant 0 : index
    %c0_40 = arith.constant 0 : index
    %c0_41 = arith.constant 0 : index
    %68 = vector.load %arg8[%c0_38, %c0_39, %c0_40, %c0_41] : memref<2x2x1x32xf32, #tpu.memory_space<vmem>>, vector<1x1x1x32xf32>
    %69 = vector.shape_cast %68 : vector<1x1x1x32xf32> to vector<1x32xf32>
    %70 = vector.broadcast %69 : vector<1x32xf32> to vector<56x32xf32>
    %71 = arith.addf %67, %70 : vector<56x32xf32>
    %cst_42 = arith.constant 2.000000e+01 : f32
    %72 = vector.broadcast %cst_42 : f32 to vector<56x32xf32>
    %73 = arith.cmpf ogt, %71, %72 : vector<56x32xf32>
    %cst_43 = arith.constant 2.000000e+01 : f32
    %74 = vector.broadcast %cst_43 : f32 to vector<56x32xf32>
    %75 = arith.minimumf %71, %74 : vector<56x32xf32>
    %76 = math.exp %75 : vector<56x32xf32>
    %cst_44 = arith.constant 1.000000e+00 : f32
    %77 = vector.broadcast %cst_44 : f32 to vector<56x32xf32>
    %78 = arith.addf %77, %76 : vector<56x32xf32>
    %79 = math.log %78 : vector<56x32xf32>
    %80 = arith.select %73, %71, %79 : vector<56x32xi1>, vector<56x32xf32>
    %81 = vector.extract_strided_slice %66 {offsets = [0, 32], sizes = [56, 16], strides = [1, 1]} : vector<56x64xf32> to vector<56x16xf32>
    %82 = vector.extract_strided_slice %66 {offsets = [0, 48], sizes = [56, 16], strides = [1, 1]} : vector<56x64xf32> to vector<56x16xf32>
    %c0_45 = arith.constant 0 : index
    %c0_46 = arith.constant 0 : index
    %c0_47 = arith.constant 0 : index
    %c0_48 = arith.constant 0 : index
    %83 = vector.load %arg9[%c0_45, %c0_46, %c0_47, %c0_48] : memref<2x2x32x512xf32, #tpu.memory_space<vmem>>, vector<1x1x32x512xf32>
    %84 = vector.shape_cast %83 : vector<1x1x32x512xf32> to vector<32x512xf32>
    %cst_49 = arith.constant dense<0.000000e+00> : vector<56x512xf32>
    %85 = tpu.matmul %80, %84, %cst_49 {dimension_numbers = #tpu.dot_dimension_numbers<[1], [0], [0], [1], [0, 0, 1, 1], [], []>} : vector<56x32xf32>, vector<32x512xf32>, vector<56x512xf32> -> vector<56x512xf32>
    %86 = math.exp %85 : vector<56x512xf32>
    %87 = arith.mulf %80, %62 : vector<56x32xf32>
    %cst_50 = arith.constant dense<0.000000e+00> : vector<56x512xf32>
    %88 = tpu.matmul %87, %32, %cst_50 {dimension_numbers = #tpu.dot_dimension_numbers<[1], [0], [0], [1], [0, 0, 1, 1], [], []>} : vector<56x32xf32>, vector<32x512xf32>, vector<56x512xf32> -> vector<56x512xf32>
    %cst_51 = arith.constant dense<0.000000e+00> : vector<56x512xf32>
    %89 = tpu.matmul %81, %33, %cst_51 {dimension_numbers = #tpu.dot_dimension_numbers<[1], [0], [0], [1], [0, 0, 1, 1], [], []>} : vector<56x16xf32>, vector<16x512xf32>, vector<56x512xf32> -> vector<56x512xf32>
    %90 = arith.mulf %88, %89 : vector<56x512xf32>
    %cst_52 = arith.constant dense<0.000000e+00> : vector<56x512xf32>
    %91 = tpu.matmul %82, %33, %cst_52 {dimension_numbers = #tpu.dot_dimension_numbers<[1], [0], [0], [1], [0, 0, 1, 1], [], []>} : vector<56x16xf32>, vector<16x512xf32>, vector<56x512xf32> -> vector<56x512xf32>
    %92 = vector.extract_strided_slice %38 {offsets = [0, 64], sizes = [56, 32], strides = [1, 1]} : vector<56x128xf32> to vector<56x32xf32>
    %93 = vector.extract_strided_slice %38 {offsets = [0, 96], sizes = [56, 32], strides = [1, 1]} : vector<56x128xf32> to vector<56x32xf32>
    %c0_53 = arith.constant 0 : index
    %c1 = arith.constant 1 : index
    %c0_54 = arith.constant 0 : index
    %c0_55 = arith.constant 0 : index
    %94 = vector.load %arg5[%c0_53, %c1, %c0_54, %c0_55] : memref<2x2x2x32xf32, #tpu.memory_space<vmem>>, vector<1x1x2x32xf32>
    %95 = vector.shape_cast %94 : vector<1x1x2x32xf32> to vector<2x32xf32>
    %96 = vector.extract_strided_slice %95 {offsets = [1, 0], sizes = [1, 32], strides = [1, 1]} : vector<2x32xf32> to vector<1x32xf32>
    %97 = vector.broadcast %96 : vector<1x32xf32> to vector<56x32xf32>
    %98 = arith.mulf %92, %97 : vector<56x32xf32>
    %cst_56 = arith.constant 0.000000e+00 : f32
    %99 = vector.broadcast %cst_56 : f32 to vector<8x32xf32>
    %100 = vector.extract_strided_slice %92 {offsets = [8, 0], sizes = [48, 32], strides = [1, 1]} : vector<56x32xf32> to vector<48x32xf32>
    %101 = tpu.concatenate %100, %99 in 0 : vector<48x32xf32>, vector<8x32xf32> -> vector<56x32xf32>
    %102 = vector.extract_strided_slice %95 {offsets = [0, 0], sizes = [1, 32], strides = [1, 1]} : vector<2x32xf32> to vector<1x32xf32>
    %103 = vector.broadcast %102 : vector<1x32xf32> to vector<56x32xf32>
    %104 = arith.mulf %101, %103 : vector<56x32xf32>
    %105 = arith.addf %98, %104 : vector<56x32xf32>
    %c0_57 = arith.constant 0 : index
    %c1_58 = arith.constant 1 : index
    %c0_59 = arith.constant 0 : index
    %c0_60 = arith.constant 0 : index
    %106 = vector.load %arg6[%c0_57, %c1_58, %c0_59, %c0_60] : memref<2x2x1x32xf32, #tpu.memory_space<vmem>>, vector<1x1x1x32xf32>
    %107 = vector.shape_cast %106 : vector<1x1x1x32xf32> to vector<1x32xf32>
    %108 = vector.broadcast %107 : vector<1x32xf32> to vector<56x32xf32>
    %109 = arith.addf %105, %108 : vector<56x32xf32>
    %110 = arith.negf %109 : vector<56x32xf32>
    %111 = math.exp %110 : vector<56x32xf32>
    %cst_61 = arith.constant 1.000000e+00 : f32
    %112 = vector.broadcast %cst_61 : f32 to vector<56x32xf32>
    %113 = arith.addf %112, %111 : vector<56x32xf32>
    %114 = arith.divf %112, %113 : vector<56x32xf32>
    %115 = arith.mulf %109, %114 : vector<56x32xf32>
    %c0_62 = arith.constant 0 : index
    %c1_63 = arith.constant 1 : index
    %c0_64 = arith.constant 0 : index
    %c0_65 = arith.constant 0 : index
    %116 = vector.load %arg7[%c0_62, %c1_63, %c0_64, %c0_65] : memref<2x2x32x64xbf16, #tpu.memory_space<vmem>>, vector<1x1x32x64xbf16>
    %117 = vector.shape_cast %116 : vector<1x1x32x64xbf16> to vector<32x64xbf16>
    %118 = arith.truncf %115 : vector<56x32xf32> to vector<56x32xbf16>
    %cst_66 = arith.constant dense<0.000000e+00> : vector<56x64xf32>
    %119 = tpu.matmul %118, %117, %cst_66 {dimension_numbers = #tpu.dot_dimension_numbers<[1], [0], [0], [1], [0, 0, 1, 1], [], []>} : vector<56x32xbf16>, vector<32x64xbf16>, vector<56x64xf32> -> vector<56x64xf32>
    %120 = vector.extract_strided_slice %119 {offsets = [0, 0], sizes = [56, 32], strides = [1, 1]} : vector<56x64xf32> to vector<56x32xf32>
    %c0_67 = arith.constant 0 : index
    %c1_68 = arith.constant 1 : index
    %c0_69 = arith.constant 0 : index
    %c0_70 = arith.constant 0 : index
    %121 = vector.load %arg8[%c0_67, %c1_68, %c0_69, %c0_70] : memref<2x2x1x32xf32, #tpu.memory_space<vmem>>, vector<1x1x1x32xf32>
    %122 = vector.shape_cast %121 : vector<1x1x1x32xf32> to vector<1x32xf32>
    %123 = vector.broadcast %122 : vector<1x32xf32> to vector<56x32xf32>
    %124 = arith.addf %120, %123 : vector<56x32xf32>
    %cst_71 = arith.constant 2.000000e+01 : f32
    %125 = vector.broadcast %cst_71 : f32 to vector<56x32xf32>
    %126 = arith.cmpf ogt, %124, %125 : vector<56x32xf32>
    %cst_72 = arith.constant 2.000000e+01 : f32
    %127 = vector.broadcast %cst_72 : f32 to vector<56x32xf32>
    %128 = arith.minimumf %124, %127 : vector<56x32xf32>
    %129 = math.exp %128 : vector<56x32xf32>
    %cst_73 = arith.constant 1.000000e+00 : f32
    %130 = vector.broadcast %cst_73 : f32 to vector<56x32xf32>
    %131 = arith.addf %130, %129 : vector<56x32xf32>
    %132 = math.log %131 : vector<56x32xf32>
    %133 = arith.select %126, %124, %132 : vector<56x32xi1>, vector<56x32xf32>
    %134 = vector.extract_strided_slice %119 {offsets = [0, 32], sizes = [56, 16], strides = [1, 1]} : vector<56x64xf32> to vector<56x16xf32>
    %135 = vector.extract_strided_slice %119 {offsets = [0, 48], sizes = [56, 16], strides = [1, 1]} : vector<56x64xf32> to vector<56x16xf32>
    %c0_74 = arith.constant 0 : index
    %c1_75 = arith.constant 1 : index
    %c0_76 = arith.constant 0 : index
    %c0_77 = arith.constant 0 : index
    %136 = vector.load %arg9[%c0_74, %c1_75, %c0_76, %c0_77] : memref<2x2x32x512xf32, #tpu.memory_space<vmem>>, vector<1x1x32x512xf32>
    %137 = vector.shape_cast %136 : vector<1x1x32x512xf32> to vector<32x512xf32>
    %cst_78 = arith.constant dense<0.000000e+00> : vector<56x512xf32>
    %138 = tpu.matmul %133, %137, %cst_78 {dimension_numbers = #tpu.dot_dimension_numbers<[1], [0], [0], [1], [0, 0, 1, 1], [], []>} : vector<56x32xf32>, vector<32x512xf32>, vector<56x512xf32> -> vector<56x512xf32>
    %139 = math.exp %138 : vector<56x512xf32>
    %140 = arith.mulf %133, %115 : vector<56x32xf32>
    %cst_79 = arith.constant dense<0.000000e+00> : vector<56x512xf32>
    %141 = tpu.matmul %140, %32, %cst_79 {dimension_numbers = #tpu.dot_dimension_numbers<[1], [0], [0], [1], [0, 0, 1, 1], [], []>} : vector<56x32xf32>, vector<32x512xf32>, vector<56x512xf32> -> vector<56x512xf32>
    %cst_80 = arith.constant dense<0.000000e+00> : vector<56x512xf32>
    %142 = tpu.matmul %134, %33, %cst_80 {dimension_numbers = #tpu.dot_dimension_numbers<[1], [0], [0], [1], [0, 0, 1, 1], [], []>} : vector<56x16xf32>, vector<16x512xf32>, vector<56x512xf32> -> vector<56x512xf32>
    %143 = arith.mulf %141, %142 : vector<56x512xf32>
    %cst_81 = arith.constant dense<0.000000e+00> : vector<56x512xf32>
    %144 = tpu.matmul %135, %33, %cst_81 {dimension_numbers = #tpu.dot_dimension_numbers<[1], [0], [0], [1], [0, 0, 1, 1], [], []>} : vector<56x16xf32>, vector<16x512xf32>, vector<56x512xf32> -> vector<56x512xf32>
    %cst_82 = arith.constant 0.000000e+00 : f32
    %145 = vector.broadcast %cst_82 : f32 to vector<8x512xf32>
    %cst_83 = arith.constant 0.000000e+00 : f32
    %146 = vector.broadcast %cst_83 : f32 to vector<8x512xf32>
    %147 = vector.extract_strided_slice %86 {offsets = [0, 0], sizes = [8, 512], strides = [1, 1]} : vector<56x512xf32> to vector<8x512xf32>
    %148 = arith.mulf %147, %145 : vector<8x512xf32>
    %149 = vector.extract_strided_slice %90 {offsets = [0, 0], sizes = [8, 512], strides = [1, 1]} : vector<56x512xf32> to vector<8x512xf32>
    %150 = arith.addf %148, %149 : vector<8x512xf32>
    %151 = vector.extract_strided_slice %139 {offsets = [48, 0], sizes = [8, 512], strides = [1, 1]} : vector<56x512xf32> to vector<8x512xf32>
    %152 = arith.mulf %151, %146 : vector<8x512xf32>
    %153 = vector.extract_strided_slice %143 {offsets = [48, 0], sizes = [8, 512], strides = [1, 1]} : vector<56x512xf32> to vector<8x512xf32>
    %154 = arith.addf %152, %153 : vector<8x512xf32>
    %155 = vector.extract_strided_slice %86 {offsets = [8, 0], sizes = [8, 512], strides = [1, 1]} : vector<56x512xf32> to vector<8x512xf32>
    %156 = arith.mulf %155, %150 : vector<8x512xf32>
    %157 = vector.extract_strided_slice %90 {offsets = [8, 0], sizes = [8, 512], strides = [1, 1]} : vector<56x512xf32> to vector<8x512xf32>
    %158 = arith.addf %156, %157 : vector<8x512xf32>
    %159 = vector.extract_strided_slice %139 {offsets = [40, 0], sizes = [8, 512], strides = [1, 1]} : vector<56x512xf32> to vector<8x512xf32>
    %160 = arith.mulf %159, %154 : vector<8x512xf32>
    %161 = vector.extract_strided_slice %143 {offsets = [40, 0], sizes = [8, 512], strides = [1, 1]} : vector<56x512xf32> to vector<8x512xf32>
    %162 = arith.addf %160, %161 : vector<8x512xf32>
    %163 = vector.extract_strided_slice %86 {offsets = [16, 0], sizes = [8, 512], strides = [1, 1]} : vector<56x512xf32> to vector<8x512xf32>
    %164 = arith.mulf %163, %158 : vector<8x512xf32>
    %165 = vector.extract_strided_slice %90 {offsets = [16, 0], sizes = [8, 512], strides = [1, 1]} : vector<56x512xf32> to vector<8x512xf32>
    %166 = arith.addf %164, %165 : vector<8x512xf32>
    %167 = vector.extract_strided_slice %139 {offsets = [32, 0], sizes = [8, 512], strides = [1, 1]} : vector<56x512xf32> to vector<8x512xf32>
    %168 = arith.mulf %167, %162 : vector<8x512xf32>
    %169 = vector.extract_strided_slice %143 {offsets = [32, 0], sizes = [8, 512], strides = [1, 1]} : vector<56x512xf32> to vector<8x512xf32>
    %170 = arith.addf %168, %169 : vector<8x512xf32>
    %171 = vector.extract_strided_slice %86 {offsets = [24, 0], sizes = [8, 512], strides = [1, 1]} : vector<56x512xf32> to vector<8x512xf32>
    %172 = arith.mulf %171, %166 : vector<8x512xf32>
    %173 = vector.extract_strided_slice %90 {offsets = [24, 0], sizes = [8, 512], strides = [1, 1]} : vector<56x512xf32> to vector<8x512xf32>
    %174 = arith.addf %172, %173 : vector<8x512xf32>
    %175 = vector.extract_strided_slice %139 {offsets = [24, 0], sizes = [8, 512], strides = [1, 1]} : vector<56x512xf32> to vector<8x512xf32>
    %176 = arith.mulf %175, %170 : vector<8x512xf32>
    %177 = vector.extract_strided_slice %143 {offsets = [24, 0], sizes = [8, 512], strides = [1, 1]} : vector<56x512xf32> to vector<8x512xf32>
    %178 = arith.addf %176, %177 : vector<8x512xf32>
    %179 = vector.extract_strided_slice %86 {offsets = [32, 0], sizes = [8, 512], strides = [1, 1]} : vector<56x512xf32> to vector<8x512xf32>
    %180 = arith.mulf %179, %174 : vector<8x512xf32>
    %181 = vector.extract_strided_slice %90 {offsets = [32, 0], sizes = [8, 512], strides = [1, 1]} : vector<56x512xf32> to vector<8x512xf32>
    %182 = arith.addf %180, %181 : vector<8x512xf32>
    %183 = vector.extract_strided_slice %139 {offsets = [16, 0], sizes = [8, 512], strides = [1, 1]} : vector<56x512xf32> to vector<8x512xf32>
    %184 = arith.mulf %183, %178 : vector<8x512xf32>
    %185 = vector.extract_strided_slice %143 {offsets = [16, 0], sizes = [8, 512], strides = [1, 1]} : vector<56x512xf32> to vector<8x512xf32>
    %186 = arith.addf %184, %185 : vector<8x512xf32>
    %187 = vector.extract_strided_slice %86 {offsets = [40, 0], sizes = [8, 512], strides = [1, 1]} : vector<56x512xf32> to vector<8x512xf32>
    %188 = arith.mulf %187, %182 : vector<8x512xf32>
    %189 = vector.extract_strided_slice %90 {offsets = [40, 0], sizes = [8, 512], strides = [1, 1]} : vector<56x512xf32> to vector<8x512xf32>
    %190 = arith.addf %188, %189 : vector<8x512xf32>
    %191 = vector.extract_strided_slice %139 {offsets = [8, 0], sizes = [8, 512], strides = [1, 1]} : vector<56x512xf32> to vector<8x512xf32>
    %192 = arith.mulf %191, %186 : vector<8x512xf32>
    %193 = vector.extract_strided_slice %143 {offsets = [8, 0], sizes = [8, 512], strides = [1, 1]} : vector<56x512xf32> to vector<8x512xf32>
    %194 = arith.addf %192, %193 : vector<8x512xf32>
    %195 = vector.extract_strided_slice %86 {offsets = [48, 0], sizes = [8, 512], strides = [1, 1]} : vector<56x512xf32> to vector<8x512xf32>
    %196 = arith.mulf %195, %190 : vector<8x512xf32>
    %197 = vector.extract_strided_slice %90 {offsets = [48, 0], sizes = [8, 512], strides = [1, 1]} : vector<56x512xf32> to vector<8x512xf32>
    %198 = arith.addf %196, %197 : vector<8x512xf32>
    %199 = vector.extract_strided_slice %139 {offsets = [0, 0], sizes = [8, 512], strides = [1, 1]} : vector<56x512xf32> to vector<8x512xf32>
    %200 = arith.mulf %199, %194 : vector<8x512xf32>
    %201 = vector.extract_strided_slice %143 {offsets = [0, 0], sizes = [8, 512], strides = [1, 1]} : vector<56x512xf32> to vector<8x512xf32>
    %202 = arith.addf %200, %201 : vector<8x512xf32>
    %203 = tpu.concatenate %150, %158, %166, %174, %182, %190, %198 in 0 : vector<8x512xf32>, vector<8x512xf32>, vector<8x512xf32>, vector<8x512xf32>, vector<8x512xf32>, vector<8x512xf32>, vector<8x512xf32> -> vector<56x512xf32>
    %204 = tpu.concatenate %202, %194, %186, %178, %170, %162, %154 in 0 : vector<8x512xf32>, vector<8x512xf32>, vector<8x512xf32>, vector<8x512xf32>, vector<8x512xf32>, vector<8x512xf32>, vector<8x512xf32> -> vector<56x512xf32>
    %205 = arith.mulf %203, %91 : vector<56x512xf32>
    %cst_84 = arith.constant dense<0.000000e+00> : vector<56x32xf32>
    %206 = tpu.matmul %205, %34, %cst_84 {dimension_numbers = #tpu.dot_dimension_numbers<[1], [0], [0], [1], [0, 0, 1, 1], [], []>} : vector<56x512xf32>, vector<512x32xf32>, vector<56x32xf32> -> vector<56x32xf32>
    %207 = arith.mulf %204, %144 : vector<56x512xf32>
    %cst_85 = arith.constant dense<0.000000e+00> : vector<56x32xf32>
    %208 = tpu.matmul %207, %34, %cst_85 {dimension_numbers = #tpu.dot_dimension_numbers<[1], [0], [0], [1], [0, 0, 1, 1], [], []>} : vector<56x512xf32>, vector<512x32xf32>, vector<56x32xf32> -> vector<56x32xf32>
    %c0_86 = arith.constant 0 : index
    %c0_87 = arith.constant 0 : index
    %c0_88 = arith.constant 0 : index
    %c0_89 = arith.constant 0 : index
    %209 = vector.load %arg13[%c0_86, %c0_87, %c0_88, %c0_89] : memref<2x2x1x32xf32, #tpu.memory_space<vmem>>, vector<1x1x1x32xf32>
    %210 = vector.shape_cast %209 : vector<1x1x1x32xf32> to vector<1x32xf32>
    %211 = vector.broadcast %210 : vector<1x32xf32> to vector<56x32xf32>
    %212 = arith.mulf %62, %211 : vector<56x32xf32>
    %213 = arith.addf %206, %212 : vector<56x32xf32>
    %214 = arith.negf %40 : vector<56x32xf32>
    %215 = math.exp %214 : vector<56x32xf32>
    %cst_90 = arith.constant 1.000000e+00 : f32
    %216 = vector.broadcast %cst_90 : f32 to vector<56x32xf32>
    %217 = arith.addf %216, %215 : vector<56x32xf32>
    %218 = arith.divf %216, %217 : vector<56x32xf32>
    %219 = arith.mulf %40, %218 : vector<56x32xf32>
    %220 = arith.mulf %213, %219 : vector<56x32xf32>
    %c0_91 = arith.constant 0 : index
    %c1_92 = arith.constant 1 : index
    %c0_93 = arith.constant 0 : index
    %c0_94 = arith.constant 0 : index
    %221 = vector.load %arg13[%c0_91, %c1_92, %c0_93, %c0_94] : memref<2x2x1x32xf32, #tpu.memory_space<vmem>>, vector<1x1x1x32xf32>
    %222 = vector.shape_cast %221 : vector<1x1x1x32xf32> to vector<1x32xf32>
    %223 = vector.broadcast %222 : vector<1x32xf32> to vector<56x32xf32>
    %224 = arith.mulf %115, %223 : vector<56x32xf32>
    %225 = arith.addf %208, %224 : vector<56x32xf32>
    %226 = arith.negf %93 : vector<56x32xf32>
    %227 = math.exp %226 : vector<56x32xf32>
    %cst_95 = arith.constant 1.000000e+00 : f32
    %228 = vector.broadcast %cst_95 : f32 to vector<56x32xf32>
    %229 = arith.addf %228, %227 : vector<56x32xf32>
    %230 = arith.divf %228, %229 : vector<56x32xf32>
    %231 = arith.mulf %93, %230 : vector<56x32xf32>
    %232 = arith.mulf %225, %231 : vector<56x32xf32>
    %233 = tpu.concatenate %220, %232 in 1 : vector<56x32xf32>, vector<56x32xf32> -> vector<56x64xf32>
    %c0_96 = arith.constant 0 : index
    %c0_97 = arith.constant 0 : index
    %c0_98 = arith.constant 0 : index
    %234 = vector.load %arg14[%c0_96, %c0_97, %c0_98] : memref<2x64x32xbf16, #tpu.memory_space<vmem>>, vector<1x64x32xbf16>
    %235 = vector.shape_cast %234 : vector<1x64x32xbf16> to vector<64x32xbf16>
    %236 = arith.truncf %233 : vector<56x64xf32> to vector<56x64xbf16>
    %cst_99 = arith.constant dense<0.000000e+00> : vector<56x32xf32>
    %237 = tpu.matmul %236, %235, %cst_99 {dimension_numbers = #tpu.dot_dimension_numbers<[1], [0], [0], [1], [0, 0, 1, 1], [], []>} : vector<56x64xbf16>, vector<64x32xbf16>, vector<56x32xf32> -> vector<56x32xf32>
    %238 = arith.addf %31, %237 : vector<56x32xf32>
    %c0_100 = arith.constant 0 : index
    %c0_101 = arith.constant 0 : index
    %c0_102 = arith.constant 0 : index
    %239 = vector.load %arg19[%c0_100, %c0_101, %c0_102] : memref<2x1x32xf32, #tpu.memory_space<vmem>>, vector<1x1x32xf32>
    %240 = vector.shape_cast %239 : vector<1x1x32xf32> to vector<1x32xf32>
    %c0_103 = arith.constant 0 : index
    %c0_104 = arith.constant 0 : index
    %c0_105 = arith.constant 0 : index
    %241 = vector.load %arg20[%c0_103, %c0_104, %c0_105] : memref<2x1x32xf32, #tpu.memory_space<vmem>>, vector<1x1x32xf32>
    %242 = vector.shape_cast %241 : vector<1x1x32xf32> to vector<1x32xf32>
    %cst_106 = arith.constant dense<0.000000e+00> : vector<56xf32>
    %243 = vector.multi_reduction <add>, %238, %cst_106 [1] : vector<56x32xf32> to vector<56xf32>
    %244 = vector.shape_cast %243 : vector<56xf32> to vector<56x1xf32>
    %cst_107 = arith.constant 3.200000e+01 : f32
    %245 = vector.broadcast %cst_107 : f32 to vector<56x1xf32>
    %246 = arith.divf %244, %245 : vector<56x1xf32>
    %247 = vector.broadcast %246 : vector<56x1xf32> to vector<56x32xf32>
    %248 = arith.subf %238, %247 : vector<56x32xf32>
    %249 = arith.mulf %248, %248 : vector<56x32xf32>
    %cst_108 = arith.constant dense<0.000000e+00> : vector<56xf32>
    %250 = vector.multi_reduction <add>, %249, %cst_108 [1] : vector<56x32xf32> to vector<56xf32>
    %251 = vector.shape_cast %250 : vector<56xf32> to vector<56x1xf32>
    %cst_109 = arith.constant 3.200000e+01 : f32
    %252 = vector.broadcast %cst_109 : f32 to vector<56x1xf32>
    %253 = arith.divf %251, %252 : vector<56x1xf32>
    %cst_110 = arith.constant 9.99999974E-6 : f32
    %254 = vector.broadcast %cst_110 : f32 to vector<56x1xf32>
    %255 = arith.addf %253, %254 : vector<56x1xf32>
    %256 = math.sqrt %255 : vector<56x1xf32>
    %257 = vector.broadcast %256 : vector<56x1xf32> to vector<56x32xf32>
    %258 = arith.divf %248, %257 : vector<56x32xf32>
    %259 = vector.broadcast %240 : vector<1x32xf32> to vector<56x32xf32>
    %260 = arith.mulf %258, %259 : vector<56x32xf32>
    %261 = vector.broadcast %242 : vector<1x32xf32> to vector<56x32xf32>
    %262 = arith.addf %260, %261 : vector<56x32xf32>
    %c0_111 = arith.constant 0 : index
    %c0_112 = arith.constant 0 : index
    %c0_113 = arith.constant 0 : index
    %263 = vector.load %arg15[%c0_111, %c0_112, %c0_113] : memref<2x32x32xbf16, #tpu.memory_space<vmem>>, vector<1x32x32xbf16>
    %264 = vector.shape_cast %263 : vector<1x32x32xbf16> to vector<32x32xbf16>
    %265 = arith.truncf %262 : vector<56x32xf32> to vector<56x32xbf16>
    %cst_114 = arith.constant dense<0.000000e+00> : vector<56x32xf32>
    %266 = tpu.matmul %265, %264, %cst_114 {dimension_numbers = #tpu.dot_dimension_numbers<[1], [0], [0], [1], [0, 0, 1, 1], [], []>} : vector<56x32xbf16>, vector<32x32xbf16>, vector<56x32xf32> -> vector<56x32xf32>
    %c0_115 = arith.constant 0 : index
    %c0_116 = arith.constant 0 : index
    %c0_117 = arith.constant 0 : index
    %267 = vector.load %arg16[%c0_115, %c0_116, %c0_117] : memref<2x1x32xf32, #tpu.memory_space<vmem>>, vector<1x1x32xf32>
    %268 = vector.shape_cast %267 : vector<1x1x32xf32> to vector<1x32xf32>
    %269 = vector.broadcast %268 : vector<1x32xf32> to vector<56x32xf32>
    %270 = arith.addf %266, %269 : vector<56x32xf32>
    %cst_118 = arith.constant 0.000000e+00 : f32
    %271 = vector.broadcast %cst_118 : f32 to vector<56x32xf32>
    %272 = arith.maximumf %270, %271 : vector<56x32xf32>
    %c0_119 = arith.constant 0 : index
    %c0_120 = arith.constant 0 : index
    %c0_121 = arith.constant 0 : index
    %273 = vector.load %arg17[%c0_119, %c0_120, %c0_121] : memref<2x32x32xbf16, #tpu.memory_space<vmem>>, vector<1x32x32xbf16>
    %274 = vector.shape_cast %273 : vector<1x32x32xbf16> to vector<32x32xbf16>
    %275 = arith.truncf %272 : vector<56x32xf32> to vector<56x32xbf16>
    %cst_122 = arith.constant dense<0.000000e+00> : vector<56x32xf32>
    %276 = tpu.matmul %275, %274, %cst_122 {dimension_numbers = #tpu.dot_dimension_numbers<[1], [0], [0], [1], [0, 0, 1, 1], [], []>} : vector<56x32xbf16>, vector<32x32xbf16>, vector<56x32xf32> -> vector<56x32xf32>
    %c0_123 = arith.constant 0 : index
    %c0_124 = arith.constant 0 : index
    %c0_125 = arith.constant 0 : index
    %277 = vector.load %arg18[%c0_123, %c0_124, %c0_125] : memref<2x1x32xf32, #tpu.memory_space<vmem>>, vector<1x1x32xf32>
    %278 = vector.shape_cast %277 : vector<1x1x32xf32> to vector<1x32xf32>
    %279 = vector.broadcast %278 : vector<1x32xf32> to vector<56x32xf32>
    %280 = arith.addf %276, %279 : vector<56x32xf32>
    %281 = arith.addf %262, %280 : vector<56x32xf32>
    %c0_126 = arith.constant 0 : index
    %c0_127 = arith.constant 0 : index
    %c0_128 = arith.constant 0 : index
    %282 = vector.load %arg21[%c0_126, %c0_127, %c0_128] : memref<2x1x32xf32, #tpu.memory_space<vmem>>, vector<1x1x32xf32>
    %283 = vector.shape_cast %282 : vector<1x1x32xf32> to vector<1x32xf32>
    %c0_129 = arith.constant 0 : index
    %c0_130 = arith.constant 0 : index
    %c0_131 = arith.constant 0 : index
    %284 = vector.load %arg22[%c0_129, %c0_130, %c0_131] : memref<2x1x32xf32, #tpu.memory_space<vmem>>, vector<1x1x32xf32>
    %285 = vector.shape_cast %284 : vector<1x1x32xf32> to vector<1x32xf32>
    %cst_132 = arith.constant dense<0.000000e+00> : vector<56xf32>
    %286 = vector.multi_reduction <add>, %281, %cst_132 [1] : vector<56x32xf32> to vector<56xf32>
    %287 = vector.shape_cast %286 : vector<56xf32> to vector<56x1xf32>
    %cst_133 = arith.constant 3.200000e+01 : f32
    %288 = vector.broadcast %cst_133 : f32 to vector<56x1xf32>
    %289 = arith.divf %287, %288 : vector<56x1xf32>
    %290 = vector.broadcast %289 : vector<56x1xf32> to vector<56x32xf32>
    %291 = arith.subf %281, %290 : vector<56x32xf32>
    %292 = arith.mulf %291, %291 : vector<56x32xf32>
    %cst_134 = arith.constant dense<0.000000e+00> : vector<56xf32>
    %293 = vector.multi_reduction <add>, %292, %cst_134 [1] : vector<56x32xf32> to vector<56xf32>
    %294 = vector.shape_cast %293 : vector<56xf32> to vector<56x1xf32>
    %cst_135 = arith.constant 3.200000e+01 : f32
    %295 = vector.broadcast %cst_135 : f32 to vector<56x1xf32>
    %296 = arith.divf %294, %295 : vector<56x1xf32>
    %cst_136 = arith.constant 9.99999974E-6 : f32
    %297 = vector.broadcast %cst_136 : f32 to vector<56x1xf32>
    %298 = arith.addf %296, %297 : vector<56x1xf32>
    %299 = math.sqrt %298 : vector<56x1xf32>
    %300 = vector.broadcast %299 : vector<56x1xf32> to vector<56x32xf32>
    %301 = arith.divf %291, %300 : vector<56x32xf32>
    %302 = vector.broadcast %283 : vector<1x32xf32> to vector<56x32xf32>
    %303 = arith.mulf %301, %302 : vector<56x32xf32>
    %304 = vector.broadcast %285 : vector<1x32xf32> to vector<56x32xf32>
    %305 = arith.addf %303, %304 : vector<56x32xf32>
    %c1_137 = arith.constant 1 : index
    %c0_138 = arith.constant 0 : index
    %c0_139 = arith.constant 0 : index
    %306 = vector.load %arg4[%c1_137, %c0_138, %c0_139] : memref<2x32x128xbf16, #tpu.memory_space<vmem>>, vector<1x32x128xbf16>
    %307 = vector.shape_cast %306 : vector<1x32x128xbf16> to vector<32x128xbf16>
    %308 = arith.truncf %305 : vector<56x32xf32> to vector<56x32xbf16>
    %cst_140 = arith.constant dense<0.000000e+00> : vector<56x128xf32>
    %309 = tpu.matmul %308, %307, %cst_140 {dimension_numbers = #tpu.dot_dimension_numbers<[1], [0], [0], [1], [0, 0, 1, 1], [], []>} : vector<56x32xbf16>, vector<32x128xbf16>, vector<56x128xf32> -> vector<56x128xf32>
    %310 = vector.extract_strided_slice %309 {offsets = [0, 0], sizes = [56, 32], strides = [1, 1]} : vector<56x128xf32> to vector<56x32xf32>
    %311 = vector.extract_strided_slice %309 {offsets = [0, 32], sizes = [56, 32], strides = [1, 1]} : vector<56x128xf32> to vector<56x32xf32>
    %c1_141 = arith.constant 1 : index
    %c0_142 = arith.constant 0 : index
    %c0_143 = arith.constant 0 : index
    %c0_144 = arith.constant 0 : index
    %312 = vector.load %arg5[%c1_141, %c0_142, %c0_143, %c0_144] : memref<2x2x2x32xf32, #tpu.memory_space<vmem>>, vector<1x1x2x32xf32>
    %313 = vector.shape_cast %312 : vector<1x1x2x32xf32> to vector<2x32xf32>
    %314 = vector.extract_strided_slice %313 {offsets = [1, 0], sizes = [1, 32], strides = [1, 1]} : vector<2x32xf32> to vector<1x32xf32>
    %315 = vector.broadcast %314 : vector<1x32xf32> to vector<56x32xf32>
    %316 = arith.mulf %310, %315 : vector<56x32xf32>
    %cst_145 = arith.constant 0.000000e+00 : f32
    %317 = vector.broadcast %cst_145 : f32 to vector<8x32xf32>
    %318 = vector.extract_strided_slice %310 {offsets = [0, 0], sizes = [48, 32], strides = [1, 1]} : vector<56x32xf32> to vector<48x32xf32>
    %319 = tpu.concatenate %317, %318 in 0 : vector<8x32xf32>, vector<48x32xf32> -> vector<56x32xf32>
    %320 = vector.extract_strided_slice %313 {offsets = [0, 0], sizes = [1, 32], strides = [1, 1]} : vector<2x32xf32> to vector<1x32xf32>
    %321 = vector.broadcast %320 : vector<1x32xf32> to vector<56x32xf32>
    %322 = arith.mulf %319, %321 : vector<56x32xf32>
    %323 = arith.addf %316, %322 : vector<56x32xf32>
    %c1_146 = arith.constant 1 : index
    %c0_147 = arith.constant 0 : index
    %c0_148 = arith.constant 0 : index
    %c0_149 = arith.constant 0 : index
    %324 = vector.load %arg6[%c1_146, %c0_147, %c0_148, %c0_149] : memref<2x2x1x32xf32, #tpu.memory_space<vmem>>, vector<1x1x1x32xf32>
    %325 = vector.shape_cast %324 : vector<1x1x1x32xf32> to vector<1x32xf32>
    %326 = vector.broadcast %325 : vector<1x32xf32> to vector<56x32xf32>
    %327 = arith.addf %323, %326 : vector<56x32xf32>
    %328 = arith.negf %327 : vector<56x32xf32>
    %329 = math.exp %328 : vector<56x32xf32>
    %cst_150 = arith.constant 1.000000e+00 : f32
    %330 = vector.broadcast %cst_150 : f32 to vector<56x32xf32>
    %331 = arith.addf %330, %329 : vector<56x32xf32>
    %332 = arith.divf %330, %331 : vector<56x32xf32>
    %333 = arith.mulf %327, %332 : vector<56x32xf32>
    %c1_151 = arith.constant 1 : index
    %c0_152 = arith.constant 0 : index
    %c0_153 = arith.constant 0 : index
    %c0_154 = arith.constant 0 : index
    %334 = vector.load %arg7[%c1_151, %c0_152, %c0_153, %c0_154] : memref<2x2x32x64xbf16, #tpu.memory_space<vmem>>, vector<1x1x32x64xbf16>
    %335 = vector.shape_cast %334 : vector<1x1x32x64xbf16> to vector<32x64xbf16>
    %336 = arith.truncf %333 : vector<56x32xf32> to vector<56x32xbf16>
    %cst_155 = arith.constant dense<0.000000e+00> : vector<56x64xf32>
    %337 = tpu.matmul %336, %335, %cst_155 {dimension_numbers = #tpu.dot_dimension_numbers<[1], [0], [0], [1], [0, 0, 1, 1], [], []>} : vector<56x32xbf16>, vector<32x64xbf16>, vector<56x64xf32> -> vector<56x64xf32>
    %338 = vector.extract_strided_slice %337 {offsets = [0, 0], sizes = [56, 32], strides = [1, 1]} : vector<56x64xf32> to vector<56x32xf32>
    %c1_156 = arith.constant 1 : index
    %c0_157 = arith.constant 0 : index
    %c0_158 = arith.constant 0 : index
    %c0_159 = arith.constant 0 : index
    %339 = vector.load %arg8[%c1_156, %c0_157, %c0_158, %c0_159] : memref<2x2x1x32xf32, #tpu.memory_space<vmem>>, vector<1x1x1x32xf32>
    %340 = vector.shape_cast %339 : vector<1x1x1x32xf32> to vector<1x32xf32>
    %341 = vector.broadcast %340 : vector<1x32xf32> to vector<56x32xf32>
    %342 = arith.addf %338, %341 : vector<56x32xf32>
    %cst_160 = arith.constant 2.000000e+01 : f32
    %343 = vector.broadcast %cst_160 : f32 to vector<56x32xf32>
    %344 = arith.cmpf ogt, %342, %343 : vector<56x32xf32>
    %cst_161 = arith.constant 2.000000e+01 : f32
    %345 = vector.broadcast %cst_161 : f32 to vector<56x32xf32>
    %346 = arith.minimumf %342, %345 : vector<56x32xf32>
    %347 = math.exp %346 : vector<56x32xf32>
    %cst_162 = arith.constant 1.000000e+00 : f32
    %348 = vector.broadcast %cst_162 : f32 to vector<56x32xf32>
    %349 = arith.addf %348, %347 : vector<56x32xf32>
    %350 = math.log %349 : vector<56x32xf32>
    %351 = arith.select %344, %342, %350 : vector<56x32xi1>, vector<56x32xf32>
    %352 = vector.extract_strided_slice %337 {offsets = [0, 32], sizes = [56, 16], strides = [1, 1]} : vector<56x64xf32> to vector<56x16xf32>
    %353 = vector.extract_strided_slice %337 {offsets = [0, 48], sizes = [56, 16], strides = [1, 1]} : vector<56x64xf32> to vector<56x16xf32>
    %c1_163 = arith.constant 1 : index
    %c0_164 = arith.constant 0 : index
    %c0_165 = arith.constant 0 : index
    %c0_166 = arith.constant 0 : index
    %354 = vector.load %arg9[%c1_163, %c0_164, %c0_165, %c0_166] : memref<2x2x32x512xf32, #tpu.memory_space<vmem>>, vector<1x1x32x512xf32>
    %355 = vector.shape_cast %354 : vector<1x1x32x512xf32> to vector<32x512xf32>
    %cst_167 = arith.constant dense<0.000000e+00> : vector<56x512xf32>
    %356 = tpu.matmul %351, %355, %cst_167 {dimension_numbers = #tpu.dot_dimension_numbers<[1], [0], [0], [1], [0, 0, 1, 1], [], []>} : vector<56x32xf32>, vector<32x512xf32>, vector<56x512xf32> -> vector<56x512xf32>
    %357 = math.exp %356 : vector<56x512xf32>
    %358 = arith.mulf %351, %333 : vector<56x32xf32>
    %cst_168 = arith.constant dense<0.000000e+00> : vector<56x512xf32>
    %359 = tpu.matmul %358, %32, %cst_168 {dimension_numbers = #tpu.dot_dimension_numbers<[1], [0], [0], [1], [0, 0, 1, 1], [], []>} : vector<56x32xf32>, vector<32x512xf32>, vector<56x512xf32> -> vector<56x512xf32>
    %cst_169 = arith.constant dense<0.000000e+00> : vector<56x512xf32>
    %360 = tpu.matmul %352, %33, %cst_169 {dimension_numbers = #tpu.dot_dimension_numbers<[1], [0], [0], [1], [0, 0, 1, 1], [], []>} : vector<56x16xf32>, vector<16x512xf32>, vector<56x512xf32> -> vector<56x512xf32>
    %361 = arith.mulf %359, %360 : vector<56x512xf32>
    %cst_170 = arith.constant dense<0.000000e+00> : vector<56x512xf32>
    %362 = tpu.matmul %353, %33, %cst_170 {dimension_numbers = #tpu.dot_dimension_numbers<[1], [0], [0], [1], [0, 0, 1, 1], [], []>} : vector<56x16xf32>, vector<16x512xf32>, vector<56x512xf32> -> vector<56x512xf32>
    %363 = vector.extract_strided_slice %309 {offsets = [0, 64], sizes = [56, 32], strides = [1, 1]} : vector<56x128xf32> to vector<56x32xf32>
    %364 = vector.extract_strided_slice %309 {offsets = [0, 96], sizes = [56, 32], strides = [1, 1]} : vector<56x128xf32> to vector<56x32xf32>
    %c1_171 = arith.constant 1 : index
    %c1_172 = arith.constant 1 : index
    %c0_173 = arith.constant 0 : index
    %c0_174 = arith.constant 0 : index
    %365 = vector.load %arg5[%c1_171, %c1_172, %c0_173, %c0_174] : memref<2x2x2x32xf32, #tpu.memory_space<vmem>>, vector<1x1x2x32xf32>
    %366 = vector.shape_cast %365 : vector<1x1x2x32xf32> to vector<2x32xf32>
    %367 = vector.extract_strided_slice %366 {offsets = [1, 0], sizes = [1, 32], strides = [1, 1]} : vector<2x32xf32> to vector<1x32xf32>
    %368 = vector.broadcast %367 : vector<1x32xf32> to vector<56x32xf32>
    %369 = arith.mulf %363, %368 : vector<56x32xf32>
    %cst_175 = arith.constant 0.000000e+00 : f32
    %370 = vector.broadcast %cst_175 : f32 to vector<8x32xf32>
    %371 = vector.extract_strided_slice %363 {offsets = [8, 0], sizes = [48, 32], strides = [1, 1]} : vector<56x32xf32> to vector<48x32xf32>
    %372 = tpu.concatenate %371, %370 in 0 : vector<48x32xf32>, vector<8x32xf32> -> vector<56x32xf32>
    %373 = vector.extract_strided_slice %366 {offsets = [0, 0], sizes = [1, 32], strides = [1, 1]} : vector<2x32xf32> to vector<1x32xf32>
    %374 = vector.broadcast %373 : vector<1x32xf32> to vector<56x32xf32>
    %375 = arith.mulf %372, %374 : vector<56x32xf32>
    %376 = arith.addf %369, %375 : vector<56x32xf32>
    %c1_176 = arith.constant 1 : index
    %c1_177 = arith.constant 1 : index
    %c0_178 = arith.constant 0 : index
    %c0_179 = arith.constant 0 : index
    %377 = vector.load %arg6[%c1_176, %c1_177, %c0_178, %c0_179] : memref<2x2x1x32xf32, #tpu.memory_space<vmem>>, vector<1x1x1x32xf32>
    %378 = vector.shape_cast %377 : vector<1x1x1x32xf32> to vector<1x32xf32>
    %379 = vector.broadcast %378 : vector<1x32xf32> to vector<56x32xf32>
    %380 = arith.addf %376, %379 : vector<56x32xf32>
    %381 = arith.negf %380 : vector<56x32xf32>
    %382 = math.exp %381 : vector<56x32xf32>
    %cst_180 = arith.constant 1.000000e+00 : f32
    %383 = vector.broadcast %cst_180 : f32 to vector<56x32xf32>
    %384 = arith.addf %383, %382 : vector<56x32xf32>
    %385 = arith.divf %383, %384 : vector<56x32xf32>
    %386 = arith.mulf %380, %385 : vector<56x32xf32>
    %c1_181 = arith.constant 1 : index
    %c1_182 = arith.constant 1 : index
    %c0_183 = arith.constant 0 : index
    %c0_184 = arith.constant 0 : index
    %387 = vector.load %arg7[%c1_181, %c1_182, %c0_183, %c0_184] : memref<2x2x32x64xbf16, #tpu.memory_space<vmem>>, vector<1x1x32x64xbf16>
    %388 = vector.shape_cast %387 : vector<1x1x32x64xbf16> to vector<32x64xbf16>
    %389 = arith.truncf %386 : vector<56x32xf32> to vector<56x32xbf16>
    %cst_185 = arith.constant dense<0.000000e+00> : vector<56x64xf32>
    %390 = tpu.matmul %389, %388, %cst_185 {dimension_numbers = #tpu.dot_dimension_numbers<[1], [0], [0], [1], [0, 0, 1, 1], [], []>} : vector<56x32xbf16>, vector<32x64xbf16>, vector<56x64xf32> -> vector<56x64xf32>
    %391 = vector.extract_strided_slice %390 {offsets = [0, 0], sizes = [56, 32], strides = [1, 1]} : vector<56x64xf32> to vector<56x32xf32>
    %c1_186 = arith.constant 1 : index
    %c1_187 = arith.constant 1 : index
    %c0_188 = arith.constant 0 : index
    %c0_189 = arith.constant 0 : index
    %392 = vector.load %arg8[%c1_186, %c1_187, %c0_188, %c0_189] : memref<2x2x1x32xf32, #tpu.memory_space<vmem>>, vector<1x1x1x32xf32>
    %393 = vector.shape_cast %392 : vector<1x1x1x32xf32> to vector<1x32xf32>
    %394 = vector.broadcast %393 : vector<1x32xf32> to vector<56x32xf32>
    %395 = arith.addf %391, %394 : vector<56x32xf32>
    %cst_190 = arith.constant 2.000000e+01 : f32
    %396 = vector.broadcast %cst_190 : f32 to vector<56x32xf32>
    %397 = arith.cmpf ogt, %395, %396 : vector<56x32xf32>
    %cst_191 = arith.constant 2.000000e+01 : f32
    %398 = vector.broadcast %cst_191 : f32 to vector<56x32xf32>
    %399 = arith.minimumf %395, %398 : vector<56x32xf32>
    %400 = math.exp %399 : vector<56x32xf32>
    %cst_192 = arith.constant 1.000000e+00 : f32
    %401 = vector.broadcast %cst_192 : f32 to vector<56x32xf32>
    %402 = arith.addf %401, %400 : vector<56x32xf32>
    %403 = math.log %402 : vector<56x32xf32>
    %404 = arith.select %397, %395, %403 : vector<56x32xi1>, vector<56x32xf32>
    %405 = vector.extract_strided_slice %390 {offsets = [0, 32], sizes = [56, 16], strides = [1, 1]} : vector<56x64xf32> to vector<56x16xf32>
    %406 = vector.extract_strided_slice %390 {offsets = [0, 48], sizes = [56, 16], strides = [1, 1]} : vector<56x64xf32> to vector<56x16xf32>
    %c1_193 = arith.constant 1 : index
    %c1_194 = arith.constant 1 : index
    %c0_195 = arith.constant 0 : index
    %c0_196 = arith.constant 0 : index
    %407 = vector.load %arg9[%c1_193, %c1_194, %c0_195, %c0_196] : memref<2x2x32x512xf32, #tpu.memory_space<vmem>>, vector<1x1x32x512xf32>
    %408 = vector.shape_cast %407 : vector<1x1x32x512xf32> to vector<32x512xf32>
    %cst_197 = arith.constant dense<0.000000e+00> : vector<56x512xf32>
    %409 = tpu.matmul %404, %408, %cst_197 {dimension_numbers = #tpu.dot_dimension_numbers<[1], [0], [0], [1], [0, 0, 1, 1], [], []>} : vector<56x32xf32>, vector<32x512xf32>, vector<56x512xf32> -> vector<56x512xf32>
    %410 = math.exp %409 : vector<56x512xf32>
    %411 = arith.mulf %404, %386 : vector<56x32xf32>
    %cst_198 = arith.constant dense<0.000000e+00> : vector<56x512xf32>
    %412 = tpu.matmul %411, %32, %cst_198 {dimension_numbers = #tpu.dot_dimension_numbers<[1], [0], [0], [1], [0, 0, 1, 1], [], []>} : vector<56x32xf32>, vector<32x512xf32>, vector<56x512xf32> -> vector<56x512xf32>
    %cst_199 = arith.constant dense<0.000000e+00> : vector<56x512xf32>
    %413 = tpu.matmul %405, %33, %cst_199 {dimension_numbers = #tpu.dot_dimension_numbers<[1], [0], [0], [1], [0, 0, 1, 1], [], []>} : vector<56x16xf32>, vector<16x512xf32>, vector<56x512xf32> -> vector<56x512xf32>
    %414 = arith.mulf %412, %413 : vector<56x512xf32>
    %cst_200 = arith.constant dense<0.000000e+00> : vector<56x512xf32>
    %415 = tpu.matmul %406, %33, %cst_200 {dimension_numbers = #tpu.dot_dimension_numbers<[1], [0], [0], [1], [0, 0, 1, 1], [], []>} : vector<56x16xf32>, vector<16x512xf32>, vector<56x512xf32> -> vector<56x512xf32>
    %cst_201 = arith.constant 0.000000e+00 : f32
    %416 = vector.broadcast %cst_201 : f32 to vector<8x512xf32>
    %cst_202 = arith.constant 0.000000e+00 : f32
    %417 = vector.broadcast %cst_202 : f32 to vector<8x512xf32>
    %418 = vector.extract_strided_slice %357 {offsets = [0, 0], sizes = [8, 512], strides = [1, 1]} : vector<56x512xf32> to vector<8x512xf32>
    %419 = arith.mulf %418, %416 : vector<8x512xf32>
    %420 = vector.extract_strided_slice %361 {offsets = [0, 0], sizes = [8, 512], strides = [1, 1]} : vector<56x512xf32> to vector<8x512xf32>
    %421 = arith.addf %419, %420 : vector<8x512xf32>
    %422 = vector.extract_strided_slice %410 {offsets = [48, 0], sizes = [8, 512], strides = [1, 1]} : vector<56x512xf32> to vector<8x512xf32>
    %423 = arith.mulf %422, %417 : vector<8x512xf32>
    %424 = vector.extract_strided_slice %414 {offsets = [48, 0], sizes = [8, 512], strides = [1, 1]} : vector<56x512xf32> to vector<8x512xf32>
    %425 = arith.addf %423, %424 : vector<8x512xf32>
    %426 = vector.extract_strided_slice %357 {offsets = [8, 0], sizes = [8, 512], strides = [1, 1]} : vector<56x512xf32> to vector<8x512xf32>
    %427 = arith.mulf %426, %421 : vector<8x512xf32>
    %428 = vector.extract_strided_slice %361 {offsets = [8, 0], sizes = [8, 512], strides = [1, 1]} : vector<56x512xf32> to vector<8x512xf32>
    %429 = arith.addf %427, %428 : vector<8x512xf32>
    %430 = vector.extract_strided_slice %410 {offsets = [40, 0], sizes = [8, 512], strides = [1, 1]} : vector<56x512xf32> to vector<8x512xf32>
    %431 = arith.mulf %430, %425 : vector<8x512xf32>
    %432 = vector.extract_strided_slice %414 {offsets = [40, 0], sizes = [8, 512], strides = [1, 1]} : vector<56x512xf32> to vector<8x512xf32>
    %433 = arith.addf %431, %432 : vector<8x512xf32>
    %434 = vector.extract_strided_slice %357 {offsets = [16, 0], sizes = [8, 512], strides = [1, 1]} : vector<56x512xf32> to vector<8x512xf32>
    %435 = arith.mulf %434, %429 : vector<8x512xf32>
    %436 = vector.extract_strided_slice %361 {offsets = [16, 0], sizes = [8, 512], strides = [1, 1]} : vector<56x512xf32> to vector<8x512xf32>
    %437 = arith.addf %435, %436 : vector<8x512xf32>
    %438 = vector.extract_strided_slice %410 {offsets = [32, 0], sizes = [8, 512], strides = [1, 1]} : vector<56x512xf32> to vector<8x512xf32>
    %439 = arith.mulf %438, %433 : vector<8x512xf32>
    %440 = vector.extract_strided_slice %414 {offsets = [32, 0], sizes = [8, 512], strides = [1, 1]} : vector<56x512xf32> to vector<8x512xf32>
    %441 = arith.addf %439, %440 : vector<8x512xf32>
    %442 = vector.extract_strided_slice %357 {offsets = [24, 0], sizes = [8, 512], strides = [1, 1]} : vector<56x512xf32> to vector<8x512xf32>
    %443 = arith.mulf %442, %437 : vector<8x512xf32>
    %444 = vector.extract_strided_slice %361 {offsets = [24, 0], sizes = [8, 512], strides = [1, 1]} : vector<56x512xf32> to vector<8x512xf32>
    %445 = arith.addf %443, %444 : vector<8x512xf32>
    %446 = vector.extract_strided_slice %410 {offsets = [24, 0], sizes = [8, 512], strides = [1, 1]} : vector<56x512xf32> to vector<8x512xf32>
    %447 = arith.mulf %446, %441 : vector<8x512xf32>
    %448 = vector.extract_strided_slice %414 {offsets = [24, 0], sizes = [8, 512], strides = [1, 1]} : vector<56x512xf32> to vector<8x512xf32>
    %449 = arith.addf %447, %448 : vector<8x512xf32>
    %450 = vector.extract_strided_slice %357 {offsets = [32, 0], sizes = [8, 512], strides = [1, 1]} : vector<56x512xf32> to vector<8x512xf32>
    %451 = arith.mulf %450, %445 : vector<8x512xf32>
    %452 = vector.extract_strided_slice %361 {offsets = [32, 0], sizes = [8, 512], strides = [1, 1]} : vector<56x512xf32> to vector<8x512xf32>
    %453 = arith.addf %451, %452 : vector<8x512xf32>
    %454 = vector.extract_strided_slice %410 {offsets = [16, 0], sizes = [8, 512], strides = [1, 1]} : vector<56x512xf32> to vector<8x512xf32>
    %455 = arith.mulf %454, %449 : vector<8x512xf32>
    %456 = vector.extract_strided_slice %414 {offsets = [16, 0], sizes = [8, 512], strides = [1, 1]} : vector<56x512xf32> to vector<8x512xf32>
    %457 = arith.addf %455, %456 : vector<8x512xf32>
    %458 = vector.extract_strided_slice %357 {offsets = [40, 0], sizes = [8, 512], strides = [1, 1]} : vector<56x512xf32> to vector<8x512xf32>
    %459 = arith.mulf %458, %453 : vector<8x512xf32>
    %460 = vector.extract_strided_slice %361 {offsets = [40, 0], sizes = [8, 512], strides = [1, 1]} : vector<56x512xf32> to vector<8x512xf32>
    %461 = arith.addf %459, %460 : vector<8x512xf32>
    %462 = vector.extract_strided_slice %410 {offsets = [8, 0], sizes = [8, 512], strides = [1, 1]} : vector<56x512xf32> to vector<8x512xf32>
    %463 = arith.mulf %462, %457 : vector<8x512xf32>
    %464 = vector.extract_strided_slice %414 {offsets = [8, 0], sizes = [8, 512], strides = [1, 1]} : vector<56x512xf32> to vector<8x512xf32>
    %465 = arith.addf %463, %464 : vector<8x512xf32>
    %466 = vector.extract_strided_slice %357 {offsets = [48, 0], sizes = [8, 512], strides = [1, 1]} : vector<56x512xf32> to vector<8x512xf32>
    %467 = arith.mulf %466, %461 : vector<8x512xf32>
    %468 = vector.extract_strided_slice %361 {offsets = [48, 0], sizes = [8, 512], strides = [1, 1]} : vector<56x512xf32> to vector<8x512xf32>
    %469 = arith.addf %467, %468 : vector<8x512xf32>
    %470 = vector.extract_strided_slice %410 {offsets = [0, 0], sizes = [8, 512], strides = [1, 1]} : vector<56x512xf32> to vector<8x512xf32>
    %471 = arith.mulf %470, %465 : vector<8x512xf32>
    %472 = vector.extract_strided_slice %414 {offsets = [0, 0], sizes = [8, 512], strides = [1, 1]} : vector<56x512xf32> to vector<8x512xf32>
    %473 = arith.addf %471, %472 : vector<8x512xf32>
    %474 = tpu.concatenate %421, %429, %437, %445, %453, %461, %469 in 0 : vector<8x512xf32>, vector<8x512xf32>, vector<8x512xf32>, vector<8x512xf32>, vector<8x512xf32>, vector<8x512xf32>, vector<8x512xf32> -> vector<56x512xf32>
    %475 = tpu.concatenate %473, %465, %457, %449, %441, %433, %425 in 0 : vector<8x512xf32>, vector<8x512xf32>, vector<8x512xf32>, vector<8x512xf32>, vector<8x512xf32>, vector<8x512xf32>, vector<8x512xf32> -> vector<56x512xf32>
    %476 = arith.mulf %474, %362 : vector<56x512xf32>
    %cst_203 = arith.constant dense<0.000000e+00> : vector<56x32xf32>
    %477 = tpu.matmul %476, %34, %cst_203 {dimension_numbers = #tpu.dot_dimension_numbers<[1], [0], [0], [1], [0, 0, 1, 1], [], []>} : vector<56x512xf32>, vector<512x32xf32>, vector<56x32xf32> -> vector<56x32xf32>
    %478 = arith.mulf %475, %415 : vector<56x512xf32>
    %cst_204 = arith.constant dense<0.000000e+00> : vector<56x32xf32>
    %479 = tpu.matmul %478, %34, %cst_204 {dimension_numbers = #tpu.dot_dimension_numbers<[1], [0], [0], [1], [0, 0, 1, 1], [], []>} : vector<56x512xf32>, vector<512x32xf32>, vector<56x32xf32> -> vector<56x32xf32>
    %c1_205 = arith.constant 1 : index
    %c0_206 = arith.constant 0 : index
    %c0_207 = arith.constant 0 : index
    %c0_208 = arith.constant 0 : index
    %480 = vector.load %arg13[%c1_205, %c0_206, %c0_207, %c0_208] : memref<2x2x1x32xf32, #tpu.memory_space<vmem>>, vector<1x1x1x32xf32>
    %481 = vector.shape_cast %480 : vector<1x1x1x32xf32> to vector<1x32xf32>
    %482 = vector.broadcast %481 : vector<1x32xf32> to vector<56x32xf32>
    %483 = arith.mulf %333, %482 : vector<56x32xf32>
    %484 = arith.addf %477, %483 : vector<56x32xf32>
    %485 = arith.negf %311 : vector<56x32xf32>
    %486 = math.exp %485 : vector<56x32xf32>
    %cst_209 = arith.constant 1.000000e+00 : f32
    %487 = vector.broadcast %cst_209 : f32 to vector<56x32xf32>
    %488 = arith.addf %487, %486 : vector<56x32xf32>
    %489 = arith.divf %487, %488 : vector<56x32xf32>
    %490 = arith.mulf %311, %489 : vector<56x32xf32>
    %491 = arith.mulf %484, %490 : vector<56x32xf32>
    %c1_210 = arith.constant 1 : index
    %c1_211 = arith.constant 1 : index
    %c0_212 = arith.constant 0 : index
    %c0_213 = arith.constant 0 : index
    %492 = vector.load %arg13[%c1_210, %c1_211, %c0_212, %c0_213] : memref<2x2x1x32xf32, #tpu.memory_space<vmem>>, vector<1x1x1x32xf32>
    %493 = vector.shape_cast %492 : vector<1x1x1x32xf32> to vector<1x32xf32>
    %494 = vector.broadcast %493 : vector<1x32xf32> to vector<56x32xf32>
    %495 = arith.mulf %386, %494 : vector<56x32xf32>
    %496 = arith.addf %479, %495 : vector<56x32xf32>
    %497 = arith.negf %364 : vector<56x32xf32>
    %498 = math.exp %497 : vector<56x32xf32>
    %cst_214 = arith.constant 1.000000e+00 : f32
    %499 = vector.broadcast %cst_214 : f32 to vector<56x32xf32>
    %500 = arith.addf %499, %498 : vector<56x32xf32>
    %501 = arith.divf %499, %500 : vector<56x32xf32>
    %502 = arith.mulf %364, %501 : vector<56x32xf32>
    %503 = arith.mulf %496, %502 : vector<56x32xf32>
    %504 = tpu.concatenate %491, %503 in 1 : vector<56x32xf32>, vector<56x32xf32> -> vector<56x64xf32>
    %c1_215 = arith.constant 1 : index
    %c0_216 = arith.constant 0 : index
    %c0_217 = arith.constant 0 : index
    %505 = vector.load %arg14[%c1_215, %c0_216, %c0_217] : memref<2x64x32xbf16, #tpu.memory_space<vmem>>, vector<1x64x32xbf16>
    %506 = vector.shape_cast %505 : vector<1x64x32xbf16> to vector<64x32xbf16>
    %507 = arith.truncf %504 : vector<56x64xf32> to vector<56x64xbf16>
    %cst_218 = arith.constant dense<0.000000e+00> : vector<56x32xf32>
    %508 = tpu.matmul %507, %506, %cst_218 {dimension_numbers = #tpu.dot_dimension_numbers<[1], [0], [0], [1], [0, 0, 1, 1], [], []>} : vector<56x64xbf16>, vector<64x32xbf16>, vector<56x32xf32> -> vector<56x32xf32>
    %509 = arith.addf %305, %508 : vector<56x32xf32>
    %c1_219 = arith.constant 1 : index
    %c0_220 = arith.constant 0 : index
    %c0_221 = arith.constant 0 : index
    %510 = vector.load %arg19[%c1_219, %c0_220, %c0_221] : memref<2x1x32xf32, #tpu.memory_space<vmem>>, vector<1x1x32xf32>
    %511 = vector.shape_cast %510 : vector<1x1x32xf32> to vector<1x32xf32>
    %c1_222 = arith.constant 1 : index
    %c0_223 = arith.constant 0 : index
    %c0_224 = arith.constant 0 : index
    %512 = vector.load %arg20[%c1_222, %c0_223, %c0_224] : memref<2x1x32xf32, #tpu.memory_space<vmem>>, vector<1x1x32xf32>
    %513 = vector.shape_cast %512 : vector<1x1x32xf32> to vector<1x32xf32>
    %cst_225 = arith.constant dense<0.000000e+00> : vector<56xf32>
    %514 = vector.multi_reduction <add>, %509, %cst_225 [1] : vector<56x32xf32> to vector<56xf32>
    %515 = vector.shape_cast %514 : vector<56xf32> to vector<56x1xf32>
    %cst_226 = arith.constant 3.200000e+01 : f32
    %516 = vector.broadcast %cst_226 : f32 to vector<56x1xf32>
    %517 = arith.divf %515, %516 : vector<56x1xf32>
    %518 = vector.broadcast %517 : vector<56x1xf32> to vector<56x32xf32>
    %519 = arith.subf %509, %518 : vector<56x32xf32>
    %520 = arith.mulf %519, %519 : vector<56x32xf32>
    %cst_227 = arith.constant dense<0.000000e+00> : vector<56xf32>
    %521 = vector.multi_reduction <add>, %520, %cst_227 [1] : vector<56x32xf32> to vector<56xf32>
    %522 = vector.shape_cast %521 : vector<56xf32> to vector<56x1xf32>
    %cst_228 = arith.constant 3.200000e+01 : f32
    %523 = vector.broadcast %cst_228 : f32 to vector<56x1xf32>
    %524 = arith.divf %522, %523 : vector<56x1xf32>
    %cst_229 = arith.constant 9.99999974E-6 : f32
    %525 = vector.broadcast %cst_229 : f32 to vector<56x1xf32>
    %526 = arith.addf %524, %525 : vector<56x1xf32>
    %527 = math.sqrt %526 : vector<56x1xf32>
    %528 = vector.broadcast %527 : vector<56x1xf32> to vector<56x32xf32>
    %529 = arith.divf %519, %528 : vector<56x32xf32>
    %530 = vector.broadcast %511 : vector<1x32xf32> to vector<56x32xf32>
    %531 = arith.mulf %529, %530 : vector<56x32xf32>
    %532 = vector.broadcast %513 : vector<1x32xf32> to vector<56x32xf32>
    %533 = arith.addf %531, %532 : vector<56x32xf32>
    %c1_230 = arith.constant 1 : index
    %c0_231 = arith.constant 0 : index
    %c0_232 = arith.constant 0 : index
    %534 = vector.load %arg15[%c1_230, %c0_231, %c0_232] : memref<2x32x32xbf16, #tpu.memory_space<vmem>>, vector<1x32x32xbf16>
    %535 = vector.shape_cast %534 : vector<1x32x32xbf16> to vector<32x32xbf16>
    %536 = arith.truncf %533 : vector<56x32xf32> to vector<56x32xbf16>
    %cst_233 = arith.constant dense<0.000000e+00> : vector<56x32xf32>
    %537 = tpu.matmul %536, %535, %cst_233 {dimension_numbers = #tpu.dot_dimension_numbers<[1], [0], [0], [1], [0, 0, 1, 1], [], []>} : vector<56x32xbf16>, vector<32x32xbf16>, vector<56x32xf32> -> vector<56x32xf32>
    %c1_234 = arith.constant 1 : index
    %c0_235 = arith.constant 0 : index
    %c0_236 = arith.constant 0 : index
    %538 = vector.load %arg16[%c1_234, %c0_235, %c0_236] : memref<2x1x32xf32, #tpu.memory_space<vmem>>, vector<1x1x32xf32>
    %539 = vector.shape_cast %538 : vector<1x1x32xf32> to vector<1x32xf32>
    %540 = vector.broadcast %539 : vector<1x32xf32> to vector<56x32xf32>
    %541 = arith.addf %537, %540 : vector<56x32xf32>
    %cst_237 = arith.constant 0.000000e+00 : f32
    %542 = vector.broadcast %cst_237 : f32 to vector<56x32xf32>
    %543 = arith.maximumf %541, %542 : vector<56x32xf32>
    %c1_238 = arith.constant 1 : index
    %c0_239 = arith.constant 0 : index
    %c0_240 = arith.constant 0 : index
    %544 = vector.load %arg17[%c1_238, %c0_239, %c0_240] : memref<2x32x32xbf16, #tpu.memory_space<vmem>>, vector<1x32x32xbf16>
    %545 = vector.shape_cast %544 : vector<1x32x32xbf16> to vector<32x32xbf16>
    %546 = arith.truncf %543 : vector<56x32xf32> to vector<56x32xbf16>
    %cst_241 = arith.constant dense<0.000000e+00> : vector<56x32xf32>
    %547 = tpu.matmul %546, %545, %cst_241 {dimension_numbers = #tpu.dot_dimension_numbers<[1], [0], [0], [1], [0, 0, 1, 1], [], []>} : vector<56x32xbf16>, vector<32x32xbf16>, vector<56x32xf32> -> vector<56x32xf32>
    %c1_242 = arith.constant 1 : index
    %c0_243 = arith.constant 0 : index
    %c0_244 = arith.constant 0 : index
    %548 = vector.load %arg18[%c1_242, %c0_243, %c0_244] : memref<2x1x32xf32, #tpu.memory_space<vmem>>, vector<1x1x32xf32>
    %549 = vector.shape_cast %548 : vector<1x1x32xf32> to vector<1x32xf32>
    %550 = vector.broadcast %549 : vector<1x32xf32> to vector<56x32xf32>
    %551 = arith.addf %547, %550 : vector<56x32xf32>
    %552 = arith.addf %533, %551 : vector<56x32xf32>
    %c1_245 = arith.constant 1 : index
    %c0_246 = arith.constant 0 : index
    %c0_247 = arith.constant 0 : index
    %553 = vector.load %arg21[%c1_245, %c0_246, %c0_247] : memref<2x1x32xf32, #tpu.memory_space<vmem>>, vector<1x1x32xf32>
    %554 = vector.shape_cast %553 : vector<1x1x32xf32> to vector<1x32xf32>
    %c1_248 = arith.constant 1 : index
    %c0_249 = arith.constant 0 : index
    %c0_250 = arith.constant 0 : index
    %555 = vector.load %arg22[%c1_248, %c0_249, %c0_250] : memref<2x1x32xf32, #tpu.memory_space<vmem>>, vector<1x1x32xf32>
    %556 = vector.shape_cast %555 : vector<1x1x32xf32> to vector<1x32xf32>
    %cst_251 = arith.constant dense<0.000000e+00> : vector<56xf32>
    %557 = vector.multi_reduction <add>, %552, %cst_251 [1] : vector<56x32xf32> to vector<56xf32>
    %558 = vector.shape_cast %557 : vector<56xf32> to vector<56x1xf32>
    %cst_252 = arith.constant 3.200000e+01 : f32
    %559 = vector.broadcast %cst_252 : f32 to vector<56x1xf32>
    %560 = arith.divf %558, %559 : vector<56x1xf32>
    %561 = vector.broadcast %560 : vector<56x1xf32> to vector<56x32xf32>
    %562 = arith.subf %552, %561 : vector<56x32xf32>
    %563 = arith.mulf %562, %562 : vector<56x32xf32>
    %cst_253 = arith.constant dense<0.000000e+00> : vector<56xf32>
    %564 = vector.multi_reduction <add>, %563, %cst_253 [1] : vector<56x32xf32> to vector<56xf32>
    %565 = vector.shape_cast %564 : vector<56xf32> to vector<56x1xf32>
    %cst_254 = arith.constant 3.200000e+01 : f32
    %566 = vector.broadcast %cst_254 : f32 to vector<56x1xf32>
    %567 = arith.divf %565, %566 : vector<56x1xf32>
    %cst_255 = arith.constant 9.99999974E-6 : f32
    %568 = vector.broadcast %cst_255 : f32 to vector<56x1xf32>
    %569 = arith.addf %567, %568 : vector<56x1xf32>
    %570 = math.sqrt %569 : vector<56x1xf32>
    %571 = vector.broadcast %570 : vector<56x1xf32> to vector<56x32xf32>
    %572 = arith.divf %562, %571 : vector<56x32xf32>
    %573 = vector.broadcast %554 : vector<1x32xf32> to vector<56x32xf32>
    %574 = arith.mulf %572, %573 : vector<56x32xf32>
    %575 = vector.broadcast %556 : vector<1x32xf32> to vector<56x32xf32>
    %576 = arith.addf %574, %575 : vector<56x32xf32>
    %c0_256 = arith.constant 0 : index
    %c0_257 = arith.constant 0 : index
    %577 = vector.load %arg23[%c0_256, %c0_257] : memref<1x32xf32, #tpu.memory_space<vmem>>, vector<1x32xf32>
    %c0_258 = arith.constant 0 : index
    %c0_259 = arith.constant 0 : index
    %578 = vector.load %arg24[%c0_258, %c0_259] : memref<1x32xf32, #tpu.memory_space<vmem>>, vector<1x32xf32>
    %cst_260 = arith.constant dense<0.000000e+00> : vector<56xf32>
    %579 = vector.multi_reduction <add>, %576, %cst_260 [1] : vector<56x32xf32> to vector<56xf32>
    %580 = vector.shape_cast %579 : vector<56xf32> to vector<56x1xf32>
    %cst_261 = arith.constant 3.200000e+01 : f32
    %581 = vector.broadcast %cst_261 : f32 to vector<56x1xf32>
    %582 = arith.divf %580, %581 : vector<56x1xf32>
    %583 = vector.broadcast %582 : vector<56x1xf32> to vector<56x32xf32>
    %584 = arith.subf %576, %583 : vector<56x32xf32>
    %585 = arith.mulf %584, %584 : vector<56x32xf32>
    %cst_262 = arith.constant dense<0.000000e+00> : vector<56xf32>
    %586 = vector.multi_reduction <add>, %585, %cst_262 [1] : vector<56x32xf32> to vector<56xf32>
    %587 = vector.shape_cast %586 : vector<56xf32> to vector<56x1xf32>
    %cst_263 = arith.constant 3.200000e+01 : f32
    %588 = vector.broadcast %cst_263 : f32 to vector<56x1xf32>
    %589 = arith.divf %587, %588 : vector<56x1xf32>
    %cst_264 = arith.constant 9.99999974E-6 : f32
    %590 = vector.broadcast %cst_264 : f32 to vector<56x1xf32>
    %591 = arith.addf %589, %590 : vector<56x1xf32>
    %592 = math.sqrt %591 : vector<56x1xf32>
    %593 = vector.broadcast %592 : vector<56x1xf32> to vector<56x32xf32>
    %594 = arith.divf %584, %593 : vector<56x32xf32>
    %595 = vector.broadcast %577 : vector<1x32xf32> to vector<56x32xf32>
    %596 = arith.mulf %594, %595 : vector<56x32xf32>
    %597 = vector.broadcast %578 : vector<1x32xf32> to vector<56x32xf32>
    %598 = arith.addf %596, %597 : vector<56x32xf32>
    %c0_265 = arith.constant 0 : index
    %c0_266 = arith.constant 0 : index
    %599 = vector.load %arg25[%c0_265, %c0_266] : memref<32x8xf32, #tpu.memory_space<vmem>>, vector<32x8xf32>
    %cst_267 = arith.constant dense<0.000000e+00> : vector<56x8xf32>
    %600 = tpu.matmul %598, %599, %cst_267 {dimension_numbers = #tpu.dot_dimension_numbers<[1], [0], [0], [1], [0, 0, 1, 1], [], []>} : vector<56x32xf32>, vector<32x8xf32>, vector<56x8xf32> -> vector<56x8xf32>
    %c0_268 = arith.constant 0 : index
    %c0_269 = arith.constant 0 : index
    %601 = vector.load %arg26[%c0_268, %c0_269] : memref<1x8xf32, #tpu.memory_space<vmem>>, vector<1x8xf32>
    %602 = vector.broadcast %601 : vector<1x8xf32> to vector<56x8xf32>
    %603 = arith.addf %600, %602 : vector<56x8xf32>
    %604 = vector.broadcast %22 : vector<56x1xf32> to vector<56x8xf32>
    %605 = arith.mulf %603, %604 : vector<56x8xf32>
    %606 = vector.broadcast %20 : vector<56x1xf32> to vector<56x8xf32>
    %607 = arith.addf %605, %606 : vector<56x8xf32>
    %608 = tpu.transpose %607, [1, 0] : vector<56x8xf32> -> vector<8x56xf32>
    %c0_270 = arith.constant 0 : index
    %c0_271 = arith.constant 0 : index
    %c0_272 = arith.constant 0 : index
    %609 = vector.load %arg27[%c0_270, %c0_271, %c0_272] : memref<1x8x56xf32, #tpu.memory_space<vmem>>, vector<1x8x56xf32>
    %610 = vector.shape_cast %609 : vector<1x8x56xf32> to vector<8x56xf32>
    %611 = vector.shape_cast %608 : vector<8x56xf32> to vector<1x8x56xf32>
    tpu.vector_store %arg27[%c0_270, %c0_271, %c0_272], %611 {strides = array<i32>} : memref<1x8x56xf32, #tpu.memory_space<vmem>>, vector<1x8x56xf32>,
    return
  }
  func.func @transform_0(%arg0: i32) -> (i32, i32, i32) {
    %c0_i32 = arith.constant 0 : i32
    %c0_i32_0 = arith.constant 0 : i32
    %c0_i32_1 = arith.constant 0 : i32
    return %arg0, %c0_i32, %c0_i32_0 : i32, i32, i32
  }
  func.func @transform_1(%arg0: i32) -> (i32, i32) {
    %c0_i32 = arith.constant 0 : i32
    %c0_i32_0 = arith.constant 0 : i32
    %c0_i32_1 = arith.constant 0 : i32
    return %c0_i32, %c0_i32_0 : i32, i32
  }
  func.func @transform_2(%arg0: i32) -> (i32, i32) {
    %c0_i32 = arith.constant 0 : i32
    %c0_i32_0 = arith.constant 0 : i32
    %c0_i32_1 = arith.constant 0 : i32
    return %c0_i32, %c0_i32_0 : i32, i32
  }
  func.func @transform_3(%arg0: i32) -> (i32, i32, i32) {
    %c0_i32 = arith.constant 0 : i32
    %c0_i32_0 = arith.constant 0 : i32
    %c0_i32_1 = arith.constant 0 : i32
    %c0_i32_2 = arith.constant 0 : i32
    return %c0_i32, %c0_i32_0, %c0_i32_1 : i32, i32, i32
  }
  func.func @transform_4(%arg0: i32) -> (i32, i32, i32, i32) {
    %c0_i32 = arith.constant 0 : i32
    %c0_i32_0 = arith.constant 0 : i32
    %c0_i32_1 = arith.constant 0 : i32
    %c0_i32_2 = arith.constant 0 : i32
    %c0_i32_3 = arith.constant 0 : i32
    return %c0_i32, %c0_i32_0, %c0_i32_1, %c0_i32_2 : i32, i32, i32, i32
  }
  func.func @transform_5(%arg0: i32) -> (i32, i32, i32, i32) {
    %c0_i32 = arith.constant 0 : i32
    %c0_i32_0 = arith.constant 0 : i32
    %c0_i32_1 = arith.constant 0 : i32
    %c0_i32_2 = arith.constant 0 : i32
    %c0_i32_3 = arith.constant 0 : i32
    return %c0_i32, %c0_i32_0, %c0_i32_1, %c0_i32_2 : i32, i32, i32, i32
  }
  func.func @transform_6(%arg0: i32) -> (i32, i32, i32, i32) {
    %c0_i32 = arith.constant 0 : i32
    %c0_i32_0 = arith.constant 0 : i32
    %c0_i32_1 = arith.constant 0 : i32
    %c0_i32_2 = arith.constant 0 : i32
    %c0_i32_3 = arith.constant 0 : i32
    return %c0_i32, %c0_i32_0, %c0_i32_1, %c0_i32_2 : i32, i32, i32, i32
  }
  func.func @transform_7(%arg0: i32) -> (i32, i32, i32, i32) {
    %c0_i32 = arith.constant 0 : i32
    %c0_i32_0 = arith.constant 0 : i32
    %c0_i32_1 = arith.constant 0 : i32
    %c0_i32_2 = arith.constant 0 : i32
    %c0_i32_3 = arith.constant 0 : i32
    return %c0_i32, %c0_i32_0, %c0_i32_1, %c0_i32_2 : i32, i32, i32, i32
  }
  func.func @transform_8(%arg0: i32) -> (i32, i32, i32, i32) {
    %c0_i32 = arith.constant 0 : i32
    %c0_i32_0 = arith.constant 0 : i32
    %c0_i32_1 = arith.constant 0 : i32
    %c0_i32_2 = arith.constant 0 : i32
    %c0_i32_3 = arith.constant 0 : i32
    return %c0_i32, %c0_i32_0, %c0_i32_1, %c0_i32_2 : i32, i32, i32, i32
  }
  func.func @transform_9(%arg0: i32) -> (i32, i32) {
    %c0_i32 = arith.constant 0 : i32
    %c0_i32_0 = arith.constant 0 : i32
    %c0_i32_1 = arith.constant 0 : i32
    return %c0_i32, %c0_i32_0 : i32, i32
  }
  func.func @transform_10(%arg0: i32) -> (i32, i32) {
    %c0_i32 = arith.constant 0 : i32
    %c0_i32_0 = arith.constant 0 : i32
    %c0_i32_1 = arith.constant 0 : i32
    return %c0_i32, %c0_i32_0 : i32, i32
  }
  func.func @transform_11(%arg0: i32) -> (i32, i32) {
    %c0_i32 = arith.constant 0 : i32
    %c0_i32_0 = arith.constant 0 : i32
    %c0_i32_1 = arith.constant 0 : i32
    return %c0_i32, %c0_i32_0 : i32, i32
  }
  func.func @transform_12(%arg0: i32) -> (i32, i32, i32, i32) {
    %c0_i32 = arith.constant 0 : i32
    %c0_i32_0 = arith.constant 0 : i32
    %c0_i32_1 = arith.constant 0 : i32
    %c0_i32_2 = arith.constant 0 : i32
    %c0_i32_3 = arith.constant 0 : i32
    return %c0_i32, %c0_i32_0, %c0_i32_1, %c0_i32_2 : i32, i32, i32, i32
  }
  func.func @transform_13(%arg0: i32) -> (i32, i32, i32) {
    %c0_i32 = arith.constant 0 : i32
    %c0_i32_0 = arith.constant 0 : i32
    %c0_i32_1 = arith.constant 0 : i32
    %c0_i32_2 = arith.constant 0 : i32
    return %c0_i32, %c0_i32_0, %c0_i32_1 : i32, i32, i32
  }
  func.func @transform_14(%arg0: i32) -> (i32, i32, i32) {
    %c0_i32 = arith.constant 0 : i32
    %c0_i32_0 = arith.constant 0 : i32
    %c0_i32_1 = arith.constant 0 : i32
    %c0_i32_2 = arith.constant 0 : i32
    return %c0_i32, %c0_i32_0, %c0_i32_1 : i32, i32, i32
  }
  func.func @transform_15(%arg0: i32) -> (i32, i32, i32) {
    %c0_i32 = arith.constant 0 : i32
    %c0_i32_0 = arith.constant 0 : i32
    %c0_i32_1 = arith.constant 0 : i32
    %c0_i32_2 = arith.constant 0 : i32
    return %c0_i32, %c0_i32_0, %c0_i32_1 : i32, i32, i32
  }
  func.func @transform_16(%arg0: i32) -> (i32, i32, i32) {
    %c0_i32 = arith.constant 0 : i32
    %c0_i32_0 = arith.constant 0 : i32
    %c0_i32_1 = arith.constant 0 : i32
    %c0_i32_2 = arith.constant 0 : i32
    return %c0_i32, %c0_i32_0, %c0_i32_1 : i32, i32, i32
  }
  func.func @transform_17(%arg0: i32) -> (i32, i32, i32) {
    %c0_i32 = arith.constant 0 : i32
    %c0_i32_0 = arith.constant 0 : i32
    %c0_i32_1 = arith.constant 0 : i32
    %c0_i32_2 = arith.constant 0 : i32
    return %c0_i32, %c0_i32_0, %c0_i32_1 : i32, i32, i32
  }
  func.func @transform_18(%arg0: i32) -> (i32, i32, i32) {
    %c0_i32 = arith.constant 0 : i32
    %c0_i32_0 = arith.constant 0 : i32
    %c0_i32_1 = arith.constant 0 : i32
    %c0_i32_2 = arith.constant 0 : i32
    return %c0_i32, %c0_i32_0, %c0_i32_1 : i32, i32, i32
  }
  func.func @transform_19(%arg0: i32) -> (i32, i32, i32) {
    %c0_i32 = arith.constant 0 : i32
    %c0_i32_0 = arith.constant 0 : i32
    %c0_i32_1 = arith.constant 0 : i32
    %c0_i32_2 = arith.constant 0 : i32
    return %c0_i32, %c0_i32_0, %c0_i32_1 : i32, i32, i32
  }
  func.func @transform_20(%arg0: i32) -> (i32, i32, i32) {
    %c0_i32 = arith.constant 0 : i32
    %c0_i32_0 = arith.constant 0 : i32
    %c0_i32_1 = arith.constant 0 : i32
    %c0_i32_2 = arith.constant 0 : i32
    return %c0_i32, %c0_i32_0, %c0_i32_1 : i32, i32, i32
  }
  func.func @transform_21(%arg0: i32) -> (i32, i32, i32) {
    %c0_i32 = arith.constant 0 : i32
    %c0_i32_0 = arith.constant 0 : i32
    %c0_i32_1 = arith.constant 0 : i32
    %c0_i32_2 = arith.constant 0 : i32
    return %c0_i32, %c0_i32_0, %c0_i32_1 : i32, i32, i32
  }
  func.func @transform_22(%arg0: i32) -> (i32, i32) {
    %c0_i32 = arith.constant 0 : i32
    %c0_i32_0 = arith.constant 0 : i32
    %c0_i32_1 = arith.constant 0 : i32
    return %c0_i32, %c0_i32_0 : i32, i32
  }
  func.func @transform_23(%arg0: i32) -> (i32, i32) {
    %c0_i32 = arith.constant 0 : i32
    %c0_i32_0 = arith.constant 0 : i32
    %c0_i32_1 = arith.constant 0 : i32
    return %c0_i32, %c0_i32_0 : i32, i32
  }
  func.func @transform_24(%arg0: i32) -> (i32, i32) {
    %c0_i32 = arith.constant 0 : i32
    %c0_i32_0 = arith.constant 0 : i32
    %c0_i32_1 = arith.constant 0 : i32
    return %c0_i32, %c0_i32_0 : i32, i32
  }
  func.func @transform_25(%arg0: i32) -> (i32, i32) {
    %c0_i32 = arith.constant 0 : i32
    %c0_i32_0 = arith.constant 0 : i32
    %c0_i32_1 = arith.constant 0 : i32
    return %c0_i32, %c0_i32_0 : i32, i32
  }
  func.func @transform_26(%arg0: i32) -> (i32, i32, i32) {
    %c0_i32 = arith.constant 0 : i32
    %c0_i32_0 = arith.constant 0 : i32
    %c0_i32_1 = arith.constant 0 : i32
    return %arg0, %c0_i32, %c0_i32_0 : i32, i32, i32
  }
}

</mosaic_0001>

<llo_original>
// kernel: mul.43
$region0: #{mul.43}
  %s0 = inlined_call_operand.vmem [shape: f32[2,2,32,16], index: 0, kind: input, shape index: {}]
  %s1 = inlined_call_operand.vmem [shape: f32[2,2,512], index: 1, kind: output, shape index: {}]
  $region1: #{mul.43} parent=0
    #allocation0 [shape = 'u8[32768]{0}', space=vmem, size = 0x8000, scoped, tag = 'scoped mem for output reshape']
    %v2 = vld [vmem:[%s0] ss:$8 sm:$0xf]
    %v3 = vld [vmem:[%s0] ss:$8 sm:$0xf0]
    %vm4 = vcmask 1047556
    %v5 = vsel %vm4, %v3, %v2
    %vm6 = vcmask 130048
    %7 = vst.msk [vmem:[#allocation0] ss:$8 sm:$0xf] %vm6, %v5
    %s8 = scalar_lea.vmem [#allocation0], 4294967265
    %9 = vst.msk [vmem:[%s8] ss:$8 sm:$0xf0] %vm6, %v5
    %s10 = scalar_lea.vmem %s0, 64
    %v11 = vld [vmem:[%s10] ss:$8 sm:$0xf]
    %s12 = scalar_lea.vmem %s0, 64
    %v13 = vld [vmem:[%s12] ss:$8 sm:$0xf0]
    %vm14 = vcmask 1047556
    %v15 = vsel %vm14, %v13, %v11
    %vm16 = vcmask 130048
    %s17 = scalar_lea.vmem [#allocation0], 32
    %18 = vst.msk [vmem:[%s17] ss:$8 sm:$0xf] %vm16, %v15
    %s19 = scalar_lea.vmem [#allocation0], 1
    %20 = vst.msk [vmem:[%s19] ss:$8 sm:$0xf0] %vm16, %v15
    %s21 = scalar_lea.vmem %s0, 7
    %v22 = vld [vmem:[%s21] sm:$0x1]
    %s23 = scalar_lea.vmem %s0, 63
    %s24 = smov 6
    %v25 = vld [vmem:[%s23] ss:$-24 sm:%s24]
    %vm26 = vcmask 1042433
    %v27 = vsel %vm26, %v25, %v22
    %s28 = scalar_lea.vmem %s0, 119
    %s29 = smov 24
    %v30 = vld [vmem:[%s28] ss:$-24 sm:%s29]
    %vm31 = vcmask 1044483
    %v32 = vsel %vm31, %v30, %v27
    %s33 = scalar_lea.vmem %s0, 175
    %s34 = smov 96
    %v35 = vld [vmem:[%s33] ss:$-24 sm:%s34]
    %vm36 = vcmask 1046533
    %v37 = vsel %vm36, %v35, %v32
    %s38 = scalar_lea.vmem %s0, 56
    %v39 = vld [vmem:[%s38] sm:$0x80]
    %vm40 = vcmask 1047559
    %v41 = vsel %vm40, %v39, %v37
    %42 = vrot.lane.b32.xlu0 %v41, 112
    %v43 = vpop.permute.xlu0 %42
    %vm44 = vcmask 1048448
    %45 = vst.msk [vmem:[#allocation0] sm:$0x3] %vm44, %v43
    %s46 = scalar_lea.vmem [#allocation0], 6
    %47 = vst.msk [vmem:[%s46] sm:$0xc] %vm44, %v43
    %s48 = scalar_lea.vmem [#allocation0], 12
    %49 = vst.msk [vmem:[%s48] sm:$0x30] %vm44, %v43
    %s50 = scalar_lea.vmem [#allocation0], 18
    %51 = vst.msk [vmem:[%s50] sm:$0xc0] %vm44, %v43
    %s52 = scalar_lea.vmem %s0, 71
    %v53 = vld [vmem:[%s52] sm:$0x1]
    %s54 = scalar_lea.vmem %s0, 127
    %s55 = smov 6
    %v56 = vld [vmem:[%s54] ss:$-24 sm:%s55]
    %vm57 = vcmask 1042433
    %v58 = vsel %vm57, %v56, %v53
    %s59 = scalar_lea.vmem %s0, 183
    %s60 = smov 24
    %v61 = vld [vmem:[%s59] ss:$-24 sm:%s60]
    %vm62 = vcmask 1044483
    %v63 = vsel %vm62, %v61, %v58
    %s64 = scalar_lea.vmem %s0, 239
    %s65 = smov 96
    %v66 = vld [vmem:[%s64] ss:$-24 sm:%s65]
    %vm67 = vcmask 1046533
    %v68 = vsel %vm67, %v66, %v63
    %s69 = scalar_lea.vmem %s0, 120
    %v70 = vld [vmem:[%s69] sm:$0x80]
    %vm71 = vcmask 1047559
    %v72 = vsel %vm71, %v70, %v68
    %73 = vrot.lane.b32.xlu0 %v72, 112
    %v74 = vpop.permute.xlu0 %73
    %vm75 = vcmask 1048448
    %s76 = scalar_lea.vmem [#allocation0], 32
    %77 = vst.msk [vmem:[%s76] sm:$0x3] %vm75, %v74
    %s78 = scalar_lea.vmem [#allocation0], 38
    %79 = vst.msk [vmem:[%s78] sm:$0xc] %vm75, %v74
    %s80 = scalar_lea.vmem [#allocation0], 44
    %81 = vst.msk [vmem:[%s80] sm:$0x30] %vm75, %v74
    %s82 = scalar_lea.vmem [#allocation0], 50
    %83 = vst.msk [vmem:[%s82] sm:$0xc0] %vm75, %v74
    %s84 = scalar_lea.vmem %s0, 6
    %v85 = vld [vmem:[%s84] sm:$0x1]
    %s86 = scalar_lea.vmem %s0, 62
    %s87 = smov 6
    %v88 = vld [vmem:[%s86] ss:$-24 sm:%s87]
    %vm89 = vcmask 1042433
    %v90 = vsel %vm89, %v88, %v85
    %s91 = scalar_lea.vmem %s0, 118
    %s92 = smov 24
    %v93 = vld [vmem:[%s91] ss:$-24 sm:%s92]
    %vm94 = vcmask 1044483
    %v95 = vsel %vm94, %v93, %v90
    %s96 = scalar_lea.vmem %s0, 174
    %s97 = smov 96
    %v98 = vld [vmem:[%s96] ss:$-24 sm:%s97]
    %vm99 = vcmask 1046533
    %v100 = vsel %vm99, %v98, %v95
    %s101 = scalar_lea.vmem %s0, 55
    %v102 = vld [vmem:[%s101] sm:$0x80]
    %vm103 = vcmask 1047559
    %v104 = vsel %vm103, %v102, %v100
    %105 = vrot.lane.b32.xlu0 %v104, 96
    %v106 = vpop.permute.xlu0 %105
    %vm107 = vcmask 917248
    %108 = vst.msk [vmem:[#allocation0] sm:$0x3] %vm107, %v106
    %s109 = scalar_lea.vmem [#allocation0], 6
    %110 = vst.msk [vmem:[%s109] sm:$0xc] %vm107, %v106
    %s111 = scalar_lea.vmem [#allocation0], 12
    %112 = vst.msk [vmem:[%s111] sm:$0x30] %vm107, %v106
    %s113 = scalar_lea.vmem [#allocation0], 18
    %114 = vst.msk [vmem:[%s113] sm:$0xc0] %vm107, %v106
    %s115 = scalar_lea.vmem %s0, 70
    %v116 = vld [vmem:[%s115] sm:$0x1]
    %s117 = scalar_lea.vmem %s0, 126
    %s118 = smov 6
    %v119 = vld [vmem:[%s117] ss:$-24 sm:%s118]
    %vm120 = vcmask 1042433
    %v121 = vsel %vm120, %v119, %v116
    %s122 = scalar_lea.vmem %s0, 182
    %s123 = smov 24
    %v124 = vld [vmem:[%s122] ss:$-24 sm:%s123]
    %vm125 = vcmask 1044483
    %v126 = vsel %vm125, %v124, %v121
    %s127 = scalar_lea.vmem %s0, 238
    %s128 = smov 96
    %v129 = vld [vmem:[%s127] ss:$-24 sm:%s128]
    %vm130 = vcmask 1046533
    %v131 = vsel %vm130, %v129, %v126
    %s132 = scalar_lea.vmem %s0, 119
    %v133 = vld [vmem:[%s132] sm:$0x80]
    %vm134 = vcmask 1047559
    %v135 = vsel %vm134, %v133, %v131
    %136 = vrot.lane.b32.xlu0 %v135, 96
    %v137 = vpop.permute.xlu0 %136
    %vm138 = vcmask 917248
    %s139 = scalar_lea.vmem [#allocation0], 32
    %140 = vst.msk [vmem:[%s139] sm:$0x3] %vm138, %v137
    %s141 = scalar_lea.vmem [#allocation0], 38
    %142 = vst.msk [vmem:[%s141] sm:$0xc] %vm138, %v137
    %s143 = scalar_lea.vmem [#allocation0], 44
    %144 = vst.msk [vmem:[%s143] sm:$0x30] %vm138, %v137
    %s145 = scalar_lea.vmem [#allocation0], 50
    %146 = vst.msk [vmem:[%s145] sm:$0xc0] %vm138, %v137
    %s147 = scalar_lea.vmem %s0, 5
    %v148 = vld [vmem:[%s147] sm:$0x1]
    %s149 = scalar_lea.vmem %s0, 61
    %s150 = smov 6
    %v151 = vld [vmem:[%s149] ss:$-24 sm:%s150]
    %vm152 = vcmask 1042433
    %v153 = vsel %vm152, %v151, %v148
    %s154 = scalar_lea.vmem %s0, 117
    %s155 = smov 24
    %v156 = vld [vmem:[%s154] ss:$-24 sm:%s155]
    %vm157 = vcmask 1044483
    %v158 = vsel %vm157, %v156, %v153
    %s159 = scalar_lea.vmem %s0, 173
    %s160 = smov 96
    %v161 = vld [vmem:[%s159] ss:$-24 sm:%s160]
    %vm162 = vcmask 1046533
    %v163 = vsel %vm162, %v161, %v158
    %s164 = scalar_lea.vmem %s0, 54
    %v165 = vld [vmem:[%s164] sm:$0x80]
    %vm166 = vcmask 1047559
    %v167 = vsel %vm166, %v165, %v163
    %168 = vrot.lane.b32.xlu0 %v167, 80
    %v169 = vpop.permute.xlu0 %168
    %vm170 = vcmask 786048
    %171 = vst.msk [vmem:[#allocation0] sm:$0x3] %vm170, %v169
    %s172 = scalar_lea.vmem [#allocation0], 6
    %173 = vst.msk [vmem:[%s172] sm:$0xc] %vm170, %v169
    %s174 = scalar_lea.vmem [#allocation0], 12
    %175 = vst.msk [vmem:[%s174] sm:$0x30] %vm170, %v169
    %s176 = scalar_lea.vmem [#allocation0], 18
    %177 = vst.msk [vmem:[%s176] sm:$0xc0] %vm170, %v169
    %s178 = scalar_lea.vmem %s0, 69
    %v179 = vld [vmem:[%s178] sm:$0x1]
    %s180 = scalar_lea.vmem %s0, 125
    %s181 = smov 6
    %v182 = vld [vmem:[%s180] ss:$-24 sm:%s181]
    %vm183 = vcmask 1042433
    %v184 = vsel %vm183, %v182, %v179
    %s185 = scalar_lea.vmem %s0, 181
    %s186 = smov 24
    %v187 = vld [vmem:[%s185] ss:$-24 sm:%s186]
    %vm188 = vcmask 1044483
    %v189 = vsel %vm188, %v187, %v184
    %s190 = scalar_lea.vmem %s0, 237
    %s191 = smov 96
    %v192 = vld [vmem:[%s190] ss:$-24 sm:%s191]
    %vm193 = vcmask 1046533
    %v194 = vsel %vm193, %v192, %v189
    %s195 = scalar_lea.vmem %s0, 118
    %v196 = vld [vmem:[%s195] sm:$0x80]
    %vm197 = vcmask 1047559
    %v198 = vsel %vm197, %v196, %v194
    %199 = vrot.lane.b32.xlu0 %v198, 80
    %v200 = vpop.permute.xlu0 %199
    %vm201 = vcmask 786048
    %s202 = scalar_lea.vmem [#allocation0], 32
    %203 = vst.msk [vmem:[%s202] sm:$0x3] %vm201, %v200
    %s204 = scalar_lea.vmem [#allocation0], 38
    %205 = vst.msk [vmem:[%s204] sm:$0xc] %vm201, %v200
    %s206 = scalar_lea.vmem [#allocation0], 44
    %207 = vst.msk [vmem:[%s206] sm:$0x30] %vm201, %v200
    %s208 = scalar_lea.vmem [#allocation0], 50
    %209 = vst.msk [vmem:[%s208] sm:$0xc0] %vm201, %v200
    %s210 = scalar_lea.vmem %s0, 4
    %v211 = vld [vmem:[%s210] sm:$0x1]
    %s212 = scalar_lea.vmem %s0, 60
    %s213 = smov 6
    %v214 = vld [vmem:[%s212] ss:$-24 sm:%s213]
    %vm215 = vcmask 1042433
    %v216 = vsel %vm215, %v214, %v211
    %s217 = scalar_lea.vmem %s0, 116
    %s218 = smov 24
    %v219 = vld [vmem:[%s217] ss:$-24 sm:%s218]
    %vm220 = vcmask 1044483
    %v221 = vsel %vm220, %v219, %v216
    %s222 = scalar_lea.vmem %s0, 172
    %s223 = smov 96
    %v224 = vld [vmem:[%s222] ss:$-24 sm:%s223]
    %vm225 = vcmask 1046533
    %v226 = vsel %vm225, %v224, %v221
    %s227 = scalar_lea.vmem %s0, 53
    %v228 = vld [vmem:[%s227] sm:$0x80]
    %vm229 = vcmask 1047559
    %v230 = vsel %vm229, %v228, %v226
    %231 = vrot.lane.b32.xlu0 %v230, 64
    %v232 = vpop.permute.xlu0 %231
    %vm233 = vcmask 654848
    %234 = vst.msk [vmem:[#allocation0] sm:$0x3] %vm233, %v232
    %s235 = scalar_lea.vmem [#allocation0], 6
    %236 = vst.msk [vmem:[%s235] sm:$0xc] %vm233, %v232
    %s237 = scalar_lea.vmem [#allocation0], 12
    %238 = vst.msk [vmem:[%s237] sm:$0x30] %vm233, %v232
    %s239 = scalar_lea.vmem [#allocation0], 18
    %240 = vst.msk [vmem:[%s239] sm:$0xc0] %vm233, %v232
    %s241 = scalar_lea.vmem %s0, 68
    %v242 = vld [vmem:[%s241] sm:$0x1]
    %s243 = scalar_lea.vmem %s0, 124
    %s244 = smov 6
    %v245 = vld [vmem:[%s243] ss:$-24 sm:%s244]
    %vm246 = vcmask 1042433
    %v247 = vsel %vm246, %v245, %v242
    %s248 = scalar_lea.vmem %s0, 180
    %s249 = smov 24
    %v250 = vld [vmem:[%s248] ss:$-24 sm:%s249]
    %vm251 = vcmask 1044483
    %v252 = vsel %vm251, %v250, %v247
    %s253 = scalar_lea.vmem %s0, 236
    %s254 = smov 96
    %v255 = vld [vmem:[%s253] ss:$-24 sm:%s254]
    %vm256 = vcmask 1046533
    %v257 = vsel %vm256, %v255, %v252
    %s258 = scalar_lea.vmem %s0, 117
    %v259 = vld [vmem:[%s258] sm:$0x80]
    %vm260 = vcmask 1047559
    %v261 = vsel %vm260, %v259, %v257
    %262 = vrot.lane.b32.xlu0 %v261, 64
    %v263 = vpop.permute.xlu0 %262
    %vm264 = vcmask 654848
    %s265 = scalar_lea.vmem [#allocation0], 32
    %266 = vst.msk [vmem:[%s265] sm:$0x3] %vm264, %v263
    %s267 = scalar_lea.vmem [#allocation0], 38
    %268 = vst.msk [vmem:[%s267] sm:$0xc] %vm264, %v263
    %s269 = scalar_lea.vmem [#allocation0], 44
    %270 = vst.msk [vmem:[%s269] sm:$0x30] %vm264, %v263
    %s271 = scalar_lea.vmem [#allocation0], 50
    %272 = vst.msk [vmem:[%s271] sm:$0xc0] %vm264, %v263
    %s273 = scalar_lea.vmem %s0, 3
    %v274 = vld [vmem:[%s273] sm:$0x1]
    %s275 = scalar_lea.vmem %s0, 59
    %s276 = smov 6
    %v277 = vld [vmem:[%s275] ss:$-24 sm:%s276]
    %vm278 = vcmask 1042433
    %v279 = vsel %vm278, %v277, %v274
    %s280 = scalar_lea.vmem %s0, 115
    %s281 = smov 24
    %v282 = vld [vmem:[%s280] ss:$-24 sm:%s281]
    %vm283 = vcmask 1044483
    %v284 = vsel %vm283, %v282, %v279
    %s285 = scalar_lea.vmem %s0, 171
    %s286 = smov 96
    %v287 = vld [vmem:[%s285] ss:$-24 sm:%s286]
    %vm288 = vcmask 1046533
    %v289 = vsel %vm288, %v287, %v284
    %s290 = scalar_lea.vmem %s0, 52
    %v291 = vld [vmem:[%s290] sm:$0x80]
    %vm292 = vcmask 1047559
    %v293 = vsel %vm292, %v291, %v289
    %294 = vrot.lane.b32.xlu0 %v293, 48
    %v295 = vpop.permute.xlu0 %294
    %vm296 = vcmask 523648
    %297 = vst.msk [vmem:[#allocation0] sm:$0x3] %vm296, %v295
    %s298 = scalar_lea.vmem [#allocation0], 6
    %299 = vst.msk [vmem:[%s298] sm:$0xc] %vm296, %v295
    %s300 = scalar_lea.vmem [#allocation0], 12
    %301 = vst.msk [vmem:[%s300] sm:$0x30] %vm296, %v295
    %s302 = scalar_lea.vmem [#allocation0], 18
    %303 = vst.msk [vmem:[%s302] sm:$0xc0] %vm296, %v295
    %s304 = scalar_lea.vmem %s0, 67
    %v305 = vld [vmem:[%s304] sm:$0x1]
    %s306 = scalar_lea.vmem %s0, 123
    %s307 = smov 6
    %v308 = vld [vmem:[%s306] ss:$-24 sm:%s307]
    %vm309 = vcmask 1042433
    %v310 = vsel %vm309, %v308, %v305
    %s311 = scalar_lea.vmem %s0, 179
    %s312 = smov 24
    %v313 = vld [vmem:[%s311] ss:$-24 sm:%s312]
    %vm314 = vcmask 1044483
    %v315 = vsel %vm314, %v313, %v310
    %s316 = scalar_lea.vmem %s0, 235
    %s317 = smov 96
    %v318 = vld [vmem:[%s316] ss:$-24 sm:%s317]
    %vm319 = vcmask 1046533
    %v320 = vsel %vm319, %v318, %v315
    %s321 = scalar_lea.vmem %s0, 116
    %v322 = vld [vmem:[%s321] sm:$0x80]
    %vm323 = vcmask 1047559
    %v324 = vsel %vm323, %v322, %v320
    %325 = vrot.lane.b32.xlu0 %v324, 48
    %v326 = vpop.permute.xlu0 %325
    %vm327 = vcmask 523648
    %s328 = scalar_lea.vmem [#allocation0], 32
    %329 = vst.msk [vmem:[%s328] sm:$0x3] %vm327, %v326
    %s330 = scalar_lea.vmem [#allocation0], 38
    %331 = vst.msk [vmem:[%s330] sm:$0xc] %vm327, %v326
    %s332 = scalar_lea.vmem [#allocation0], 44
    %333 = vst.msk [vmem:[%s332] sm:$0x30] %vm327, %v326
    %s334 = scalar_lea.vmem [#allocation0], 50
    %335 = vst.msk [vmem:[%s334] sm:$0xc0] %vm327, %v326
    %s336 = scalar_lea.vmem %s0, 2
    %v337 = vld [vmem:[%s336] sm:$0x1]
    %s338 = scalar_lea.vmem %s0, 58
    %s339 = smov 6
    %v340 = vld [vmem:[%s338] ss:$-24 sm:%s339]
    %vm341 = vcmask 1042433
    %v342 = vsel %vm341, %v340, %v337
    %s343 = scalar_lea.vmem %s0, 114
    %s344 = smov 24
    %v345 = vld [vmem:[%s343] ss:$-24 sm:%s344]
    %vm346 = vcmask 1044483
    %v347 = vsel %vm346, %v345, %v342
    %s348 = scalar_lea.vmem %s0, 170
    %s349 = smov 96
    %v350 = vld [vmem:[%s348] ss:$-24 sm:%s349]
    %vm351 = vcmask 1046533
    %v352 = vsel %vm351, %v350, %v347
    %s353 = scalar_lea.vmem %s0, 51
    %v354 = vld [vmem:[%s353] sm:$0x80]
    %vm355 = vcmask 1047559
    %v356 = vsel %vm355, %v354, %v352
    %357 = vrot.lane.b32.xlu0 %v356, 32
    %v358 = vpop.permute.xlu0 %357
    %vm359 = vcmask 392448
    %360 = vst.msk [vmem:[#allocation0] sm:$0x3] %vm359, %v358
    %s361 = scalar_lea.vmem [#allocation0], 6
    %362 = vst.msk [vmem:[%s361] sm:$0xc] %vm359, %v358
    %s363 = scalar_lea.vmem [#allocation0], 12
    %364 = vst.msk [vmem:[%s363] sm:$0x30] %vm359, %v358
    %s365 = scalar_lea.vmem [#allocation0], 18
    %366 = vst.msk [vmem:[%s365] sm:$0xc0] %vm359, %v358
    %s367 = scalar_lea.vmem %s0, 66
    %v368 = vld [vmem:[%s367] sm:$0x1]
    %s369 = scalar_lea.vmem %s0, 122
    %s370 = smov 6
    %v371 = vld [vmem:[%s369] ss:$-24 sm:%s370]
    %vm372 = vcmask 1042433
    %v373 = vsel %vm372, %v371, %v368
    %s374 = scalar_lea.vmem %s0, 178
    %s375 = smov 24
    %v376 = vld [vmem:[%s374] ss:$-24 sm:%s375]
    %vm377 = vcmask 1044483
    %v378 = vsel %vm377, %v376, %v373
    %s379 = scalar_lea.vmem %s0, 234
    %s380 = smov 96
    %v381 = vld [vmem:[%s379] ss:$-24 sm:%s380]
    %vm382 = vcmask 1046533
    %v383 = vsel %vm382, %v381, %v378
    %s384 = scalar_lea.vmem %s0, 115
    %v385 = vld [vmem:[%s384] sm:$0x80]
    %vm386 = vcmask 1047559
    %v387 = vsel %vm386, %v385, %v383
    %388 = vrot.lane.b32.xlu0 %v387, 32
    %v389 = vpop.permute.xlu0 %388
    %vm390 = vcmask 392448
    %s391 = scalar_lea.vmem [#allocation0], 32
    %392 = vst.msk [vmem:[%s391] sm:$0x3] %vm390, %v389
    %s393 = scalar_lea.vmem [#allocation0], 38
    %394 = vst.msk [vmem:[%s393] sm:$0xc] %vm390, %v389
    %s395 = scalar_lea.vmem [#allocation0], 44
    %396 = vst.msk [vmem:[%s395] sm:$0x30] %vm390, %v389
    %s397 = scalar_lea.vmem [#allocation0], 50
    %398 = vst.msk [vmem:[%s397] sm:$0xc0] %vm390, %v389
    %s399 = scalar_lea.vmem %s0, 1
    %v400 = vld [vmem:[%s399] sm:$0x1]
    %s401 = scalar_lea.vmem %s0, 57
    %s402 = smov 6
    %v403 = vld [vmem:[%s401] ss:$-24 sm:%s402]
    %vm404 = vcmask 1042433
    %v405 = vsel %vm404, %v403, %v400
    %s406 = scalar_lea.vmem %s0, 113
    %s407 = smov 24
    %v408 = vld [vmem:[%s406] ss:$-24 sm:%s407]
    %vm409 = vcmask 1044483
    %v410 = vsel %vm409, %v408, %v405
    %s411 = scalar_lea.vmem %s0, 169
    %s412 = smov 96
    %v413 = vld [vmem:[%s411] ss:$-24 sm:%s412]
    %vm414 = vcmask 1046533
    %v415 = vsel %vm414, %v413, %v410
    %s416 = scalar_lea.vmem %s0, 50
    %v417 = vld [vmem:[%s416] sm:$0x80]
    %vm418 = vcmask 1047559
    %v419 = vsel %vm418, %v417, %v415
    %420 = vrot.lane.b32.xlu0 %v419, 16
    %v421 = vpop.permute.xlu0 %420
    %vm422 = vcmask 261248
    %423 = vst.msk [vmem:[#allocation0] sm:$0x3] %vm422, %v421
    %s424 = scalar_lea.vmem [#allocation0], 6
    %425 = vst.msk [vmem:[%s424] sm:$0xc] %vm422, %v421
    %s426 = scalar_lea.vmem [#allocation0], 12
    %427 = vst.msk [vmem:[%s426] sm:$0x30] %vm422, %v421
    %s428 = scalar_lea.vmem [#allocation0], 18
    %429 = vst.msk [vmem:[%s428] sm:$0xc0] %vm422, %v421
    %s430 = scalar_lea.vmem %s0, 65
    %v431 = vld [vmem:[%s430] sm:$0x1]
    %s432 = scalar_lea.vmem %s0, 121
    %s433 = smov 6
    %v434 = vld [vmem:[%s432] ss:$-24 sm:%s433]
    %vm435 = vcmask 1042433
    %v436 = vsel %vm435, %v434, %v431
    %s437 = scalar_lea.vmem %s0, 177
    %s438 = smov 24
    %v439 = vld [vmem:[%s437] ss:$-24 sm:%s438]
    %vm440 = vcmask 1044483
    %v441 = vsel %vm440, %v439, %v436
    %s442 = scalar_lea.vmem %s0, 233
    %s443 = smov 96
    %v444 = vld [vmem:[%s442] ss:$-24 sm:%s443]
    %vm445 = vcmask 1046533
    %v446 = vsel %vm445, %v444, %v441
    %s447 = scalar_lea.vmem %s0, 114
    %v448 = vld [vmem:[%s447] sm:$0x80]
    %vm449 = vcmask 1047559
    %v450 = vsel %vm449, %v448, %v446
    %451 = vrot.lane.b32.xlu0 %v450, 16
    %v452 = vpop.permute.xlu0 %451
    %vm453 = vcmask 261248
    %s454 = scalar_lea.vmem [#allocation0], 32
    %455 = vst.msk [vmem:[%s454] sm:$0x3] %vm453, %v452
    %s456 = scalar_lea.vmem [#allocation0], 38
    %457 = vst.msk [vmem:[%s456] sm:$0xc] %vm453, %v452
    %s458 = scalar_lea.vmem [#allocation0], 44
    %459 = vst.msk [vmem:[%s458] sm:$0x30] %vm453, %v452
    %s460 = scalar_lea.vmem [#allocation0], 50
    %461 = vst.msk [vmem:[%s460] sm:$0xc0] %vm453, %v452
    %s463 = sshllo.u32 0, 2
    %v465 = vld [vmem:[#allocation0] sm:%s463]
    %s466 = sshllo.u32 0, 2
    %467 = vst [vmem:[%s1] sm:%s466] %v465
    %s468 = scalar_lea.vmem [#allocation0], 8
    %v469 = vld [vmem:[%s468] sm:%s463]
    %s470 = sshllo.u32 0, 2
    %s471 = scalar_lea.vmem %s1, 2
    %472 = vst [vmem:[%s471] sm:%s470] %v469
    %s473 = scalar_lea.vmem [#allocation0], 16
    %v474 = vld [vmem:[%s473] sm:%s463]
    %s475 = sshllo.u32 0, 2
    %s476 = smul.addr 2, 2
    %s477 = scalar_lea.vmem %s1, %s476
    %478 = vst [vmem:[%s477] sm:%s475] %v474
    %s479 = scalar_lea.vmem [#allocation0], 24
    %v480 = vld [vmem:[%s479] sm:%s463]
    %s481 = sshllo.u32 0, 2
    %s482 = smul.addr 2, 3
    %s483 = scalar_lea.vmem %s1, %s482
    %484 = vst [vmem:[%s483] sm:%s481] %v480
    %s485 = scalar_lea.vmem [#allocation0], 32
    %v486 = vld [vmem:[%s485] sm:%s463]
    %s487 = sshllo.u32 0, 2
    %s488 = smul.addr 2, 4
    %s489 = scalar_lea.vmem %s1, %s488
    %490 = vst [vmem:[%s489] sm:%s487] %v486
    %s491 = scalar_lea.vmem [#allocation0], 40
    %v492 = vld [vmem:[%s491] sm:%s463]
    %s493 = sshllo.u32 0, 2
    %s494 = smul.addr 2, 5
    %s495 = scalar_lea.vmem %s1, %s494
    %496 = vst [vmem:[%s495] sm:%s493] %v492
    %s497 = scalar_lea.vmem [#allocation0], 48
    %v498 = vld [vmem:[%s497] sm:%s463]
    %s499 = sshllo.u32 0, 2
    %s500 = smul.addr 2, 6
    %s501 = scalar_lea.vmem %s1, %s500
    %502 = vst [vmem:[%s501] sm:%s499] %v498
    %s503 = scalar_lea.vmem [#allocation0], 56
    %v504 = vld [vmem:[%s503] sm:%s463]
    %s505 = sshllo.u32 0, 2
    %s506 = smul.addr 2, 7
    %s507 = scalar_lea.vmem %s1, %s506
    %508 = vst [vmem:[%s507] sm:%s505] %v504

// kernel: s_mamba_forward.1
$region0: #{s_mamba_forward.1}
  #allocation0 [shape = 'u32[]', space=smem, size = 0x4, offset = 0x4, fixed_abs, tag = 'smem constant byte address 0x4 - core index']
  #allocation1 [shape = 'u32[144,128]{1,0:T(1,128)}', space=vmem, size = 0x12000, scoped, tag = 'internal scratch']
  %s0 = inlined_call_operand.hbm [shape: f32[1,56,8], index: 0, kind: input, shape index: {}]
  %s1 = inlined_call_operand.hbm [shape: f32[8,32], index: 1, kind: input, shape index: {}]
  %s2 = inlined_call_operand.hbm [shape: f32[1,32], index: 2, kind: input, shape index: {}]
  %s3 = inlined_call_operand.hbm [shape: bf16[2,32,128], index: 3, kind: input, shape index: {}]
  %s4 = inlined_call_operand.hbm [shape: f32[2,2,2,32], index: 4, kind: input, shape index: {}]
  %s5 = inlined_call_operand.hbm [shape: f32[2,2,1,32], index: 5, kind: input, shape index: {}]
  %s6 = inlined_call_operand.hbm [shape: bf16[2,2,32,64], index: 6, kind: input, shape index: {}]
  %s7 = inlined_call_operand.hbm [shape: f32[2,2,1,32], index: 7, kind: input, shape index: {}]
  %s8 = inlined_call_operand.hbm [shape: f32[2,2,32,512], index: 8, kind: input, shape index: {}]
  %s9 = inlined_call_operand.hbm [shape: f32[32,512], index: 9, kind: input, shape index: {}]
  %s10 = inlined_call_operand.hbm [shape: f32[16,512], index: 10, kind: input, shape index: {}]
  %s11 = inlined_call_operand.hbm [shape: f32[512,32], index: 11, kind: input, shape index: {}]
  %s12 = inlined_call_operand.hbm [shape: f32[2,2,1,32], index: 12, kind: input, shape index: {}]
  %s13 = inlined_call_operand.hbm [shape: bf16[2,64,32], index: 13, kind: input, shape index: {}]
  %s14 = inlined_call_operand.hbm [shape: bf16[2,32,32], index: 14, kind: input, shape index: {}]
  %s15 = inlined_call_operand.hbm [shape: f32[2,1,32], index: 15, kind: input, shape index: {}]
  %s16 = inlined_call_operand.hbm [shape: bf16[2,32,32], index: 16, kind: input, shape index: {}]
  %s17 = inlined_call_operand.hbm [shape: f32[2,1,32], index: 17, kind: input, shape index: {}]
  %s18 = inlined_call_operand.hbm [shape: f32[2,1,32], index: 18, kind: input, shape index: {}]
  %s19 = inlined_call_operand.hbm [shape: f32[2,1,32], index: 19, kind: input, shape index: {}]
  %s20 = inlined_call_operand.hbm [shape: f32[2,1,32], index: 20, kind: input, shape index: {}]
  %s21 = inlined_call_operand.hbm [shape: f32[2,1,32], index: 21, kind: input, shape index: {}]
  %s22 = inlined_call_operand.hbm [shape: f32[1,32], index: 22, kind: input, shape index: {}]
  %s23 = inlined_call_operand.hbm [shape: f32[1,32], index: 23, kind: input, shape index: {}]
  %s24 = inlined_call_operand.hbm [shape: f32[32,8], index: 24, kind: input, shape index: {}]
  %s25 = inlined_call_operand.hbm [shape: f32[1,8], index: 25, kind: input, shape index: {}]
  %s26 = inlined_call_operand.hbm [shape: f32[1,8,56], index: 26, kind: output, shape index: {}]
  %s27 = sld [smem:[#allocation0]]
  $region218: #{s_mamba_forward.1} parent=0
    _
  %s29 = ssub.s32 1, %s27
  %s30 = scalar_select 0, %s29, %s27
  $region1: #{s_mamba_forward.1} parent=0
    #allocation2 [shape = 'u8[28672]{0}', space=vmem, size = 0x7000, scoped, tag = 'input window, operand 0, single buffered']
    #allocation3 [shape = 's32[1]{0}', space=sflag, size = 0x4, scoped, tag = 'scoped memory for s_mamba_forward.1']
    #allocation4 [shape = 's32[1]{0}', space=sflag, size = 0x4, scoped, tag = 'scoped memory for s_mamba_forward.1']
    #allocation5 [shape = 'u8[4096]{0}', space=vmem, size = 0x1000, scoped, tag = 'input window, operand 1, single buffered']
    #allocation6 [shape = 's32[1]{0}', space=sflag, size = 0x4, scoped, tag = 'scoped memory for s_mamba_forward.1']
    #allocation7 [shape = 'u8[512]{0}', space=vmem, size = 0x400, scoped, tag = 'input window, operand 2, single buffered']
    #allocation8 [shape = 'u8[16384]{0}', space=vmem, size = 0x4000, scoped, tag = 'input window, operand 3, single buffered']
    #allocation9 [shape = 's32[1]{0}', space=sflag, size = 0x4, scoped, tag = 'scoped memory for s_mamba_forward.1']
    #allocation10 [shape = 'u8[4096]{0}', space=vmem, size = 0x1000, scoped, tag = 'input window, operand 4, single buffered']
    #allocation11 [shape = 'u8[2048]{0}', space=vmem, size = 0x800, scoped, tag = 'input window, operand 5, single buffered']
    #allocation12 [shape = 's32[1]{0}', space=sflag, size = 0x4, scoped, tag = 'scoped memory for s_mamba_forward.1']
    #allocation13 [shape = 'u8[32768]{0}', space=vmem, size = 0x8000, scoped, tag = 'input window, operand 6, single buffered']
    #allocation14 [shape = 'u8[2048]{0}', space=vmem, size = 0x800, scoped, tag = 'input window, operand 7, single buffered']
    #allocation15 [shape = 's32[1]{0}', space=sflag, size = 0x4, scoped, tag = 'scoped memory for s_mamba_forward.1']
    #allocation16 [shape = 'u8[262144]{0}', space=vmem, size = 0x40000, scoped, tag = 'input window, operand 8, single buffered']
    #allocation17 [shape = 'u8[65536]{0}', space=vmem, size = 0x10000, scoped, tag = 'input window, operand 9, single buffered']
    #allocation18 [shape = 's32[1]{0}', space=sflag, size = 0x4, scoped, tag = 'scoped memory for s_mamba_forward.1']
    #allocation19 [shape = 'u8[32768]{0}', space=vmem, size = 0x8000, scoped, tag = 'input window, operand 10, single buffered']
    #allocation20 [shape = 'u8[262144]{0}', space=vmem, size = 0x40000, scoped, tag = 'input window, operand 11, single buffered']
    #allocation21 [shape = 's32[1]{0}', space=sflag, size = 0x4, scoped, tag = 'scoped memory for s_mamba_forward.1']
    #allocation22 [shape = 'u8[2048]{0}', space=vmem, size = 0x800, scoped, tag = 'input window, operand 12, single buffered']
    #allocation23 [shape = 'u8[32768]{0}', space=vmem, size = 0x8000, scoped, tag = 'input window, operand 13, single buffered']
    #allocation24 [shape = 's32[1]{0}', space=sflag, size = 0x4, scoped, tag = 'scoped memory for s_mamba_forward.1']
    #allocation25 [shape = 'u8[16384]{0}', space=vmem, size = 0x4000, scoped, tag = 'input window, operand 14, single buffered']
    #allocation26 [shape = 'u8[1024]{0}', space=vmem, size = 0x400, scoped, tag = 'input window, operand 15, single buffered']
    #allocation27 [shape = 's32[1]{0}', space=sflag, size = 0x4, scoped, tag = 'scoped memory for s_mamba_forward.1']
    #allocation28 [shape = 'u8[16384]{0}', space=vmem, size = 0x4000, scoped, tag = 'input window, operand 16, single buffered']
    #allocation29 [shape = 'u8[1024]{0}', space=vmem, size = 0x400, scoped, tag = 'input window, operand 17, single buffered']
    #allocation30 [shape = 's32[1]{0}', space=sflag, size = 0x4, scoped, tag = 'scoped memory for s_mamba_forward.1']
    #allocation31 [shape = 'u8[1024]{0}', space=vmem, size = 0x400, scoped, tag = 'input window, operand 18, single buffered']
    #allocation32 [shape = 'u8[1024]{0}', space=vmem, size = 0x400, scoped, tag = 'input window, operand 19, single buffered']
    #allocation33 [shape = 's32[1]{0}', space=sflag, size = 0x4, scoped, tag = 'scoped memory for s_mamba_forward.1']
    #allocation34 [shape = 'u8[1024]{0}', space=vmem, size = 0x400, scoped, tag = 'input window, operand 20, single buffered']
    #allocation35 [shape = 'u8[1024]{0}', space=vmem, size = 0x400, scoped, tag = 'input window, operand 21, single buffered']
    #allocation36 [shape = 's32[1]{0}', space=sflag, size = 0x4, scoped, tag = 'scoped memory for s_mamba_forward.1']
    #allocation37 [shape = 'u8[512]{0}', space=vmem, size = 0x400, scoped, tag = 'input window, operand 22, single buffered']
    #allocation38 [shape = 'u8[512]{0}', space=vmem, size = 0x400, scoped, tag = 'input window, operand 23, single buffered']
    #allocation39 [shape = 's32[1]{0}', space=sflag, size = 0x4, scoped, tag = 'scoped memory for s_mamba_forward.1']
    #allocation40 [shape = 'u8[16384]{0}', space=vmem, size = 0x4000, scoped, tag = 'input window, operand 24, single buffered']
    #allocation41 [shape = 'u8[512]{0}', space=vmem, size = 0x400, scoped, tag = 'input window, operand 25, single buffered']
    #allocation42 [shape = 's32[1]{0}', space=sflag, size = 0x4, scoped, tag = 'scoped memory for s_mamba_forward.1']
    #allocation43 [shape = 'u8[4096]{0}', space=vmem, size = 0x1000, scoped, tag = 'output window, operand 0, single buffered']
    %31 = vsyncpa [#allocation3], 0
    %32 = vsyncpa [#allocation6], 0
    %33 = vsyncpa [#allocation9], 0
    %34 = vsyncpa [#allocation12], 0
    %35 = vsyncpa [#allocation15], 0
    %36 = vsyncpa [#allocation18], 0
    %37 = vsyncpa [#allocation21], 0
    %38 = vsyncpa [#allocation24], 0
    %39 = vsyncpa [#allocation27], 0
    %40 = vsyncpa [#allocation30], 0
    %41 = vsyncpa [#allocation33], 0
    %42 = vsyncpa [#allocation36], 0
    %43 = vsyncpa [#allocation39], 0
    %44 = vsyncpa [#allocation42], 0
    %45 = vsyncpa [#allocation4], 0
    // Predicated region
    $region2: #{s_mamba_forward.1} parent=1 // pred_check
      _
    $region3: #{s_mamba_forward.1} parent=1 // pred_check_branch
      %47 = sbr.rel (0) target = $region5
    $region4: #{s_mamba_forward.1} parent=1 // pred_region
      %s49 = ssub.s32 896, 896
      %50 = vsyncadd [#allocation3], %s49
      %s51 = sshll.u32 [#allocation2], 4
      %s52 = int_to_ptr.vmem [resolvable:$true] %s51
      %57 = dma.hbm_to_vmem [thread:$0]  %s0, 896, %s52, [#allocation3], 128, 128, 8
    $region5: #{s_mamba_forward.1} parent=1 // pred_fallthru
      _
    // Predicated region
    $region6: #{s_mamba_forward.1} parent=1 // pred_check
      _
    $region7: #{s_mamba_forward.1} parent=1 // pred_check_branch
      %59 = sbr.rel (0) target = $region9
    $region8: #{s_mamba_forward.1} parent=1 // pred_region
      %s61 = ssub.s32 128, 128
      %62 = vsyncadd [#allocation6], %s61
      %s64 = sshll.u32 [#allocation5], 4
      %s65 = int_to_ptr.vmem [resolvable:$true] %s64
      %67 = dma.hbm_to_vmem [thread:$0]  %s1, 128, %s65, [#allocation6]
    $region9: #{s_mamba_forward.1} parent=1 // pred_fallthru
      _
    // Predicated region
    $region10: #{s_mamba_forward.1} parent=1 // pred_check
      _
    $region11: #{s_mamba_forward.1} parent=1 // pred_check_branch
      %69 = sbr.rel (0) target = $region13
    $region12: #{s_mamba_forward.1} parent=1 // pred_region
      %s71 = ssub.s32 16, 16
      %72 = vsyncadd [#allocation6], %s71
      %s74 = sshll.u32 [#allocation7], 4
      %s75 = int_to_ptr.vmem [resolvable:$true] %s74
      %77 = dma.hbm_to_vmem [thread:$0]  %s2, 16, %s75, [#allocation6]
    $region13: #{s_mamba_forward.1} parent=1 // pred_fallthru
      _
    // Predicated region
    $region14: #{s_mamba_forward.1} parent=1 // pred_check
      _
    $region15: #{s_mamba_forward.1} parent=1 // pred_check_branch
      %79 = sbr.rel (0) target = $region17
    $region16: #{s_mamba_forward.1} parent=1 // pred_region
      %s81 = ssub.s32 512, 512
      %82 = vsyncadd [#allocation9], %s81
      %s83 = sshll.u32 [#allocation8], 4
      %s84 = int_to_ptr.vmem [resolvable:$true] %s83
      %89 = dma.hbm_to_vmem [thread:$0]  %s3, 512, %s84, [#allocation9], 64, 64, 4
    $region17: #{s_mamba_forward.1} parent=1 // pred_fallthru
      _
    // Predicated region
    $region18: #{s_mamba_forward.1} parent=1 // pred_check
      _
    $region19: #{s_mamba_forward.1} parent=1 // pred_check_branch
      %91 = sbr.rel (0) target = $region21
    $region20: #{s_mamba_forward.1} parent=1 // pred_region
      %s93 = ssub.s32 128, 128
      %94 = vsyncadd [#allocation9], %s93
      %s95 = sshll.u32 [#allocation10], 4
      %s96 = int_to_ptr.vmem [resolvable:$true] %s95
      %101 = dma.hbm_to_vmem [thread:$0]  %s4, 128, %s96, [#allocation9], 32, 32, 2
    $region21: #{s_mamba_forward.1} parent=1 // pred_fallthru
      _
    // Predicated region
    $region22: #{s_mamba_forward.1} parent=1 // pred_check
      _
    $region23: #{s_mamba_forward.1} parent=1 // pred_check_branch
      %103 = sbr.rel (0) target = $region25
    $region24: #{s_mamba_forward.1} parent=1 // pred_region
      %s105 = ssub.s32 64, 64
      %106 = vsyncadd [#allocation12], %s105
      %s107 = sshll.u32 [#allocation11], 4
      %s108 = int_to_ptr.vmem [resolvable:$true] %s107
      %113 = dma.hbm_to_vmem [thread:$0]  %s5, 64, %s108, [#allocation12], 16, 16, 1
    $region25: #{s_mamba_forward.1} parent=1 // pred_fallthru
      _
    // Predicated region
    $region26: #{s_mamba_forward.1} parent=1 // pred_check
      _
    $region27: #{s_mamba_forward.1} parent=1 // pred_check_branch
      %115 = sbr.rel (0) target = $region29
    $region28: #{s_mamba_forward.1} parent=1 // pred_region
      %s117 = ssub.s32 1024, 1024
      %118 = vsyncadd [#allocation12], %s117
      %s119 = sshll.u32 [#allocation13], 4
      %s120 = int_to_ptr.vmem [resolvable:$true] %s119
      %125 = dma.hbm_to_vmem [thread:$0]  %s6, 1024, %s120, [#allocation12], 64, 64, 4
    $region29: #{s_mamba_forward.1} parent=1 // pred_fallthru
      _
    // Predicated region
    $region30: #{s_mamba_forward.1} parent=1 // pred_check
      _
    $region31: #{s_mamba_forward.1} parent=1 // pred_check_branch
      %127 = sbr.rel (0) target = $region33
    $region32: #{s_mamba_forward.1} parent=1 // pred_region
      %s129 = ssub.s32 64, 64
      %130 = vsyncadd [#allocation15], %s129
      %s131 = sshll.u32 [#allocation14], 4
      %s132 = int_to_ptr.vmem [resolvable:$true] %s131
      %137 = dma.hbm_to_vmem [thread:$0]  %s7, 64, %s132, [#allocation15], 16, 16, 1
    $region33: #{s_mamba_forward.1} parent=1 // pred_fallthru
      _
    // Predicated region
    $region34: #{s_mamba_forward.1} parent=1 // pred_check
      _
    $region35: #{s_mamba_forward.1} parent=1 // pred_check_branch
      %139 = sbr.rel (0) target = $region37
    $region36: #{s_mamba_forward.1} parent=1 // pred_region
      %s141 = ssub.s32 8192, 8192
      %142 = vsyncadd [#allocation15], %s141
      %s143 = sshll.u32 [#allocation16], 4
      %s144 = int_to_ptr.vmem [resolvable:$true] %s143
      %149 = dma.hbm_to_vmem [thread:$0]  %s8, 8192, %s144, [#allocation15], 512, 512, 32
    $region37: #{s_mamba_forward.1} parent=1 // pred_fallthru
      _
    // Predicated region
    $region38: #{s_mamba_forward.1} parent=1 // pred_check
      _
    $region39: #{s_mamba_forward.1} parent=1 // pred_check_branch
      %151 = sbr.rel (0) target = $region41
    $region40: #{s_mamba_forward.1} parent=1 // pred_region
      %s153 = ssub.s32 2048, 2048
      %154 = vsyncadd [#allocation18], %s153
      %s155 = sshll.u32 [#allocation17], 4
      %s156 = int_to_ptr.vmem [resolvable:$true] %s155
      %161 = dma.hbm_to_vmem [thread:$0]  %s9, 2048, %s156, [#allocation18], 512, 512, 32
    $region41: #{s_mamba_forward.1} parent=1 // pred_fallthru
      _
    // Predicated region
    $region42: #{s_mamba_forward.1} parent=1 // pred_check
      _
    $region43: #{s_mamba_forward.1} parent=1 // pred_check_branch
      %163 = sbr.rel (0) target = $region45
    $region44: #{s_mamba_forward.1} parent=1 // pred_region
      %s165 = ssub.s32 1024, 1024
      %166 = vsyncadd [#allocation18], %s165
      %s167 = sshll.u32 [#allocation19], 4
      %s168 = int_to_ptr.vmem [resolvable:$true] %s167
      %173 = dma.hbm_to_vmem [thread:$0]  %s10, 1024, %s168, [#allocation18], 512, 512, 32
    $region45: #{s_mamba_forward.1} parent=1 // pred_fallthru
      _
    // Predicated region
    $region46: #{s_mamba_forward.1} parent=1 // pred_check
      _
    $region47: #{s_mamba_forward.1} parent=1 // pred_check_branch
      %175 = sbr.rel (0) target = $region49
    $region48: #{s_mamba_forward.1} parent=1 // pred_region
      %s177 = ssub.s32 8192, 8192
      %178 = vsyncadd [#allocation21], %s177
      %s179 = sshll.u32 [#allocation20], 4
      %s180 = int_to_ptr.vmem [resolvable:$true] %s179
      %185 = dma.hbm_to_vmem [thread:$0]  %s11, 8192, %s180, [#allocation21], 128, 128, 8
    $region49: #{s_mamba_forward.1} parent=1 // pred_fallthru
      _
    // Predicated region
    $region50: #{s_mamba_forward.1} parent=1 // pred_check
      _
    $region51: #{s_mamba_forward.1} parent=1 // pred_check_branch
      %187 = sbr.rel (0) target = $region53
    $region52: #{s_mamba_forward.1} parent=1 // pred_region
      %s189 = ssub.s32 64, 64
      %190 = vsyncadd [#allocation21], %s189
      %s191 = sshll.u32 [#allocation22], 4
      %s192 = int_to_ptr.vmem [resolvable:$true] %s191
      %197 = dma.hbm_to_vmem [thread:$0]  %s12, 64, %s192, [#allocation21], 16, 16, 1
    $region53: #{s_mamba_forward.1} parent=1 // pred_fallthru
      _
    // Predicated region
    $region54: #{s_mamba_forward.1} parent=1 // pred_check
      _
    $region55: #{s_mamba_forward.1} parent=1 // pred_check_branch
      %199 = sbr.rel (0) target = $region57
    $region56: #{s_mamba_forward.1} parent=1 // pred_region
      %s201 = ssub.s32 1024, 1024
      %202 = vsyncadd [#allocation24], %s201
      %s203 = sshll.u32 [#allocation23], 4
      %s204 = int_to_ptr.vmem [resolvable:$true] %s203
      %209 = dma.hbm_to_vmem [thread:$0]  %s13, 1024, %s204, [#allocation24], 64, 64, 4
    $region57: #{s_mamba_forward.1} parent=1 // pred_fallthru
      _
    // Predicated region
    $region58: #{s_mamba_forward.1} parent=1 // pred_check
      _
    $region59: #{s_mamba_forward.1} parent=1 // pred_check_branch
      %211 = sbr.rel (0) target = $region61
    $region60: #{s_mamba_forward.1} parent=1 // pred_region
      %s213 = ssub.s32 512, 512
      %214 = vsyncadd [#allocation24], %s213
      %s215 = sshll.u32 [#allocation25], 4
      %s216 = int_to_ptr.vmem [resolvable:$true] %s215
      %221 = dma.hbm_to_vmem [thread:$0]  %s14, 512, %s216, [#allocation24], 64, 64, 4
    $region61: #{s_mamba_forward.1} parent=1 // pred_fallthru
      _
    // Predicated region
    $region62: #{s_mamba_forward.1} parent=1 // pred_check
      _
    $region63: #{s_mamba_forward.1} parent=1 // pred_check_branch
      %223 = sbr.rel (0) target = $region65
    $region64: #{s_mamba_forward.1} parent=1 // pred_region
      %s225 = ssub.s32 32, 32
      %226 = vsyncadd [#allocation27], %s225
      %s227 = sshll.u32 [#allocation26], 4
      %s228 = int_to_ptr.vmem [resolvable:$true] %s227
      %233 = dma.hbm_to_vmem [thread:$0]  %s15, 32, %s228, [#allocation27], 16, 16, 1
    $region65: #{s_mamba_forward.1} parent=1 // pred_fallthru
      _
    // Predicated region
    $region66: #{s_mamba_forward.1} parent=1 // pred_check
      _
    $region67: #{s_mamba_forward.1} parent=1 // pred_check_branch
      %235 = sbr.rel (0) target = $region69
    $region68: #{s_mamba_forward.1} parent=1 // pred_region
      %s237 = ssub.s32 512, 512
      %238 = vsyncadd [#allocation27], %s237
      %s239 = sshll.u32 [#allocation28], 4
      %s240 = int_to_ptr.vmem [resolvable:$true] %s239
      %245 = dma.hbm_to_vmem [thread:$0]  %s16, 512, %s240, [#allocation27], 64, 64, 4
    $region69: #{s_mamba_forward.1} parent=1 // pred_fallthru
      _
    // Predicated region
    $region70: #{s_mamba_forward.1} parent=1 // pred_check
      _
    $region71: #{s_mamba_forward.1} parent=1 // pred_check_branch
      %247 = sbr.rel (0) target = $region73
    $region72: #{s_mamba_forward.1} parent=1 // pred_region
      %s249 = ssub.s32 32, 32
      %250 = vsyncadd [#allocation30], %s249
      %s251 = sshll.u32 [#allocation29], 4
      %s252 = int_to_ptr.vmem [resolvable:$true] %s251
      %257 = dma.hbm_to_vmem [thread:$0]  %s17, 32, %s252, [#allocation30], 16, 16, 1
    $region73: #{s_mamba_forward.1} parent=1 // pred_fallthru
      _
    // Predicated region
    $region74: #{s_mamba_forward.1} parent=1 // pred_check
      _
    $region75: #{s_mamba_forward.1} parent=1 // pred_check_branch
      %259 = sbr.rel (0) target = $region77
    $region76: #{s_mamba_forward.1} parent=1 // pred_region
      %s261 = ssub.s32 32, 32
      %262 = vsyncadd [#allocation30], %s261
      %s263 = sshll.u32 [#allocation31], 4
      %s264 = int_to_ptr.vmem [resolvable:$true] %s263
      %269 = dma.hbm_to_vmem [thread:$0]  %s18, 32, %s264, [#allocation30], 16, 16, 1
    $region77: #{s_mamba_forward.1} parent=1 // pred_fallthru
      _
    // Predicated region
    $region78: #{s_mamba_forward.1} parent=1 // pred_check
      _
    $region79: #{s_mamba_forward.1} parent=1 // pred_check_branch
      %271 = sbr.rel (0) target = $region81
    $region80: #{s_mamba_forward.1} parent=1 // pred_region
      %s273 = ssub.s32 32, 32
      %274 = vsyncadd [#allocation33], %s273
      %s275 = sshll.u32 [#allocation32], 4
      %s276 = int_to_ptr.vmem [resolvable:$true] %s275
      %281 = dma.hbm_to_vmem [thread:$0]  %s19, 32, %s276, [#allocation33], 16, 16, 1
    $region81: #{s_mamba_forward.1} parent=1 // pred_fallthru
      _
    // Predicated region
    $region82: #{s_mamba_forward.1} parent=1 // pred_check
      _
    $region83: #{s_mamba_forward.1} parent=1 // pred_check_branch
      %283 = sbr.rel (0) target = $region85
    $region84: #{s_mamba_forward.1} parent=1 // pred_region
      %s285 = ssub.s32 32, 32
      %286 = vsyncadd [#allocation33], %s285
      %s287 = sshll.u32 [#allocation34], 4
      %s288 = int_to_ptr.vmem [resolvable:$true] %s287
      %293 = dma.hbm_to_vmem [thread:$0]  %s20, 32, %s288, [#allocation33], 16, 16, 1
    $region85: #{s_mamba_forward.1} parent=1 // pred_fallthru
      _
    // Predicated region
    $region86: #{s_mamba_forward.1} parent=1 // pred_check
      _
    $region87: #{s_mamba_forward.1} parent=1 // pred_check_branch
      %295 = sbr.rel (0) target = $region89
    $region88: #{s_mamba_forward.1} parent=1 // pred_region
      %s297 = ssub.s32 32, 32
      %298 = vsyncadd [#allocation36], %s297
      %s299 = sshll.u32 [#allocation35], 4
      %s300 = int_to_ptr.vmem [resolvable:$true] %s299
      %305 = dma.hbm_to_vmem [thread:$0]  %s21, 32, %s300, [#allocation36], 16, 16, 1
    $region89: #{s_mamba_forward.1} parent=1 // pred_fallthru
      _
    // Predicated region
    $region90: #{s_mamba_forward.1} parent=1 // pred_check
      _
    $region91: #{s_mamba_forward.1} parent=1 // pred_check_branch
      %307 = sbr.rel (0) target = $region93
    $region92: #{s_mamba_forward.1} parent=1 // pred_region
      %s309 = ssub.s32 16, 16
      %310 = vsyncadd [#allocation36], %s309
      %s312 = sshll.u32 [#allocation37], 4
      %s313 = int_to_ptr.vmem [resolvable:$true] %s312
      %315 = dma.hbm_to_vmem [thread:$0]  %s22, 16, %s313, [#allocation36]
    $region93: #{s_mamba_forward.1} parent=1 // pred_fallthru
      _
    // Predicated region
    $region94: #{s_mamba_forward.1} parent=1 // pred_check
      _
    $region95: #{s_mamba_forward.1} parent=1 // pred_check_branch
      %317 = sbr.rel (0) target = $region97
    $region96: #{s_mamba_forward.1} parent=1 // pred_region
      %s319 = ssub.s32 16, 16
      %320 = vsyncadd [#allocation39], %s319
      %s322 = sshll.u32 [#allocation38], 4
      %s323 = int_to_ptr.vmem [resolvable:$true] %s322
      %325 = dma.hbm_to_vmem [thread:$0]  %s23, 16, %s323, [#allocation39]
    $region97: #{s_mamba_forward.1} parent=1 // pred_fallthru
      _
    // Predicated region
    $region98: #{s_mamba_forward.1} parent=1 // pred_check
      _
    $region99: #{s_mamba_forward.1} parent=1 // pred_check_branch
      %327 = sbr.rel (0) target = $region101
    $region100: #{s_mamba_forward.1} parent=1 // pred_region
      %s329 = ssub.s32 512, 512
      %330 = vsyncadd [#allocation39], %s329
      %s331 = sshll.u32 [#allocation40], 4
      %s332 = int_to_ptr.vmem [resolvable:$true] %s331
      %337 = dma.hbm_to_vmem [thread:$0]  %s24, 512, %s332, [#allocation39], 128, 128, 8
    $region101: #{s_mamba_forward.1} parent=1 // pred_fallthru
      _
    // Predicated region
    $region102: #{s_mamba_forward.1} parent=1 // pred_check
      _
    $region103: #{s_mamba_forward.1} parent=1 // pred_check_branch
      %339 = sbr.rel (0) target = $region105
    $region104: #{s_mamba_forward.1} parent=1 // pred_region
      %s341 = ssub.s32 16, 16
      %342 = vsyncadd [#allocation42], %s341
      %s344 = sshll.u32 [#allocation41], 4
      %s345 = int_to_ptr.vmem [resolvable:$true] %s344
      %347 = dma.hbm_to_vmem [thread:$0]  %s25, 16, %s345, [#allocation42]
    $region105: #{s_mamba_forward.1} parent=1 // pred_fallthru
      _
    // Predicated region
    $region106: #{s_mamba_forward.1} parent=1 // pred_check
      _
    $region107: #{s_mamba_forward.1} parent=1 // pred_check_branch
      %349 = sbr.rel (0) target = $region109
    $region108: #{s_mamba_forward.1} parent=1 // pred_region
      %350 = dma.done [#allocation3], 896
    $region109: #{s_mamba_forward.1} parent=1 // pred_fallthru
      _
    // Predicated region
    $region110: #{s_mamba_forward.1} parent=1 // pred_check
      _
    $region111: #{s_mamba_forward.1} parent=1 // pred_check_branch
      %352 = sbr.rel (0) target = $region113
    $region112: #{s_mamba_forward.1} parent=1 // pred_region
      %353 = dma.done [#allocation6], 128
    $region113: #{s_mamba_forward.1} parent=1 // pred_fallthru
      _
    // Predicated region
    $region114: #{s_mamba_forward.1} parent=1 // pred_check
      _
    $region115: #{s_mamba_forward.1} parent=1 // pred_check_branch
      %355 = sbr.rel (0) target = $region117
    $region116: #{s_mamba_forward.1} parent=1 // pred_region
      %356 = dma.done [#allocation6], 16
    $region117: #{s_mamba_forward.1} parent=1 // pred_fallthru
      _
    // Predicated region
    $region118: #{s_mamba_forward.1} parent=1 // pred_check
      _
    $region119: #{s_mamba_forward.1} parent=1 // pred_check_branch
      %358 = sbr.rel (0) target = $region121
    $region120: #{s_mamba_forward.1} parent=1 // pred_region
      %359 = dma.done [#allocation9], 512
    $region121: #{s_mamba_forward.1} parent=1 // pred_fallthru
      _
    // Predicated region
    $region122: #{s_mamba_forward.1} parent=1 // pred_check
      _
    $region123: #{s_mamba_forward.1} parent=1 // pred_check_branch
      %361 = sbr.rel (0) target = $region125
    $region124: #{s_mamba_forward.1} parent=1 // pred_region
      %362 = dma.done [#allocation9], 128
    $region125: #{s_mamba_forward.1} parent=1 // pred_fallthru
      _
    // Predicated region
    $region126: #{s_mamba_forward.1} parent=1 // pred_check
      _
    $region127: #{s_mamba_forward.1} parent=1 // pred_check_branch
      %364 = sbr.rel (0) target = $region129
    $region128: #{s_mamba_forward.1} parent=1 // pred_region
      %365 = dma.done [#allocation12], 64
    $region129: #{s_mamba_forward.1} parent=1 // pred_fallthru
      _
    // Predicated region
    $region130: #{s_mamba_forward.1} parent=1 // pred_check
      _
    $region131: #{s_mamba_forward.1} parent=1 // pred_check_branch
      %367 = sbr.rel (0) target = $region133
    $region132: #{s_mamba_forward.1} parent=1 // pred_region
      %368 = dma.done [#allocation12], 1024
    $region133: #{s_mamba_forward.1} parent=1 // pred_fallthru
      _
    // Predicated region
    $region134: #{s_mamba_forward.1} parent=1 // pred_check
      _
    $region135: #{s_mamba_forward.1} parent=1 // pred_check_branch
      %370 = sbr.rel (0) target = $region137
    $region136: #{s_mamba_forward.1} parent=1 // pred_region
      %371 = dma.done [#allocation15], 64
    $region137: #{s_mamba_forward.1} parent=1 // pred_fallthru
      _
    // Predicated region
    $region138: #{s_mamba_forward.1} parent=1 // pred_check
      _
    $region139: #{s_mamba_forward.1} parent=1 // pred_check_branch
      %373 = sbr.rel (0) target = $region141
    $region140: #{s_mamba_forward.1} parent=1 // pred_region
      %374 = dma.done [#allocation15], 8192
    $region141: #{s_mamba_forward.1} parent=1 // pred_fallthru
      _
    // Predicated region
    $region142: #{s_mamba_forward.1} parent=1 // pred_check
      _
    $region143: #{s_mamba_forward.1} parent=1 // pred_check_branch
      %376 = sbr.rel (0) target = $region145
    $region144: #{s_mamba_forward.1} parent=1 // pred_region
      %377 = dma.done [#allocation18], 2048
    $region145: #{s_mamba_forward.1} parent=1 // pred_fallthru
      _
    // Predicated region
    $region146: #{s_mamba_forward.1} parent=1 // pred_check
      _
    $region147: #{s_mamba_forward.1} parent=1 // pred_check_branch
      %379 = sbr.rel (0) target = $region149
    $region148: #{s_mamba_forward.1} parent=1 // pred_region
      %380 = dma.done [#allocation18], 1024
    $region149: #{s_mamba_forward.1} parent=1 // pred_fallthru
      _
    // Predicated region
    $region150: #{s_mamba_forward.1} parent=1 // pred_check
      _
    $region151: #{s_mamba_forward.1} parent=1 // pred_check_branch
      %382 = sbr.rel (0) target = $region153
    $region152: #{s_mamba_forward.1} parent=1 // pred_region
      %383 = dma.done [#allocation21], 8192
    $region153: #{s_mamba_forward.1} parent=1 // pred_fallthru
      _
    // Predicated region
    $region154: #{s_mamba_forward.1} parent=1 // pred_check
      _
    $region155: #{s_mamba_forward.1} parent=1 // pred_check_branch
      %385 = sbr.rel (0) target = $region157
    $region156: #{s_mamba_forward.1} parent=1 // pred_region
      %386 = dma.done [#allocation21], 64
    $region157: #{s_mamba_forward.1} parent=1 // pred_fallthru
      _
    // Predicated region
    $region158: #{s_mamba_forward.1} parent=1 // pred_check
      _
    $region159: #{s_mamba_forward.1} parent=1 // pred_check_branch
      %388 = sbr.rel (0) target = $region161
    $region160: #{s_mamba_forward.1} parent=1 // pred_region
      %389 = dma.done [#allocation24], 1024
    $region161: #{s_mamba_forward.1} parent=1 // pred_fallthru
      _
    // Predicated region
    $region162: #{s_mamba_forward.1} parent=1 // pred_check
      _
    $region163: #{s_mamba_forward.1} parent=1 // pred_check_branch
      %391 = sbr.rel (0) target = $region165
    $region164: #{s_mamba_forward.1} parent=1 // pred_region
      %392 = dma.done [#allocation24], 512
    $region165: #{s_mamba_forward.1} parent=1 // pred_fallthru
      _
    // Predicated region
    $region166: #{s_mamba_forward.1} parent=1 // pred_check
      _
    $region167: #{s_mamba_forward.1} parent=1 // pred_check_branch
      %394 = sbr.rel (0) target = $region169
    $region168: #{s_mamba_forward.1} parent=1 // pred_region
      %395 = dma.done [#allocation27], 32
    $region169: #{s_mamba_forward.1} parent=1 // pred_fallthru
      _
    // Predicated region
    $region170: #{s_mamba_forward.1} parent=1 // pred_check
      _
    $region171: #{s_mamba_forward.1} parent=1 // pred_check_branch
      %397 = sbr.rel (0) target = $region173
    $region172: #{s_mamba_forward.1} parent=1 // pred_region
      %398 = dma.done [#allocation27], 512
    $region173: #{s_mamba_forward.1} parent=1 // pred_fallthru
      _
    // Predicated region
    $region174: #{s_mamba_forward.1} parent=1 // pred_check
      _
    $region175: #{s_mamba_forward.1} parent=1 // pred_check_branch
      %400 = sbr.rel (0) target = $region177
    $region176: #{s_mamba_forward.1} parent=1 // pred_region
      %401 = dma.done [#allocation30], 32
    $region177: #{s_mamba_forward.1} parent=1 // pred_fallthru
      _
    // Predicated region
    $region178: #{s_mamba_forward.1} parent=1 // pred_check
      _
    $region179: #{s_mamba_forward.1} parent=1 // pred_check_branch
      %403 = sbr.rel (0) target = $region181
    $region180: #{s_mamba_forward.1} parent=1 // pred_region
      %404 = dma.done [#allocation30], 32
    $region181: #{s_mamba_forward.1} parent=1 // pred_fallthru
      _
    // Predicated region
    $region182: #{s_mamba_forward.1} parent=1 // pred_check
      _
    $region183: #{s_mamba_forward.1} parent=1 // pred_check_branch
      %406 = sbr.rel (0) target = $region185
    $region184: #{s_mamba_forward.1} parent=1 // pred_region
      %407 = dma.done [#allocation33], 32
    $region185: #{s_mamba_forward.1} parent=1 // pred_fallthru
      _
    // Predicated region
    $region186: #{s_mamba_forward.1} parent=1 // pred_check
      _
    $region187: #{s_mamba_forward.1} parent=1 // pred_check_branch
      %409 = sbr.rel (0) target = $region189
    $region188: #{s_mamba_forward.1} parent=1 // pred_region
      %410 = dma.done [#allocation33], 32
    $region189: #{s_mamba_forward.1} parent=1 // pred_fallthru
      _
    // Predicated region
    $region190: #{s_mamba_forward.1} parent=1 // pred_check
      _
    $region191: #{s_mamba_forward.1} parent=1 // pred_check_branch
      %412 = sbr.rel (0) target = $region193
    $region192: #{s_mamba_forward.1} parent=1 // pred_region
      %413 = dma.done [#allocation36], 32
    $region193: #{s_mamba_forward.1} parent=1 // pred_fallthru
      _
    // Predicated region
    $region194: #{s_mamba_forward.1} parent=1 // pred_check
      _
    $region195: #{s_mamba_forward.1} parent=1 // pred_check_branch
      %415 = sbr.rel (0) target = $region197
    $region196: #{s_mamba_forward.1} parent=1 // pred_region
      %416 = dma.done [#allocation36], 16
    $region197: #{s_mamba_forward.1} parent=1 // pred_fallthru
      _
    // Predicated region
    $region198: #{s_mamba_forward.1} parent=1 // pred_check
      _
    $region199: #{s_mamba_forward.1} parent=1 // pred_check_branch
      %418 = sbr.rel (0) target = $region201
    $region200: #{s_mamba_forward.1} parent=1 // pred_region
      %419 = dma.done [#allocation39], 16
    $region201: #{s_mamba_forward.1} parent=1 // pred_fallthru
      _
    // Predicated region
    $region202: #{s_mamba_forward.1} parent=1 // pred_check
      _
    $region203: #{s_mamba_forward.1} parent=1 // pred_check_branch
      %421 = sbr.rel (0) target = $region205
    $region204: #{s_mamba_forward.1} parent=1 // pred_region
      %422 = dma.done [#allocation39], 512
    $region205: #{s_mamba_forward.1} parent=1 // pred_fallthru
      _
    // Predicated region
    $region206: #{s_mamba_forward.1} parent=1 // pred_check
      _
    $region207: #{s_mamba_forward.1} parent=1 // pred_check_branch
      %424 = sbr.rel (0) target = $region209
    $region208: #{s_mamba_forward.1} parent=1 // pred_region
      %425 = dma.done [#allocation42], 16
    $region209: #{s_mamba_forward.1} parent=1 // pred_fallthru
      _
    %v427 = vld [vmem:[#allocation2] sm:$0xff]
    %v428 = vld [vmem:[#allocation2 + $0x8] sm:$0xff]
    %v429 = vld [vmem:[#allocation2 + $0x10] sm:$0xff]
    %v430 = vld [vmem:[#allocation2 + $0x18] sm:$0xff]
    %v431 = vld [vmem:[#allocation2 + $0x20] sm:$0xff]
    %v432 = vld [vmem:[#allocation2 + $0x28] sm:$0xff]
    %v433 = vld [vmem:[#allocation2 + $0x30] sm:$0xff]
    %vm434 = vcmask 64512
    %v435 = vsel %vm434, %v427, 0.0
    %436 = vadd.xlane.f32.xlu0 %v435
    %v437 = vpop.xlane.xlu0 %436
    %v438 = vsel %vm434, %v428, 0.0
    %439 = vadd.xlane.f32.xlu0 %v438
    %v440 = vpop.xlane.xlu0 %439
    %v441 = vsel %vm434, %v429, 0.0
    %442 = vadd.xlane.f32.xlu0 %v441
    %v443 = vpop.xlane.xlu0 %442
    %v444 = vsel %vm434, %v430, 0.0
    %445 = vadd.xlane.f32.xlu0 %v444
    %v446 = vpop.xlane.xlu0 %445
    %v447 = vsel %vm434, %v431, 0.0
    %448 = vadd.xlane.f32.xlu0 %v447
    %v449 = vpop.xlane.xlu0 %448
    %v450 = vsel %vm434, %v432, 0.0
    %451 = vadd.xlane.f32.xlu0 %v450
    %v452 = vpop.xlane.xlu0 %451
    %v453 = vsel %vm434, %v433, 0.0
    %454 = vadd.xlane.f32.xlu0 %v453
    %v455 = vpop.xlane.xlu0 %454
    %v456 = vrcp.pop 8.0
    %v457 = vmul.f32 %v437, %v456
    %v458 = vmul.f32 %v440, %v456
    %v459 = vmul.f32 %v443, %v456
    %v460 = vmul.f32 %v446, %v456
    %v461 = vmul.f32 %v449, %v456
    %v462 = vmul.f32 %v452, %v456
    %v463 = vmul.f32 %v455, %v456
    %v464 = vsub.f32 %v427, %v457
    %v465 = vsub.f32 %v428, %v458
    %v466 = vsub.f32 %v429, %v459
    %v467 = vsub.f32 %v430, %v460
    %v468 = vsub.f32 %v431, %v461
    %v469 = vsub.f32 %v432, %v462
    %v470 = vsub.f32 %v433, %v463
    %v471 = vmul.f32 %v464, %v464
    %v472 = vmul.f32 %v465, %v465
    %v473 = vmul.f32 %v466, %v466
    %v474 = vmul.f32 %v467, %v467
    %v475 = vmul.f32 %v468, %v468
    %v476 = vmul.f32 %v469, %v469
    %v477 = vmul.f32 %v470, %v470
    %v478 = vsel %vm434, %v471, 0.0
    %479 = vadd.xlane.f32.xlu0 %v478
    %v480 = vpop.xlane.xlu0 %479
    %v481 = vsel %vm434, %v472, 0.0
    %482 = vadd.xlane.f32.xlu0 %v481
    %v483 = vpop.xlane.xlu0 %482
    %v484 = vsel %vm434, %v473, 0.0
    %485 = vadd.xlane.f32.xlu0 %v484
    %v486 = vpop.xlane.xlu0 %485
    %v487 = vsel %vm434, %v474, 0.0
    %488 = vadd.xlane.f32.xlu0 %v487
    %v489 = vpop.xlane.xlu0 %488
    %v490 = vsel %vm434, %v475, 0.0
    %491 = vadd.xlane.f32.xlu0 %v490
    %v492 = vpop.xlane.xlu0 %491
    %v493 = vsel %vm434, %v476, 0.0
    %494 = vadd.xlane.f32.xlu0 %v493
    %v495 = vpop.xlane.xlu0 %494
    %v496 = vsel %vm434, %v477, 0.0
    %497 = vadd.xlane.f32.xlu0 %v496
    %v498 = vpop.xlane.xlu0 %497
    %v499 = vmul.f32 %v480, %v456
    %v500 = vmul.f32 %v483, %v456
    %v501 = vmul.f32 %v486, %v456
    %v502 = vmul.f32 %v489, %v456
    %v503 = vmul.f32 %v492, %v456
    %v504 = vmul.f32 %v495, %v456
    %v505 = vmul.f32 %v498, %v456
    %v506 = vadd.f32 %v499, 1e-05
    %v507 = vadd.f32 %v500, 1e-05
    %v508 = vadd.f32 %v501, 1e-05
    %v509 = vadd.f32 %v502, 1e-05
    %v510 = vadd.f32 %v503, 1e-05
    %v511 = vadd.f32 %v504, 1e-05
    %v512 = vadd.f32 %v505, 1e-05
    %v513 = vrsqrt.pop %v506
    %v514 = vmul.f32 %v506, %v513
    %vm515 = vcmp.eq.f32.partialorder %v506, inf
    %v516 = vsel %vm515, %v506, %v514
    %vm517 = vcmp.eq.f32.partialorder %v506, 0.0
    %v518 = vand.u32 %v506, 2147483648
    %v519 = vsel %vm517, %v518, %v516
    %v520 = vrsqrt.pop %v507
    %v521 = vmul.f32 %v507, %v520
    %vm522 = vcmp.eq.f32.partialorder %v507, inf
    %v523 = vsel %vm522, %v507, %v521
    %vm524 = vcmp.eq.f32.partialorder %v507, 0.0
    %v525 = vand.u32 %v507, 2147483648
    %v526 = vsel %vm524, %v525, %v523
    %v527 = vrsqrt.pop %v508
    %v528 = vmul.f32 %v508, %v527
    %vm529 = vcmp.eq.f32.partialorder %v508, inf
    %v530 = vsel %vm529, %v508, %v528
    %vm531 = vcmp.eq.f32.partialorder %v508, 0.0
    %v532 = vand.u32 %v508, 2147483648
    %v533 = vsel %vm531, %v532, %v530
    %v534 = vrsqrt.pop %v509
    %v535 = vmul.f32 %v509, %v534
    %vm536 = vcmp.eq.f32.partialorder %v509, inf
    %v537 = vsel %vm536, %v509, %v535
    %vm538 = vcmp.eq.f32.partialorder %v509, 0.0
    %v539 = vand.u32 %v509, 2147483648
    %v540 = vsel %vm538, %v539, %v537
    %v541 = vrsqrt.pop %v510
    %v542 = vmul.f32 %v510, %v541
    %vm543 = vcmp.eq.f32.partialorder %v510, inf
    %v544 = vsel %vm543, %v510, %v542
    %vm545 = vcmp.eq.f32.partialorder %v510, 0.0
    %v546 = vand.u32 %v510, 2147483648
    %v547 = vsel %vm545, %v546, %v544
    %v548 = vrsqrt.pop %v511
    %v549 = vmul.f32 %v511, %v548
    %vm550 = vcmp.eq.f32.partialorder %v511, inf
    %v551 = vsel %vm550, %v511, %v549
    %vm552 = vcmp.eq.f32.partialorder %v511, 0.0
    %v553 = vand.u32 %v511, 2147483648
    %v554 = vsel %vm552, %v553, %v551
    %v555 = vrsqrt.pop %v512
    %v556 = vmul.f32 %v512, %v555
    %vm557 = vcmp.eq.f32.partialorder %v512, inf
    %v558 = vsel %vm557, %v512, %v556
    %vm559 = vcmp.eq.f32.partialorder %v512, 0.0
    %v560 = vand.u32 %v512, 2147483648
    %v561 = vsel %vm559, %v560, %v558
    %v562 = vlaneseq
    %v563 = vshrl.u32 %v562, 7
    %v564 = vadd.s32 %v563, 8
    %v565 = vadd.s32 %v563, 16
    %v566 = vadd.s32 %v563, 24
    %v567 = vadd.s32 %v563, 32
    %v568 = vadd.s32 %v563, 40
    %v569 = vadd.s32 %v563, 48
    %vm570 = vcmp.lt.s32.totalorder %v563, 32
    %vm571 = vcmp.lt.s32.totalorder %v564, 32
    %vm572 = vcmp.lt.s32.totalorder %v565, 32
    %vm573 = vcmp.lt.s32.totalorder %v566, 32
    %vm574 = vcmp.lt.s32.totalorder %v567, 32
    %vm575 = vcmp.lt.s32.totalorder %v568, 32
    %vm576 = vcmp.lt.s32.totalorder %v569, 32
    %v577 = vsel %vm570, %v457, 0.0
    %v578 = vsel %vm571, %v458, 0.0
    %v579 = vsel %vm572, %v459, 0.0
    %v580 = vsel %vm573, %v460, 0.0
    %v581 = vsel %vm574, %v461, 0.0
    %v582 = vsel %vm575, %v462, 0.0
    %v583 = vsel %vm576, %v463, 0.0
    %v584 = vsel %vm570, %v519, 1.0
    %v585 = vsel %vm571, %v526, 1.0
    %v586 = vsel %vm572, %v533, 1.0
    %v587 = vsel %vm573, %v540, 1.0
    %v588 = vsel %vm574, %v547, 1.0
    %v589 = vsel %vm575, %v554, 1.0
    %v590 = vsel %vm576, %v561, 1.0
    %v591 = vsub.f32 %v427, %v577
    %v592 = vsub.f32 %v428, %v578
    %v593 = vsub.f32 %v429, %v579
    %v594 = vsub.f32 %v430, %v580
    %v595 = vsub.f32 %v431, %v581
    %v596 = vsub.f32 %v432, %v582
    %v597 = vsub.f32 %v433, %v583
    %v598 = vrcp.pop %v584
    %v599 = vmul.f32 %v591, %v598
    %v600 = vrcp.pop %v585
    %v601 = vmul.f32 %v592, %v600
    %v602 = vrcp.pop %v586
    %v603 = vmul.f32 %v593, %v602
    %v604 = vrcp.pop %v587
    %v605 = vmul.f32 %v594, %v604
    %v606 = vrcp.pop %v588
    %v607 = vmul.f32 %v595, %v606
    %v608 = vrcp.pop %v589
    %v609 = vmul.f32 %v596, %v608
    %v610 = vrcp.pop %v590
    %v611 = vmul.f32 %v597, %v610
    %v612 = vld [vmem:[#allocation5] sm:$0xff]
    %v613 = vld [vmem:[#allocation7] sm:$0x1]
    %v615 = vlaneseq
    %v616 = vshrl.u32 %v615, 7
    %v617 = vsub.s32 0, %v616
    %v618 = vrot.slane %v613, %v617
    %v621 = vsel %vm434, %v599, 0
    %v624 = vsel %vm434, %v601, 0
    %v627 = vsel %vm434, %v603, 0
    %v630 = vsel %vm434, %v605, 0
    %v633 = vsel %vm434, %v607, 0
    %v636 = vsel %vm434, %v609, 0
    %v639 = vsel %vm434, %v611, 0
    %641 = vmatprep.subr.mxu0 0.0
    %642 = vmatpush1.msra.mxu0 %v612
    %643 = vmatprep.subr.mxu0 0.0
    %644 = vmatpush1.msra.mxu0 0.0
    %645 = vmatprep.subr.mxu0 0.0
    %646 = vmatpush1.msra.mxu0 0.0
    %647 = vmatprep.subr.mxu0 0.0
    %648 = vmatpush1.msra.mxu0 0.0
    %649 = vmatprep.subr.mxu0 0.0
    %650 = vmatpush1.msra.mxu0 0.0
    %651 = vmatprep.subr.mxu0 0.0
    %652 = vmatpush1.msra.mxu0 0.0
    %653 = vmatprep.subr.mxu0 0.0
    %654 = vmatpush1.msra.mxu0 0.0
    %655 = vmatprep.subr.mxu0 0.0
    %656 = vmatpush1.msra.mxu0 0.0
    %657 = vmatprep.subr.mxu0 0.0
    %658 = vmatpush1.msra.mxu0 0.0
    %659 = vmatprep.subr.mxu0 0.0
    %660 = vmatpush1.msra.mxu0 0.0
    %661 = vmatprep.subr.mxu0 0.0
    %662 = vmatpush1.msra.mxu0 0.0
    %663 = vmatprep.subr.mxu0 0.0
    %664 = vmatpush1.msra.mxu0 0.0
    %665 = vmatprep.subr.mxu0 0.0
    %666 = vmatpush1.msra.mxu0 0.0
    %667 = vmatprep.subr.mxu0 0.0
    %668 = vmatpush1.msra.mxu0 0.0
    %669 = vmatprep.subr.mxu0 0.0
    %670 = vmatpush1.msra.mxu0 0.0
    %671 = vmatprep.subr.mxu0 0.0
    %672 = vmatpush1.msra.mxu0 0.0
    %673 = vmatprep.subr.mxu0 0.0
    %674 = vmatpush1.msra.mxu0 0.0
    %675 = vmatprep.subr.mxu0 0.0
    %676 = vmatpush1.msra.mxu0 0.0
    %677 = vmatprep.subr.mxu0 0.0
    %678 = vmatpush1.msra.mxu0 0.0
    %679 = vmatprep.subr.mxu0 0.0
    %680 = vmatpush1.msra.mxu0 0.0
    %681 = vmatprep.subr.mxu0 0.0
    %682 = vmatpush1.msra.mxu0 0.0
    %683 = vmatprep.subr.mxu0 0.0
    %684 = vmatpush1.msra.mxu0 0.0
    %685 = vmatprep.subr.mxu0 0.0
    %686 = vmatpush1.msra.mxu0 0.0
    %687 = vmatprep.subr.mxu0 0.0
    %688 = vmatpush1.msra.mxu0 0.0
    %689 = vmatprep.subr.mxu0 0.0
    %690 = vmatpush1.msra.mxu0 0.0
    %691 = vmatprep.subr.mxu0 0.0
    %692 = vmatpush1.msra.mxu0 0.0
    %693 = vmatprep.subr.mxu0 0.0
    %694 = vmatpush1.msra.mxu0 0.0
    %695 = vmatprep.subr.mxu0 0.0
    %696 = vmatpush1.msra.mxu0 0.0
    %697 = vmatprep.subr.mxu0 0.0
    %698 = vmatpush1.msra.mxu0 0.0
    %699 = vmatprep.subr.mxu0 0.0
    %700 = vmatpush1.msra.mxu0 0.0
    %701 = vmatprep.subr.mxu0 0.0
    %702 = vmatpush1.msra.mxu0 0.0
    %703 = vmatprep.subr.mxu0 0.0
    %704 = vmatpush1.msra.mxu0 0.0
    %705 = vmatprep.mubr.f32.mxu0 0.0
    %706 = vmatmul.mubr.f32.gmra.mrb[0].mxu0 %v621
    %v707 = vpop.f32.mrb[0].mxu0
    %v708 = vadd.f32 %v618, %v707
    %v709 = vpop.f32.mrb[0].mxu0
    %710 = vmatprep.mubr.f32.mxu0 0.0
    %711 = vmatmul.mubr.f32.gmra.mrb[0].mxu0 %v624
    %v712 = vpop.f32.mrb[0].mxu0
    %v713 = vadd.f32 %v618, %v712
    %v714 = vpop.f32.mrb[0].mxu0
    %715 = vmatprep.mubr.f32.mxu0 0.0
    %716 = vmatmul.mubr.f32.gmra.mrb[0].mxu0 %v627
    %v717 = vpop.f32.mrb[0].mxu0
    %v718 = vadd.f32 %v618, %v717
    %v719 = vpop.f32.mrb[0].mxu0
    %720 = vmatprep.mubr.f32.mxu0 0.0
    %721 = vmatmul.mubr.f32.gmra.mrb[0].mxu0 %v630
    %v722 = vpop.f32.mrb[0].mxu0
    %v723 = vadd.f32 %v618, %v722
    %v724 = vpop.f32.mrb[0].mxu0
    %725 = vmatprep.mubr.f32.mxu0 0.0
    %726 = vmatmul.mubr.f32.gmra.mrb[0].mxu0 %v633
    %v727 = vpop.f32.mrb[0].mxu0
    %v728 = vadd.f32 %v618, %v727
    %v729 = vpop.f32.mrb[0].mxu0
    %730 = vmatprep.mubr.f32.mxu0 0.0
    %731 = vmatmul.mubr.f32.gmra.mrb[0].mxu0 %v636
    %v732 = vpop.f32.mrb[0].mxu0
    %v733 = vadd.f32 %v618, %v732
    %v734 = vpop.f32.mrb[0].mxu0
    %735 = vmatprep.mubr.f32.mxu0 0.0
    %736 = vmatmul.mubr.f32.gmra.mrb[0].mxu0 %v639
    %v737 = vpop.f32.mrb[0].mxu0
    %v738 = vadd.f32 %v618, %v737
    %v739 = vpop.f32.mrb[0].mxu0
    %740 = vdwg.mxu0
    %v741 = vld [vmem:[#allocation17] sm:$0xff]
    %v742 = vld [vmem:[#allocation17 + $0x8] sm:$0xff]
    %v743 = vld [vmem:[#allocation17 + $0x10] sm:$0xff]
    %v744 = vld [vmem:[#allocation17 + $0x18] sm:$0xff]
    %v745 = vld [vmem:[#allocation17 + $0x20] sm:$0xff]
    %v746 = vld [vmem:[#allocation17 + $0x28] sm:$0xff]
    %v747 = vld [vmem:[#allocation17 + $0x30] sm:$0xff]
    %v748 = vld [vmem:[#allocation17 + $0x38] sm:$0xff]
    %v749 = vld [vmem:[#allocation17 + $0x40] sm:$0xff]
    %v750 = vld [vmem:[#allocation17 + $0x48] sm:$0xff]
    %v751 = vld [vmem:[#allocation17 + $0x50] sm:$0xff]
    %v752 = vld [vmem:[#allocation17 + $0x58] sm:$0xff]
    %v753 = vld [vmem:[#allocation17 + $0x60] sm:$0xff]
    %v754 = vld [vmem:[#allocation17 + $0x68] sm:$0xff]
    %v755 = vld [vmem:[#allocation17 + $0x70] sm:$0xff]
    %v756 = vld [vmem:[#allocation17 + $0x78] sm:$0xff]
    %v757 = vld [vmem:[#allocation19] sm:$0xff]
    %v758 = vld [vmem:[#allocation19 + $0x8] sm:$0xff]
    %v759 = vld [vmem:[#allocation19 + $0x10] sm:$0xff]
    %v760 = vld [vmem:[#allocation19 + $0x18] sm:$0xff]
    %v761 = vld [vmem:[#allocation19 + $0x20] sm:$0xff]
    %v762 = vld [vmem:[#allocation19 + $0x28] sm:$0xff]
    %v763 = vld [vmem:[#allocation19 + $0x30] sm:$0xff]
    %v764 = vld [vmem:[#allocation19 + $0x38] sm:$0xff]
    %v765 = vld [vmem:[#allocation20] sm:$0xff]
    %v766 = vld [vmem:[#allocation20 + $0x8] sm:$0xff]
    %v767 = vld [vmem:[#allocation20 + $0x10] sm:$0xff]
    %v768 = vld [vmem:[#allocation20 + $0x18] sm:$0xff]
    %v769 = vld [vmem:[#allocation20 + $0x20] sm:$0xff]
    %v770 = vld [vmem:[#allocation20 + $0x28] sm:$0xff]
    %v771 = vld [vmem:[#allocation20 + $0x30] sm:$0xff]
    %v772 = vld [vmem:[#allocation20 + $0x38] sm:$0xff]
    %v773 = vld [vmem:[#allocation20 + $0x40] sm:$0xff]
    %v774 = vld [vmem:[#allocation20 + $0x48] sm:$0xff]
    %v775 = vld [vmem:[#allocation20 + $0x50] sm:$0xff]
    %v776 = vld [vmem:[#allocation20 + $0x58] sm:$0xff]
    %v777 = vld [vmem:[#allocation20 + $0x60] sm:$0xff]
    %v778 = vld [vmem:[#allocation20 + $0x68] sm:$0xff]
    %v779 = vld [vmem:[#allocation20 + $0x70] sm:$0xff]
    %v780 = vld [vmem:[#allocation20 + $0x78] sm:$0xff]
    %v781 = vld [vmem:[#allocation20 + $0x80] sm:$0xff]
    %v782 = vld [vmem:[#allocation20 + $0x88] sm:$0xff]
    %v783 = vld [vmem:[#allocation20 + $0x90] sm:$0xff]
    %v784 = vld [vmem:[#allocation20 + $0x98] sm:$0xff]
    %v785 = vld [vmem:[#allocation20 + $0xa0] sm:$0xff]
    %v786 = vld [vmem:[#allocation20 + $0xa8] sm:$0xff]
    %v787 = vld [vmem:[#allocation20 + $0xb0] sm:$0xff]
    %v788 = vld [vmem:[#allocation20 + $0xb8] sm:$0xff]
    %v789 = vld [vmem:[#allocation20 + $0xc0] sm:$0xff]
    %v790 = vld [vmem:[#allocation20 + $0xc8] sm:$0xff]
    %v791 = vld [vmem:[#allocation20 + $0xd0] sm:$0xff]
    %v792 = vld [vmem:[#allocation20 + $0xd8] sm:$0xff]
    %v793 = vld [vmem:[#allocation20 + $0xe0] sm:$0xff]
    %v794 = vld [vmem:[#allocation20 + $0xe8] sm:$0xff]
    %v795 = vld [vmem:[#allocation20 + $0xf0] sm:$0xff]
    %v796 = vld [vmem:[#allocation20 + $0xf8] sm:$0xff]
    %v797 = vld [vmem:[#allocation20 + $0x100] sm:$0xff]
    %v798 = vld [vmem:[#allocation20 + $0x108] sm:$0xff]
    %v799 = vld [vmem:[#allocation20 + $0x110] sm:$0xff]
    %v800 = vld [vmem:[#allocation20 + $0x118] sm:$0xff]
    %v801 = vld [vmem:[#allocation20 + $0x120] sm:$0xff]
    %v802 = vld [vmem:[#allocation20 + $0x128] sm:$0xff]
    %v803 = vld [vmem:[#allocation20 + $0x130] sm:$0xff]
    %v804 = vld [vmem:[#allocation20 + $0x138] sm:$0xff]
    %v805 = vld [vmem:[#allocation20 + $0x140] sm:$0xff]
    %v806 = vld [vmem:[#allocation20 + $0x148] sm:$0xff]
    %v807 = vld [vmem:[#allocation20 + $0x150] sm:$0xff]
    %v808 = vld [vmem:[#allocation20 + $0x158] sm:$0xff]
    %v809 = vld [vmem:[#allocation20 + $0x160] sm:$0xff]
    %v810 = vld [vmem:[#allocation20 + $0x168] sm:$0xff]
    %v811 = vld [vmem:[#allocation20 + $0x170] sm:$0xff]
    %v812 = vld [vmem:[#allocation20 + $0x178] sm:$0xff]
    %v813 = vld [vmem:[#allocation20 + $0x180] sm:$0xff]
    %v814 = vld [vmem:[#allocation20 + $0x188] sm:$0xff]
    %v815 = vld [vmem:[#allocation20 + $0x190] sm:$0xff]
    %v816 = vld [vmem:[#allocation20 + $0x198] sm:$0xff]
    %v817 = vld [vmem:[#allocation20 + $0x1a0] sm:$0xff]
    %v818 = vld [vmem:[#allocation20 + $0x1a8] sm:$0xff]
    %v819 = vld [vmem:[#allocation20 + $0x1b0] sm:$0xff]
    %v820 = vld [vmem:[#allocation20 + $0x1b8] sm:$0xff]
    %v821 = vld [vmem:[#allocation20 + $0x1c0] sm:$0xff]
    %v822 = vld [vmem:[#allocation20 + $0x1c8] sm:$0xff]
    %v823 = vld [vmem:[#allocation20 + $0x1d0] sm:$0xff]
    %v824 = vld [vmem:[#allocation20 + $0x1d8] sm:$0xff]
    %v825 = vld [vmem:[#allocation20 + $0x1e0] sm:$0xff]
    %v826 = vld [vmem:[#allocation20 + $0x1e8] sm:$0xff]
    %v827 = vld [vmem:[#allocation20 + $0x1f0] sm:$0xff]
    %v828 = vld [vmem:[#allocation20 + $0x1f8] sm:$0xff]
    %v829 = vld [vmem:[#allocation8] sm:$0xf]
    %v830 = vld [vmem:[#allocation8 + $0x4] sm:$0xf]
    %v831 = vld [vmem:[#allocation8 + $0x8] sm:$0xf]
    %v832 = vld [vmem:[#allocation8 + $0xc] sm:$0xf]
    %v833 = vpack.c.bf16 %v713, %v708
    %v834 = vpack.c.bf16 %v723, %v718
    %v835 = vpack.c.bf16 %v733, %v728
    %v836 = vpack.c.bf16 %v738, %v738
    %v841 = vunpack.c.l.b16 %v829
    %v842 = vunpack.c.l.b16 %v830
    %v843 = vunpack.c.l.b16 %v831
    %v844 = vunpack.c.l.b16 %v832
    %v845 = vpack.c.b16 %v842, %v841
    %v846 = vpack.c.b16 %v844, %v843
    %vm849 = vcmask 261120
    %v851 = vsel %vm849, %v833, 0
    %v854 = vsel %vm849, %v834, 0
    %v857 = vsel %vm849, %v835, 0
    %v860 = vsel %vm849, %v836, 0
    %862 = vmatprep.subr.bf16.mxu0 0
    %863 = vmatpush1.bf16.msra.mxu0 %v845
    %864 = vmatprep.subr.bf16.mxu0 0
    %865 = vmatpush1.bf16.msra.mxu0 %v846
    %866 = vmatprep.subr.bf16.mxu0 0
    %867 = vmatpush1.bf16.msra.mxu0 0
    %868 = vmatprep.subr.bf16.mxu0 0
    %869 = vmatpush1.bf16.msra.mxu0 0
    %870 = vmatprep.subr.bf16.mxu0 0
    %871 = vmatpush1.bf16.msra.mxu0 0
    %872 = vmatprep.subr.bf16.mxu0 0
    %873 = vmatpush1.bf16.msra.mxu0 0
    %874 = vmatprep.subr.bf16.mxu0 0
    %875 = vmatpush1.bf16.msra.mxu0 0
    %876 = vmatprep.subr.bf16.mxu0 0
    %877 = vmatpush1.bf16.msra.mxu0 0
    %878 = vmatprep.subr.bf16.mxu0 0
    %879 = vmatpush1.bf16.msra.mxu0 0
    %880 = vmatprep.subr.bf16.mxu0 0
    %881 = vmatpush1.bf16.msra.mxu0 0
    %882 = vmatprep.subr.bf16.mxu0 0
    %883 = vmatpush1.bf16.msra.mxu0 0
    %884 = vmatprep.subr.bf16.mxu0 0
    %885 = vmatpush1.bf16.msra.mxu0 0
    %886 = vmatprep.subr.bf16.mxu0 0
    %887 = vmatpush1.bf16.msra.mxu0 0
    %888 = vmatprep.subr.bf16.mxu0 0
    %889 = vmatpush1.bf16.msra.mxu0 0
    %890 = vmatprep.subr.bf16.mxu0 0
    %891 = vmatpush1.bf16.msra.mxu0 0
    %892 = vmatprep.subr.bf16.mxu0 0
    %893 = vmatpush1.bf16.msra.mxu0 0
    %894 = vmatprep.mubr.bf16.mxu0 0
    %895 = vmatmul.mubr.bf16.gmra.mrb[0].mxu0 %v851
    %v896 = vpop.f32.mrb[0].mxu0
    %v897 = vadd.f32 0.0, %v896
    %v898 = vpop.f32.mrb[0].mxu0
    %v899 = vpop.f32.mrb[0].mxu0
    %v900 = vadd.f32 0.0, %v899
    %v901 = vpop.f32.mrb[0].mxu0
    %902 = vmatprep.mubr.bf16.mxu0 0
    %903 = vmatmul.mubr.bf16.gmra.mrb[0].mxu0 %v854
    %v904 = vpop.f32.mrb[0].mxu0
    %v905 = vadd.f32 0.0, %v904
    %v906 = vpop.f32.mrb[0].mxu0
    %v907 = vpop.f32.mrb[0].mxu0
    %v908 = vadd.f32 0.0, %v907
    %v909 = vpop.f32.mrb[0].mxu0
    %910 = vmatprep.mubr.bf16.mxu0 0
    %911 = vmatmul.mubr.bf16.gmra.mrb[0].mxu0 %v857
    %v912 = vpop.f32.mrb[0].mxu0
    %v913 = vadd.f32 0.0, %v912
    %v914 = vpop.f32.mrb[0].mxu0
    %v915 = vpop.f32.mrb[0].mxu0
    %v916 = vadd.f32 0.0, %v915
    %v917 = vpop.f32.mrb[0].mxu0
    %918 = vmatprep.mubr.bf16.mxu0 0
    %919 = vmatmul.mubr.bf16.gmra.mrb[0].mxu0 %v860
    %v920 = vpop.f32.mrb[0].mxu0
    %v921 = vadd.f32 0.0, %v920
    %v922 = vpop.f32.mrb[0].mxu0
    %v923 = vpop.f32.mrb[0].mxu0
    %v924 = vpop.f32.mrb[0].mxu0
    %925 = vdwg.mxu0
    %v926 = vld [vmem:[#allocation10] sm:$0x3]
    %v927 = vlaneseq
    %v928 = vshrl.u32 %v927, 7
    %v929 = vsub.s32 1, %v928
    %v930 = vrot.slane %v926, %v929
    %v931 = vmul.f32 %v897, %v930
    %v932 = vmul.f32 %v900, %v930
    %v933 = vmul.f32 %v905, %v930
    %v934 = vmul.f32 %v908, %v930
    %v935 = vmul.f32 %v913, %v930
    %v936 = vmul.f32 %v916, %v930
    %v937 = vmul.f32 %v921, %v930
    %v938 = vlaneseq
    %v939 = vshrl.u32 %v938, 7
    %v940 = vsub.s32 0, %v939
    %v941 = vrot.slane %v926, %v940
    %v942 = vmul.f32 %v941, 0.0
    %v943 = vmul.f32 %v897, %v941
    %v944 = vmul.f32 %v900, %v941
    %v945 = vmul.f32 %v905, %v941
    %v946 = vmul.f32 %v908, %v941
    %v947 = vmul.f32 %v913, %v941
    %v948 = vmul.f32 %v916, %v941
    %v949 = vadd.f32 %v931, %v942
    %v950 = vadd.f32 %v932, %v943
    %v951 = vadd.f32 %v933, %v944
    %v952 = vadd.f32 %v934, %v945
    %v953 = vadd.f32 %v935, %v946
    %v954 = vadd.f32 %v936, %v947
    %v955 = vadd.f32 %v937, %v948
    %v956 = vld [vmem:[#allocation11] sm:$0x1]
    %v958 = vlaneseq
    %v959 = vshrl.u32 %v958, 7
    %v960 = vsub.s32 0, %v959
    %v961 = vrot.slane %v956, %v960
    %v963 = vadd.f32 %v949, %v961
    %v964 = vadd.f32 %v950, %v961
    %v965 = vadd.f32 %v951, %v961
    %v966 = vadd.f32 %v952, %v961
    %v967 = vadd.f32 %v953, %v961
    %v968 = vadd.f32 %v954, %v961
    %v969 = vadd.f32 %v955, %v961
    %v970 = vxor.u32 %v963, 2147483648
    %v971 = vxor.u32 %v964, 2147483648
    %v972 = vxor.u32 %v965, 2147483648
    %v973 = vxor.u32 %v966, 2147483648
    %v974 = vxor.u32 %v967, 2147483648
    %v975 = vxor.u32 %v968, 2147483648
    %v976 = vxor.u32 %v969, 2147483648
    %v977 = vmul.f32 %v970, 1.442695
    %v978 = vpow.pop %v977
    %v979 = vmul.f32 %v971, 1.442695
    %v980 = vpow.pop %v979
    %v981 = vmul.f32 %v972, 1.442695
    %v982 = vpow.pop %v981
    %v983 = vmul.f32 %v973, 1.442695
    %v984 = vpow.pop %v983
    %v985 = vmul.f32 %v974, 1.442695
    %v986 = vpow.pop %v985
    %v987 = vmul.f32 %v975, 1.442695
    %v988 = vpow.pop %v987
    %v989 = vmul.f32 %v976, 1.442695
    %v990 = vpow.pop %v989
    %v991 = vadd.f32 %v978, 1.0
    %v992 = vadd.f32 %v980, 1.0
    %v993 = vadd.f32 %v982, 1.0
    %v994 = vadd.f32 %v984, 1.0
    %v995 = vadd.f32 %v986, 1.0
    %v996 = vadd.f32 %v988, 1.0
    %v997 = vadd.f32 %v990, 1.0
    %v998 = vrcp.pop %v991
    %v999 = vmul.f32 1.0, %v998
    %v1000 = vrcp.pop %v992
    %v1001 = vmul.f32 1.0, %v1000
    %v1002 = vrcp.pop %v993
    %v1003 = vmul.f32 1.0, %v1002
    %v1004 = vrcp.pop %v994
    %v1005 = vmul.f32 1.0, %v1004
    %v1006 = vrcp.pop %v995
    %v1007 = vmul.f32 1.0, %v1006
    %v1008 = vrcp.pop %v996
    %v1009 = vmul.f32 1.0, %v1008
    %v1010 = vrcp.pop %v997
    %v1011 = vmul.f32 1.0, %v1010
    %v1012 = vmul.f32 %v963, %v999
    %v1013 = vmul.f32 %v964, %v1001
    %v1014 = vmul.f32 %v965, %v1003
    %v1015 = vmul.f32 %v966, %v1005
    %v1016 = vmul.f32 %v967, %v1007
    %v1017 = vmul.f32 %v968, %v1009
    %v1018 = vmul.f32 %v969, %v1011
    %v1019 = vld [vmem:[#allocation13] sm:$0xf]
    %v1020 = vld [vmem:[#allocation13 + $0x4] sm:$0xf]
    %v1021 = vld [vmem:[#allocation13 + $0x8] sm:$0xf]
    %v1022 = vld [vmem:[#allocation13 + $0xc] sm:$0xf]
    %v1023 = vpack.c.bf16 %v1013, %v1012
    %v1024 = vpack.c.bf16 %v1015, %v1014
    %v1025 = vpack.c.bf16 %v1017, %v1016
    %v1026 = vpack.c.bf16 %v1018, %v1018
    %v1031 = vunpack.c.l.b16 %v1019
    %v1032 = vunpack.c.l.b16 %v1020
    %v1033 = vunpack.c.l.b16 %v1021
    %v1034 = vunpack.c.l.b16 %v1022
    %v1035 = vpack.c.b16 %v1032, %v1031
    %v1036 = vpack.c.b16 %v1034, %v1033
    %v1040 = vsel %vm849, %v1023, 0
    %v1043 = vsel %vm849, %v1024, 0
    %v1046 = vsel %vm849, %v1025, 0
    %v1049 = vsel %vm849, %v1026, 0
    %1051 = vmatprep.subr.bf16.mxu0 0
    %1052 = vmatpush1.bf16.msra.mxu0 %v1035
    %1053 = vmatprep.subr.bf16.mxu0 0
    %1054 = vmatpush1.bf16.msra.mxu0 %v1036
    %1055 = vmatprep.subr.bf16.mxu0 0
    %1056 = vmatpush1.bf16.msra.mxu0 0
    %1057 = vmatprep.subr.bf16.mxu0 0
    %1058 = vmatpush1.bf16.msra.mxu0 0
    %1059 = vmatprep.subr.bf16.mxu0 0
    %1060 = vmatpush1.bf16.msra.mxu0 0
    %1061 = vmatprep.subr.bf16.mxu0 0
    %1062 = vmatpush1.bf16.msra.mxu0 0
    %1063 = vmatprep.subr.bf16.mxu0 0
    %1064 = vmatpush1.bf16.msra.mxu0 0
    %1065 = vmatprep.subr.bf16.mxu0 0
    %1066 = vmatpush1.bf16.msra.mxu0 0
    %1067 = vmatprep.subr.bf16.mxu0 0
    %1068 = vmatpush1.bf16.msra.mxu0 0
    %1069 = vmatprep.subr.bf16.mxu0 0
    %1070 = vmatpush1.bf16.msra.mxu0 0
    %1071 = vmatprep.subr.bf16.mxu0 0
    %1072 = vmatpush1.bf16.msra.mxu0 0
    %1073 = vmatprep.subr.bf16.mxu0 0
    %1074 = vmatpush1.bf16.msra.mxu0 0
    %1075 = vmatprep.subr.bf16.mxu0 0
    %1076 = vmatpush1.bf16.msra.mxu0 0
    %1077 = vmatprep.subr.bf16.mxu0 0
    %1078 = vmatpush1.bf16.msra.mxu0 0
    %1079 = vmatprep.subr.bf16.mxu0 0
    %1080 = vmatpush1.bf16.msra.mxu0 0
    %1081 = vmatprep.subr.bf16.mxu0 0
    %1082 = vmatpush1.bf16.msra.mxu0 0
    %1083 = vmatprep.mubr.bf16.mxu0 0
    %1084 = vmatmul.mubr.bf16.gmra.mrb[0].mxu0 %v1040
    %v1085 = vpop.f32.mrb[0].mxu0
    %v1086 = vadd.f32 0.0, %v1085
    %v1087 = vpop.f32.mrb[0].mxu0
    %v1088 = vpop.f32.mrb[0].mxu0
    %v1089 = vadd.f32 0.0, %v1088
    %v1090 = vpop.f32.mrb[0].mxu0
    %1091 = vmatprep.mubr.bf16.mxu0 0
    %1092 = vmatmul.mubr.bf16.gmra.mrb[0].mxu0 %v1043
    %v1093 = vpop.f32.mrb[0].mxu0
    %v1094 = vadd.f32 0.0, %v1093
    %v1095 = vpop.f32.mrb[0].mxu0
    %v1096 = vpop.f32.mrb[0].mxu0
    %v1097 = vadd.f32 0.0, %v1096
    %v1098 = vpop.f32.mrb[0].mxu0
    %1099 = vmatprep.mubr.bf16.mxu0 0
    %1100 = vmatmul.mubr.bf16.gmra.mrb[0].mxu0 %v1046
    %v1101 = vpop.f32.mrb[0].mxu0
    %v1102 = vadd.f32 0.0, %v1101
    %v1103 = vpop.f32.mrb[0].mxu0
    %v1104 = vpop.f32.mrb[0].mxu0
    %v1105 = vadd.f32 0.0, %v1104
    %v1106 = vpop.f32.mrb[0].mxu0
    %1107 = vmatprep.mubr.bf16.mxu0 0
    %1108 = vmatmul.mubr.bf16.gmra.mrb[0].mxu0 %v1049
    %v1109 = vpop.f32.mrb[0].mxu0
    %v1110 = vadd.f32 0.0, %v1109
    %v1111 = vpop.f32.mrb[0].mxu0
    %v1112 = vpop.f32.mrb[0].mxu0
    %v1113 = vpop.f32.mrb[0].mxu0
    %1114 = vdwg.mxu0
    %v1115 = vld [vmem:[#allocation14] sm:$0x1]
    %v1117 = vlaneseq
    %v1118 = vshrl.u32 %v1117, 7
    %v1119 = vsub.s32 0, %v1118
    %v1120 = vrot.slane %v1115, %v1119
    %v1122 = vadd.f32 %v1086, %v1120
    %v1123 = vadd.f32 %v1089, %v1120
    %v1124 = vadd.f32 %v1094, %v1120
    %v1125 = vadd.f32 %v1097, %v1120
    %v1126 = vadd.f32 %v1102, %v1120
    %v1127 = vadd.f32 %v1105, %v1120
    %v1128 = vadd.f32 %v1110, %v1120
    %vm1129 = vcmp.gt.f32.partialorder %v1122, 20.0
    %vm1130 = vcmp.gt.f32.partialorder %v1123, 20.0
    %vm1131 = vcmp.gt.f32.partialorder %v1124, 20.0
    %vm1132 = vcmp.gt.f32.partialorder %v1125, 20.0
    %vm1133 = vcmp.gt.f32.partialorder %v1126, 20.0
    %vm1134 = vcmp.gt.f32.partialorder %v1127, 20.0
    %vm1135 = vcmp.gt.f32.partialorder %v1128, 20.0
    %v1136 = vmin.f32 %v1122, 20.0
    %v1137 = vmin.f32 %v1123, 20.0
    %v1138 = vmin.f32 %v1124, 20.0
    %v1139 = vmin.f32 %v1125, 20.0
    %v1140 = vmin.f32 %v1126, 20.0
    %v1141 = vmin.f32 %v1127, 20.0
    %v1142 = vmin.f32 %v1128, 20.0
    %v1143 = vmul.f32 %v1136, 1.442695
    %v1144 = vpow.pop %v1143
    %v1145 = vmul.f32 %v1137, 1.442695
    %v1146 = vpow.pop %v1145
    %v1147 = vmul.f32 %v1138, 1.442695
    %v1148 = vpow.pop %v1147
    %v1149 = vmul.f32 %v1139, 1.442695
    %v1150 = vpow.pop %v1149
    %v1151 = vmul.f32 %v1140, 1.442695
    %v1152 = vpow.pop %v1151
    %v1153 = vmul.f32 %v1141, 1.442695
    %v1154 = vpow.pop %v1153
    %v1155 = vmul.f32 %v1142, 1.442695
    %v1156 = vpow.pop %v1155
    %v1157 = vadd.f32 %v1144, 1.0
    %v1158 = vadd.f32 %v1146, 1.0
    %v1159 = vadd.f32 %v1148, 1.0
    %v1160 = vadd.f32 %v1150, 1.0
    %v1161 = vadd.f32 %v1152, 1.0
    %v1162 = vadd.f32 %v1154, 1.0
    %v1163 = vadd.f32 %v1156, 1.0
    %v1164 = vlog2.pop %v1157
    %v1165 = vmul.f32 %v1164, 0.6931472
    %v1166 = vlog2.pop %v1158
    %v1167 = vmul.f32 %v1166, 0.6931472
    %v1168 = vlog2.pop %v1159
    %v1169 = vmul.f32 %v1168, 0.6931472
    %v1170 = vlog2.pop %v1160
    %v1171 = vmul.f32 %v1170, 0.6931472
    %v1172 = vlog2.pop %v1161
    %v1173 = vmul.f32 %v1172, 0.6931472
    %v1174 = vlog2.pop %v1162
    %v1175 = vmul.f32 %v1174, 0.6931472
    %v1176 = vlog2.pop %v1163
    %v1177 = vmul.f32 %v1176, 0.6931472
    %v1178 = vsel %vm1129, %v1122, %v1165
    %v1179 = vsel %vm1130, %v1123, %v1167
    %v1180 = vsel %vm1131, %v1124, %v1169
    %v1181 = vsel %vm1132, %v1125, %v1171
    %v1182 = vsel %vm1133, %v1126, %v1173
    %v1183 = vsel %vm1134, %v1127, %v1175
    %v1184 = vsel %vm1135, %v1128, %v1177
    %v1185 = vld [vmem:[#allocation16] sm:$0xff]
    %v1186 = vld [vmem:[#allocation16 + $0x8] sm:$0xff]
    %v1187 = vld [vmem:[#allocation16 + $0x10] sm:$0xff]
    %v1188 = vld [vmem:[#allocation16 + $0x18] sm:$0xff]
    %v1189 = vld [vmem:[#allocation16 + $0x20] sm:$0xff]
    %v1190 = vld [vmem:[#allocation16 + $0x28] sm:$0xff]
    %v1191 = vld [vmem:[#allocation16 + $0x30] sm:$0xff]
    %v1192 = vld [vmem:[#allocation16 + $0x38] sm:$0xff]
    %v1193 = vld [vmem:[#allocation16 + $0x40] sm:$0xff]
    %v1194 = vld [vmem:[#allocation16 + $0x48] sm:$0xff]
    %v1195 = vld [vmem:[#allocation16 + $0x50] sm:$0xff]
    %v1196 = vld [vmem:[#allocation16 + $0x58] sm:$0xff]
    %v1197 = vld [vmem:[#allocation16 + $0x60] sm:$0xff]
    %v1198 = vld [vmem:[#allocation16 + $0x68] sm:$0xff]
    %v1199 = vld [vmem:[#allocation16 + $0x70] sm:$0xff]
    %v1200 = vld [vmem:[#allocation16 + $0x78] sm:$0xff]
    %v1202 = vsel %vm849, %v1178, 0
    %v1205 = vsel %vm849, %v1179, 0
    %v1208 = vsel %vm849, %v1180, 0
    %v1211 = vsel %vm849, %v1181, 0
    %v1214 = vsel %vm849, %v1182, 0
    %v1217 = vsel %vm849, %v1183, 0
    %v1220 = vsel %vm849, %v1184, 0
    %1222 = vmatprep.subr.mxu0 %v1186
    %1223 = vmatpush1.msra.mxu0 %v1185
    %1224 = vmatprep.subr.mxu0 %v1190
    %1225 = vmatpush1.msra.mxu0 %v1189
    %1226 = vmatprep.subr.mxu0 %v1194
    %1227 = vmatpush1.msra.mxu0 %v1193
    %1228 = vmatprep.subr.mxu0 %v1198
    %1229 = vmatpush1.msra.mxu0 %v1197
    %1230 = vmatprep.subr.mxu0 0.0
    %1231 = vmatpush1.msra.mxu0 0.0
    %1232 = vmatprep.subr.mxu0 0.0
    %1233 = vmatpush1.msra.mxu0 0.0
    %1234 = vmatprep.subr.mxu0 0.0
    %1235 = vmatpush1.msra.mxu0 0.0
    %1236 = vmatprep.subr.mxu0 0.0
    %1237 = vmatpush1.msra.mxu0 0.0
    %1238 = vmatprep.subr.mxu0 0.0
    %1239 = vmatpush1.msra.mxu0 0.0
    %1240 = vmatprep.subr.mxu0 0.0
    %1241 = vmatpush1.msra.mxu0 0.0
    %1242 = vmatprep.subr.mxu0 0.0
    %1243 = vmatpush1.msra.mxu0 0.0
    %1244 = vmatprep.subr.mxu0 0.0
    %1245 = vmatpush1.msra.mxu0 0.0
    %1246 = vmatprep.subr.mxu0 0.0
    %1247 = vmatpush1.msra.mxu0 0.0
    %1248 = vmatprep.subr.mxu0 0.0
    %1249 = vmatpush1.msra.mxu0 0.0
    %1250 = vmatprep.subr.mxu0 0.0
    %1251 = vmatpush1.msra.mxu0 0.0
    %1252 = vmatprep.subr.mxu0 0.0
    %1253 = vmatpush1.msra.mxu0 0.0
    %1254 = vmatprep.subr.mxu0 0.0
    %1255 = vmatpush1.msra.mxu0 0.0
    %1256 = vmatprep.subr.mxu0 0.0
    %1257 = vmatpush1.msra.mxu0 0.0
    %1258 = vmatprep.subr.mxu0 0.0
    %1259 = vmatpush1.msra.mxu0 0.0
    %1260 = vmatprep.subr.mxu0 0.0
    %1261 = vmatpush1.msra.mxu0 0.0
    %1262 = vmatprep.subr.mxu0 0.0
    %1263 = vmatpush1.msra.mxu0 0.0
    %1264 = vmatprep.subr.mxu0 0.0
    %1265 = vmatpush1.msra.mxu0 0.0
    %1266 = vmatprep.subr.mxu0 0.0
    %1267 = vmatpush1.msra.mxu0 0.0
    %1268 = vmatprep.subr.mxu0 0.0
    %1269 = vmatpush1.msra.mxu0 0.0
    %1270 = vmatprep.subr.mxu0 0.0
    %1271 = vmatpush1.msra.mxu0 0.0
    %1272 = vmatprep.subr.mxu0 0.0
    %1273 = vmatpush1.msra.mxu0 0.0
    %1274 = vmatprep.subr.mxu0 0.0
    %1275 = vmatpush1.msra.mxu0 0.0
    %1276 = vmatprep.subr.mxu0 0.0
    %1277 = vmatpush1.msra.mxu0 0.0
    %1278 = vmatprep.subr.mxu0 0.0
    %1279 = vmatpush1.msra.mxu0 0.0
    %1280 = vmatprep.subr.mxu0 0.0
    %1281 = vmatpush1.msra.mxu0 0.0
    %1282 = vmatprep.subr.mxu0 0.0
    %1283 = vmatpush1.msra.mxu0 0.0
    %1284 = vmatprep.subr.mxu0 0.0
    %1285 = vmatpush1.msra.mxu0 0.0
    %1286 = vmatprep.mubr.f32.mxu0 0.0
    %1287 = vmatmul.mubr.f32.gmra.mrb[0].mxu0 %v1202
    %v1288 = vpop.f32.mrb[0].mxu0
    %v1289 = vadd.f32 0.0, %v1288
    %v1290 = vpop.f32.mrb[0].mxu0
    %v1291 = vadd.f32 0.0, %v1290
    %1292 = vmatprep.mubr.f32.mxu0 0.0
    %1293 = vmatmul.mubr.f32.gmra.mrb[0].mxu0 %v1205
    %v1294 = vpop.f32.mrb[0].mxu0
    %v1295 = vadd.f32 0.0, %v1294
    %v1296 = vpop.f32.mrb[0].mxu0
    %v1297 = vadd.f32 0.0, %v1296
    %1298 = vmatprep.mubr.f32.mxu0 0.0
    %1299 = vmatmul.mubr.f32.gmra.mrb[0].mxu0 %v1208
    %v1300 = vpop.f32.mrb[0].mxu0
    %v1301 = vadd.f32 0.0, %v1300
    %v1302 = vpop.f32.mrb[0].mxu0
    %v1303 = vadd.f32 0.0, %v1302
    %1304 = vmatprep.mubr.f32.mxu0 0.0
    %1305 = vmatmul.mubr.f32.gmra.mrb[0].mxu0 %v1211
    %v1306 = vpop.f32.mrb[0].mxu0
    %v1307 = vadd.f32 0.0, %v1306
    %v1308 = vpop.f32.mrb[0].mxu0
    %v1309 = vadd.f32 0.0, %v1308
    %1310 = vmatprep.mubr.f32.mxu0 0.0
    %1311 = vmatmul.mubr.f32.gmra.mrb[0].mxu0 %v1214
    %v1312 = vpop.f32.mrb[0].mxu0
    %v1313 = vadd.f32 0.0, %v1312
    %v1314 = vpop.f32.mrb[0].mxu0
    %v1315 = vadd.f32 0.0, %v1314
    %1316 = vmatprep.mubr.f32.mxu0 0.0
    %1317 = vmatmul.mubr.f32.gmra.mrb[0].mxu0 %v1217
    %v1318 = vpop.f32.mrb[0].mxu0
    %v1319 = vadd.f32 0.0, %v1318
    %v1320 = vpop.f32.mrb[0].mxu0
    %v1321 = vadd.f32 0.0, %v1320
    %1322 = vmatprep.mubr.f32.mxu0 0.0
    %1323 = vmatmul.mubr.f32.gmra.mrb[0].mxu0 %v1220
    %v1324 = vpop.f32.mrb[0].mxu0
    %v1325 = vadd.f32 0.0, %v1324
    %v1326 = vpop.f32.mrb[0].mxu0
    %v1327 = vadd.f32 0.0, %v1326
    %1328 = vdwg.mxu0
    %1329 = vmatprep.subr.mxu0 %v1188
    %1330 = vmatpush1.msra.mxu0 %v1187
    %1331 = vmatprep.subr.mxu0 %v1192
    %1332 = vmatpush1.msra.mxu0 %v1191
    %1333 = vmatprep.subr.mxu0 %v1196
    %1334 = vmatpush1.msra.mxu0 %v1195
    %1335 = vmatprep.subr.mxu0 %v1200
    %1336 = vmatpush1.msra.mxu0 %v1199
    %1337 = vmatprep.subr.mxu0 0.0
    %1338 = vmatpush1.msra.mxu0 0.0
    %1339 = vmatprep.subr.mxu0 0.0
    %1340 = vmatpush1.msra.mxu0 0.0
    %1341 = vmatprep.subr.mxu0 0.0
    %1342 = vmatpush1.msra.mxu0 0.0
    %1343 = vmatprep.subr.mxu0 0.0
    %1344 = vmatpush1.msra.mxu0 0.0
    %1345 = vmatprep.subr.mxu0 0.0
    %1346 = vmatpush1.msra.mxu0 0.0
    %1347 = vmatprep.subr.mxu0 0.0
    %1348 = vmatpush1.msra.mxu0 0.0
    %1349 = vmatprep.subr.mxu0 0.0
    %1350 = vmatpush1.msra.mxu0 0.0
    %1351 = vmatprep.subr.mxu0 0.0
    %1352 = vmatpush1.msra.mxu0 0.0
    %1353 = vmatprep.subr.mxu0 0.0
    %1354 = vmatpush1.msra.mxu0 0.0
    %1355 = vmatprep.subr.mxu0 0.0
    %1356 = vmatpush1.msra.mxu0 0.0
    %1357 = vmatprep.subr.mxu0 0.0
    %1358 = vmatpush1.msra.mxu0 0.0
    %1359 = vmatprep.subr.mxu0 0.0
    %1360 = vmatpush1.msra.mxu0 0.0
    %1361 = vmatprep.subr.mxu0 0.0
    %1362 = vmatpush1.msra.mxu0 0.0
    %1363 = vmatprep.subr.mxu0 0.0
    %1364 = vmatpush1.msra.mxu0 0.0
    %1365 = vmatprep.subr.mxu0 0.0
    %1366 = vmatpush1.msra.mxu0 0.0
    %1367 = vmatprep.subr.mxu0 0.0
    %1368 = vmatpush1.msra.mxu0 0.0
    %1369 = vmatprep.subr.mxu0 0.0
    %1370 = vmatpush1.msra.mxu0 0.0
    %1371 = vmatprep.subr.mxu0 0.0
    %1372 = vmatpush1.msra.mxu0 0.0
    %1373 = vmatprep.subr.mxu0 0.0
    %1374 = vmatpush1.msra.mxu0 0.0
    %1375 = vmatprep.subr.mxu0 0.0
    %1376 = vmatpush1.msra.mxu0 0.0
    %1377 = vmatprep.subr.mxu0 0.0
    %1378 = vmatpush1.msra.mxu0 0.0
    %1379 = vmatprep.subr.mxu0 0.0
    %1380 = vmatpush1.msra.mxu0 0.0
    %1381 = vmatprep.subr.mxu0 0.0
    %1382 = vmatpush1.msra.mxu0 0.0
    %1383 = vmatprep.subr.mxu0 0.0
    %1384 = vmatpush1.msra.mxu0 0.0
    %1385 = vmatprep.subr.mxu0 0.0
    %1386 = vmatpush1.msra.mxu0 0.0
    %1387 = vmatprep.subr.mxu0 0.0
    %1388 = vmatpush1.msra.mxu0 0.0
    %1389 = vmatprep.subr.mxu0 0.0
    %1390 = vmatpush1.msra.mxu0 0.0
    %1391 = vmatprep.subr.mxu0 0.0
    %1392 = vmatpush1.msra.mxu0 0.0
    %1393 = vmatprep.mubr.f32.mxu0 0.0
    %1394 = vmatmul.mubr.f32.gmra.mrb[0].mxu0 %v1202
    %v1395 = vpop.f32.mrb[0].mxu0
    %v1396 = vadd.f32 0.0, %v1395
    %v1397 = vpop.f32.mrb[0].mxu0
    %v1398 = vadd.f32 0.0, %v1397
    %1399 = vmatprep.mubr.f32.mxu0 0.0
    %1400 = vmatmul.mubr.f32.gmra.mrb[0].mxu0 %v1205
    %v1401 = vpop.f32.mrb[0].mxu0
    %v1402 = vadd.f32 0.0, %v1401
    %v1403 = vpop.f32.mrb[0].mxu0
    %v1404 = vadd.f32 0.0, %v1403
    %1405 = vmatprep.mubr.f32.mxu0 0.0
    %1406 = vmatmul.mubr.f32.gmra.mrb[0].mxu0 %v1208
    %v1407 = vpop.f32.mrb[0].mxu0
    %v1408 = vadd.f32 0.0, %v1407
    %v1409 = vpop.f32.mrb[0].mxu0
    %v1410 = vadd.f32 0.0, %v1409
    %1411 = vmatprep.mubr.f32.mxu0 0.0
    %1412 = vmatmul.mubr.f32.gmra.mrb[0].mxu0 %v1211
    %v1413 = vpop.f32.mrb[0].mxu0
    %v1414 = vadd.f32 0.0, %v1413
    %v1415 = vpop.f32.mrb[0].mxu0
    %v1416 = vadd.f32 0.0, %v1415
    %1417 = vmatprep.mubr.f32.mxu0 0.0
    %1418 = vmatmul.mubr.f32.gmra.mrb[0].mxu0 %v1214
    %v1419 = vpop.f32.mrb[0].mxu0
    %v1420 = vadd.f32 0.0, %v1419
    %v1421 = vpop.f32.mrb[0].mxu0
    %v1422 = vadd.f32 0.0, %v1421
    %1423 = vmatprep.mubr.f32.mxu0 0.0
    %1424 = vmatmul.mubr.f32.gmra.mrb[0].mxu0 %v1217
    %v1425 = vpop.f32.mrb[0].mxu0
    %v1426 = vadd.f32 0.0, %v1425
    %v1427 = vpop.f32.mrb[0].mxu0
    %v1428 = vadd.f32 0.0, %v1427
    %1429 = vmatprep.mubr.f32.mxu0 0.0
    %1430 = vmatmul.mubr.f32.gmra.mrb[0].mxu0 %v1220
    %v1431 = vpop.f32.mrb[0].mxu0
    %v1432 = vadd.f32 0.0, %v1431
    %v1433 = vpop.f32.mrb[0].mxu0
    %v1434 = vadd.f32 0.0, %v1433
    %1435 = vdwg.mxu0
    %v1436 = vmul.f32 %v1289, 1.442695
    %v1437 = vpow.pop %v1436
    %v1438 = vmul.f32 %v1291, 1.442695
    %v1439 = vpow.pop %v1438
    %v1440 = vmul.f32 %v1396, 1.442695
    %v1441 = vpow.pop %v1440
    %v1442 = vmul.f32 %v1398, 1.442695
    %v1443 = vpow.pop %v1442
    %v1444 = vmul.f32 %v1295, 1.442695
    %v1445 = vpow.pop %v1444
    %v1446 = vmul.f32 %v1297, 1.442695
    %v1447 = vpow.pop %v1446
    %v1448 = vmul.f32 %v1402, 1.442695
    %v1449 = vpow.pop %v1448
    %v1450 = vmul.f32 %v1404, 1.442695
    %v1451 = vpow.pop %v1450
    %v1452 = vmul.f32 %v1301, 1.442695
    %v1453 = vpow.pop %v1452
    %v1454 = vmul.f32 %v1303, 1.442695
    %v1455 = vpow.pop %v1454
    %v1456 = vmul.f32 %v1408, 1.442695
    %v1457 = vpow.pop %v1456
    %v1458 = vmul.f32 %v1410, 1.442695
    %v1459 = vpow.pop %v1458
    %v1460 = vmul.f32 %v1307, 1.442695
    %v1461 = vpow.pop %v1460
    %v1462 = vmul.f32 %v1309, 1.442695
    %v1463 = vpow.pop %v1462
    %v1464 = vmul.f32 %v1414, 1.442695
    %v1465 = vpow.pop %v1464
    %v1466 = vmul.f32 %v1416, 1.442695
    %v1467 = vpow.pop %v1466
    %v1468 = vmul.f32 %v1313, 1.442695
    %v1469 = vpow.pop %v1468
    %v1470 = vmul.f32 %v1315, 1.442695
    %v1471 = vpow.pop %v1470
    %v1472 = vmul.f32 %v1420, 1.442695
    %v1473 = vpow.pop %v1472
    %v1474 = vmul.f32 %v1422, 1.442695
    %v1475 = vpow.pop %v1474
    %v1476 = vmul.f32 %v1319, 1.442695
    %v1477 = vpow.pop %v1476
    %v1478 = vmul.f32 %v1321, 1.442695
    %v1479 = vpow.pop %v1478
    %v1480 = vmul.f32 %v1426, 1.442695
    %v1481 = vpow.pop %v1480
    %v1482 = vmul.f32 %v1428, 1.442695
    %v1483 = vpow.pop %v1482
    %v1484 = vmul.f32 %v1325, 1.442695
    %v1485 = vpow.pop %v1484
    %v1486 = vmul.f32 %v1327, 1.442695
    %v1487 = vpow.pop %v1486
    %v1488 = vmul.f32 %v1432, 1.442695
    %v1489 = vpow.pop %v1488
    %v1490 = vmul.f32 %v1434, 1.442695
    %v1491 = vpow.pop %v1490
    %v1492 = vmul.f32 %v1178, %v1012
    %v1493 = vmul.f32 %v1179, %v1013
    %v1494 = vmul.f32 %v1180, %v1014
    %v1495 = vmul.f32 %v1181, %v1015
    %v1496 = vmul.f32 %v1182, %v1016
    %v1497 = vmul.f32 %v1183, %v1017
    %v1498 = vmul.f32 %v1184, %v1018
    %v1500 = vsel %vm849, %v1492, 0
    %v1503 = vsel %vm849, %v1493, 0
    %v1506 = vsel %vm849, %v1494, 0
    %v1509 = vsel %vm849, %v1495, 0
    %v1512 = vsel %vm849, %v1496, 0
    %v1515 = vsel %vm849, %v1497, 0
    %v1518 = vsel %vm849, %v1498, 0
    %1520 = vmatprep.subr.mxu0 %v742
    %1521 = vmatpush1.msra.mxu0 %v741
    %1522 = vmatprep.subr.mxu0 %v746
    %1523 = vmatpush1.msra.mxu0 %v745
    %1524 = vmatprep.subr.mxu0 %v750
    %1525 = vmatpush1.msra.mxu0 %v749
    %1526 = vmatprep.subr.mxu0 %v754
    %1527 = vmatpush1.msra.mxu0 %v753
    %1528 = vmatprep.subr.mxu0 0.0
    %1529 = vmatpush1.msra.mxu0 0.0
    %1530 = vmatprep.subr.mxu0 0.0
    %1531 = vmatpush1.msra.mxu0 0.0
    %1532 = vmatprep.subr.mxu0 0.0
    %1533 = vmatpush1.msra.mxu0 0.0
    %1534 = vmatprep.subr.mxu0 0.0
    %1535 = vmatpush1.msra.mxu0 0.0
    %1536 = vmatprep.subr.mxu0 0.0
    %1537 = vmatpush1.msra.mxu0 0.0
    %1538 = vmatprep.subr.mxu0 0.0
    %1539 = vmatpush1.msra.mxu0 0.0
    %1540 = vmatprep.subr.mxu0 0.0
    %1541 = vmatpush1.msra.mxu0 0.0
    %1542 = vmatprep.subr.mxu0 0.0
    %1543 = vmatpush1.msra.mxu0 0.0
    %1544 = vmatprep.subr.mxu0 0.0
    %1545 = vmatpush1.msra.mxu0 0.0
    %1546 = vmatprep.subr.mxu0 0.0
    %1547 = vmatpush1.msra.mxu0 0.0
    %1548 = vmatprep.subr.mxu0 0.0
    %1549 = vmatpush1.msra.mxu0 0.0
    %1550 = vmatprep.subr.mxu0 0.0
    %1551 = vmatpush1.msra.mxu0 0.0
    %1552 = vmatprep.subr.mxu0 0.0
    %1553 = vmatpush1.msra.mxu0 0.0
    %1554 = vmatprep.subr.mxu0 0.0
    %1555 = vmatpush1.msra.mxu0 0.0
    %1556 = vmatprep.subr.mxu0 0.0
    %1557 = vmatpush1.msra.mxu0 0.0
    %1558 = vmatprep.subr.mxu0 0.0
    %1559 = vmatpush1.msra.mxu0 0.0
    %1560 = vmatprep.subr.mxu0 0.0
    %1561 = vmatpush1.msra.mxu0 0.0
    %1562 = vmatprep.subr.mxu0 0.0
    %1563 = vmatpush1.msra.mxu0 0.0
    %1564 = vmatprep.subr.mxu0 0.0
    %1565 = vmatpush1.msra.mxu0 0.0
    %1566 = vmatprep.subr.mxu0 0.0
    %1567 = vmatpush1.msra.mxu0 0.0
    %1568 = vmatprep.subr.mxu0 0.0
    %1569 = vmatpush1.msra.mxu0 0.0
    %1570 = vmatprep.subr.mxu0 0.0
    %1571 = vmatpush1.msra.mxu0 0.0
    %1572 = vmatprep.subr.mxu0 0.0
    %1573 = vmatpush1.msra.mxu0 0.0
    %1574 = vmatprep.subr.mxu0 0.0
    %1575 = vmatpush1.msra.mxu0 0.0
    %1576 = vmatprep.subr.mxu0 0.0
    %1577 = vmatpush1.msra.mxu0 0.0
    %1578 = vmatprep.subr.mxu0 0.0
    %1579 = vmatpush1.msra.mxu0 0.0
    %1580 = vmatprep.subr.mxu0 0.0
    %1581 = vmatpush1.msra.mxu0 0.0
    %1582 = vmatprep.subr.mxu0 0.0
    %1583 = vmatpush1.msra.mxu0 0.0
    %1584 = vmatprep.mubr.f32.mxu0 0.0
    %1585 = vmatmul.mubr.f32.gmra.mrb[0].mxu0 %v1500
    %v1586 = vpop.f32.mrb[0].mxu0
    %v1587 = vadd.f32 0.0, %v1586
    %v1588 = vpop.f32.mrb[0].mxu0
    %v1589 = vadd.f32 0.0, %v1588
    %1590 = vmatprep.mubr.f32.mxu0 0.0
    %1591 = vmatmul.mubr.f32.gmra.mrb[0].mxu0 %v1503
    %v1592 = vpop.f32.mrb[0].mxu0
    %v1593 = vadd.f32 0.0, %v1592
    %v1594 = vpop.f32.mrb[0].mxu0
    %v1595 = vadd.f32 0.0, %v1594
    %1596 = vmatprep.mubr.f32.mxu0 0.0
    %1597 = vmatmul.mubr.f32.gmra.mrb[0].mxu0 %v1506
    %v1598 = vpop.f32.mrb[0].mxu0
    %v1599 = vadd.f32 0.0, %v1598
    %v1600 = vpop.f32.mrb[0].mxu0
    %v1601 = vadd.f32 0.0, %v1600
    %1602 = vmatprep.mubr.f32.mxu0 0.0
    %1603 = vmatmul.mubr.f32.gmra.mrb[0].mxu0 %v1509
    %v1604 = vpop.f32.mrb[0].mxu0
    %v1605 = vadd.f32 0.0, %v1604
    %v1606 = vpop.f32.mrb[0].mxu0
    %v1607 = vadd.f32 0.0, %v1606
    %1608 = vmatprep.mubr.f32.mxu0 0.0
    %1609 = vmatmul.mubr.f32.gmra.mrb[0].mxu0 %v1512
    %v1610 = vpop.f32.mrb[0].mxu0
    %v1611 = vadd.f32 0.0, %v1610
    %v1612 = vpop.f32.mrb[0].mxu0
    %v1613 = vadd.f32 0.0, %v1612
    %1614 = vmatprep.mubr.f32.mxu0 0.0
    %1615 = vmatmul.mubr.f32.gmra.mrb[0].mxu0 %v1515
    %v1616 = vpop.f32.mrb[0].mxu0
    %v1617 = vadd.f32 0.0, %v1616
    %v1618 = vpop.f32.mrb[0].mxu0
    %v1619 = vadd.f32 0.0, %v1618
    %1620 = vmatprep.mubr.f32.mxu0 0.0
    %1621 = vmatmul.mubr.f32.gmra.mrb[0].mxu0 %v1518
    %v1622 = vpop.f32.mrb[0].mxu0
    %v1623 = vadd.f32 0.0, %v1622
    %v1624 = vpop.f32.mrb[0].mxu0
    %v1625 = vadd.f32 0.0, %v1624
    %1626 = vdwg.mxu0
    %1627 = vmatprep.subr.mxu0 %v744
    %1628 = vmatpush1.msra.mxu0 %v743
    %1629 = vmatprep.subr.mxu0 %v748
    %1630 = vmatpush1.msra.mxu0 %v747
    %1631 = vmatprep.subr.mxu0 %v752
    %1632 = vmatpush1.msra.mxu0 %v751
    %1633 = vmatprep.subr.mxu0 %v756
    %1634 = vmatpush1.msra.mxu0 %v755
    %1635 = vmatprep.subr.mxu0 0.0
    %1636 = vmatpush1.msra.mxu0 0.0
    %1637 = vmatprep.subr.mxu0 0.0
    %1638 = vmatpush1.msra.mxu0 0.0
    %1639 = vmatprep.subr.mxu0 0.0
    %1640 = vmatpush1.msra.mxu0 0.0
    %1641 = vmatprep.subr.mxu0 0.0
    %1642 = vmatpush1.msra.mxu0 0.0
    %1643 = vmatprep.subr.mxu0 0.0
    %1644 = vmatpush1.msra.mxu0 0.0
    %1645 = vmatprep.subr.mxu0 0.0
    %1646 = vmatpush1.msra.mxu0 0.0
    %1647 = vmatprep.subr.mxu0 0.0
    %1648 = vmatpush1.msra.mxu0 0.0
    %1649 = vmatprep.subr.mxu0 0.0
    %1650 = vmatpush1.msra.mxu0 0.0
    %1651 = vmatprep.subr.mxu0 0.0
    %1652 = vmatpush1.msra.mxu0 0.0
    %1653 = vmatprep.subr.mxu0 0.0
    %1654 = vmatpush1.msra.mxu0 0.0
    %1655 = vmatprep.subr.mxu0 0.0
    %1656 = vmatpush1.msra.mxu0 0.0
    %1657 = vmatprep.subr.mxu0 0.0
    %1658 = vmatpush1.msra.mxu0 0.0
    %1659 = vmatprep.subr.mxu0 0.0
    %1660 = vmatpush1.msra.mxu0 0.0
    %1661 = vmatprep.subr.mxu0 0.0
    %1662 = vmatpush1.msra.mxu0 0.0
    %1663 = vmatprep.subr.mxu0 0.0
    %1664 = vmatpush1.msra.mxu0 0.0
    %1665 = vmatprep.subr.mxu0 0.0
    %1666 = vmatpush1.msra.mxu0 0.0
    %1667 = vmatprep.subr.mxu0 0.0
    %1668 = vmatpush1.msra.mxu0 0.0
    %1669 = vmatprep.subr.mxu0 0.0
    %1670 = vmatpush1.msra.mxu0 0.0
    %1671 = vmatprep.subr.mxu0 0.0
    %1672 = vmatpush1.msra.mxu0 0.0
    %1673 = vmatprep.subr.mxu0 0.0
    %1674 = vmatpush1.msra.mxu0 0.0
    %1675 = vmatprep.subr.mxu0 0.0
    %1676 = vmatpush1.msra.mxu0 0.0
    %1677 = vmatprep.subr.mxu0 0.0
    %1678 = vmatpush1.msra.mxu0 0.0
    %1679 = vmatprep.subr.mxu0 0.0
    %1680 = vmatpush1.msra.mxu0 0.0
    %1681 = vmatprep.subr.mxu0 0.0
    %1682 = vmatpush1.msra.mxu0 0.0
    %1683 = vmatprep.subr.mxu0 0.0
    %1684 = vmatpush1.msra.mxu0 0.0
    %1685 = vmatprep.subr.mxu0 0.0
    %1686 = vmatpush1.msra.mxu0 0.0
    %1687 = vmatprep.subr.mxu0 0.0
    %1688 = vmatpush1.msra.mxu0 0.0
    %1689 = vmatprep.subr.mxu0 0.0
    %1690 = vmatpush1.msra.mxu0 0.0
    %1691 = vmatprep.mubr.f32.mxu0 0.0
    %1692 = vmatmul.mubr.f32.gmra.mrb[0].mxu0 %v1500
    %v1693 = vpop.f32.mrb[0].mxu0
    %v1694 = vadd.f32 0.0, %v1693
    %v1695 = vpop.f32.mrb[0].mxu0
    %v1696 = vadd.f32 0.0, %v1695
    %1697 = vmatprep.mubr.f32.mxu0 0.0
    %1698 = vmatmul.mubr.f32.gmra.mrb[0].mxu0 %v1503
    %v1699 = vpop.f32.mrb[0].mxu0
    %v1700 = vadd.f32 0.0, %v1699
    %v1701 = vpop.f32.mrb[0].mxu0
    %v1702 = vadd.f32 0.0, %v1701
    %1703 = vmatprep.mubr.f32.mxu0 0.0
    %1704 = vmatmul.mubr.f32.gmra.mrb[0].mxu0 %v1506
    %v1705 = vpop.f32.mrb[0].mxu0
    %v1706 = vadd.f32 0.0, %v1705
    %v1707 = vpop.f32.mrb[0].mxu0
    %v1708 = vadd.f32 0.0, %v1707
    %1709 = vmatprep.mubr.f32.mxu0 0.0
    %1710 = vmatmul.mubr.f32.gmra.mrb[0].mxu0 %v1509
    %v1711 = vpop.f32.mrb[0].mxu0
    %v1712 = vadd.f32 0.0, %v1711
    %v1713 = vpop.f32.mrb[0].mxu0
    %v1714 = vadd.f32 0.0, %v1713
    %1715 = vmatprep.mubr.f32.mxu0 0.0
    %1716 = vmatmul.mubr.f32.gmra.mrb[0].mxu0 %v1512
    %v1717 = vpop.f32.mrb[0].mxu0
    %v1718 = vadd.f32 0.0, %v1717
    %v1719 = vpop.f32.mrb[0].mxu0
    %v1720 = vadd.f32 0.0, %v1719
    %1721 = vmatprep.mubr.f32.mxu0 0.0
    %1722 = vmatmul.mubr.f32.gmra.mrb[0].mxu0 %v1515
    %v1723 = vpop.f32.mrb[0].mxu0
    %v1724 = vadd.f32 0.0, %v1723
    %v1725 = vpop.f32.mrb[0].mxu0
    %v1726 = vadd.f32 0.0, %v1725
    %1727 = vmatprep.mubr.f32.mxu0 0.0
    %1728 = vmatmul.mubr.f32.gmra.mrb[0].mxu0 %v1518
    %v1729 = vpop.f32.mrb[0].mxu0
    %v1730 = vadd.f32 0.0, %v1729
    %v1731 = vpop.f32.mrb[0].mxu0
    %v1732 = vadd.f32 0.0, %v1731
    %1733 = vdwg.mxu0
    %1741 = vrot.lane.b32.xlu0 %v1086, 96
    %v1742 = vpop.permute.xlu0 %1741
    %1743 = vrot.lane.b32.xlu0 %v1089, 96
    %v1744 = vpop.permute.xlu0 %1743
    %1745 = vrot.lane.b32.xlu0 %v1094, 96
    %v1746 = vpop.permute.xlu0 %1745
    %1747 = vrot.lane.b32.xlu0 %v1097, 96
    %v1748 = vpop.permute.xlu0 %1747
    %1749 = vrot.lane.b32.xlu0 %v1102, 96
    %v1750 = vpop.permute.xlu0 %1749
    %1751 = vrot.lane.b32.xlu0 %v1105, 96
    %v1752 = vpop.permute.xlu0 %1751
    %1753 = vrot.lane.b32.xlu0 %v1110, 96
    %v1754 = vpop.permute.xlu0 %1753
    %vm1755 = vcmask 130048
    %v1756 = vsel %vm1755, %v1742, 0
    %v1758 = vsel %vm1755, %v1744, 0
    %v1760 = vsel %vm1755, %v1746, 0
    %v1762 = vsel %vm1755, %v1748, 0
    %v1764 = vsel %vm1755, %v1750, 0
    %v1766 = vsel %vm1755, %v1752, 0
    %v1768 = vsel %vm1755, %v1754, 0
    %1770 = vmatprep.subr.mxu0 %v758
    %1771 = vmatpush1.msra.mxu0 %v757
    %1772 = vmatprep.subr.mxu0 %v762
    %1773 = vmatpush1.msra.mxu0 %v761
    %1774 = vmatprep.subr.mxu0 0.0
    %1775 = vmatpush1.msra.mxu0 0.0
    %1776 = vmatprep.subr.mxu0 0.0
    %1777 = vmatpush1.msra.mxu0 0.0
    %1778 = vmatprep.subr.mxu0 0.0
    %1779 = vmatpush1.msra.mxu0 0.0
    %1780 = vmatprep.subr.mxu0 0.0
    %1781 = vmatpush1.msra.mxu0 0.0
    %1782 = vmatprep.subr.mxu0 0.0
    %1783 = vmatpush1.msra.mxu0 0.0
    %1784 = vmatprep.subr.mxu0 0.0
    %1785 = vmatpush1.msra.mxu0 0.0
    %1786 = vmatprep.subr.mxu0 0.0
    %1787 = vmatpush1.msra.mxu0 0.0
    %1788 = vmatprep.subr.mxu0 0.0
    %1789 = vmatpush1.msra.mxu0 0.0
    %1790 = vmatprep.subr.mxu0 0.0
    %1791 = vmatpush1.msra.mxu0 0.0
    %1792 = vmatprep.subr.mxu0 0.0
    %1793 = vmatpush1.msra.mxu0 0.0
    %1794 = vmatprep.subr.mxu0 0.0
    %1795 = vmatpush1.msra.mxu0 0.0
    %1796 = vmatprep.subr.mxu0 0.0
    %1797 = vmatpush1.msra.mxu0 0.0
    %1798 = vmatprep.subr.mxu0 0.0
    %1799 = vmatpush1.msra.mxu0 0.0
    %1800 = vmatprep.subr.mxu0 0.0
    %1801 = vmatpush1.msra.mxu0 0.0
    %1802 = vmatprep.subr.mxu0 0.0
    %1803 = vmatpush1.msra.mxu0 0.0
    %1804 = vmatprep.subr.mxu0 0.0
    %1805 = vmatpush1.msra.mxu0 0.0
    %1806 = vmatprep.subr.mxu0 0.0
    %1807 = vmatpush1.msra.mxu0 0.0
    %1808 = vmatprep.subr.mxu0 0.0
    %1809 = vmatpush1.msra.mxu0 0.0
    %1810 = vmatprep.subr.mxu0 0.0
    %1811 = vmatpush1.msra.mxu0 0.0
    %1812 = vmatprep.subr.mxu0 0.0
    %1813 = vmatpush1.msra.mxu0 0.0
    %1814 = vmatprep.subr.mxu0 0.0
    %1815 = vmatpush1.msra.mxu0 0.0
    %1816 = vmatprep.subr.mxu0 0.0
    %1817 = vmatpush1.msra.mxu0 0.0
    %1818 = vmatprep.subr.mxu0 0.0
    %1819 = vmatpush1.msra.mxu0 0.0
    %1820 = vmatprep.subr.mxu0 0.0
    %1821 = vmatpush1.msra.mxu0 0.0
    %1822 = vmatprep.subr.mxu0 0.0
    %1823 = vmatpush1.msra.mxu0 0.0
    %1824 = vmatprep.subr.mxu0 0.0
    %1825 = vmatpush1.msra.mxu0 0.0
    %1826 = vmatprep.subr.mxu0 0.0
    %1827 = vmatpush1.msra.mxu0 0.0
    %1828 = vmatprep.subr.mxu0 0.0
    %1829 = vmatpush1.msra.mxu0 0.0
    %1830 = vmatprep.subr.mxu0 0.0
    %1831 = vmatpush1.msra.mxu0 0.0
    %1832 = vmatprep.subr.mxu0 0.0
    %1833 = vmatpush1.msra.mxu0 0.0
    %1834 = vmatprep.mubr.f32.mxu0 0.0
    %1835 = vmatmul.mubr.f32.gmra.mrb[0].mxu0 %v1756
    %v1836 = vpop.f32.mrb[0].mxu0
    %v1837 = vadd.f32 0.0, %v1836
    %v1838 = vpop.f32.mrb[0].mxu0
    %v1839 = vadd.f32 0.0, %v1838
    %1840 = vmatprep.mubr.f32.mxu0 0.0
    %1841 = vmatmul.mubr.f32.gmra.mrb[0].mxu0 %v1758
    %v1842 = vpop.f32.mrb[0].mxu0
    %v1843 = vadd.f32 0.0, %v1842
    %v1844 = vpop.f32.mrb[0].mxu0
    %v1845 = vadd.f32 0.0, %v1844
    %1846 = vmatprep.mubr.f32.mxu0 0.0
    %1847 = vmatmul.mubr.f32.gmra.mrb[0].mxu0 %v1760
    %v1848 = vpop.f32.mrb[0].mxu0
    %v1849 = vadd.f32 0.0, %v1848
    %v1850 = vpop.f32.mrb[0].mxu0
    %v1851 = vadd.f32 0.0, %v1850
    %1852 = vmatprep.mubr.f32.mxu0 0.0
    %1853 = vmatmul.mubr.f32.gmra.mrb[0].mxu0 %v1762
    %v1854 = vpop.f32.mrb[0].mxu0
    %v1855 = vadd.f32 0.0, %v1854
    %v1856 = vpop.f32.mrb[0].mxu0
    %v1857 = vadd.f32 0.0, %v1856
    %1858 = vmatprep.mubr.f32.mxu0 0.0
    %1859 = vmatmul.mubr.f32.gmra.mrb[0].mxu0 %v1764
    %v1860 = vpop.f32.mrb[0].mxu0
    %v1861 = vadd.f32 0.0, %v1860
    %v1862 = vpop.f32.mrb[0].mxu0
    %v1863 = vadd.f32 0.0, %v1862
    %1864 = vmatprep.mubr.f32.mxu0 0.0
    %1865 = vmatmul.mubr.f32.gmra.mrb[0].mxu0 %v1766
    %v1866 = vpop.f32.mrb[0].mxu0
    %v1867 = vadd.f32 0.0, %v1866
    %v1868 = vpop.f32.mrb[0].mxu0
    %v1869 = vadd.f32 0.0, %v1868
    %1870 = vmatprep.mubr.f32.mxu0 0.0
    %1871 = vmatmul.mubr.f32.gmra.mrb[0].mxu0 %v1768
    %v1872 = vpop.f32.mrb[0].mxu0
    %v1873 = vadd.f32 0.0, %v1872
    %v1874 = vpop.f32.mrb[0].mxu0
    %v1875 = vadd.f32 0.0, %v1874
    %1876 = vdwg.mxu0
    %1877 = vmatprep.subr.mxu0 %v760
    %1878 = vmatpush1.msra.mxu0 %v759
    %1879 = vmatprep.subr.mxu0 %v764
    %1880 = vmatpush1.msra.mxu0 %v763
    %1881 = vmatprep.subr.mxu0 0.0
    %1882 = vmatpush1.msra.mxu0 0.0
    %1883 = vmatprep.subr.mxu0 0.0
    %1884 = vmatpush1.msra.mxu0 0.0
    %1885 = vmatprep.subr.mxu0 0.0
    %1886 = vmatpush1.msra.mxu0 0.0
    %1887 = vmatprep.subr.mxu0 0.0
    %1888 = vmatpush1.msra.mxu0 0.0
    %1889 = vmatprep.subr.mxu0 0.0
    %1890 = vmatpush1.msra.mxu0 0.0
    %1891 = vmatprep.subr.mxu0 0.0
    %1892 = vmatpush1.msra.mxu0 0.0
    %1893 = vmatprep.subr.mxu0 0.0
    %1894 = vmatpush1.msra.mxu0 0.0
    %1895 = vmatprep.subr.mxu0 0.0
    %1896 = vmatpush1.msra.mxu0 0.0
    %1897 = vmatprep.subr.mxu0 0.0
    %1898 = vmatpush1.msra.mxu0 0.0
    %1899 = vmatprep.subr.mxu0 0.0
    %1900 = vmatpush1.msra.mxu0 0.0
    %1901 = vmatprep.subr.mxu0 0.0
    %1902 = vmatpush1.msra.mxu0 0.0
    %1903 = vmatprep.subr.mxu0 0.0
    %1904 = vmatpush1.msra.mxu0 0.0
    %1905 = vmatprep.subr.mxu0 0.0
    %1906 = vmatpush1.msra.mxu0 0.0
    %1907 = vmatprep.subr.mxu0 0.0
    %1908 = vmatpush1.msra.mxu0 0.0
    %1909 = vmatprep.subr.mxu0 0.0
    %1910 = vmatpush1.msra.mxu0 0.0
    %1911 = vmatprep.subr.mxu0 0.0
    %1912 = vmatpush1.msra.mxu0 0.0
    %1913 = vmatprep.subr.mxu0 0.0
    %1914 = vmatpush1.msra.mxu0 0.0
    %1915 = vmatprep.subr.mxu0 0.0
    %1916 = vmatpush1.msra.mxu0 0.0
    %1917 = vmatprep.subr.mxu0 0.0
    %1918 = vmatpush1.msra.mxu0 0.0
    %1919 = vmatprep.subr.mxu0 0.0
    %1920 = vmatpush1.msra.mxu0 0.0
    %1921 = vmatprep.subr.mxu0 0.0
    %1922 = vmatpush1.msra.mxu0 0.0
    %1923 = vmatprep.subr.mxu0 0.0
    %1924 = vmatpush1.msra.mxu0 0.0
    %1925 = vmatprep.subr.mxu0 0.0
    %1926 = vmatpush1.msra.mxu0 0.0
    %1927 = vmatprep.subr.mxu0 0.0
    %1928 = vmatpush1.msra.mxu0 0.0
    %1929 = vmatprep.subr.mxu0 0.0
    %1930 = vmatpush1.msra.mxu0 0.0
    %1931 = vmatprep.subr.mxu0 0.0
    %1932 = vmatpush1.msra.mxu0 0.0
    %1933 = vmatprep.subr.mxu0 0.0
    %1934 = vmatpush1.msra.mxu0 0.0
    %1935 = vmatprep.subr.mxu0 0.0
    %1936 = vmatpush1.msra.mxu0 0.0
    %1937 = vmatprep.subr.mxu0 0.0
    %1938 = vmatpush1.msra.mxu0 0.0
    %1939 = vmatprep.subr.mxu0 0.0
    %1940 = vmatpush1.msra.mxu0 0.0
    %1941 = vmatprep.mubr.f32.mxu0 0.0
    %1942 = vmatmul.mubr.f32.gmra.mrb[0].mxu0 %v1756
    %v1943 = vpop.f32.mrb[0].mxu0
    %v1944 = vadd.f32 0.0, %v1943
    %v1945 = vpop.f32.mrb[0].mxu0
    %v1946 = vadd.f32 0.0, %v1945
    %1947 = vmatprep.mubr.f32.mxu0 0.0
    %1948 = vmatmul.mubr.f32.gmra.mrb[0].mxu0 %v1758
    %v1949 = vpop.f32.mrb[0].mxu0
    %v1950 = vadd.f32 0.0, %v1949
    %v1951 = vpop.f32.mrb[0].mxu0
    %v1952 = vadd.f32 0.0, %v1951
    %1953 = vmatprep.mubr.f32.mxu0 0.0
    %1954 = vmatmul.mubr.f32.gmra.mrb[0].mxu0 %v1760
    %v1955 = vpop.f32.mrb[0].mxu0
    %v1956 = vadd.f32 0.0, %v1955
    %v1957 = vpop.f32.mrb[0].mxu0
    %v1958 = vadd.f32 0.0, %v1957
    %1959 = vmatprep.mubr.f32.mxu0 0.0
    %1960 = vmatmul.mubr.f32.gmra.mrb[0].mxu0 %v1762
    %v1961 = vpop.f32.mrb[0].mxu0
    %v1962 = vadd.f32 0.0, %v1961
    %v1963 = vpop.f32.mrb[0].mxu0
    %v1964 = vadd.f32 0.0, %v1963
    %1965 = vmatprep.mubr.f32.mxu0 0.0
    %1966 = vmatmul.mubr.f32.gmra.mrb[0].mxu0 %v1764
    %v1967 = vpop.f32.mrb[0].mxu0
    %v1968 = vadd.f32 0.0, %v1967
    %v1969 = vpop.f32.mrb[0].mxu0
    %v1970 = vadd.f32 0.0, %v1969
    %1971 = vmatprep.mubr.f32.mxu0 0.0
    %1972 = vmatmul.mubr.f32.gmra.mrb[0].mxu0 %v1766
    %v1973 = vpop.f32.mrb[0].mxu0
    %v1974 = vadd.f32 0.0, %v1973
    %v1975 = vpop.f32.mrb[0].mxu0
    %v1976 = vadd.f32 0.0, %v1975
    %1977 = vmatprep.mubr.f32.mxu0 0.0
    %1978 = vmatmul.mubr.f32.gmra.mrb[0].mxu0 %v1768
    %v1979 = vpop.f32.mrb[0].mxu0
    %v1980 = vadd.f32 0.0, %v1979
    %v1981 = vpop.f32.mrb[0].mxu0
    %v1982 = vadd.f32 0.0, %v1981
    %1983 = vdwg.mxu0
    %v1984 = vmul.f32 %v1587, %v1837
    %v1985 = vmul.f32 %v1589, %v1839
    %v1986 = vmul.f32 %v1694, %v1944
    %v1987 = vmul.f32 %v1696, %v1946
    %v1988 = vmul.f32 %v1593, %v1843
    %v1989 = vmul.f32 %v1595, %v1845
    %v1990 = vmul.f32 %v1700, %v1950
    %v1991 = vmul.f32 %v1702, %v1952
    %v1992 = vmul.f32 %v1599, %v1849
    %v1993 = vmul.f32 %v1601, %v1851
    %v1994 = vmul.f32 %v1706, %v1956
    %v1995 = vmul.f32 %v1708, %v1958
    %v1996 = vmul.f32 %v1605, %v1855
    %v1997 = vmul.f32 %v1607, %v1857
    %v1998 = vmul.f32 %v1712, %v1962
    %v1999 = vmul.f32 %v1714, %v1964
    %v2000 = vmul.f32 %v1611, %v1861
    %v2001 = vmul.f32 %v1613, %v1863
    %v2002 = vmul.f32 %v1718, %v1968
    %v2003 = vmul.f32 %v1720, %v1970
    %v2004 = vmul.f32 %v1617, %v1867
    %v2005 = vmul.f32 %v1619, %v1869
    %v2006 = vmul.f32 %v1724, %v1974
    %v2007 = vmul.f32 %v1726, %v1976
    %v2008 = vmul.f32 %v1623, %v1873
    %v2009 = vmul.f32 %v1625, %v1875
    %v2010 = vmul.f32 %v1730, %v1980
    %v2011 = vmul.f32 %v1732, %v1982
    %2012 = vrot.lane.b32.xlu0 %v1086, 80
    %v2013 = vpop.permute.xlu0 %2012
    %2014 = vrot.lane.b32.xlu0 %v1089, 80
    %v2015 = vpop.permute.xlu0 %2014
    %2016 = vrot.lane.b32.xlu0 %v1094, 80
    %v2017 = vpop.permute.xlu0 %2016
    %2018 = vrot.lane.b32.xlu0 %v1097, 80
    %v2019 = vpop.permute.xlu0 %2018
    %2020 = vrot.lane.b32.xlu0 %v1102, 80
    %v2021 = vpop.permute.xlu0 %2020
    %2022 = vrot.lane.b32.xlu0 %v1105, 80
    %v2023 = vpop.permute.xlu0 %2022
    %2024 = vrot.lane.b32.xlu0 %v1110, 80
    %v2025 = vpop.permute.xlu0 %2024
    %v2026 = vsel %vm1755, %v2013, 0
    %v2028 = vsel %vm1755, %v2015, 0
    %v2030 = vsel %vm1755, %v2017, 0
    %v2032 = vsel %vm1755, %v2019, 0
    %v2034 = vsel %vm1755, %v2021, 0
    %v2036 = vsel %vm1755, %v2023, 0
    %v2038 = vsel %vm1755, %v2025, 0
    %2040 = vmatprep.subr.mxu0 %v758
    %2041 = vmatpush1.msra.mxu0 %v757
    %2042 = vmatprep.subr.mxu0 %v762
    %2043 = vmatpush1.msra.mxu0 %v761
    %2044 = vmatprep.subr.mxu0 0.0
    %2045 = vmatpush1.msra.mxu0 0.0
    %2046 = vmatprep.subr.mxu0 0.0
    %2047 = vmatpush1.msra.mxu0 0.0
    %2048 = vmatprep.subr.mxu0 0.0
    %2049 = vmatpush1.msra.mxu0 0.0
    %2050 = vmatprep.subr.mxu0 0.0
    %2051 = vmatpush1.msra.mxu0 0.0
    %2052 = vmatprep.subr.mxu0 0.0
    %2053 = vmatpush1.msra.mxu0 0.0
    %2054 = vmatprep.subr.mxu0 0.0
    %2055 = vmatpush1.msra.mxu0 0.0
    %2056 = vmatprep.subr.mxu0 0.0
    %2057 = vmatpush1.msra.mxu0 0.0
    %2058 = vmatprep.subr.mxu0 0.0
    %2059 = vmatpush1.msra.mxu0 0.0
    %2060 = vmatprep.subr.mxu0 0.0
    %2061 = vmatpush1.msra.mxu0 0.0
    %2062 = vmatprep.subr.mxu0 0.0
    %2063 = vmatpush1.msra.mxu0 0.0
    %2064 = vmatprep.subr.mxu0 0.0
    %2065 = vmatpush1.msra.mxu0 0.0
    %2066 = vmatprep.subr.mxu0 0.0
    %2067 = vmatpush1.msra.mxu0 0.0
    %2068 = vmatprep.subr.mxu0 0.0
    %2069 = vmatpush1.msra.mxu0 0.0
    %2070 = vmatprep.subr.mxu0 0.0
    %2071 = vmatpush1.msra.mxu0 0.0
    %2072 = vmatprep.subr.mxu0 0.0
    %2073 = vmatpush1.msra.mxu0 0.0
    %2074 = vmatprep.subr.mxu0 0.0
    %2075 = vmatpush1.msra.mxu0 0.0
    %2076 = vmatprep.subr.mxu0 0.0
    %2077 = vmatpush1.msra.mxu0 0.0
    %2078 = vmatprep.subr.mxu0 0.0
    %2079 = vmatpush1.msra.mxu0 0.0
    %2080 = vmatprep.subr.mxu0 0.0
    %2081 = vmatpush1.msra.mxu0 0.0
    %2082 = vmatprep.subr.mxu0 0.0
    %2083 = vmatpush1.msra.mxu0 0.0
    %2084 = vmatprep.subr.mxu0 0.0
    %2085 = vmatpush1.msra.mxu0 0.0
    %2086 = vmatprep.subr.mxu0 0.0
    %2087 = vmatpush1.msra.mxu0 0.0
    %2088 = vmatprep.subr.mxu0 0.0
    %2089 = vmatpush1.msra.mxu0 0.0
    %2090 = vmatprep.subr.mxu0 0.0
    %2091 = vmatpush1.msra.mxu0 0.0
    %2092 = vmatprep.subr.mxu0 0.0
    %2093 = vmatpush1.msra.mxu0 0.0
    %2094 = vmatprep.subr.mxu0 0.0
    %2095 = vmatpush1.msra.mxu0 0.0
    %2096 = vmatprep.subr.mxu0 0.0
    %2097 = vmatpush1.msra.mxu0 0.0
    %2098 = vmatprep.subr.mxu0 0.0
    %2099 = vmatpush1.msra.mxu0 0.0
    %2100 = vmatprep.subr.mxu0 0.0
    %2101 = vmatpush1.msra.mxu0 0.0
    %2102 = vmatprep.subr.mxu0 0.0
    %2103 = vmatpush1.msra.mxu0 0.0
    %2104 = vmatprep.mubr.f32.mxu0 0.0
    %2105 = vmatmul.mubr.f32.gmra.mrb[0].mxu0 %v2026
    %v2106 = vpop.f32.mrb[0].mxu0
    %v2107 = vadd.f32 0.0, %v2106
    %v2108 = vpop.f32.mrb[0].mxu0
    %v2109 = vadd.f32 0.0, %v2108
    %2110 = vmatprep.mubr.f32.mxu0 0.0
    %2111 = vmatmul.mubr.f32.gmra.mrb[0].mxu0 %v2028
    %v2112 = vpop.f32.mrb[0].mxu0
    %v2113 = vadd.f32 0.0, %v2112
    %v2114 = vpop.f32.mrb[0].mxu0
    %v2115 = vadd.f32 0.0, %v2114
    %2116 = vmatprep.mubr.f32.mxu0 0.0
    %2117 = vmatmul.mubr.f32.gmra.mrb[0].mxu0 %v2030
    %v2118 = vpop.f32.mrb[0].mxu0
    %v2119 = vadd.f32 0.0, %v2118
    %v2120 = vpop.f32.mrb[0].mxu0
    %v2121 = vadd.f32 0.0, %v2120
    %2122 = vmatprep.mubr.f32.mxu0 0.0
    %2123 = vmatmul.mubr.f32.gmra.mrb[0].mxu0 %v2032
    %v2124 = vpop.f32.mrb[0].mxu0
    %v2125 = vadd.f32 0.0, %v2124
    %v2126 = vpop.f32.mrb[0].mxu0
    %v2127 = vadd.f32 0.0, %v2126
    %2128 = vmatprep.mubr.f32.mxu0 0.0
    %2129 = vmatmul.mubr.f32.gmra.mrb[0].mxu0 %v2034
    %v2130 = vpop.f32.mrb[0].mxu0
    %v2131 = vadd.f32 0.0, %v2130
    %v2132 = vpop.f32.mrb[0].mxu0
    %v2133 = vadd.f32 0.0, %v2132
    %2134 = vmatprep.mubr.f32.mxu0 0.0
    %2135 = vmatmul.mubr.f32.gmra.mrb[0].mxu0 %v2036
    %v2136 = vpop.f32.mrb[0].mxu0
    %v2137 = vadd.f32 0.0, %v2136
    %v2138 = vpop.f32.mrb[0].mxu0
    %v2139 = vadd.f32 0.0, %v2138
    %2140 = vmatprep.mubr.f32.mxu0 0.0
    %2141 = vmatmul.mubr.f32.gmra.mrb[0].mxu0 %v2038
    %v2142 = vpop.f32.mrb[0].mxu0
    %v2143 = vadd.f32 0.0, %v2142
    %v2144 = vpop.f32.mrb[0].mxu0
    %v2145 = vadd.f32 0.0, %v2144
    %2146 = vdwg.mxu0
    %2147 = vmatprep.subr.mxu0 %v760
    %2148 = vmatpush1.msra.mxu0 %v759
    %2149 = vmatprep.subr.mxu0 %v764
    %2150 = vmatpush1.msra.mxu0 %v763
    %2151 = vmatprep.subr.mxu0 0.0
    %2152 = vmatpush1.msra.mxu0 0.0
    %2153 = vmatprep.subr.mxu0 0.0
    %2154 = vmatpush1.msra.mxu0 0.0
    %2155 = vmatprep.subr.mxu0 0.0
    %2156 = vmatpush1.msra.mxu0 0.0
    %2157 = vmatprep.subr.mxu0 0.0
    %2158 = vmatpush1.msra.mxu0 0.0
    %2159 = vmatprep.subr.mxu0 0.0
    %2160 = vmatpush1.msra.mxu0 0.0
    %2161 = vmatprep.subr.mxu0 0.0
    %2162 = vmatpush1.msra.mxu0 0.0
    %2163 = vmatprep.subr.mxu0 0.0
    %2164 = vmatpush1.msra.mxu0 0.0
    %2165 = vmatprep.subr.mxu0 0.0
    %2166 = vmatpush1.msra.mxu0 0.0
    %2167 = vmatprep.subr.mxu0 0.0
    %2168 = vmatpush1.msra.mxu0 0.0
    %2169 = vmatprep.subr.mxu0 0.0
    %2170 = vmatpush1.msra.mxu0 0.0
    %2171 = vmatprep.subr.mxu0 0.0
    %2172 = vmatpush1.msra.mxu0 0.0
    %2173 = vmatprep.subr.mxu0 0.0
    %2174 = vmatpush1.msra.mxu0 0.0
    %2175 = vmatprep.subr.mxu0 0.0
    %2176 = vmatpush1.msra.mxu0 0.0
    %2177 = vmatprep.subr.mxu0 0.0
    %2178 = vmatpush1.msra.mxu0 0.0
    %2179 = vmatprep.subr.mxu0 0.0
    %2180 = vmatpush1.msra.mxu0 0.0
    %2181 = vmatprep.subr.mxu0 0.0
    %2182 = vmatpush1.msra.mxu0 0.0
    %2183 = vmatprep.subr.mxu0 0.0
    %2184 = vmatpush1.msra.mxu0 0.0
    %2185 = vmatprep.subr.mxu0 0.0
    %2186 = vmatpush1.msra.mxu0 0.0
    %2187 = vmatprep.subr.mxu0 0.0
    %2188 = vmatpush1.msra.mxu0 0.0
    %2189 = vmatprep.subr.mxu0 0.0
    %2190 = vmatpush1.msra.mxu0 0.0
    %2191 = vmatprep.subr.mxu0 0.0
    %2192 = vmatpush1.msra.mxu0 0.0
    %2193 = vmatprep.subr.mxu0 0.0
    %2194 = vmatpush1.msra.mxu0 0.0
    %2195 = vmatprep.subr.mxu0 0.0
    %2196 = vmatpush1.msra.mxu0 0.0
    %2197 = vmatprep.subr.mxu0 0.0
    %2198 = vmatpush1.msra.mxu0 0.0
    %2199 = vmatprep.subr.mxu0 0.0
    %2200 = vmatpush1.msra.mxu0 0.0
    %2201 = vmatprep.subr.mxu0 0.0
    %2202 = vmatpush1.msra.mxu0 0.0
    %2203 = vmatprep.subr.mxu0 0.0
    %2204 = vmatpush1.msra.mxu0 0.0
    %2205 = vmatprep.subr.mxu0 0.0
    %2206 = vmatpush1.msra.mxu0 0.0
    %2207 = vmatprep.subr.mxu0 0.0
    %2208 = vmatpush1.msra.mxu0 0.0
    %2209 = vmatprep.subr.mxu0 0.0
    %2210 = vmatpush1.msra.mxu0 0.0
    %2211 = vmatprep.mubr.f32.mxu0 0.0
    %2212 = vmatmul.mubr.f32.gmra.mrb[0].mxu0 %v2026
    %v2213 = vpop.f32.mrb[0].mxu0
    %v2214 = vadd.f32 0.0, %v2213
    %v2215 = vpop.f32.mrb[0].mxu0
    %v2216 = vadd.f32 0.0, %v2215
    %2217 = vmatprep.mubr.f32.mxu0 0.0
    %2218 = vmatmul.mubr.f32.gmra.mrb[0].mxu0 %v2028
    %v2219 = vpop.f32.mrb[0].mxu0
    %v2220 = vadd.f32 0.0, %v2219
    %v2221 = vpop.f32.mrb[0].mxu0
    %v2222 = vadd.f32 0.0, %v2221
    %2223 = vmatprep.mubr.f32.mxu0 0.0
    %2224 = vmatmul.mubr.f32.gmra.mrb[0].mxu0 %v2030
    %v2225 = vpop.f32.mrb[0].mxu0
    %v2226 = vadd.f32 0.0, %v2225
    %v2227 = vpop.f32.mrb[0].mxu0
    %v2228 = vadd.f32 0.0, %v2227
    %2229 = vmatprep.mubr.f32.mxu0 0.0
    %2230 = vmatmul.mubr.f32.gmra.mrb[0].mxu0 %v2032
    %v2231 = vpop.f32.mrb[0].mxu0
    %v2232 = vadd.f32 0.0, %v2231
    %v2233 = vpop.f32.mrb[0].mxu0
    %v2234 = vadd.f32 0.0, %v2233
    %2235 = vmatprep.mubr.f32.mxu0 0.0
    %2236 = vmatmul.mubr.f32.gmra.mrb[0].mxu0 %v2034
    %v2237 = vpop.f32.mrb[0].mxu0
    %v2238 = vadd.f32 0.0, %v2237
    %v2239 = vpop.f32.mrb[0].mxu0
    %v2240 = vadd.f32 0.0, %v2239
    %2241 = vmatprep.mubr.f32.mxu0 0.0
    %2242 = vmatmul.mubr.f32.gmra.mrb[0].mxu0 %v2036
    %v2243 = vpop.f32.mrb[0].mxu0
    %v2244 = vadd.f32 0.0, %v2243
    %v2245 = vpop.f32.mrb[0].mxu0
    %v2246 = vadd.f32 0.0, %v2245
    %2247 = vmatprep.mubr.f32.mxu0 0.0
    %2248 = vmatmul.mubr.f32.gmra.mrb[0].mxu0 %v2038
    %v2249 = vpop.f32.mrb[0].mxu0
    %v2250 = vadd.f32 0.0, %v2249
    %v2251 = vpop.f32.mrb[0].mxu0
    %v2252 = vadd.f32 0.0, %v2251
    %2253 = vdwg.mxu0
    %s2254 = scalar_lea.vmem [#allocation10], 2
    %v2255 = vld [vmem:[%s2254] sm:$0x3]
    %v2256 = vlaneseq
    %v2257 = vshrl.u32 %v2256, 7
    %v2258 = vsub.s32 1, %v2257
    %v2259 = vrot.slane %v2255, %v2258
    %2261 = vrot.lane.b32.xlu0 %v2259, 64
    %v2262 = vpop.permute.xlu0 %2261
    %v2264 = vmul.f32 %v897, %v2262
    %v2265 = vmul.f32 %v900, %v2262
    %v2266 = vmul.f32 %v905, %v2262
    %v2267 = vmul.f32 %v908, %v2262
    %v2268 = vmul.f32 %v913, %v2262
    %v2269 = vmul.f32 %v916, %v2262
    %v2270 = vmul.f32 %v921, %v2262
    %v2271 = vlaneseq
    %v2272 = vshrl.u32 %v2271, 7
    %v2273 = vsub.s32 0, %v2272
    %v2274 = vrot.slane %v2255, %v2273
    %2276 = vrot.lane.b32.xlu0 %v2274, 64
    %v2277 = vpop.permute.xlu0 %2276
    %v2279 = vmul.f32 %v900, %v2277
    %v2280 = vmul.f32 %v905, %v2277
    %v2281 = vmul.f32 %v908, %v2277
    %v2282 = vmul.f32 %v913, %v2277
    %v2283 = vmul.f32 %v916, %v2277
    %v2284 = vmul.f32 %v921, %v2277
    %v2285 = vmul.f32 %v2277, 0.0
    %v2286 = vadd.f32 %v2264, %v2279
    %v2287 = vadd.f32 %v2265, %v2280
    %v2288 = vadd.f32 %v2266, %v2281
    %v2289 = vadd.f32 %v2267, %v2282
    %v2290 = vadd.f32 %v2268, %v2283
    %v2291 = vadd.f32 %v2269, %v2284
    %v2292 = vadd.f32 %v2270, %v2285
    %s2293 = scalar_lea.vmem [#allocation11], 1
    %v2294 = vld [vmem:[%s2293] sm:$0x1]
    %v2296 = vlaneseq
    %v2297 = vshrl.u32 %v2296, 7
    %v2298 = vsub.s32 0, %v2297
    %v2299 = vrot.slane %v2294, %v2298
    %2300 = vrot.lane.b32.xlu0 %v2299, 64
    %v2301 = vpop.permute.xlu0 %2300
    %v2303 = vadd.f32 %v2286, %v2301
    %v2304 = vadd.f32 %v2287, %v2301
    %v2305 = vadd.f32 %v2288, %v2301
    %v2306 = vadd.f32 %v2289, %v2301
    %v2307 = vadd.f32 %v2290, %v2301
    %v2308 = vadd.f32 %v2291, %v2301
    %v2309 = vadd.f32 %v2292, %v2301
    %v2310 = vxor.u32 %v2303, 2147483648
    %v2311 = vxor.u32 %v2304, 2147483648
    %v2312 = vxor.u32 %v2305, 2147483648
    %v2313 = vxor.u32 %v2306, 2147483648
    %v2314 = vxor.u32 %v2307, 2147483648
    %v2315 = vxor.u32 %v2308, 2147483648
    %v2316 = vxor.u32 %v2309, 2147483648
    %v2317 = vmul.f32 %v2310, 1.442695
    %v2318 = vpow.pop %v2317
    %v2319 = vmul.f32 %v2311, 1.442695
    %v2320 = vpow.pop %v2319
    %v2321 = vmul.f32 %v2312, 1.442695
    %v2322 = vpow.pop %v2321
    %v2323 = vmul.f32 %v2313, 1.442695
    %v2324 = vpow.pop %v2323
    %v2325 = vmul.f32 %v2314, 1.442695
    %v2326 = vpow.pop %v2325
    %v2327 = vmul.f32 %v2315, 1.442695
    %v2328 = vpow.pop %v2327
    %v2329 = vmul.f32 %v2316, 1.442695
    %v2330 = vpow.pop %v2329
    %v2331 = vadd.f32 %v2318, 1.0
    %v2332 = vadd.f32 %v2320, 1.0
    %v2333 = vadd.f32 %v2322, 1.0
    %v2334 = vadd.f32 %v2324, 1.0
    %v2335 = vadd.f32 %v2326, 1.0
    %v2336 = vadd.f32 %v2328, 1.0
    %v2337 = vadd.f32 %v2330, 1.0
    %v2338 = vrcp.pop %v2331
    %v2339 = vmul.f32 1.0, %v2338
    %v2340 = vrcp.pop %v2332
    %v2341 = vmul.f32 1.0, %v2340
    %v2342 = vrcp.pop %v2333
    %v2343 = vmul.f32 1.0, %v2342
    %v2344 = vrcp.pop %v2334
    %v2345 = vmul.f32 1.0, %v2344
    %v2346 = vrcp.pop %v2335
    %v2347 = vmul.f32 1.0, %v2346
    %v2348 = vrcp.pop %v2336
    %v2349 = vmul.f32 1.0, %v2348
    %v2350 = vrcp.pop %v2337
    %v2351 = vmul.f32 1.0, %v2350
    %v2352 = vmul.f32 %v2303, %v2339
    %v2353 = vmul.f32 %v2304, %v2341
    %v2354 = vmul.f32 %v2305, %v2343
    %v2355 = vmul.f32 %v2306, %v2345
    %v2356 = vmul.f32 %v2307, %v2347
    %v2357 = vmul.f32 %v2308, %v2349
    %v2358 = vmul.f32 %v2309, %v2351
    %s2359 = scalar_lea.vmem [#allocation13], 16
    %v2360 = vld [vmem:[%s2359] sm:$0xf]
    %v2361 = vld [vmem:[%s2359 + $0x4] sm:$0xf]
    %v2362 = vld [vmem:[%s2359 + $0x8] sm:$0xf]
    %v2363 = vld [vmem:[%s2359 + $0xc] sm:$0xf]
    %v2364 = vpack.c.bf16 %v2353, %v2352
    %v2365 = vpack.c.bf16 %v2355, %v2354
    %v2366 = vpack.c.bf16 %v2357, %v2356
    %v2367 = vpack.c.bf16 %v2358, %v2358
    %2372 = vrot.lane.b32.xlu0 %v2364, 64
    %v2373 = vpop.permute.xlu0 %2372
    %2374 = vrot.lane.b32.xlu0 %v2365, 64
    %v2375 = vpop.permute.xlu0 %2374
    %2376 = vrot.lane.b32.xlu0 %v2366, 64
    %v2377 = vpop.permute.xlu0 %2376
    %2378 = vrot.lane.b32.xlu0 %v2367, 64
    %v2379 = vpop.permute.xlu0 %2378
    %v2384 = vunpack.c.l.b16 %v2360
    %v2385 = vunpack.c.l.b16 %v2361
    %v2386 = vunpack.c.l.b16 %v2362
    %v2387 = vunpack.c.l.b16 %v2363
    %v2388 = vpack.c.b16 %v2385, %v2384
    %v2389 = vpack.c.b16 %v2387, %v2386
    %v2393 = vsel %vm849, %v2373, 0
    %v2396 = vsel %vm849, %v2375, 0
    %v2399 = vsel %vm849, %v2377, 0
    %v2402 = vsel %vm849, %v2379, 0
    %2404 = vmatprep.subr.bf16.mxu0 0
    %2405 = vmatpush1.bf16.msra.mxu0 %v2388
    %2406 = vmatprep.subr.bf16.mxu0 0
    %2407 = vmatpush1.bf16.msra.mxu0 %v2389
    %2408 = vmatprep.subr.bf16.mxu0 0
    %2409 = vmatpush1.bf16.msra.mxu0 0
    %2410 = vmatprep.subr.bf16.mxu0 0
    %2411 = vmatpush1.bf16.msra.mxu0 0
    %2412 = vmatprep.subr.bf16.mxu0 0
    %2413 = vmatpush1.bf16.msra.mxu0 0
    %2414 = vmatprep.subr.bf16.mxu0 0
    %2415 = vmatpush1.bf16.msra.mxu0 0
    %2416 = vmatprep.subr.bf16.mxu0 0
    %2417 = vmatpush1.bf16.msra.mxu0 0
    %2418 = vmatprep.subr.bf16.mxu0 0
    %2419 = vmatpush1.bf16.msra.mxu0 0
    %2420 = vmatprep.subr.bf16.mxu0 0
    %2421 = vmatpush1.bf16.msra.mxu0 0
    %2422 = vmatprep.subr.bf16.mxu0 0
    %2423 = vmatpush1.bf16.msra.mxu0 0
    %2424 = vmatprep.subr.bf16.mxu0 0
    %2425 = vmatpush1.bf16.msra.mxu0 0
    %2426 = vmatprep.subr.bf16.mxu0 0
    %2427 = vmatpush1.bf16.msra.mxu0 0
    %2428 = vmatprep.subr.bf16.mxu0 0
    %2429 = vmatpush1.bf16.msra.mxu0 0
    %2430 = vmatprep.subr.bf16.mxu0 0
    %2431 = vmatpush1.bf16.msra.mxu0 0
    %2432 = vmatprep.subr.bf16.mxu0 0
    %2433 = vmatpush1.bf16.msra.mxu0 0
    %2434 = vmatprep.subr.bf16.mxu0 0
    %2435 = vmatpush1.bf16.msra.mxu0 0
    %2436 = vmatprep.mubr.bf16.mxu0 0
    %2437 = vmatmul.mubr.bf16.gmra.mrb[0].mxu0 %v2393
    %v2438 = vpop.f32.mrb[0].mxu0
    %v2439 = vadd.f32 0.0, %v2438
    %v2440 = vpop.f32.mrb[0].mxu0
    %v2441 = vpop.f32.mrb[0].mxu0
    %v2442 = vadd.f32 0.0, %v2441
    %v2443 = vpop.f32.mrb[0].mxu0
    %2444 = vmatprep.mubr.bf16.mxu0 0
    %2445 = vmatmul.mubr.bf16.gmra.mrb[0].mxu0 %v2396
    %v2446 = vpop.f32.mrb[0].mxu0
    %v2447 = vadd.f32 0.0, %v2446
    %v2448 = vpop.f32.mrb[0].mxu0
    %v2449 = vpop.f32.mrb[0].mxu0
    %v2450 = vadd.f32 0.0, %v2449
    %v2451 = vpop.f32.mrb[0].mxu0
    %2452 = vmatprep.mubr.bf16.mxu0 0
    %2453 = vmatmul.mubr.bf16.gmra.mrb[0].mxu0 %v2399
    %v2454 = vpop.f32.mrb[0].mxu0
    %v2455 = vadd.f32 0.0, %v2454
    %v2456 = vpop.f32.mrb[0].mxu0
    %v2457 = vpop.f32.mrb[0].mxu0
    %v2458 = vadd.f32 0.0, %v2457
    %v2459 = vpop.f32.mrb[0].mxu0
    %2460 = vmatprep.mubr.bf16.mxu0 0
    %2461 = vmatmul.mubr.bf16.gmra.mrb[0].mxu0 %v2402
    %v2462 = vpop.f32.mrb[0].mxu0
    %v2463 = vadd.f32 0.0, %v2462
    %v2464 = vpop.f32.mrb[0].mxu0
    %v2465 = vpop.f32.mrb[0].mxu0
    %v2466 = vpop.f32.mrb[0].mxu0
    %2467 = vdwg.mxu0
    %s2468 = scalar_lea.vmem [#allocation14], 1
    %v2469 = vld [vmem:[%s2468] sm:$0x1]
    %v2471 = vlaneseq
    %v2472 = vshrl.u32 %v2471, 7
    %v2473 = vsub.s32 0, %v2472
    %v2474 = vrot.slane %v2469, %v2473
    %v2476 = vadd.f32 %v2439, %v2474
    %v2477 = vadd.f32 %v2442, %v2474
    %v2478 = vadd.f32 %v2447, %v2474
    %v2479 = vadd.f32 %v2450, %v2474
    %v2480 = vadd.f32 %v2455, %v2474
    %v2481 = vadd.f32 %v2458, %v2474
    %v2482 = vadd.f32 %v2463, %v2474
    %vm2483 = vcmp.gt.f32.partialorder %v2476, 20.0
    %vm2484 = vcmp.gt.f32.partialorder %v2477, 20.0
    %vm2485 = vcmp.gt.f32.partialorder %v2478, 20.0
    %vm2486 = vcmp.gt.f32.partialorder %v2479, 20.0
    %vm2487 = vcmp.gt.f32.partialorder %v2480, 20.0
    %vm2488 = vcmp.gt.f32.partialorder %v2481, 20.0
    %vm2489 = vcmp.gt.f32.partialorder %v2482, 20.0
    %v2490 = vmin.f32 %v2476, 20.0
    %v2491 = vmin.f32 %v2477, 20.0
    %v2492 = vmin.f32 %v2478, 20.0
    %v2493 = vmin.f32 %v2479, 20.0
    %v2494 = vmin.f32 %v2480, 20.0
    %v2495 = vmin.f32 %v2481, 20.0
    %v2496 = vmin.f32 %v2482, 20.0
    %v2497 = vmul.f32 %v2490, 1.442695
    %v2498 = vpow.pop %v2497
    %v2499 = vmul.f32 %v2491, 1.442695
    %v2500 = vpow.pop %v2499
    %v2501 = vmul.f32 %v2492, 1.442695
    %v2502 = vpow.pop %v2501
    %v2503 = vmul.f32 %v2493, 1.442695
    %v2504 = vpow.pop %v2503
    %v2505 = vmul.f32 %v2494, 1.442695
    %v2506 = vpow.pop %v2505
    %v2507 = vmul.f32 %v2495, 1.442695
    %v2508 = vpow.pop %v2507
    %v2509 = vmul.f32 %v2496, 1.442695
    %v2510 = vpow.pop %v2509
    %v2511 = vadd.f32 %v2498, 1.0
    %v2512 = vadd.f32 %v2500, 1.0
    %v2513 = vadd.f32 %v2502, 1.0
    %v2514 = vadd.f32 %v2504, 1.0
    %v2515 = vadd.f32 %v2506, 1.0
    %v2516 = vadd.f32 %v2508, 1.0
    %v2517 = vadd.f32 %v2510, 1.0
    %v2518 = vlog2.pop %v2511
    %v2519 = vmul.f32 %v2518, 0.6931472
    %v2520 = vlog2.pop %v2512
    %v2521 = vmul.f32 %v2520, 0.6931472
    %v2522 = vlog2.pop %v2513
    %v2523 = vmul.f32 %v2522, 0.6931472
    %v2524 = vlog2.pop %v2514
    %v2525 = vmul.f32 %v2524, 0.6931472
    %v2526 = vlog2.pop %v2515
    %v2527 = vmul.f32 %v2526, 0.6931472
    %v2528 = vlog2.pop %v2516
    %v2529 = vmul.f32 %v2528, 0.6931472
    %v2530 = vlog2.pop %v2517
    %v2531 = vmul.f32 %v2530, 0.6931472
    %v2532 = vsel %vm2483, %v2476, %v2519
    %v2533 = vsel %vm2484, %v2477, %v2521
    %v2534 = vsel %vm2485, %v2478, %v2523
    %v2535 = vsel %vm2486, %v2479, %v2525
    %v2536 = vsel %vm2487, %v2480, %v2527
    %v2537 = vsel %vm2488, %v2481, %v2529
    %v2538 = vsel %vm2489, %v2482, %v2531
    %s2539 = scalar_lea.vmem [#allocation16], 128
    %v2540 = vld [vmem:[%s2539] sm:$0xff]
    %v2541 = vld [vmem:[%s2539 + $0x8] sm:$0xff]
    %v2542 = vld [vmem:[%s2539 + $0x10] sm:$0xff]
    %v2543 = vld [vmem:[%s2539 + $0x18] sm:$0xff]
    %v2544 = vld [vmem:[%s2539 + $0x20] sm:$0xff]
    %v2545 = vld [vmem:[%s2539 + $0x28] sm:$0xff]
    %v2546 = vld [vmem:[%s2539 + $0x30] sm:$0xff]
    %v2547 = vld [vmem:[%s2539 + $0x38] sm:$0xff]
    %v2548 = vld [vmem:[%s2539 + $0x40] sm:$0xff]
    %v2549 = vld [vmem:[%s2539 + $0x48] sm:$0xff]
    %v2550 = vld [vmem:[%s2539 + $0x50] sm:$0xff]
    %v2551 = vld [vmem:[%s2539 + $0x58] sm:$0xff]
    %v2552 = vld [vmem:[%s2539 + $0x60] sm:$0xff]
    %v2553 = vld [vmem:[%s2539 + $0x68] sm:$0xff]
    %v2554 = vld [vmem:[%s2539 + $0x70] sm:$0xff]
    %v2555 = vld [vmem:[%s2539 + $0x78] sm:$0xff]
    %v2557 = vsel %vm849, %v2532, 0
    %v2560 = vsel %vm849, %v2533, 0
    %v2563 = vsel %vm849, %v2534, 0
    %v2566 = vsel %vm849, %v2535, 0
    %v2569 = vsel %vm849, %v2536, 0
    %v2572 = vsel %vm849, %v2537, 0
    %v2575 = vsel %vm849, %v2538, 0
    %2577 = vmatprep.subr.mxu0 %v2541
    %2578 = vmatpush1.msra.mxu0 %v2540
    %2579 = vmatprep.subr.mxu0 %v2545
    %2580 = vmatpush1.msra.mxu0 %v2544
    %2581 = vmatprep.subr.mxu0 %v2549
    %2582 = vmatpush1.msra.mxu0 %v2548
    %2583 = vmatprep.subr.mxu0 %v2553
    %2584 = vmatpush1.msra.mxu0 %v2552
    %2585 = vmatprep.subr.mxu0 0.0
    %2586 = vmatpush1.msra.mxu0 0.0
    %2587 = vmatprep.subr.mxu0 0.0
    %2588 = vmatpush1.msra.mxu0 0.0
    %2589 = vmatprep.subr.mxu0 0.0
    %2590 = vmatpush1.msra.mxu0 0.0
    %2591 = vmatprep.subr.mxu0 0.0
    %2592 = vmatpush1.msra.mxu0 0.0
    %2593 = vmatprep.subr.mxu0 0.0
    %2594 = vmatpush1.msra.mxu0 0.0
    %2595 = vmatprep.subr.mxu0 0.0
    %2596 = vmatpush1.msra.mxu0 0.0
    %2597 = vmatprep.subr.mxu0 0.0
    %2598 = vmatpush1.msra.mxu0 0.0
    %2599 = vmatprep.subr.mxu0 0.0
    %2600 = vmatpush1.msra.mxu0 0.0
    %2601 = vmatprep.subr.mxu0 0.0
    %2602 = vmatpush1.msra.mxu0 0.0
    %2603 = vmatprep.subr.mxu0 0.0
    %2604 = vmatpush1.msra.mxu0 0.0
    %2605 = vmatprep.subr.mxu0 0.0
    %2606 = vmatpush1.msra.mxu0 0.0
    %2607 = vmatprep.subr.mxu0 0.0
    %2608 = vmatpush1.msra.mxu0 0.0
    %2609 = vmatprep.subr.mxu0 0.0
    %2610 = vmatpush1.msra.mxu0 0.0
    %2611 = vmatprep.subr.mxu0 0.0
    %2612 = vmatpush1.msra.mxu0 0.0
    %2613 = vmatprep.subr.mxu0 0.0
    %2614 = vmatpush1.msra.mxu0 0.0
    %2615 = vmatprep.subr.mxu0 0.0
    %2616 = vmatpush1.msra.mxu0 0.0
    %2617 = vmatprep.subr.mxu0 0.0
    %2618 = vmatpush1.msra.mxu0 0.0
    %2619 = vmatprep.subr.mxu0 0.0
    %2620 = vmatpush1.msra.mxu0 0.0
    %2621 = vmatprep.subr.mxu0 0.0
    %2622 = vmatpush1.msra.mxu0 0.0
    %2623 = vmatprep.subr.mxu0 0.0
    %2624 = vmatpush1.msra.mxu0 0.0
    %2625 = vmatprep.subr.mxu0 0.0
    %2626 = vmatpush1.msra.mxu0 0.0
    %2627 = vmatprep.subr.mxu0 0.0
    %2628 = vmatpush1.msra.mxu0 0.0
    %2629 = vmatprep.subr.mxu0 0.0
    %2630 = vmatpush1.msra.mxu0 0.0
    %2631 = vmatprep.subr.mxu0 0.0
    %2632 = vmatpush1.msra.mxu0 0.0
    %2633 = vmatprep.subr.mxu0 0.0
    %2634 = vmatpush1.msra.mxu0 0.0
    %2635 = vmatprep.subr.mxu0 0.0
    %2636 = vmatpush1.msra.mxu0 0.0
    %2637 = vmatprep.subr.mxu0 0.0
    %2638 = vmatpush1.msra.mxu0 0.0
    %2639 = vmatprep.subr.mxu0 0.0
    %2640 = vmatpush1.msra.mxu0 0.0
    %2641 = vmatprep.mubr.f32.mxu0 0.0
    %2642 = vmatmul.mubr.f32.gmra.mrb[0].mxu0 %v2557
    %v2643 = vpop.f32.mrb[0].mxu0
    %v2644 = vadd.f32 0.0, %v2643
    %v2645 = vpop.f32.mrb[0].mxu0
    %v2646 = vadd.f32 0.0, %v2645
    %2647 = vmatprep.mubr.f32.mxu0 0.0
    %2648 = vmatmul.mubr.f32.gmra.mrb[0].mxu0 %v2560
    %v2649 = vpop.f32.mrb[0].mxu0
    %v2650 = vadd.f32 0.0, %v2649
    %v2651 = vpop.f32.mrb[0].mxu0
    %v2652 = vadd.f32 0.0, %v2651
    %2653 = vmatprep.mubr.f32.mxu0 0.0
    %2654 = vmatmul.mubr.f32.gmra.mrb[0].mxu0 %v2563
    %v2655 = vpop.f32.mrb[0].mxu0
    %v2656 = vadd.f32 0.0, %v2655
    %v2657 = vpop.f32.mrb[0].mxu0
    %v2658 = vadd.f32 0.0, %v2657
    %2659 = vmatprep.mubr.f32.mxu0 0.0
    %2660 = vmatmul.mubr.f32.gmra.mrb[0].mxu0 %v2566
    %v2661 = vpop.f32.mrb[0].mxu0
    %v2662 = vadd.f32 0.0, %v2661
    %v2663 = vpop.f32.mrb[0].mxu0
    %v2664 = vadd.f32 0.0, %v2663
    %2665 = vmatprep.mubr.f32.mxu0 0.0
    %2666 = vmatmul.mubr.f32.gmra.mrb[0].mxu0 %v2569
    %v2667 = vpop.f32.mrb[0].mxu0
    %v2668 = vadd.f32 0.0, %v2667
    %v2669 = vpop.f32.mrb[0].mxu0
    %v2670 = vadd.f32 0.0, %v2669
    %2671 = vmatprep.mubr.f32.mxu0 0.0
    %2672 = vmatmul.mubr.f32.gmra.mrb[0].mxu0 %v2572
    %v2673 = vpop.f32.mrb[0].mxu0
    %v2674 = vadd.f32 0.0, %v2673
    %v2675 = vpop.f32.mrb[0].mxu0
    %v2676 = vadd.f32 0.0, %v2675
    %2677 = vmatprep.mubr.f32.mxu0 0.0
    %2678 = vmatmul.mubr.f32.gmra.mrb[0].mxu0 %v2575
    %v2679 = vpop.f32.mrb[0].mxu0
    %v2680 = vadd.f32 0.0, %v2679
    %v2681 = vpop.f32.mrb[0].mxu0
    %v2682 = vadd.f32 0.0, %v2681
    %2683 = vdwg.mxu0
    %2684 = vmatprep.subr.mxu0 %v2543
    %2685 = vmatpush1.msra.mxu0 %v2542
    %2686 = vmatprep.subr.mxu0 %v2547
    %2687 = vmatpush1.msra.mxu0 %v2546
    %2688 = vmatprep.subr.mxu0 %v2551
    %2689 = vmatpush1.msra.mxu0 %v2550
    %2690 = vmatprep.subr.mxu0 %v2555
    %2691 = vmatpush1.msra.mxu0 %v2554
    %2692 = vmatprep.subr.mxu0 0.0
    %2693 = vmatpush1.msra.mxu0 0.0
    %2694 = vmatprep.subr.mxu0 0.0
    %2695 = vmatpush1.msra.mxu0 0.0
    %2696 = vmatprep.subr.mxu0 0.0
    %2697 = vmatpush1.msra.mxu0 0.0
    %2698 = vmatprep.subr.mxu0 0.0
    %2699 = vmatpush1.msra.mxu0 0.0
    %2700 = vmatprep.subr.mxu0 0.0
    %2701 = vmatpush1.msra.mxu0 0.0
    %2702 = vmatprep.subr.mxu0 0.0
    %2703 = vmatpush1.msra.mxu0 0.0
    %2704 = vmatprep.subr.mxu0 0.0
    %2705 = vmatpush1.msra.mxu0 0.0
    %2706 = vmatprep.subr.mxu0 0.0
    %2707 = vmatpush1.msra.mxu0 0.0
    %2708 = vmatprep.subr.mxu0 0.0
    %2709 = vmatpush1.msra.mxu0 0.0
    %2710 = vmatprep.subr.mxu0 0.0
    %2711 = vmatpush1.msra.mxu0 0.0
    %2712 = vmatprep.subr.mxu0 0.0
    %2713 = vmatpush1.msra.mxu0 0.0
    %2714 = vmatprep.subr.mxu0 0.0
    %2715 = vmatpush1.msra.mxu0 0.0
    %2716 = vmatprep.subr.mxu0 0.0
    %2717 = vmatpush1.msra.mxu0 0.0
    %2718 = vmatprep.subr.mxu0 0.0
    %2719 = vmatpush1.msra.mxu0 0.0
    %2720 = vmatprep.subr.mxu0 0.0
    %2721 = vmatpush1.msra.mxu0 0.0
    %2722 = vmatprep.subr.mxu0 0.0
    %2723 = vmatpush1.msra.mxu0 0.0
    %2724 = vmatprep.subr.mxu0 0.0
    %2725 = vmatpush1.msra.mxu0 0.0
    %2726 = vmatprep.subr.mxu0 0.0
    %2727 = vmatpush1.msra.mxu0 0.0
    %2728 = vmatprep.subr.mxu0 0.0
    %2729 = vmatpush1.msra.mxu0 0.0
    %2730 = vmatprep.subr.mxu0 0.0
    %2731 = vmatpush1.msra.mxu0 0.0
    %2732 = vmatprep.subr.mxu0 0.0
    %2733 = vmatpush1.msra.mxu0 0.0
    %2734 = vmatprep.subr.mxu0 0.0
    %2735 = vmatpush1.msra.mxu0 0.0
    %2736 = vmatprep.subr.mxu0 0.0
    %2737 = vmatpush1.msra.mxu0 0.0
    %2738 = vmatprep.subr.mxu0 0.0
    %2739 = vmatpush1.msra.mxu0 0.0
    %2740 = vmatprep.subr.mxu0 0.0
    %2741 = vmatpush1.msra.mxu0 0.0
    %2742 = vmatprep.subr.mxu0 0.0
    %2743 = vmatpush1.msra.mxu0 0.0
    %2744 = vmatprep.subr.mxu0 0.0
    %2745 = vmatpush1.msra.mxu0 0.0
    %2746 = vmatprep.subr.mxu0 0.0
    %2747 = vmatpush1.msra.mxu0 0.0
    %2748 = vmatprep.mubr.f32.mxu0 0.0
    %2749 = vmatmul.mubr.f32.gmra.mrb[0].mxu0 %v2557
    %v2750 = vpop.f32.mrb[0].mxu0
    %v2751 = vadd.f32 0.0, %v2750
    %v2752 = vpop.f32.mrb[0].mxu0
    %v2753 = vadd.f32 0.0, %v2752
    %2754 = vmatprep.mubr.f32.mxu0 0.0
    %2755 = vmatmul.mubr.f32.gmra.mrb[0].mxu0 %v2560
    %v2756 = vpop.f32.mrb[0].mxu0
    %v2757 = vadd.f32 0.0, %v2756
    %v2758 = vpop.f32.mrb[0].mxu0
    %v2759 = vadd.f32 0.0, %v2758
    %2760 = vmatprep.mubr.f32.mxu0 0.0
    %2761 = vmatmul.mubr.f32.gmra.mrb[0].mxu0 %v2563
    %v2762 = vpop.f32.mrb[0].mxu0
    %v2763 = vadd.f32 0.0, %v2762
    %v2764 = vpop.f32.mrb[0].mxu0
    %v2765 = vadd.f32 0.0, %v2764
    %2766 = vmatprep.mubr.f32.mxu0 0.0
    %2767 = vmatmul.mubr.f32.gmra.mrb[0].mxu0 %v2566
    %v2768 = vpop.f32.mrb[0].mxu0
    %v2769 = vadd.f32 0.0, %v2768
    %v2770 = vpop.f32.mrb[0].mxu0
    %v2771 = vadd.f32 0.0, %v2770
    %2772 = vmatprep.mubr.f32.mxu0 0.0
    %2773 = vmatmul.mubr.f32.gmra.mrb[0].mxu0 %v2569
    %v2774 = vpop.f32.mrb[0].mxu0
    %v2775 = vadd.f32 0.0, %v2774
    %v2776 = vpop.f32.mrb[0].mxu0
    %v2777 = vadd.f32 0.0, %v2776
    %2778 = vmatprep.mubr.f32.mxu0 0.0
    %2779 = vmatmul.mubr.f32.gmra.mrb[0].mxu0 %v2572
    %v2780 = vpop.f32.mrb[0].mxu0
    %v2781 = vadd.f32 0.0, %v2780
    %v2782 = vpop.f32.mrb[0].mxu0
    %v2783 = vadd.f32 0.0, %v2782
    %2784 = vmatprep.mubr.f32.mxu0 0.0
    %2785 = vmatmul.mubr.f32.gmra.mrb[0].mxu0 %v2575
    %v2786 = vpop.f32.mrb[0].mxu0
    %v2787 = vadd.f32 0.0, %v2786
    %v2788 = vpop.f32.mrb[0].mxu0
    %v2789 = vadd.f32 0.0, %v2788
    %2790 = vdwg.mxu0
    %v2791 = vmul.f32 %v2644, 1.442695
    %v2792 = vpow.pop %v2791
    %v2793 = vmul.f32 %v2646, 1.442695
    %v2794 = vpow.pop %v2793
    %v2795 = vmul.f32 %v2751, 1.442695
    %v2796 = vpow.pop %v2795
    %v2797 = vmul.f32 %v2753, 1.442695
    %v2798 = vpow.pop %v2797
    %v2799 = vmul.f32 %v2650, 1.442695
    %v2800 = vpow.pop %v2799
    %v2801 = vmul.f32 %v2652, 1.442695
    %v2802 = vpow.pop %v2801
    %v2803 = vmul.f32 %v2757, 1.442695
    %v2804 = vpow.pop %v2803
    %v2805 = vmul.f32 %v2759, 1.442695
    %v2806 = vpow.pop %v2805
    %v2807 = vmul.f32 %v2656, 1.442695
    %v2808 = vpow.pop %v2807
    %v2809 = vmul.f32 %v2658, 1.442695
    %v2810 = vpow.pop %v2809
    %v2811 = vmul.f32 %v2763, 1.442695
    %v2812 = vpow.pop %v2811
    %v2813 = vmul.f32 %v2765, 1.442695
    %v2814 = vpow.pop %v2813
    %v2815 = vmul.f32 %v2662, 1.442695
    %v2816 = vpow.pop %v2815
    %v2817 = vmul.f32 %v2664, 1.442695
    %v2818 = vpow.pop %v2817
    %v2819 = vmul.f32 %v2769, 1.442695
    %v2820 = vpow.pop %v2819
    %v2821 = vmul.f32 %v2771, 1.442695
    %v2822 = vpow.pop %v2821
    %v2823 = vmul.f32 %v2668, 1.442695
    %v2824 = vpow.pop %v2823
    %v2825 = vmul.f32 %v2670, 1.442695
    %v2826 = vpow.pop %v2825
    %v2827 = vmul.f32 %v2775, 1.442695
    %v2828 = vpow.pop %v2827
    %v2829 = vmul.f32 %v2777, 1.442695
    %v2830 = vpow.pop %v2829
    %v2831 = vmul.f32 %v2674, 1.442695
    %v2832 = vpow.pop %v2831
    %v2833 = vmul.f32 %v2676, 1.442695
    %v2834 = vpow.pop %v2833
    %v2835 = vmul.f32 %v2781, 1.442695
    %v2836 = vpow.pop %v2835
    %v2837 = vmul.f32 %v2783, 1.442695
    %v2838 = vpow.pop %v2837
    %v2839 = vmul.f32 %v2680, 1.442695
    %v2840 = vpow.pop %v2839
    %v2841 = vmul.f32 %v2682, 1.442695
    %v2842 = vpow.pop %v2841
    %v2843 = vmul.f32 %v2787, 1.442695
    %v2844 = vpow.pop %v2843
    %v2845 = vmul.f32 %v2789, 1.442695
    %v2846 = vpow.pop %v2845
    %2854 = vrot.lane.b32.xlu0 %v2352, 64
    %v2855 = vpop.permute.xlu0 %2854
    %2856 = vrot.lane.b32.xlu0 %v2353, 64
    %v2857 = vpop.permute.xlu0 %2856
    %2858 = vrot.lane.b32.xlu0 %v2354, 64
    %v2859 = vpop.permute.xlu0 %2858
    %2860 = vrot.lane.b32.xlu0 %v2355, 64
    %v2861 = vpop.permute.xlu0 %2860
    %2862 = vrot.lane.b32.xlu0 %v2356, 64
    %v2863 = vpop.permute.xlu0 %2862
    %2864 = vrot.lane.b32.xlu0 %v2357, 64
    %v2865 = vpop.permute.xlu0 %2864
    %2866 = vrot.lane.b32.xlu0 %v2358, 64
    %v2867 = vpop.permute.xlu0 %2866
    %v2875 = vmul.f32 %v2532, %v2855
    %v2876 = vmul.f32 %v2533, %v2857
    %v2877 = vmul.f32 %v2534, %v2859
    %v2878 = vmul.f32 %v2535, %v2861
    %v2879 = vmul.f32 %v2536, %v2863
    %v2880 = vmul.f32 %v2537, %v2865
    %v2881 = vmul.f32 %v2538, %v2867
    %v2883 = vsel %vm849, %v2875, 0
    %v2886 = vsel %vm849, %v2876, 0
    %v2889 = vsel %vm849, %v2877, 0
    %v2892 = vsel %vm849, %v2878, 0
    %v2895 = vsel %vm849, %v2879, 0
    %v2898 = vsel %vm849, %v2880, 0
    %v2901 = vsel %vm849, %v2881, 0
    %2903 = vmatprep.subr.mxu0 %v742
    %2904 = vmatpush1.msra.mxu0 %v741
    %2905 = vmatprep.subr.mxu0 %v746
    %2906 = vmatpush1.msra.mxu0 %v745
    %2907 = vmatprep.subr.mxu0 %v750
    %2908 = vmatpush1.msra.mxu0 %v749
    %2909 = vmatprep.subr.mxu0 %v754
    %2910 = vmatpush1.msra.mxu0 %v753
    %2911 = vmatprep.subr.mxu0 0.0
    %2912 = vmatpush1.msra.mxu0 0.0
    %2913 = vmatprep.subr.mxu0 0.0
    %2914 = vmatpush1.msra.mxu0 0.0
    %2915 = vmatprep.subr.mxu0 0.0
    %2916 = vmatpush1.msra.mxu0 0.0
    %2917 = vmatprep.subr.mxu0 0.0
    %2918 = vmatpush1.msra.mxu0 0.0
    %2919 = vmatprep.subr.mxu0 0.0
    %2920 = vmatpush1.msra.mxu0 0.0
    %2921 = vmatprep.subr.mxu0 0.0
    %2922 = vmatpush1.msra.mxu0 0.0
    %2923 = vmatprep.subr.mxu0 0.0
    %2924 = vmatpush1.msra.mxu0 0.0
    %2925 = vmatprep.subr.mxu0 0.0
    %2926 = vmatpush1.msra.mxu0 0.0
    %2927 = vmatprep.subr.mxu0 0.0
    %2928 = vmatpush1.msra.mxu0 0.0
    %2929 = vmatprep.subr.mxu0 0.0
    %2930 = vmatpush1.msra.mxu0 0.0
    %2931 = vmatprep.subr.mxu0 0.0
    %2932 = vmatpush1.msra.mxu0 0.0
    %2933 = vmatprep.subr.mxu0 0.0
    %2934 = vmatpush1.msra.mxu0 0.0
    %2935 = vmatprep.subr.mxu0 0.0
    %2936 = vmatpush1.msra.mxu0 0.0
    %2937 = vmatprep.subr.mxu0 0.0
    %2938 = vmatpush1.msra.mxu0 0.0
    %2939 = vmatprep.subr.mxu0 0.0
    %2940 = vmatpush1.msra.mxu0 0.0
    %2941 = vmatprep.subr.mxu0 0.0
    %2942 = vmatpush1.msra.mxu0 0.0
    %2943 = vmatprep.subr.mxu0 0.0
    %2944 = vmatpush1.msra.mxu0 0.0
    %2945 = vmatprep.subr.mxu0 0.0
    %2946 = vmatpush1.msra.mxu0 0.0
    %2947 = vmatprep.subr.mxu0 0.0
    %2948 = vmatpush1.msra.mxu0 0.0
    %2949 = vmatprep.subr.mxu0 0.0
    %2950 = vmatpush1.msra.mxu0 0.0
    %2951 = vmatprep.subr.mxu0 0.0
    %2952 = vmatpush1.msra.mxu0 0.0
    %2953 = vmatprep.subr.mxu0 0.0
    %2954 = vmatpush1.msra.mxu0 0.0
    %2955 = vmatprep.subr.mxu0 0.0
    %2956 = vmatpush1.msra.mxu0 0.0
    %2957 = vmatprep.subr.mxu0 0.0
    %2958 = vmatpush1.msra.mxu0 0.0
    %2959 = vmatprep.subr.mxu0 0.0
    %2960 = vmatpush1.msra.mxu0 0.0
    %2961 = vmatprep.subr.mxu0 0.0
    %2962 = vmatpush1.msra.mxu0 0.0
    %2963 = vmatprep.subr.mxu0 0.0
    %2964 = vmatpush1.msra.mxu0 0.0
    %2965 = vmatprep.subr.mxu0 0.0
    %2966 = vmatpush1.msra.mxu0 0.0
    %2967 = vmatprep.mubr.f32.mxu0 0.0
    %2968 = vmatmul.mubr.f32.gmra.mrb[0].mxu0 %v2883
    %v2969 = vpop.f32.mrb[0].mxu0
    %v2970 = vadd.f32 0.0, %v2969
    %v2971 = vpop.f32.mrb[0].mxu0
    %v2972 = vadd.f32 0.0, %v2971
    %2973 = vmatprep.mubr.f32.mxu0 0.0
    %2974 = vmatmul.mubr.f32.gmra.mrb[0].mxu0 %v2886
    %v2975 = vpop.f32.mrb[0].mxu0
    %v2976 = vadd.f32 0.0, %v2975
    %v2977 = vpop.f32.mrb[0].mxu0
    %v2978 = vadd.f32 0.0, %v2977
    %2979 = vmatprep.mubr.f32.mxu0 0.0
    %2980 = vmatmul.mubr.f32.gmra.mrb[0].mxu0 %v2889
    %v2981 = vpop.f32.mrb[0].mxu0
    %v2982 = vadd.f32 0.0, %v2981
    %v2983 = vpop.f32.mrb[0].mxu0
    %v2984 = vadd.f32 0.0, %v2983
    %2985 = vmatprep.mubr.f32.mxu0 0.0
    %2986 = vmatmul.mubr.f32.gmra.mrb[0].mxu0 %v2892
    %v2987 = vpop.f32.mrb[0].mxu0
    %v2988 = vadd.f32 0.0, %v2987
    %v2989 = vpop.f32.mrb[0].mxu0
    %v2990 = vadd.f32 0.0, %v2989
    %2991 = vmatprep.mubr.f32.mxu0 0.0
    %2992 = vmatmul.mubr.f32.gmra.mrb[0].mxu0 %v2895
    %v2993 = vpop.f32.mrb[0].mxu0
    %v2994 = vadd.f32 0.0, %v2993
    %v2995 = vpop.f32.mrb[0].mxu0
    %v2996 = vadd.f32 0.0, %v2995
    %2997 = vmatprep.mubr.f32.mxu0 0.0
    %2998 = vmatmul.mubr.f32.gmra.mrb[0].mxu0 %v2898
    %v2999 = vpop.f32.mrb[0].mxu0
    %v3000 = vadd.f32 0.0, %v2999
    %v3001 = vpop.f32.mrb[0].mxu0
    %v3002 = vadd.f32 0.0, %v3001
    %3003 = vmatprep.mubr.f32.mxu0 0.0
    %3004 = vmatmul.mubr.f32.gmra.mrb[0].mxu0 %v2901
    %v3005 = vpop.f32.mrb[0].mxu0
    %v3006 = vadd.f32 0.0, %v3005
    %v3007 = vpop.f32.mrb[0].mxu0
    %v3008 = vadd.f32 0.0, %v3007
    %3009 = vdwg.mxu0
    %3010 = vmatprep.subr.mxu0 %v744
    %3011 = vmatpush1.msra.mxu0 %v743
    %3012 = vmatprep.subr.mxu0 %v748
    %3013 = vmatpush1.msra.mxu0 %v747
    %3014 = vmatprep.subr.mxu0 %v752
    %3015 = vmatpush1.msra.mxu0 %v751
    %3016 = vmatprep.subr.mxu0 %v756
    %3017 = vmatpush1.msra.mxu0 %v755
    %3018 = vmatprep.subr.mxu0 0.0
    %3019 = vmatpush1.msra.mxu0 0.0
    %3020 = vmatprep.subr.mxu0 0.0
    %3021 = vmatpush1.msra.mxu0 0.0
    %3022 = vmatprep.subr.mxu0 0.0
    %3023 = vmatpush1.msra.mxu0 0.0
    %3024 = vmatprep.subr.mxu0 0.0
    %3025 = vmatpush1.msra.mxu0 0.0
    %3026 = vmatprep.subr.mxu0 0.0
    %3027 = vmatpush1.msra.mxu0 0.0
    %3028 = vmatprep.subr.mxu0 0.0
    %3029 = vmatpush1.msra.mxu0 0.0
    %3030 = vmatprep.subr.mxu0 0.0
    %3031 = vmatpush1.msra.mxu0 0.0
    %3032 = vmatprep.subr.mxu0 0.0
    %3033 = vmatpush1.msra.mxu0 0.0
    %3034 = vmatprep.subr.mxu0 0.0
    %3035 = vmatpush1.msra.mxu0 0.0
    %3036 = vmatprep.subr.mxu0 0.0
    %3037 = vmatpush1.msra.mxu0 0.0
    %3038 = vmatprep.subr.mxu0 0.0
    %3039 = vmatpush1.msra.mxu0 0.0
    %3040 = vmatprep.subr.mxu0 0.0
    %3041 = vmatpush1.msra.mxu0 0.0
    %3042 = vmatprep.subr.mxu0 0.0
    %3043 = vmatpush1.msra.mxu0 0.0
    %3044 = vmatprep.subr.mxu0 0.0
    %3045 = vmatpush1.msra.mxu0 0.0
    %3046 = vmatprep.subr.mxu0 0.0
    %3047 = vmatpush1.msra.mxu0 0.0
    %3048 = vmatprep.subr.mxu0 0.0
    %3049 = vmatpush1.msra.mxu0 0.0
    %3050 = vmatprep.subr.mxu0 0.0
    %3051 = vmatpush1.msra.mxu0 0.0
    %3052 = vmatprep.subr.mxu0 0.0
    %3053 = vmatpush1.msra.mxu0 0.0
    %3054 = vmatprep.subr.mxu0 0.0
    %3055 = vmatpush1.msra.mxu0 0.0
    %3056 = vmatprep.subr.mxu0 0.0
    %3057 = vmatpush1.msra.mxu0 0.0
    %3058 = vmatprep.subr.mxu0 0.0
    %3059 = vmatpush1.msra.mxu0 0.0
    %3060 = vmatprep.subr.mxu0 0.0
    %3061 = vmatpush1.msra.mxu0 0.0
    %3062 = vmatprep.subr.mxu0 0.0
    %3063 = vmatpush1.msra.mxu0 0.0
    %3064 = vmatprep.subr.mxu0 0.0
    %3065 = vmatpush1.msra.mxu0 0.0
    %3066 = vmatprep.subr.mxu0 0.0
    %3067 = vmatpush1.msra.mxu0 0.0
    %3068 = vmatprep.subr.mxu0 0.0
    %3069 = vmatpush1.msra.mxu0 0.0
    %3070 = vmatprep.subr.mxu0 0.0
    %3071 = vmatpush1.msra.mxu0 0.0
    %3072 = vmatprep.subr.mxu0 0.0
    %3073 = vmatpush1.msra.mxu0 0.0
    %3074 = vmatprep.mubr.f32.mxu0 0.0
    %3075 = vmatmul.mubr.f32.gmra.mrb[0].mxu0 %v2883
    %v3076 = vpop.f32.mrb[0].mxu0
    %v3077 = vadd.f32 0.0, %v3076
    %v3078 = vpop.f32.mrb[0].mxu0
    %v3079 = vadd.f32 0.0, %v3078
    %3080 = vmatprep.mubr.f32.mxu0 0.0
    %3081 = vmatmul.mubr.f32.gmra.mrb[0].mxu0 %v2886
    %v3082 = vpop.f32.mrb[0].mxu0
    %v3083 = vadd.f32 0.0, %v3082
    %v3084 = vpop.f32.mrb[0].mxu0
    %v3085 = vadd.f32 0.0, %v3084
    %3086 = vmatprep.mubr.f32.mxu0 0.0
    %3087 = vmatmul.mubr.f32.gmra.mrb[0].mxu0 %v2889
    %v3088 = vpop.f32.mrb[0].mxu0
    %v3089 = vadd.f32 0.0, %v3088
    %v3090 = vpop.f32.mrb[0].mxu0
    %v3091 = vadd.f32 0.0, %v3090
    %3092 = vmatprep.mubr.f32.mxu0 0.0
    %3093 = vmatmul.mubr.f32.gmra.mrb[0].mxu0 %v2892
    %v3094 = vpop.f32.mrb[0].mxu0
    %v3095 = vadd.f32 0.0, %v3094
    %v3096 = vpop.f32.mrb[0].mxu0
    %v3097 = vadd.f32 0.0, %v3096
    %3098 = vmatprep.mubr.f32.mxu0 0.0
    %3099 = vmatmul.mubr.f32.gmra.mrb[0].mxu0 %v2895
    %v3100 = vpop.f32.mrb[0].mxu0
    %v3101 = vadd.f32 0.0, %v3100
    %v3102 = vpop.f32.mrb[0].mxu0
    %v3103 = vadd.f32 0.0, %v3102
    %3104 = vmatprep.mubr.f32.mxu0 0.0
    %3105 = vmatmul.mubr.f32.gmra.mrb[0].mxu0 %v2898
    %v3106 = vpop.f32.mrb[0].mxu0
    %v3107 = vadd.f32 0.0, %v3106
    %v3108 = vpop.f32.mrb[0].mxu0
    %v3109 = vadd.f32 0.0, %v3108
    %3110 = vmatprep.mubr.f32.mxu0 0.0
    %3111 = vmatmul.mubr.f32.gmra.mrb[0].mxu0 %v2901
    %v3112 = vpop.f32.mrb[0].mxu0
    %v3113 = vadd.f32 0.0, %v3112
    %v3114 = vpop.f32.mrb[0].mxu0
    %v3115 = vadd.f32 0.0, %v3114
    %3116 = vdwg.mxu0
    %3124 = vrot.lane.b32.xlu0 %v2439, 96
    %v3125 = vpop.permute.xlu0 %3124
    %3126 = vrot.lane.b32.xlu0 %v2442, 96
    %v3127 = vpop.permute.xlu0 %3126
    %3128 = vrot.lane.b32.xlu0 %v2447, 96
    %v3129 = vpop.permute.xlu0 %3128
    %3130 = vrot.lane.b32.xlu0 %v2450, 96
    %v3131 = vpop.permute.xlu0 %3130
    %3132 = vrot.lane.b32.xlu0 %v2455, 96
    %v3133 = vpop.permute.xlu0 %3132
    %3134 = vrot.lane.b32.xlu0 %v2458, 96
    %v3135 = vpop.permute.xlu0 %3134
    %3136 = vrot.lane.b32.xlu0 %v2463, 96
    %v3137 = vpop.permute.xlu0 %3136
    %v3138 = vsel %vm1755, %v3125, 0
    %v3140 = vsel %vm1755, %v3127, 0
    %v3142 = vsel %vm1755, %v3129, 0
    %v3144 = vsel %vm1755, %v3131, 0
    %v3146 = vsel %vm1755, %v3133, 0
    %v3148 = vsel %vm1755, %v3135, 0
    %v3150 = vsel %vm1755, %v3137, 0
    %3152 = vmatprep.subr.mxu0 %v758
    %3153 = vmatpush1.msra.mxu0 %v757
    %3154 = vmatprep.subr.mxu0 %v762
    %3155 = vmatpush1.msra.mxu0 %v761
    %3156 = vmatprep.subr.mxu0 0.0
    %3157 = vmatpush1.msra.mxu0 0.0
    %3158 = vmatprep.subr.mxu0 0.0
    %3159 = vmatpush1.msra.mxu0 0.0
    %3160 = vmatprep.subr.mxu0 0.0
    %3161 = vmatpush1.msra.mxu0 0.0
    %3162 = vmatprep.subr.mxu0 0.0
    %3163 = vmatpush1.msra.mxu0 0.0
    %3164 = vmatprep.subr.mxu0 0.0
    %3165 = vmatpush1.msra.mxu0 0.0
    %3166 = vmatprep.subr.mxu0 0.0
    %3167 = vmatpush1.msra.mxu0 0.0
    %3168 = vmatprep.subr.mxu0 0.0
    %3169 = vmatpush1.msra.mxu0 0.0
    %3170 = vmatprep.subr.mxu0 0.0
    %3171 = vmatpush1.msra.mxu0 0.0
    %3172 = vmatprep.subr.mxu0 0.0
    %3173 = vmatpush1.msra.mxu0 0.0
    %3174 = vmatprep.subr.mxu0 0.0
    %3175 = vmatpush1.msra.mxu0 0.0
    %3176 = vmatprep.subr.mxu0 0.0
    %3177 = vmatpush1.msra.mxu0 0.0
    %3178 = vmatprep.subr.mxu0 0.0
    %3179 = vmatpush1.msra.mxu0 0.0
    %3180 = vmatprep.subr.mxu0 0.0
    %3181 = vmatpush1.msra.mxu0 0.0
    %3182 = vmatprep.subr.mxu0 0.0
    %3183 = vmatpush1.msra.mxu0 0.0
    %3184 = vmatprep.subr.mxu0 0.0
    %3185 = vmatpush1.msra.mxu0 0.0
    %3186 = vmatprep.subr.mxu0 0.0
    %3187 = vmatpush1.msra.mxu0 0.0
    %3188 = vmatprep.subr.mxu0 0.0
    %3189 = vmatpush1.msra.mxu0 0.0
    %3190 = vmatprep.subr.mxu0 0.0
    %3191 = vmatpush1.msra.mxu0 0.0
    %3192 = vmatprep.subr.mxu0 0.0
    %3193 = vmatpush1.msra.mxu0 0.0
    %3194 = vmatprep.subr.mxu0 0.0
    %3195 = vmatpush1.msra.mxu0 0.0
    %3196 = vmatprep.subr.mxu0 0.0
    %3197 = vmatpush1.msra.mxu0 0.0
    %3198 = vmatprep.subr.mxu0 0.0
    %3199 = vmatpush1.msra.mxu0 0.0
    %3200 = vmatprep.subr.mxu0 0.0
    %3201 = vmatpush1.msra.mxu0 0.0
    %3202 = vmatprep.subr.mxu0 0.0
    %3203 = vmatpush1.msra.mxu0 0.0
    %3204 = vmatprep.subr.mxu0 0.0
    %3205 = vmatpush1.msra.mxu0 0.0
    %3206 = vmatprep.subr.mxu0 0.0
    %3207 = vmatpush1.msra.mxu0 0.0
    %3208 = vmatprep.subr.mxu0 0.0
    %3209 = vmatpush1.msra.mxu0 0.0
    %3210 = vmatprep.subr.mxu0 0.0
    %3211 = vmatpush1.msra.mxu0 0.0
    %3212 = vmatprep.subr.mxu0 0.0
    %3213 = vmatpush1.msra.mxu0 0.0
    %3214 = vmatprep.subr.mxu0 0.0
    %3215 = vmatpush1.msra.mxu0 0.0
    %3216 = vmatprep.mubr.f32.mxu0 0.0
    %3217 = vmatmul.mubr.f32.gmra.mrb[0].mxu0 %v3138
    %v3218 = vpop.f32.mrb[0].mxu0
    %v3219 = vadd.f32 0.0, %v3218
    %v3220 = vpop.f32.mrb[0].mxu0
    %v3221 = vadd.f32 0.0, %v3220
    %3222 = vmatprep.mubr.f32.mxu0 0.0
    %3223 = vmatmul.mubr.f32.gmra.mrb[0].mxu0 %v3140
    %v3224 = vpop.f32.mrb[0].mxu0
    %v3225 = vadd.f32 0.0, %v3224
    %v3226 = vpop.f32.mrb[0].mxu0
    %v3227 = vadd.f32 0.0, %v3226
    %3228 = vmatprep.mubr.f32.mxu0 0.0
    %3229 = vmatmul.mubr.f32.gmra.mrb[0].mxu0 %v3142
    %v3230 = vpop.f32.mrb[0].mxu0
    %v3231 = vadd.f32 0.0, %v3230
    %v3232 = vpop.f32.mrb[0].mxu0
    %v3233 = vadd.f32 0.0, %v3232
    %3234 = vmatprep.mubr.f32.mxu0 0.0
    %3235 = vmatmul.mubr.f32.gmra.mrb[0].mxu0 %v3144
    %v3236 = vpop.f32.mrb[0].mxu0
    %v3237 = vadd.f32 0.0, %v3236
    %v3238 = vpop.f32.mrb[0].mxu0
    %v3239 = vadd.f32 0.0, %v3238
    %3240 = vmatprep.mubr.f32.mxu0 0.0
    %3241 = vmatmul.mubr.f32.gmra.mrb[0].mxu0 %v3146
    %v3242 = vpop.f32.mrb[0].mxu0
    %v3243 = vadd.f32 0.0, %v3242
    %v3244 = vpop.f32.mrb[0].mxu0
    %v3245 = vadd.f32 0.0, %v3244
    %3246 = vmatprep.mubr.f32.mxu0 0.0
    %3247 = vmatmul.mubr.f32.gmra.mrb[0].mxu0 %v3148
    %v3248 = vpop.f32.mrb[0].mxu0
    %v3249 = vadd.f32 0.0, %v3248
    %v3250 = vpop.f32.mrb[0].mxu0
    %v3251 = vadd.f32 0.0, %v3250
    %3252 = vmatprep.mubr.f32.mxu0 0.0
    %3253 = vmatmul.mubr.f32.gmra.mrb[0].mxu0 %v3150
    %v3254 = vpop.f32.mrb[0].mxu0
    %v3255 = vadd.f32 0.0, %v3254
    %v3256 = vpop.f32.mrb[0].mxu0
    %v3257 = vadd.f32 0.0, %v3256
    %3258 = vdwg.mxu0
    %3259 = vmatprep.subr.mxu0 %v760
    %3260 = vmatpush1.msra.mxu0 %v759
    %3261 = vmatprep.subr.mxu0 %v764
    %3262 = vmatpush1.msra.mxu0 %v763
    %3263 = vmatprep.subr.mxu0 0.0
    %3264 = vmatpush1.msra.mxu0 0.0
    %3265 = vmatprep.subr.mxu0 0.0
    %3266 = vmatpush1.msra.mxu0 0.0
    %3267 = vmatprep.subr.mxu0 0.0
    %3268 = vmatpush1.msra.mxu0 0.0
    %3269 = vmatprep.subr.mxu0 0.0
    %3270 = vmatpush1.msra.mxu0 0.0
    %3271 = vmatprep.subr.mxu0 0.0
    %3272 = vmatpush1.msra.mxu0 0.0
    %3273 = vmatprep.subr.mxu0 0.0
    %3274 = vmatpush1.msra.mxu0 0.0
    %3275 = vmatprep.subr.mxu0 0.0
    %3276 = vmatpush1.msra.mxu0 0.0
    %3277 = vmatprep.subr.mxu0 0.0
    %3278 = vmatpush1.msra.mxu0 0.0
    %3279 = vmatprep.subr.mxu0 0.0
    %3280 = vmatpush1.msra.mxu0 0.0
    %3281 = vmatprep.subr.mxu0 0.0
    %3282 = vmatpush1.msra.mxu0 0.0
    %3283 = vmatprep.subr.mxu0 0.0
    %3284 = vmatpush1.msra.mxu0 0.0
    %3285 = vmatprep.subr.mxu0 0.0
    %3286 = vmatpush1.msra.mxu0 0.0
    %3287 = vmatprep.subr.mxu0 0.0
    %3288 = vmatpush1.msra.mxu0 0.0
    %3289 = vmatprep.subr.mxu0 0.0
    %3290 = vmatpush1.msra.mxu0 0.0
    %3291 = vmatprep.subr.mxu0 0.0
    %3292 = vmatpush1.msra.mxu0 0.0
    %3293 = vmatprep.subr.mxu0 0.0
    %3294 = vmatpush1.msra.mxu0 0.0
    %3295 = vmatprep.subr.mxu0 0.0
    %3296 = vmatpush1.msra.mxu0 0.0
    %3297 = vmatprep.subr.mxu0 0.0
    %3298 = vmatpush1.msra.mxu0 0.0
    %3299 = vmatprep.subr.mxu0 0.0
    %3300 = vmatpush1.msra.mxu0 0.0
    %3301 = vmatprep.subr.mxu0 0.0
    %3302 = vmatpush1.msra.mxu0 0.0
    %3303 = vmatprep.subr.mxu0 0.0
    %3304 = vmatpush1.msra.mxu0 0.0
    %3305 = vmatprep.subr.mxu0 0.0
    %3306 = vmatpush1.msra.mxu0 0.0
    %3307 = vmatprep.subr.mxu0 0.0
    %3308 = vmatpush1.msra.mxu0 0.0
    %3309 = vmatprep.subr.mxu0 0.0
    %3310 = vmatpush1.msra.mxu0 0.0
    %3311 = vmatprep.subr.mxu0 0.0
    %3312 = vmatpush1.msra.mxu0 0.0
    %3313 = vmatprep.subr.mxu0 0.0
    %3314 = vmatpush1.msra.mxu0 0.0
    %3315 = vmatprep.subr.mxu0 0.0
    %3316 = vmatpush1.msra.mxu0 0.0
    %3317 = vmatprep.subr.mxu0 0.0
    %3318 = vmatpush1.msra.mxu0 0.0
    %3319 = vmatprep.subr.mxu0 0.0
    %3320 = vmatpush1.msra.mxu0 0.0
    %3321 = vmatprep.subr.mxu0 0.0
    %3322 = vmatpush1.msra.mxu0 0.0
    %3323 = vmatprep.mubr.f32.mxu0 0.0
    %3324 = vmatmul.mubr.f32.gmra.mrb[0].mxu0 %v3138
    %v3325 = vpop.f32.mrb[0].mxu0
    %v3326 = vadd.f32 0.0, %v3325
    %v3327 = vpop.f32.mrb[0].mxu0
    %v3328 = vadd.f32 0.0, %v3327
    %3329 = vmatprep.mubr.f32.mxu0 0.0
    %3330 = vmatmul.mubr.f32.gmra.mrb[0].mxu0 %v3140
    %v3331 = vpop.f32.mrb[0].mxu0
    %v3332 = vadd.f32 0.0, %v3331
    %v3333 = vpop.f32.mrb[0].mxu0
    %v3334 = vadd.f32 0.0, %v3333
    %3335 = vmatprep.mubr.f32.mxu0 0.0
    %3336 = vmatmul.mubr.f32.gmra.mrb[0].mxu0 %v3142
    %v3337 = vpop.f32.mrb[0].mxu0
    %v3338 = vadd.f32 0.0, %v3337
    %v3339 = vpop.f32.mrb[0].mxu0
    %v3340 = vadd.f32 0.0, %v3339
    %3341 = vmatprep.mubr.f32.mxu0 0.0
    %3342 = vmatmul.mubr.f32.gmra.mrb[0].mxu0 %v3144
    %v3343 = vpop.f32.mrb[0].mxu0
    %v3344 = vadd.f32 0.0, %v3343
    %v3345 = vpop.f32.mrb[0].mxu0
    %v3346 = vadd.f32 0.0, %v3345
    %3347 = vmatprep.mubr.f32.mxu0 0.0
    %3348 = vmatmul.mubr.f32.gmra.mrb[0].mxu0 %v3146
    %v3349 = vpop.f32.mrb[0].mxu0
    %v3350 = vadd.f32 0.0, %v3349
    %v3351 = vpop.f32.mrb[0].mxu0
    %v3352 = vadd.f32 0.0, %v3351
    %3353 = vmatprep.mubr.f32.mxu0 0.0
    %3354 = vmatmul.mubr.f32.gmra.mrb[0].mxu0 %v3148
    %v3355 = vpop.f32.mrb[0].mxu0
    %v3356 = vadd.f32 0.0, %v3355
    %v3357 = vpop.f32.mrb[0].mxu0
    %v3358 = vadd.f32 0.0, %v3357
    %3359 = vmatprep.mubr.f32.mxu0 0.0
    %3360 = vmatmul.mubr.f32.gmra.mrb[0].mxu0 %v3150
    %v3361 = vpop.f32.mrb[0].mxu0
    %v3362 = vadd.f32 0.0, %v3361
    %v3363 = vpop.f32.mrb[0].mxu0
    %v3364 = vadd.f32 0.0, %v3363
    %3365 = vdwg.mxu0
    %v3366 = vmul.f32 %v2970, %v3219
    %v3367 = vmul.f32 %v2972, %v3221
    %v3368 = vmul.f32 %v3077, %v3326
    %v3369 = vmul.f32 %v3079, %v3328
    %v3370 = vmul.f32 %v2976, %v3225
    %v3371 = vmul.f32 %v2978, %v3227
    %v3372 = vmul.f32 %v3083, %v3332
    %v3373 = vmul.f32 %v3085, %v3334
    %v3374 = vmul.f32 %v2982, %v3231
    %v3375 = vmul.f32 %v2984, %v3233
    %v3376 = vmul.f32 %v3089, %v3338
    %v3377 = vmul.f32 %v3091, %v3340
    %v3378 = vmul.f32 %v2988, %v3237
    %v3379 = vmul.f32 %v2990, %v3239
    %v3380 = vmul.f32 %v3095, %v3344
    %v3381 = vmul.f32 %v3097, %v3346
    %v3382 = vmul.f32 %v2994, %v3243
    %v3383 = vmul.f32 %v2996, %v3245
    %v3384 = vmul.f32 %v3101, %v3350
    %v3385 = vmul.f32 %v3103, %v3352
    %v3386 = vmul.f32 %v3000, %v3249
    %v3387 = vmul.f32 %v3002, %v3251
    %v3388 = vmul.f32 %v3107, %v3356
    %v3389 = vmul.f32 %v3109, %v3358
    %v3390 = vmul.f32 %v3006, %v3255
    %v3391 = vmul.f32 %v3008, %v3257
    %v3392 = vmul.f32 %v3113, %v3362
    %v3393 = vmul.f32 %v3115, %v3364
    %3394 = vrot.lane.b32.xlu0 %v2439, 80
    %v3395 = vpop.permute.xlu0 %3394
    %3396 = vrot.lane.b32.xlu0 %v2442, 80
    %v3397 = vpop.permute.xlu0 %3396
    %3398 = vrot.lane.b32.xlu0 %v2447, 80
    %v3399 = vpop.permute.xlu0 %3398
    %3400 = vrot.lane.b32.xlu0 %v2450, 80
    %v3401 = vpop.permute.xlu0 %3400
    %3402 = vrot.lane.b32.xlu0 %v2455, 80
    %v3403 = vpop.permute.xlu0 %3402
    %3404 = vrot.lane.b32.xlu0 %v2458, 80
    %v3405 = vpop.permute.xlu0 %3404
    %3406 = vrot.lane.b32.xlu0 %v2463, 80
    %v3407 = vpop.permute.xlu0 %3406
    %v3408 = vsel %vm1755, %v3395, 0
    %v3410 = vsel %vm1755, %v3397, 0
    %v3412 = vsel %vm1755, %v3399, 0
    %v3414 = vsel %vm1755, %v3401, 0
    %v3416 = vsel %vm1755, %v3403, 0
    %v3418 = vsel %vm1755, %v3405, 0
    %v3420 = vsel %vm1755, %v3407, 0
    %3422 = vmatprep.subr.mxu0 %v758
    %3423 = vmatpush1.msra.mxu0 %v757
    %3424 = vmatprep.subr.mxu0 %v762
    %3425 = vmatpush1.msra.mxu0 %v761
    %3426 = vmatprep.subr.mxu0 0.0
    %3427 = vmatpush1.msra.mxu0 0.0
    %3428 = vmatprep.subr.mxu0 0.0
    %3429 = vmatpush1.msra.mxu0 0.0
    %3430 = vmatprep.subr.mxu0 0.0
    %3431 = vmatpush1.msra.mxu0 0.0
    %3432 = vmatprep.subr.mxu0 0.0
    %3433 = vmatpush1.msra.mxu0 0.0
    %3434 = vmatprep.subr.mxu0 0.0
    %3435 = vmatpush1.msra.mxu0 0.0
    %3436 = vmatprep.subr.mxu0 0.0
    %3437 = vmatpush1.msra.mxu0 0.0
    %3438 = vmatprep.subr.mxu0 0.0
    %3439 = vmatpush1.msra.mxu0 0.0
    %3440 = vmatprep.subr.mxu0 0.0
    %3441 = vmatpush1.msra.mxu0 0.0
    %3442 = vmatprep.subr.mxu0 0.0
    %3443 = vmatpush1.msra.mxu0 0.0
    %3444 = vmatprep.subr.mxu0 0.0
    %3445 = vmatpush1.msra.mxu0 0.0
    %3446 = vmatprep.subr.mxu0 0.0
    %3447 = vmatpush1.msra.mxu0 0.0
    %3448 = vmatprep.subr.mxu0 0.0
    %3449 = vmatpush1.msra.mxu0 0.0
    %3450 = vmatprep.subr.mxu0 0.0
    %3451 = vmatpush1.msra.mxu0 0.0
    %3452 = vmatprep.subr.mxu0 0.0
    %3453 = vmatpush1.msra.mxu0 0.0
    %3454 = vmatprep.subr.mxu0 0.0
    %3455 = vmatpush1.msra.mxu0 0.0
    %3456 = vmatprep.subr.mxu0 0.0
    %3457 = vmatpush1.msra.mxu0 0.0
    %3458 = vmatprep.subr.mxu0 0.0
    %3459 = vmatpush1.msra.mxu0 0.0
    %3460 = vmatprep.subr.mxu0 0.0
    %3461 = vmatpush1.msra.mxu0 0.0
    %3462 = vmatprep.subr.mxu0 0.0
    %3463 = vmatpush1.msra.mxu0 0.0
    %3464 = vmatprep.subr.mxu0 0.0
    %3465 = vmatpush1.msra.mxu0 0.0
    %3466 = vmatprep.subr.mxu0 0.0
    %3467 = vmatpush1.msra.mxu0 0.0
    %3468 = vmatprep.subr.mxu0 0.0
    %3469 = vmatpush1.msra.mxu0 0.0
    %3470 = vmatprep.subr.mxu0 0.0
    %3471 = vmatpush1.msra.mxu0 0.0
    %3472 = vmatprep.subr.mxu0 0.0
    %3473 = vmatpush1.msra.mxu0 0.0
    %3474 = vmatprep.subr.mxu0 0.0
    %3475 = vmatpush1.msra.mxu0 0.0
    %3476 = vmatprep.subr.mxu0 0.0
    %3477 = vmatpush1.msra.mxu0 0.0
    %3478 = vmatprep.subr.mxu0 0.0
    %3479 = vmatpush1.msra.mxu0 0.0
    %3480 = vmatprep.subr.mxu0 0.0
    %3481 = vmatpush1.msra.mxu0 0.0
    %3482 = vmatprep.subr.mxu0 0.0
    %3483 = vmatpush1.msra.mxu0 0.0
    %3484 = vmatprep.subr.mxu0 0.0
    %3485 = vmatpush1.msra.mxu0 0.0
    %3486 = vmatprep.mubr.f32.mxu0 0.0
    %3487 = vmatmul.mubr.f32.gmra.mrb[0].mxu0 %v3408
    %v3488 = vpop.f32.mrb[0].mxu0
    %v3489 = vadd.f32 0.0, %v3488
    %v3490 = vpop.f32.mrb[0].mxu0
    %v3491 = vadd.f32 0.0, %v3490
    %3492 = vmatprep.mubr.f32.mxu0 0.0
    %3493 = vmatmul.mubr.f32.gmra.mrb[0].mxu0 %v3410
    %v3494 = vpop.f32.mrb[0].mxu0
    %v3495 = vadd.f32 0.0, %v3494
    %v3496 = vpop.f32.mrb[0].mxu0
    %v3497 = vadd.f32 0.0, %v3496
    %3498 = vmatprep.mubr.f32.mxu0 0.0
    %3499 = vmatmul.mubr.f32.gmra.mrb[0].mxu0 %v3412
    %v3500 = vpop.f32.mrb[0].mxu0
    %v3501 = vadd.f32 0.0, %v3500
    %v3502 = vpop.f32.mrb[0].mxu0
    %v3503 = vadd.f32 0.0, %v3502
    %3504 = vmatprep.mubr.f32.mxu0 0.0
    %3505 = vmatmul.mubr.f32.gmra.mrb[0].mxu0 %v3414
    %v3506 = vpop.f32.mrb[0].mxu0
    %v3507 = vadd.f32 0.0, %v3506
    %v3508 = vpop.f32.mrb[0].mxu0
    %v3509 = vadd.f32 0.0, %v3508
    %3510 = vmatprep.mubr.f32.mxu0 0.0
    %3511 = vmatmul.mubr.f32.gmra.mrb[0].mxu0 %v3416
    %v3512 = vpop.f32.mrb[0].mxu0
    %v3513 = vadd.f32 0.0, %v3512
    %v3514 = vpop.f32.mrb[0].mxu0
    %v3515 = vadd.f32 0.0, %v3514
    %3516 = vmatprep.mubr.f32.mxu0 0.0
    %3517 = vmatmul.mubr.f32.gmra.mrb[0].mxu0 %v3418
    %v3518 = vpop.f32.mrb[0].mxu0
    %v3519 = vadd.f32 0.0, %v3518
    %v3520 = vpop.f32.mrb[0].mxu0
    %v3521 = vadd.f32 0.0, %v3520
    %3522 = vmatprep.mubr.f32.mxu0 0.0
    %3523 = vmatmul.mubr.f32.gmra.mrb[0].mxu0 %v3420
    %v3524 = vpop.f32.mrb[0].mxu0
    %v3525 = vadd.f32 0.0, %v3524
    %v3526 = vpop.f32.mrb[0].mxu0
    %v3527 = vadd.f32 0.0, %v3526
    %3528 = vdwg.mxu0
    %3529 = vmatprep.subr.mxu0 %v760
    %3530 = vmatpush1.msra.mxu0 %v759
    %3531 = vmatprep.subr.mxu0 %v764
    %3532 = vmatpush1.msra.mxu0 %v763
    %3533 = vmatprep.subr.mxu0 0.0
    %3534 = vmatpush1.msra.mxu0 0.0
    %3535 = vmatprep.subr.mxu0 0.0
    %3536 = vmatpush1.msra.mxu0 0.0
    %3537 = vmatprep.subr.mxu0 0.0
    %3538 = vmatpush1.msra.mxu0 0.0
    %3539 = vmatprep.subr.mxu0 0.0
    %3540 = vmatpush1.msra.mxu0 0.0
    %3541 = vmatprep.subr.mxu0 0.0
    %3542 = vmatpush1.msra.mxu0 0.0
    %3543 = vmatprep.subr.mxu0 0.0
    %3544 = vmatpush1.msra.mxu0 0.0
    %3545 = vmatprep.subr.mxu0 0.0
    %3546 = vmatpush1.msra.mxu0 0.0
    %3547 = vmatprep.subr.mxu0 0.0
    %3548 = vmatpush1.msra.mxu0 0.0
    %3549 = vmatprep.subr.mxu0 0.0
    %3550 = vmatpush1.msra.mxu0 0.0
    %3551 = vmatprep.subr.mxu0 0.0
    %3552 = vmatpush1.msra.mxu0 0.0
    %3553 = vmatprep.subr.mxu0 0.0
    %3554 = vmatpush1.msra.mxu0 0.0
    %3555 = vmatprep.subr.mxu0 0.0
    %3556 = vmatpush1.msra.mxu0 0.0
    %3557 = vmatprep.subr.mxu0 0.0
    %3558 = vmatpush1.msra.mxu0 0.0
    %3559 = vmatprep.subr.mxu0 0.0
    %3560 = vmatpush1.msra.mxu0 0.0
    %3561 = vmatprep.subr.mxu0 0.0
    %3562 = vmatpush1.msra.mxu0 0.0
    %3563 = vmatprep.subr.mxu0 0.0
    %3564 = vmatpush1.msra.mxu0 0.0
    %3565 = vmatprep.subr.mxu0 0.0
    %3566 = vmatpush1.msra.mxu0 0.0
    %3567 = vmatprep.subr.mxu0 0.0
    %3568 = vmatpush1.msra.mxu0 0.0
    %3569 = vmatprep.subr.mxu0 0.0
    %3570 = vmatpush1.msra.mxu0 0.0
    %3571 = vmatprep.subr.mxu0 0.0
    %3572 = vmatpush1.msra.mxu0 0.0
    %3573 = vmatprep.subr.mxu0 0.0
    %3574 = vmatpush1.msra.mxu0 0.0
    %3575 = vmatprep.subr.mxu0 0.0
    %3576 = vmatpush1.msra.mxu0 0.0
    %3577 = vmatprep.subr.mxu0 0.0
    %3578 = vmatpush1.msra.mxu0 0.0
    %3579 = vmatprep.subr.mxu0 0.0
    %3580 = vmatpush1.msra.mxu0 0.0
    %3581 = vmatprep.subr.mxu0 0.0
    %3582 = vmatpush1.msra.mxu0 0.0
    %3583 = vmatprep.subr.mxu0 0.0
    %3584 = vmatpush1.msra.mxu0 0.0
    %3585 = vmatprep.subr.mxu0 0.0
    %3586 = vmatpush1.msra.mxu0 0.0
    %3587 = vmatprep.subr.mxu0 0.0
    %3588 = vmatpush1.msra.mxu0 0.0
    %3589 = vmatprep.subr.mxu0 0.0
    %3590 = vmatpush1.msra.mxu0 0.0
    %3591 = vmatprep.subr.mxu0 0.0
    %3592 = vmatpush1.msra.mxu0 0.0
    %3593 = vmatprep.mubr.f32.mxu0 0.0
    %3594 = vmatmul.mubr.f32.gmra.mrb[0].mxu0 %v3408
    %v3595 = vpop.f32.mrb[0].mxu0
    %v3596 = vadd.f32 0.0, %v3595
    %v3597 = vpop.f32.mrb[0].mxu0
    %v3598 = vadd.f32 0.0, %v3597
    %3599 = vmatprep.mubr.f32.mxu0 0.0
    %3600 = vmatmul.mubr.f32.gmra.mrb[0].mxu0 %v3410
    %v3601 = vpop.f32.mrb[0].mxu0
    %v3602 = vadd.f32 0.0, %v3601
    %v3603 = vpop.f32.mrb[0].mxu0
    %v3604 = vadd.f32 0.0, %v3603
    %3605 = vmatprep.mubr.f32.mxu0 0.0
    %3606 = vmatmul.mubr.f32.gmra.mrb[0].mxu0 %v3412
    %v3607 = vpop.f32.mrb[0].mxu0
    %v3608 = vadd.f32 0.0, %v3607
    %v3609 = vpop.f32.mrb[0].mxu0
    %v3610 = vadd.f32 0.0, %v3609
    %3611 = vmatprep.mubr.f32.mxu0 0.0
    %3612 = vmatmul.mubr.f32.gmra.mrb[0].mxu0 %v3414
    %v3613 = vpop.f32.mrb[0].mxu0
    %v3614 = vadd.f32 0.0, %v3613
    %v3615 = vpop.f32.mrb[0].mxu0
    %v3616 = vadd.f32 0.0, %v3615
    %3617 = vmatprep.mubr.f32.mxu0 0.0
    %3618 = vmatmul.mubr.f32.gmra.mrb[0].mxu0 %v3416
    %v3619 = vpop.f32.mrb[0].mxu0
    %v3620 = vadd.f32 0.0, %v3619
    %v3621 = vpop.f32.mrb[0].mxu0
    %v3622 = vadd.f32 0.0, %v3621
    %3623 = vmatprep.mubr.f32.mxu0 0.0
    %3624 = vmatmul.mubr.f32.gmra.mrb[0].mxu0 %v3418
    %v3625 = vpop.f32.mrb[0].mxu0
    %v3626 = vadd.f32 0.0, %v3625
    %v3627 = vpop.f32.mrb[0].mxu0
    %v3628 = vadd.f32 0.0, %v3627
    %3629 = vmatprep.mubr.f32.mxu0 0.0
    %3630 = vmatmul.mubr.f32.gmra.mrb[0].mxu0 %v3420
    %v3631 = vpop.f32.mrb[0].mxu0
    %v3632 = vadd.f32 0.0, %v3631
    %v3633 = vpop.f32.mrb[0].mxu0
    %v3634 = vadd.f32 0.0, %v3633
    %3635 = vdwg.mxu0
    %v3636 = vmul.f32 %v1437, 0.0
    %v3637 = vmul.f32 %v1439, 0.0
    %v3638 = vmul.f32 %v1441, 0.0
    %v3639 = vmul.f32 %v1443, 0.0
    %v3640 = vadd.f32 %v3636, %v1984
    %v3641 = vadd.f32 %v3637, %v1985
    %v3642 = vadd.f32 %v3638, %v1986
    %v3643 = vadd.f32 %v3639, %v1987
    %v3644 = vmul.f32 %v2840, 0.0
    %v3645 = vmul.f32 %v2842, 0.0
    %v3646 = vmul.f32 %v2844, 0.0
    %v3647 = vmul.f32 %v2846, 0.0
    %v3648 = vadd.f32 %v3644, %v3390
    %v3649 = vadd.f32 %v3645, %v3391
    %v3650 = vadd.f32 %v3646, %v3392
    %v3651 = vadd.f32 %v3647, %v3393
    %v3652 = vmul.f32 %v1445, %v3640
    %v3653 = vmul.f32 %v1447, %v3641
    %v3654 = vmul.f32 %v1449, %v3642
    %v3655 = vmul.f32 %v1451, %v3643
    %v3656 = vadd.f32 %v3652, %v1988
    %v3657 = vadd.f32 %v3653, %v1989
    %v3658 = vadd.f32 %v3654, %v1990
    %v3659 = vadd.f32 %v3655, %v1991
    %v3660 = vmul.f32 %v2832, %v3648
    %v3661 = vmul.f32 %v2834, %v3649
    %v3662 = vmul.f32 %v2836, %v3650
    %v3663 = vmul.f32 %v2838, %v3651
    %v3664 = vadd.f32 %v3660, %v3386
    %v3665 = vadd.f32 %v3661, %v3387
    %v3666 = vadd.f32 %v3662, %v3388
    %v3667 = vadd.f32 %v3663, %v3389
    %v3668 = vmul.f32 %v1453, %v3656
    %v3669 = vmul.f32 %v1455, %v3657
    %v3670 = vmul.f32 %v1457, %v3658
    %v3671 = vmul.f32 %v1459, %v3659
    %v3672 = vadd.f32 %v3668, %v1992
    %v3673 = vadd.f32 %v3669, %v1993
    %v3674 = vadd.f32 %v3670, %v1994
    %v3675 = vadd.f32 %v3671, %v1995
    %v3676 = vmul.f32 %v2824, %v3664
    %v3677 = vmul.f32 %v2826, %v3665
    %v3678 = vmul.f32 %v2828, %v3666
    %v3679 = vmul.f32 %v2830, %v3667
    %v3680 = vadd.f32 %v3676, %v3382
    %v3681 = vadd.f32 %v3677, %v3383
    %v3682 = vadd.f32 %v3678, %v3384
    %v3683 = vadd.f32 %v3679, %v3385
    %v3684 = vmul.f32 %v1461, %v3672
    %v3685 = vmul.f32 %v1463, %v3673
    %v3686 = vmul.f32 %v1465, %v3674
    %v3687 = vmul.f32 %v1467, %v3675
    %v3688 = vadd.f32 %v3684, %v1996
    %v3689 = vadd.f32 %v3685, %v1997
    %v3690 = vadd.f32 %v3686, %v1998
    %v3691 = vadd.f32 %v3687, %v1999
    %v3692 = vmul.f32 %v2816, %v3680
    %v3693 = vmul.f32 %v2818, %v3681
    %v3694 = vmul.f32 %v2820, %v3682
    %v3695 = vmul.f32 %v2822, %v3683
    %v3696 = vadd.f32 %v3692, %v3378
    %v3697 = vadd.f32 %v3693, %v3379
    %v3698 = vadd.f32 %v3694, %v3380
    %v3699 = vadd.f32 %v3695, %v3381
    %v3700 = vmul.f32 %v1469, %v3688
    %v3701 = vmul.f32 %v1471, %v3689
    %v3702 = vmul.f32 %v1473, %v3690
    %v3703 = vmul.f32 %v1475, %v3691
    %v3704 = vadd.f32 %v3700, %v2000
    %v3705 = vadd.f32 %v3701, %v2001
    %v3706 = vadd.f32 %v3702, %v2002
    %v3707 = vadd.f32 %v3703, %v2003
    %v3708 = vmul.f32 %v2808, %v3696
    %v3709 = vmul.f32 %v2810, %v3697
    %v3710 = vmul.f32 %v2812, %v3698
    %v3711 = vmul.f32 %v2814, %v3699
    %v3712 = vadd.f32 %v3708, %v3374
    %v3713 = vadd.f32 %v3709, %v3375
    %v3714 = vadd.f32 %v3710, %v3376
    %v3715 = vadd.f32 %v3711, %v3377
    %v3716 = vmul.f32 %v1477, %v3704
    %v3717 = vmul.f32 %v1479, %v3705
    %v3718 = vmul.f32 %v1481, %v3706
    %v3719 = vmul.f32 %v1483, %v3707
    %v3720 = vadd.f32 %v3716, %v2004
    %v3721 = vadd.f32 %v3717, %v2005
    %v3722 = vadd.f32 %v3718, %v2006
    %v3723 = vadd.f32 %v3719, %v2007
    %v3724 = vmul.f32 %v2800, %v3712
    %v3725 = vmul.f32 %v2802, %v3713
    %v3726 = vmul.f32 %v2804, %v3714
    %v3727 = vmul.f32 %v2806, %v3715
    %v3728 = vadd.f32 %v3724, %v3370
    %v3729 = vadd.f32 %v3725, %v3371
    %v3730 = vadd.f32 %v3726, %v3372
    %v3731 = vadd.f32 %v3727, %v3373
    %v3732 = vmul.f32 %v1485, %v3720
    %v3733 = vmul.f32 %v1487, %v3721
    %v3734 = vmul.f32 %v1489, %v3722
    %v3735 = vmul.f32 %v1491, %v3723
    %v3736 = vadd.f32 %v3732, %v2008
    %v3737 = vadd.f32 %v3733, %v2009
    %v3738 = vadd.f32 %v3734, %v2010
    %v3739 = vadd.f32 %v3735, %v2011
    %v3740 = vmul.f32 %v2792, %v3728
    %v3741 = vmul.f32 %v2794, %v3729
    %v3742 = vmul.f32 %v2796, %v3730
    %v3743 = vmul.f32 %v2798, %v3731
    %v3744 = vadd.f32 %v3740, %v3366
    %v3745 = vadd.f32 %v3741, %v3367
    %v3746 = vadd.f32 %v3742, %v3368
    %v3747 = vadd.f32 %v3743, %v3369
    %v3748 = vmul.f32 %v3640, %v2107
    %v3749 = vmul.f32 %v3641, %v2109
    %v3750 = vmul.f32 %v3642, %v2214
    %v3751 = vmul.f32 %v3643, %v2216
    %v3752 = vmul.f32 %v3656, %v2113
    %v3753 = vmul.f32 %v3657, %v2115
    %v3754 = vmul.f32 %v3658, %v2220
    %v3755 = vmul.f32 %v3659, %v2222
    %v3756 = vmul.f32 %v3672, %v2119
    %v3757 = vmul.f32 %v3673, %v2121
    %v3758 = vmul.f32 %v3674, %v2226
    %v3759 = vmul.f32 %v3675, %v2228
    %v3760 = vmul.f32 %v3688, %v2125
    %v3761 = vmul.f32 %v3689, %v2127
    %v3762 = vmul.f32 %v3690, %v2232
    %v3763 = vmul.f32 %v3691, %v2234
    %v3764 = vmul.f32 %v3704, %v2131
    %v3765 = vmul.f32 %v3705, %v2133
    %v3766 = vmul.f32 %v3706, %v2238
    %v3767 = vmul.f32 %v3707, %v2240
    %v3768 = vmul.f32 %v3720, %v2137
    %v3769 = vmul.f32 %v3721, %v2139
    %v3770 = vmul.f32 %v3722, %v2244
    %v3771 = vmul.f32 %v3723, %v2246
    %v3772 = vmul.f32 %v3736, %v2143
    %v3773 = vmul.f32 %v3737, %v2145
    %v3774 = vmul.f32 %v3738, %v2250
    %v3775 = vmul.f32 %v3739, %v2252
    %v3776 = vmul.f32 %v3744, %v3489
    %v3777 = vmul.f32 %v3745, %v3491
    %v3778 = vmul.f32 %v3746, %v3596
    %v3779 = vmul.f32 %v3747, %v3598
    %v3780 = vmul.f32 %v3728, %v3495
    %v3781 = vmul.f32 %v3729, %v3497
    %v3782 = vmul.f32 %v3730, %v3602
    %v3783 = vmul.f32 %v3731, %v3604
    %v3784 = vmul.f32 %v3712, %v3501
    %v3785 = vmul.f32 %v3713, %v3503
    %v3786 = vmul.f32 %v3714, %v3608
    %v3787 = vmul.f32 %v3715, %v3610
    %v3788 = vmul.f32 %v3696, %v3507
    %v3789 = vmul.f32 %v3697, %v3509
    %v3790 = vmul.f32 %v3698, %v3614
    %v3791 = vmul.f32 %v3699, %v3616
    %v3792 = vmul.f32 %v3680, %v3513
    %v3793 = vmul.f32 %v3681, %v3515
    %v3794 = vmul.f32 %v3682, %v3620
    %v3795 = vmul.f32 %v3683, %v3622
    %v3796 = vmul.f32 %v3664, %v3519
    %v3797 = vmul.f32 %v3665, %v3521
    %v3798 = vmul.f32 %v3666, %v3626
    %v3799 = vmul.f32 %v3667, %v3628
    %v3800 = vmul.f32 %v3648, %v3525
    %v3801 = vmul.f32 %v3649, %v3527
    %v3802 = vmul.f32 %v3650, %v3632
    %v3803 = vmul.f32 %v3651, %v3634
    %v3804 = vld [vmem:[#allocation22] sm:$0x1]
    %v3806 = vlaneseq
    %v3807 = vshrl.u32 %v3806, 7
    %v3808 = vsub.s32 0, %v3807
    %v3809 = vrot.slane %v3804, %v3808
    %v3811 = vmul.f32 %v1012, %v3809
    %v3812 = vmul.f32 %v1013, %v3809
    %v3813 = vmul.f32 %v1014, %v3809
    %v3814 = vmul.f32 %v1015, %v3809
    %v3815 = vmul.f32 %v1016, %v3809
    %v3816 = vmul.f32 %v1017, %v3809
    %v3817 = vmul.f32 %v1018, %v3809
    %3818 = vmatprep.subr.mxu0 0.0
    %3819 = vmatpush1.msra.mxu0 %v765
    %3820 = vmatprep.subr.mxu0 0.0
    %3821 = vmatpush1.msra.mxu0 %v766
    %3822 = vmatprep.subr.mxu0 0.0
    %3823 = vmatpush1.msra.mxu0 %v767
    %3824 = vmatprep.subr.mxu0 0.0
    %3825 = vmatpush1.msra.mxu0 %v768
    %3826 = vmatprep.subr.mxu0 0.0
    %3827 = vmatpush1.msra.mxu0 %v769
    %3828 = vmatprep.subr.mxu0 0.0
    %3829 = vmatpush1.msra.mxu0 %v770
    %3830 = vmatprep.subr.mxu0 0.0
    %3831 = vmatpush1.msra.mxu0 %v771
    %3832 = vmatprep.subr.mxu0 0.0
    %3833 = vmatpush1.msra.mxu0 %v772
    %3834 = vmatprep.subr.mxu0 0.0
    %3835 = vmatpush1.msra.mxu0 %v773
    %3836 = vmatprep.subr.mxu0 0.0
    %3837 = vmatpush1.msra.mxu0 %v774
    %3838 = vmatprep.subr.mxu0 0.0
    %3839 = vmatpush1.msra.mxu0 %v775
    %3840 = vmatprep.subr.mxu0 0.0
    %3841 = vmatpush1.msra.mxu0 %v776
    %3842 = vmatprep.subr.mxu0 0.0
    %3843 = vmatpush1.msra.mxu0 %v777
    %3844 = vmatprep.subr.mxu0 0.0
    %3845 = vmatpush1.msra.mxu0 %v778
    %3846 = vmatprep.subr.mxu0 0.0
    %3847 = vmatpush1.msra.mxu0 %v779
    %3848 = vmatprep.subr.mxu0 0.0
    %3849 = vmatpush1.msra.mxu0 %v780
    %3850 = vmatprep.subr.mxu0 0.0
    %3851 = vmatpush1.msra.mxu0 %v781
    %3852 = vmatprep.subr.mxu0 0.0
    %3853 = vmatpush1.msra.mxu0 %v782
    %3854 = vmatprep.subr.mxu0 0.0
    %3855 = vmatpush1.msra.mxu0 %v783
    %3856 = vmatprep.subr.mxu0 0.0
    %3857 = vmatpush1.msra.mxu0 %v784
    %3858 = vmatprep.subr.mxu0 0.0
    %3859 = vmatpush1.msra.mxu0 %v785
    %3860 = vmatprep.subr.mxu0 0.0
    %3861 = vmatpush1.msra.mxu0 %v786
    %3862 = vmatprep.subr.mxu0 0.0
    %3863 = vmatpush1.msra.mxu0 %v787
    %3864 = vmatprep.subr.mxu0 0.0
    %3865 = vmatpush1.msra.mxu0 %v788
    %3866 = vmatprep.subr.mxu0 0.0
    %3867 = vmatpush1.msra.mxu0 %v789
    %3868 = vmatprep.subr.mxu0 0.0
    %3869 = vmatpush1.msra.mxu0 %v790
    %3870 = vmatprep.subr.mxu0 0.0
    %3871 = vmatpush1.msra.mxu0 %v791
    %3872 = vmatprep.subr.mxu0 0.0
    %3873 = vmatpush1.msra.mxu0 %v792
    %3874 = vmatprep.subr.mxu0 0.0
    %3875 = vmatpush1.msra.mxu0 %v793
    %3876 = vmatprep.subr.mxu0 0.0
    %3877 = vmatpush1.msra.mxu0 %v794
    %3878 = vmatprep.subr.mxu0 0.0
    %3879 = vmatpush1.msra.mxu0 %v795
    %3880 = vmatprep.subr.mxu0 0.0
    %3881 = vmatpush1.msra.mxu0 %v796
    %3882 = vmatprep.mubr.f32.mxu0 %v3749
    %3883 = vmatmul.mubr.f32.gmra.mrb[0].mxu0 %v3748
    %v3884 = vpop.f32.mrb[0].mxu0
    %v3885 = vadd.f32 %v3811, %v3884
    %v3886 = vpop.f32.mrb[0].mxu0
    %3887 = vmatprep.mubr.f32.mxu0 %v3753
    %3888 = vmatmul.mubr.f32.gmra.mrb[0].mxu0 %v3752
    %v3889 = vpop.f32.mrb[0].mxu0
    %v3890 = vadd.f32 %v3812, %v3889
    %v3891 = vpop.f32.mrb[0].mxu0
    %3892 = vmatprep.mubr.f32.mxu0 %v3757
    %3893 = vmatmul.mubr.f32.gmra.mrb[0].mxu0 %v3756
    %v3894 = vpop.f32.mrb[0].mxu0
    %v3895 = vadd.f32 %v3813, %v3894
    %v3896 = vpop.f32.mrb[0].mxu0
    %3897 = vmatprep.mubr.f32.mxu0 %v3761
    %3898 = vmatmul.mubr.f32.gmra.mrb[0].mxu0 %v3760
    %v3899 = vpop.f32.mrb[0].mxu0
    %v3900 = vadd.f32 %v3814, %v3899
    %v3901 = vpop.f32.mrb[0].mxu0
    %3902 = vmatprep.mubr.f32.mxu0 %v3765
    %3903 = vmatmul.mubr.f32.gmra.mrb[0].mxu0 %v3764
    %v3904 = vpop.f32.mrb[0].mxu0
    %v3905 = vadd.f32 %v3815, %v3904
    %v3906 = vpop.f32.mrb[0].mxu0
    %3907 = vmatprep.mubr.f32.mxu0 %v3769
    %3908 = vmatmul.mubr.f32.gmra.mrb[0].mxu0 %v3768
    %v3909 = vpop.f32.mrb[0].mxu0
    %v3910 = vadd.f32 %v3816, %v3909
    %v3911 = vpop.f32.mrb[0].mxu0
    %3912 = vmatprep.mubr.f32.mxu0 %v3773
    %3913 = vmatmul.mubr.f32.gmra.mrb[0].mxu0 %v3772
    %v3914 = vpop.f32.mrb[0].mxu0
    %v3915 = vadd.f32 %v3817, %v3914
    %v3916 = vpop.f32.mrb[0].mxu0
    %3917 = vdwg.mxu0
    %3918 = vmatprep.subr.mxu0 0.0
    %3919 = vmatpush1.msra.mxu0 %v797
    %3920 = vmatprep.subr.mxu0 0.0
    %3921 = vmatpush1.msra.mxu0 %v798
    %3922 = vmatprep.subr.mxu0 0.0
    %3923 = vmatpush1.msra.mxu0 %v799
    %3924 = vmatprep.subr.mxu0 0.0
    %3925 = vmatpush1.msra.mxu0 %v800
    %3926 = vmatprep.subr.mxu0 0.0
    %3927 = vmatpush1.msra.mxu0 %v801
    %3928 = vmatprep.subr.mxu0 0.0
    %3929 = vmatpush1.msra.mxu0 %v802
    %3930 = vmatprep.subr.mxu0 0.0
    %3931 = vmatpush1.msra.mxu0 %v803
    %3932 = vmatprep.subr.mxu0 0.0
    %3933 = vmatpush1.msra.mxu0 %v804
    %3934 = vmatprep.subr.mxu0 0.0
    %3935 = vmatpush1.msra.mxu0 %v805
    %3936 = vmatprep.subr.mxu0 0.0
    %3937 = vmatpush1.msra.mxu0 %v806
    %3938 = vmatprep.subr.mxu0 0.0
    %3939 = vmatpush1.msra.mxu0 %v807
    %3940 = vmatprep.subr.mxu0 0.0
    %3941 = vmatpush1.msra.mxu0 %v808
    %3942 = vmatprep.subr.mxu0 0.0
    %3943 = vmatpush1.msra.mxu0 %v809
    %3944 = vmatprep.subr.mxu0 0.0
    %3945 = vmatpush1.msra.mxu0 %v810
    %3946 = vmatprep.subr.mxu0 0.0
    %3947 = vmatpush1.msra.mxu0 %v811
    %3948 = vmatprep.subr.mxu0 0.0
    %3949 = vmatpush1.msra.mxu0 %v812
    %3950 = vmatprep.subr.mxu0 0.0
    %3951 = vmatpush1.msra.mxu0 %v813
    %3952 = vmatprep.subr.mxu0 0.0
    %3953 = vmatpush1.msra.mxu0 %v814
    %3954 = vmatprep.subr.mxu0 0.0
    %3955 = vmatpush1.msra.mxu0 %v815
    %3956 = vmatprep.subr.mxu0 0.0
    %3957 = vmatpush1.msra.mxu0 %v816
    %3958 = vmatprep.subr.mxu0 0.0
    %3959 = vmatpush1.msra.mxu0 %v817
    %3960 = vmatprep.subr.mxu0 0.0
    %3961 = vmatpush1.msra.mxu0 %v818
    %3962 = vmatprep.subr.mxu0 0.0
    %3963 = vmatpush1.msra.mxu0 %v819
    %3964 = vmatprep.subr.mxu0 0.0
    %3965 = vmatpush1.msra.mxu0 %v820
    %3966 = vmatprep.subr.mxu0 0.0
    %3967 = vmatpush1.msra.mxu0 %v821
    %3968 = vmatprep.subr.mxu0 0.0
    %3969 = vmatpush1.msra.mxu0 %v822
    %3970 = vmatprep.subr.mxu0 0.0
    %3971 = vmatpush1.msra.mxu0 %v823
    %3972 = vmatprep.subr.mxu0 0.0
    %3973 = vmatpush1.msra.mxu0 %v824
    %3974 = vmatprep.subr.mxu0 0.0
    %3975 = vmatpush1.msra.mxu0 %v825
    %3976 = vmatprep.subr.mxu0 0.0
    %3977 = vmatpush1.msra.mxu0 %v826
    %3978 = vmatprep.subr.mxu0 0.0
    %3979 = vmatpush1.msra.mxu0 %v827
    %3980 = vmatprep.subr.mxu0 0.0
    %3981 = vmatpush1.msra.mxu0 %v828
    %3982 = vmatprep.mubr.f32.mxu0 %v3751
    %3983 = vmatmul.mubr.f32.gmra.mrb[0].mxu0 %v3750
    %v3984 = vpop.f32.mrb[0].mxu0
    %v3985 = vadd.f32 %v3885, %v3984
    %v3986 = vpop.f32.mrb[0].mxu0
    %3987 = vmatprep.mubr.f32.mxu0 %v3755
    %3988 = vmatmul.mubr.f32.gmra.mrb[0].mxu0 %v3754
    %v3989 = vpop.f32.mrb[0].mxu0
    %v3990 = vadd.f32 %v3890, %v3989
    %v3991 = vpop.f32.mrb[0].mxu0
    %3992 = vmatprep.mubr.f32.mxu0 %v3759
    %3993 = vmatmul.mubr.f32.gmra.mrb[0].mxu0 %v3758
    %v3994 = vpop.f32.mrb[0].mxu0
    %v3995 = vadd.f32 %v3895, %v3994
    %v3996 = vpop.f32.mrb[0].mxu0
    %3997 = vmatprep.mubr.f32.mxu0 %v3763
    %3998 = vmatmul.mubr.f32.gmra.mrb[0].mxu0 %v3762
    %v3999 = vpop.f32.mrb[0].mxu0
    %v4000 = vadd.f32 %v3900, %v3999
    %v4001 = vpop.f32.mrb[0].mxu0
    %4002 = vmatprep.mubr.f32.mxu0 %v3767
    %4003 = vmatmul.mubr.f32.gmra.mrb[0].mxu0 %v3766
    %v4004 = vpop.f32.mrb[0].mxu0
    %v4005 = vadd.f32 %v3905, %v4004
    %v4006 = vpop.f32.mrb[0].mxu0
    %4007 = vmatprep.mubr.f32.mxu0 %v3771
    %4008 = vmatmul.mubr.f32.gmra.mrb[0].mxu0 %v3770
    %v4009 = vpop.f32.mrb[0].mxu0
    %v4010 = vadd.f32 %v3910, %v4009
    %v4011 = vpop.f32.mrb[0].mxu0
    %4012 = vmatprep.mubr.f32.mxu0 %v3775
    %4013 = vmatmul.mubr.f32.gmra.mrb[0].mxu0 %v3774
    %v4014 = vpop.f32.mrb[0].mxu0
    %v4015 = vadd.f32 %v3915, %v4014
    %v4016 = vpop.f32.mrb[0].mxu0
    %4017 = vdwg.mxu0
    %v4018 = vxor.u32 %v897, 2147483648
    %v4019 = vxor.u32 %v900, 2147483648
    %v4020 = vxor.u32 %v905, 2147483648
    %v4021 = vxor.u32 %v908, 2147483648
    %v4022 = vxor.u32 %v913, 2147483648
    %v4023 = vxor.u32 %v916, 2147483648
    %v4024 = vxor.u32 %v921, 2147483648
    %v4025 = vmul.f32 %v4018, 1.442695
    %v4026 = vpow.pop %v4025
    %v4027 = vmul.f32 %v4019, 1.442695
    %v4028 = vpow.pop %v4027
    %v4029 = vmul.f32 %v4020, 1.442695
    %v4030 = vpow.pop %v4029
    %v4031 = vmul.f32 %v4021, 1.442695
    %v4032 = vpow.pop %v4031
    %v4033 = vmul.f32 %v4022, 1.442695
    %v4034 = vpow.pop %v4033
    %v4035 = vmul.f32 %v4023, 1.442695
    %v4036 = vpow.pop %v4035
    %v4037 = vmul.f32 %v4024, 1.442695
    %v4038 = vpow.pop %v4037
    %v4039 = vadd.f32 %v4026, 1.0
    %v4040 = vadd.f32 %v4028, 1.0
    %v4041 = vadd.f32 %v4030, 1.0
    %v4042 = vadd.f32 %v4032, 1.0
    %v4043 = vadd.f32 %v4034, 1.0
    %v4044 = vadd.f32 %v4036, 1.0
    %v4045 = vadd.f32 %v4038, 1.0
    %v4046 = vrcp.pop %v4039
    %v4047 = vmul.f32 1.0, %v4046
    %v4048 = vrcp.pop %v4040
    %v4049 = vmul.f32 1.0, %v4048
    %v4050 = vrcp.pop %v4041
    %v4051 = vmul.f32 1.0, %v4050
    %v4052 = vrcp.pop %v4042
    %v4053 = vmul.f32 1.0, %v4052
    %v4054 = vrcp.pop %v4043
    %v4055 = vmul.f32 1.0, %v4054
    %v4056 = vrcp.pop %v4044
    %v4057 = vmul.f32 1.0, %v4056
    %v4058 = vrcp.pop %v4045
    %v4059 = vmul.f32 1.0, %v4058
    %v4060 = vmul.f32 %v897, %v4047
    %v4061 = vmul.f32 %v900, %v4049
    %v4062 = vmul.f32 %v905, %v4051
    %v4063 = vmul.f32 %v908, %v4053
    %v4064 = vmul.f32 %v913, %v4055
    %v4065 = vmul.f32 %v916, %v4057
    %v4066 = vmul.f32 %v921, %v4059
    %4074 = vrot.lane.b32.xlu0 %v4060, 96
    %v4075 = vpop.permute.xlu0 %4074
    %4076 = vrot.lane.b32.xlu0 %v4061, 96
    %v4077 = vpop.permute.xlu0 %4076
    %4078 = vrot.lane.b32.xlu0 %v4062, 96
    %v4079 = vpop.permute.xlu0 %4078
    %4080 = vrot.lane.b32.xlu0 %v4063, 96
    %v4081 = vpop.permute.xlu0 %4080
    %4082 = vrot.lane.b32.xlu0 %v4064, 96
    %v4083 = vpop.permute.xlu0 %4082
    %4084 = vrot.lane.b32.xlu0 %v4065, 96
    %v4085 = vpop.permute.xlu0 %4084
    %4086 = vrot.lane.b32.xlu0 %v4066, 96
    %v4087 = vpop.permute.xlu0 %4086
    %v4095 = vmul.f32 %v3985, %v4075
    %v4096 = vmul.f32 %v3990, %v4077
    %v4097 = vmul.f32 %v3995, %v4079
    %v4098 = vmul.f32 %v4000, %v4081
    %v4099 = vmul.f32 %v4005, %v4083
    %v4100 = vmul.f32 %v4010, %v4085
    %v4101 = vmul.f32 %v4015, %v4087
    %s4102 = scalar_lea.vmem [#allocation22], 1
    %v4103 = vld [vmem:[%s4102] sm:$0x1]
    %v4105 = vlaneseq
    %v4106 = vshrl.u32 %v4105, 7
    %v4107 = vsub.s32 0, %v4106
    %v4108 = vrot.slane %v4103, %v4107
    %4109 = vrot.lane.b32.xlu0 %v4108, 64
    %v4110 = vpop.permute.xlu0 %4109
    %v4112 = vmul.f32 %v2352, %v4110
    %v4113 = vmul.f32 %v2353, %v4110
    %v4114 = vmul.f32 %v2354, %v4110
    %v4115 = vmul.f32 %v2355, %v4110
    %v4116 = vmul.f32 %v2356, %v4110
    %v4117 = vmul.f32 %v2357, %v4110
    %v4118 = vmul.f32 %v2358, %v4110
    %4126 = vrot.lane.b32.xlu0 %v4112, 64
    %v4127 = vpop.permute.xlu0 %4126
    %4128 = vrot.lane.b32.xlu0 %v4113, 64
    %v4129 = vpop.permute.xlu0 %4128
    %4130 = vrot.lane.b32.xlu0 %v4114, 64
    %v4131 = vpop.permute.xlu0 %4130
    %4132 = vrot.lane.b32.xlu0 %v4115, 64
    %v4133 = vpop.permute.xlu0 %4132
    %4134 = vrot.lane.b32.xlu0 %v4116, 64
    %v4135 = vpop.permute.xlu0 %4134
    %4136 = vrot.lane.b32.xlu0 %v4117, 64
    %v4137 = vpop.permute.xlu0 %4136
    %4138 = vrot.lane.b32.xlu0 %v4118, 64
    %v4139 = vpop.permute.xlu0 %4138
    %4147 = vmatprep.subr.mxu0 0.0
    %4148 = vmatpush1.msra.mxu0 %v765
    %4149 = vmatprep.subr.mxu0 0.0
    %4150 = vmatpush1.msra.mxu0 %v766
    %4151 = vmatprep.subr.mxu0 0.0
    %4152 = vmatpush1.msra.mxu0 %v767
    %4153 = vmatprep.subr.mxu0 0.0
    %4154 = vmatpush1.msra.mxu0 %v768
    %4155 = vmatprep.subr.mxu0 0.0
    %4156 = vmatpush1.msra.mxu0 %v769
    %4157 = vmatprep.subr.mxu0 0.0
    %4158 = vmatpush1.msra.mxu0 %v770
    %4159 = vmatprep.subr.mxu0 0.0
    %4160 = vmatpush1.msra.mxu0 %v771
    %4161 = vmatprep.subr.mxu0 0.0
    %4162 = vmatpush1.msra.mxu0 %v772
    %4163 = vmatprep.subr.mxu0 0.0
    %4164 = vmatpush1.msra.mxu0 %v773
    %4165 = vmatprep.subr.mxu0 0.0
    %4166 = vmatpush1.msra.mxu0 %v774
    %4167 = vmatprep.subr.mxu0 0.0
    %4168 = vmatpush1.msra.mxu0 %v775
    %4169 = vmatprep.subr.mxu0 0.0
    %4170 = vmatpush1.msra.mxu0 %v776
    %4171 = vmatprep.subr.mxu0 0.0
    %4172 = vmatpush1.msra.mxu0 %v777
    %4173 = vmatprep.subr.mxu0 0.0
    %4174 = vmatpush1.msra.mxu0 %v778
    %4175 = vmatprep.subr.mxu0 0.0
    %4176 = vmatpush1.msra.mxu0 %v779
    %4177 = vmatprep.subr.mxu0 0.0
    %4178 = vmatpush1.msra.mxu0 %v780
    %4179 = vmatprep.subr.mxu0 0.0
    %4180 = vmatpush1.msra.mxu0 %v781
    %4181 = vmatprep.subr.mxu0 0.0
    %4182 = vmatpush1.msra.mxu0 %v782
    %4183 = vmatprep.subr.mxu0 0.0
    %4184 = vmatpush1.msra.mxu0 %v783
    %4185 = vmatprep.subr.mxu0 0.0
    %4186 = vmatpush1.msra.mxu0 %v784
    %4187 = vmatprep.subr.mxu0 0.0
    %4188 = vmatpush1.msra.mxu0 %v785
    %4189 = vmatprep.subr.mxu0 0.0
    %4190 = vmatpush1.msra.mxu0 %v786
    %4191 = vmatprep.subr.mxu0 0.0
    %4192 = vmatpush1.msra.mxu0 %v787
    %4193 = vmatprep.subr.mxu0 0.0
    %4194 = vmatpush1.msra.mxu0 %v788
    %4195 = vmatprep.subr.mxu0 0.0
    %4196 = vmatpush1.msra.mxu0 %v789
    %4197 = vmatprep.subr.mxu0 0.0
    %4198 = vmatpush1.msra.mxu0 %v790
    %4199 = vmatprep.subr.mxu0 0.0
    %4200 = vmatpush1.msra.mxu0 %v791
    %4201 = vmatprep.subr.mxu0 0.0
    %4202 = vmatpush1.msra.mxu0 %v792
    %4203 = vmatprep.subr.mxu0 0.0
    %4204 = vmatpush1.msra.mxu0 %v793
    %4205 = vmatprep.subr.mxu0 0.0
    %4206 = vmatpush1.msra.mxu0 %v794
    %4207 = vmatprep.subr.mxu0 0.0
    %4208 = vmatpush1.msra.mxu0 %v795
    %4209 = vmatprep.subr.mxu0 0.0
    %4210 = vmatpush1.msra.mxu0 %v796
    %4211 = vmatprep.mubr.f32.mxu0 %v3777
    %4212 = vmatmul.mubr.f32.gmra.mrb[0].mxu0 %v3776
    %v4213 = vpop.f32.mrb[0].mxu0
    %v4214 = vadd.f32 %v4127, %v4213
    %v4215 = vpop.f32.mrb[0].mxu0
    %4216 = vmatprep.mubr.f32.mxu0 %v3781
    %4217 = vmatmul.mubr.f32.gmra.mrb[0].mxu0 %v3780
    %v4218 = vpop.f32.mrb[0].mxu0
    %v4219 = vadd.f32 %v4129, %v4218
    %v4220 = vpop.f32.mrb[0].mxu0
    %4221 = vmatprep.mubr.f32.mxu0 %v3785
    %4222 = vmatmul.mubr.f32.gmra.mrb[0].mxu0 %v3784
    %v4223 = vpop.f32.mrb[0].mxu0
    %v4224 = vadd.f32 %v4131, %v4223
    %v4225 = vpop.f32.mrb[0].mxu0
    %4226 = vmatprep.mubr.f32.mxu0 %v3789
    %4227 = vmatmul.mubr.f32.gmra.mrb[0].mxu0 %v3788
    %v4228 = vpop.f32.mrb[0].mxu0
    %v4229 = vadd.f32 %v4133, %v4228
    %v4230 = vpop.f32.mrb[0].mxu0
    %4231 = vmatprep.mubr.f32.mxu0 %v3793
    %4232 = vmatmul.mubr.f32.gmra.mrb[0].mxu0 %v3792
    %v4233 = vpop.f32.mrb[0].mxu0
    %v4234 = vadd.f32 %v4135, %v4233
    %v4235 = vpop.f32.mrb[0].mxu0
    %4236 = vmatprep.mubr.f32.mxu0 %v3797
    %4237 = vmatmul.mubr.f32.gmra.mrb[0].mxu0 %v3796
    %v4238 = vpop.f32.mrb[0].mxu0
    %v4239 = vadd.f32 %v4137, %v4238
    %v4240 = vpop.f32.mrb[0].mxu0
    %4241 = vmatprep.mubr.f32.mxu0 %v3801
    %4242 = vmatmul.mubr.f32.gmra.mrb[0].mxu0 %v3800
    %v4243 = vpop.f32.mrb[0].mxu0
    %v4244 = vadd.f32 %v4139, %v4243
    %v4245 = vpop.f32.mrb[0].mxu0
    %4246 = vdwg.mxu0
    %4247 = vmatprep.subr.mxu0 0.0
    %4248 = vmatpush1.msra.mxu0 %v797
    %4249 = vmatprep.subr.mxu0 0.0
    %4250 = vmatpush1.msra.mxu0 %v798
    %4251 = vmatprep.subr.mxu0 0.0
    %4252 = vmatpush1.msra.mxu0 %v799
    %4253 = vmatprep.subr.mxu0 0.0
    %4254 = vmatpush1.msra.mxu0 %v800
    %4255 = vmatprep.subr.mxu0 0.0
    %4256 = vmatpush1.msra.mxu0 %v801
    %4257 = vmatprep.subr.mxu0 0.0
    %4258 = vmatpush1.msra.mxu0 %v802
    %4259 = vmatprep.subr.mxu0 0.0
    %4260 = vmatpush1.msra.mxu0 %v803
    %4261 = vmatprep.subr.mxu0 0.0
    %4262 = vmatpush1.msra.mxu0 %v804
    %4263 = vmatprep.subr.mxu0 0.0
    %4264 = vmatpush1.msra.mxu0 %v805
    %4265 = vmatprep.subr.mxu0 0.0
    %4266 = vmatpush1.msra.mxu0 %v806
    %4267 = vmatprep.subr.mxu0 0.0
    %4268 = vmatpush1.msra.mxu0 %v807
    %4269 = vmatprep.subr.mxu0 0.0
    %4270 = vmatpush1.msra.mxu0 %v808
    %4271 = vmatprep.subr.mxu0 0.0
    %4272 = vmatpush1.msra.mxu0 %v809
    %4273 = vmatprep.subr.mxu0 0.0
    %4274 = vmatpush1.msra.mxu0 %v810
    %4275 = vmatprep.subr.mxu0 0.0
    %4276 = vmatpush1.msra.mxu0 %v811
    %4277 = vmatprep.subr.mxu0 0.0
    %4278 = vmatpush1.msra.mxu0 %v812
    %4279 = vmatprep.subr.mxu0 0.0
    %4280 = vmatpush1.msra.mxu0 %v813
    %4281 = vmatprep.subr.mxu0 0.0
    %4282 = vmatpush1.msra.mxu0 %v814
    %4283 = vmatprep.subr.mxu0 0.0
    %4284 = vmatpush1.msra.mxu0 %v815
    %4285 = vmatprep.subr.mxu0 0.0
    %4286 = vmatpush1.msra.mxu0 %v816
    %4287 = vmatprep.subr.mxu0 0.0
    %4288 = vmatpush1.msra.mxu0 %v817
    %4289 = vmatprep.subr.mxu0 0.0
    %4290 = vmatpush1.msra.mxu0 %v818
    %4291 = vmatprep.subr.mxu0 0.0
    %4292 = vmatpush1.msra.mxu0 %v819
    %4293 = vmatprep.subr.mxu0 0.0
    %4294 = vmatpush1.msra.mxu0 %v820
    %4295 = vmatprep.subr.mxu0 0.0
    %4296 = vmatpush1.msra.mxu0 %v821
    %4297 = vmatprep.subr.mxu0 0.0
    %4298 = vmatpush1.msra.mxu0 %v822
    %4299 = vmatprep.subr.mxu0 0.0
    %4300 = vmatpush1.msra.mxu0 %v823
    %4301 = vmatprep.subr.mxu0 0.0
    %4302 = vmatpush1.msra.mxu0 %v824
    %4303 = vmatprep.subr.mxu0 0.0
    %4304 = vmatpush1.msra.mxu0 %v825
    %4305 = vmatprep.subr.mxu0 0.0
    %4306 = vmatpush1.msra.mxu0 %v826
    %4307 = vmatprep.subr.mxu0 0.0
    %4308 = vmatpush1.msra.mxu0 %v827
    %4309 = vmatprep.subr.mxu0 0.0
    %4310 = vmatpush1.msra.mxu0 %v828
    %4311 = vmatprep.mubr.f32.mxu0 %v3779
    %4312 = vmatmul.mubr.f32.gmra.mrb[0].mxu0 %v3778
    %v4313 = vpop.f32.mrb[0].mxu0
    %v4314 = vadd.f32 %v4214, %v4313
    %v4315 = vpop.f32.mrb[0].mxu0
    %4316 = vmatprep.mubr.f32.mxu0 %v3783
    %4317 = vmatmul.mubr.f32.gmra.mrb[0].mxu0 %v3782
    %v4318 = vpop.f32.mrb[0].mxu0
    %v4319 = vadd.f32 %v4219, %v4318
    %v4320 = vpop.f32.mrb[0].mxu0
    %4321 = vmatprep.mubr.f32.mxu0 %v3787
    %4322 = vmatmul.mubr.f32.gmra.mrb[0].mxu0 %v3786
    %v4323 = vpop.f32.mrb[0].mxu0
    %v4324 = vadd.f32 %v4224, %v4323
    %v4325 = vpop.f32.mrb[0].mxu0
    %4326 = vmatprep.mubr.f32.mxu0 %v3791
    %4327 = vmatmul.mubr.f32.gmra.mrb[0].mxu0 %v3790
    %v4328 = vpop.f32.mrb[0].mxu0
    %v4329 = vadd.f32 %v4229, %v4328
    %v4330 = vpop.f32.mrb[0].mxu0
    %4331 = vmatprep.mubr.f32.mxu0 %v3795
    %4332 = vmatmul.mubr.f32.gmra.mrb[0].mxu0 %v3794
    %v4333 = vpop.f32.mrb[0].mxu0
    %v4334 = vadd.f32 %v4234, %v4333
    %v4335 = vpop.f32.mrb[0].mxu0
    %4336 = vmatprep.mubr.f32.mxu0 %v3799
    %4337 = vmatmul.mubr.f32.gmra.mrb[0].mxu0 %v3798
    %v4338 = vpop.f32.mrb[0].mxu0
    %v4339 = vadd.f32 %v4239, %v4338
    %v4340 = vpop.f32.mrb[0].mxu0
    %4341 = vmatprep.mubr.f32.mxu0 %v3803
    %4342 = vmatmul.mubr.f32.gmra.mrb[0].mxu0 %v3802
    %v4343 = vpop.f32.mrb[0].mxu0
    %v4344 = vadd.f32 %v4244, %v4343
    %v4345 = vpop.f32.mrb[0].mxu0
    %4346 = vdwg.mxu0
    %4347 = vrot.lane.b32.xlu0 %v4060, 32
    %v4348 = vpop.permute.xlu0 %4347
    %4349 = vrot.lane.b32.xlu0 %v4061, 32
    %v4350 = vpop.permute.xlu0 %4349
    %4351 = vrot.lane.b32.xlu0 %v4062, 32
    %v4352 = vpop.permute.xlu0 %4351
    %4353 = vrot.lane.b32.xlu0 %v4063, 32
    %v4354 = vpop.permute.xlu0 %4353
    %4355 = vrot.lane.b32.xlu0 %v4064, 32
    %v4356 = vpop.permute.xlu0 %4355
    %4357 = vrot.lane.b32.xlu0 %v4065, 32
    %v4358 = vpop.permute.xlu0 %4357
    %4359 = vrot.lane.b32.xlu0 %v4066, 32
    %v4360 = vpop.permute.xlu0 %4359
    %v4368 = vmul.f32 %v4314, %v4348
    %v4369 = vmul.f32 %v4319, %v4350
    %v4370 = vmul.f32 %v4324, %v4352
    %v4371 = vmul.f32 %v4329, %v4354
    %v4372 = vmul.f32 %v4334, %v4356
    %v4373 = vmul.f32 %v4339, %v4358
    %v4374 = vmul.f32 %v4344, %v4360
    %4382 = vrot.lane.b32.xlu0 %v4368, 32
    %v4383 = vpop.permute.xlu0 %4382
    %4384 = vrot.lane.b32.xlu0 %v4369, 32
    %v4385 = vpop.permute.xlu0 %4384
    %4386 = vrot.lane.b32.xlu0 %v4370, 32
    %v4387 = vpop.permute.xlu0 %4386
    %4388 = vrot.lane.b32.xlu0 %v4371, 32
    %v4389 = vpop.permute.xlu0 %4388
    %4390 = vrot.lane.b32.xlu0 %v4372, 32
    %v4391 = vpop.permute.xlu0 %4390
    %4392 = vrot.lane.b32.xlu0 %v4373, 32
    %v4393 = vpop.permute.xlu0 %4392
    %4394 = vrot.lane.b32.xlu0 %v4374, 32
    %v4395 = vpop.permute.xlu0 %4394
    %v4403 = vsel %vm849, %v4095, %v4383
    %v4404 = vsel %vm849, %v4096, %v4385
    %v4405 = vsel %vm849, %v4097, %v4387
    %v4406 = vsel %vm849, %v4098, %v4389
    %v4407 = vsel %vm849, %v4099, %v4391
    %v4408 = vsel %vm849, %v4100, %v4393
    %v4409 = vsel %vm849, %v4101, %v4395
    %v4410 = vld [vmem:[#allocation23] sm:$0xf]
    %v4411 = vld [vmem:[#allocation23 + $0x4] sm:$0xf]
    %v4412 = vld [vmem:[#allocation23 + $0x8] sm:$0xf]
    %v4413 = vld [vmem:[#allocation23 + $0xc] sm:$0xf]
    %v4414 = vld [vmem:[#allocation23 + $0x10] sm:$0xf]
    %v4415 = vld [vmem:[#allocation23 + $0x14] sm:$0xf]
    %v4416 = vld [vmem:[#allocation23 + $0x18] sm:$0xf]
    %v4417 = vld [vmem:[#allocation23 + $0x1c] sm:$0xf]
    %v4418 = vpack.c.bf16 %v4404, %v4403
    %v4419 = vpack.c.bf16 %v4406, %v4405
    %v4420 = vpack.c.bf16 %v4408, %v4407
    %v4421 = vpack.c.bf16 %v4409, %v4409
    %v4430 = vunpack.c.l.b16 %v4410
    %v4431 = vunpack.c.l.b16 %v4411
    %v4432 = vunpack.c.l.b16 %v4412
    %v4433 = vunpack.c.l.b16 %v4413
    %v4434 = vunpack.c.l.b16 %v4414
    %v4435 = vunpack.c.l.b16 %v4415
    %v4436 = vunpack.c.l.b16 %v4416
    %v4437 = vunpack.c.l.b16 %v4417
    %v4438 = vpack.c.b16 %v4431, %v4430
    %v4439 = vpack.c.b16 %v4433, %v4432
    %v4440 = vpack.c.b16 %v4435, %v4434
    %v4441 = vpack.c.b16 %v4437, %v4436
    %vm4446 = vcmask 523264
    %v4448 = vsel %vm4446, %v4418, 0
    %v4451 = vsel %vm4446, %v4419, 0
    %v4454 = vsel %vm4446, %v4420, 0
    %v4457 = vsel %vm4446, %v4421, 0
    %4459 = vmatprep.subr.bf16.mxu0 0
    %4460 = vmatpush1.bf16.msra.mxu0 %v4438
    %4461 = vmatprep.subr.bf16.mxu0 0
    %4462 = vmatpush1.bf16.msra.mxu0 %v4439
    %4463 = vmatprep.subr.bf16.mxu0 0
    %4464 = vmatpush1.bf16.msra.mxu0 %v4440
    %4465 = vmatprep.subr.bf16.mxu0 0
    %4466 = vmatpush1.bf16.msra.mxu0 %v4441
    %4467 = vmatprep.subr.bf16.mxu0 0
    %4468 = vmatpush1.bf16.msra.mxu0 0
    %4469 = vmatprep.subr.bf16.mxu0 0
    %4470 = vmatpush1.bf16.msra.mxu0 0
    %4471 = vmatprep.subr.bf16.mxu0 0
    %4472 = vmatpush1.bf16.msra.mxu0 0
    %4473 = vmatprep.subr.bf16.mxu0 0
    %4474 = vmatpush1.bf16.msra.mxu0 0
    %4475 = vmatprep.subr.bf16.mxu0 0
    %4476 = vmatpush1.bf16.msra.mxu0 0
    %4477 = vmatprep.subr.bf16.mxu0 0
    %4478 = vmatpush1.bf16.msra.mxu0 0
    %4479 = vmatprep.subr.bf16.mxu0 0
    %4480 = vmatpush1.bf16.msra.mxu0 0
    %4481 = vmatprep.subr.bf16.mxu0 0
    %4482 = vmatpush1.bf16.msra.mxu0 0
    %4483 = vmatprep.subr.bf16.mxu0 0
    %4484 = vmatpush1.bf16.msra.mxu0 0
    %4485 = vmatprep.subr.bf16.mxu0 0
    %4486 = vmatpush1.bf16.msra.mxu0 0
    %4487 = vmatprep.subr.bf16.mxu0 0
    %4488 = vmatpush1.bf16.msra.mxu0 0
    %4489 = vmatprep.subr.bf16.mxu0 0
    %4490 = vmatpush1.bf16.msra.mxu0 0
    %4491 = vmatprep.mubr.bf16.mxu0 0
    %4492 = vmatmul.mubr.bf16.gmra.mrb[0].mxu0 %v4448
    %v4493 = vpop.f32.mrb[0].mxu0
    %v4494 = vadd.f32 0.0, %v4493
    %v4495 = vpop.f32.mrb[0].mxu0
    %v4496 = vpop.f32.mrb[0].mxu0
    %v4497 = vadd.f32 0.0, %v4496
    %v4498 = vpop.f32.mrb[0].mxu0
    %4499 = vmatprep.mubr.bf16.mxu0 0
    %4500 = vmatmul.mubr.bf16.gmra.mrb[0].mxu0 %v4451
    %v4501 = vpop.f32.mrb[0].mxu0
    %v4502 = vadd.f32 0.0, %v4501
    %v4503 = vpop.f32.mrb[0].mxu0
    %v4504 = vpop.f32.mrb[0].mxu0
    %v4505 = vadd.f32 0.0, %v4504
    %v4506 = vpop.f32.mrb[0].mxu0
    %4507 = vmatprep.mubr.bf16.mxu0 0
    %4508 = vmatmul.mubr.bf16.gmra.mrb[0].mxu0 %v4454
    %v4509 = vpop.f32.mrb[0].mxu0
    %v4510 = vadd.f32 0.0, %v4509
    %v4511 = vpop.f32.mrb[0].mxu0
    %v4512 = vpop.f32.mrb[0].mxu0
    %v4513 = vadd.f32 0.0, %v4512
    %v4514 = vpop.f32.mrb[0].mxu0
    %4515 = vmatprep.mubr.bf16.mxu0 0
    %4516 = vmatmul.mubr.bf16.gmra.mrb[0].mxu0 %v4457
    %v4517 = vpop.f32.mrb[0].mxu0
    %v4518 = vadd.f32 0.0, %v4517
    %v4519 = vpop.f32.mrb[0].mxu0
    %v4520 = vpop.f32.mrb[0].mxu0
    %v4521 = vpop.f32.mrb[0].mxu0
    %4522 = vdwg.mxu0
    %v4523 = vadd.f32 %v708, %v4494
    %v4524 = vadd.f32 %v713, %v4497
    %v4525 = vadd.f32 %v718, %v4502
    %v4526 = vadd.f32 %v723, %v4505
    %v4527 = vadd.f32 %v728, %v4510
    %v4528 = vadd.f32 %v733, %v4513
    %v4529 = vadd.f32 %v738, %v4518
    %v4530 = vld [vmem:[#allocation31] sm:$0x1]
    %v4531 = vld [vmem:[#allocation32] sm:$0x1]
    %v4532 = vsel %vm849, %v4523, 0.0
    %4533 = vadd.xlane.f32.xlu0 %v4532
    %v4534 = vpop.xlane.xlu0 %4533
    %v4535 = vsel %vm849, %v4524, 0.0
    %4536 = vadd.xlane.f32.xlu0 %v4535
    %v4537 = vpop.xlane.xlu0 %4536
    %v4538 = vsel %vm849, %v4525, 0.0
    %4539 = vadd.xlane.f32.xlu0 %v4538
    %v4540 = vpop.xlane.xlu0 %4539
    %v4541 = vsel %vm849, %v4526, 0.0
    %4542 = vadd.xlane.f32.xlu0 %v4541
    %v4543 = vpop.xlane.xlu0 %4542
    %v4544 = vsel %vm849, %v4527, 0.0
    %4545 = vadd.xlane.f32.xlu0 %v4544
    %v4546 = vpop.xlane.xlu0 %4545
    %v4547 = vsel %vm849, %v4528, 0.0
    %4548 = vadd.xlane.f32.xlu0 %v4547
    %v4549 = vpop.xlane.xlu0 %4548
    %v4550 = vsel %vm849, %v4529, 0.0
    %4551 = vadd.xlane.f32.xlu0 %v4550
    %v4552 = vpop.xlane.xlu0 %4551
    %v4553 = vrcp.pop 32.0
    %v4554 = vmul.f32 %v4534, %v4553
    %v4555 = vmul.f32 %v4537, %v4553
    %v4556 = vmul.f32 %v4540, %v4553
    %v4557 = vmul.f32 %v4543, %v4553
    %v4558 = vmul.f32 %v4546, %v4553
    %v4559 = vmul.f32 %v4549, %v4553
    %v4560 = vmul.f32 %v4552, %v4553
    %v4561 = vsub.f32 %v4523, %v4554
    %v4562 = vsub.f32 %v4524, %v4555
    %v4563 = vsub.f32 %v4525, %v4556
    %v4564 = vsub.f32 %v4526, %v4557
    %v4565 = vsub.f32 %v4527, %v4558
    %v4566 = vsub.f32 %v4528, %v4559
    %v4567 = vsub.f32 %v4529, %v4560
    %v4568 = vmul.f32 %v4561, %v4561
    %v4569 = vmul.f32 %v4562, %v4562
    %v4570 = vmul.f32 %v4563, %v4563
    %v4571 = vmul.f32 %v4564, %v4564
    %v4572 = vmul.f32 %v4565, %v4565
    %v4573 = vmul.f32 %v4566, %v4566
    %v4574 = vmul.f32 %v4567, %v4567
    %v4575 = vsel %vm849, %v4568, 0.0
    %4576 = vadd.xlane.f32.xlu0 %v4575
    %v4577 = vpop.xlane.xlu0 %4576
    %v4578 = vsel %vm849, %v4569, 0.0
    %4579 = vadd.xlane.f32.xlu0 %v4578
    %v4580 = vpop.xlane.xlu0 %4579
    %v4581 = vsel %vm849, %v4570, 0.0
    %4582 = vadd.xlane.f32.xlu0 %v4581
    %v4583 = vpop.xlane.xlu0 %4582
    %v4584 = vsel %vm849, %v4571, 0.0
    %4585 = vadd.xlane.f32.xlu0 %v4584
    %v4586 = vpop.xlane.xlu0 %4585
    %v4587 = vsel %vm849, %v4572, 0.0
    %4588 = vadd.xlane.f32.xlu0 %v4587
    %v4589 = vpop.xlane.xlu0 %4588
    %v4590 = vsel %vm849, %v4573, 0.0
    %4591 = vadd.xlane.f32.xlu0 %v4590
    %v4592 = vpop.xlane.xlu0 %4591
    %v4593 = vsel %vm849, %v4574, 0.0
    %4594 = vadd.xlane.f32.xlu0 %v4593
    %v4595 = vpop.xlane.xlu0 %4594
    %v4596 = vmul.f32 %v4577, %v4553
    %v4597 = vmul.f32 %v4580, %v4553
    %v4598 = vmul.f32 %v4583, %v4553
    %v4599 = vmul.f32 %v4586, %v4553
    %v4600 = vmul.f32 %v4589, %v4553
    %v4601 = vmul.f32 %v4592, %v4553
    %v4602 = vmul.f32 %v4595, %v4553
    %v4603 = vadd.f32 %v4596, 1e-05
    %v4604 = vadd.f32 %v4597, 1e-05
    %v4605 = vadd.f32 %v4598, 1e-05
    %v4606 = vadd.f32 %v4599, 1e-05
    %v4607 = vadd.f32 %v4600, 1e-05
    %v4608 = vadd.f32 %v4601, 1e-05
    %v4609 = vadd.f32 %v4602, 1e-05
    %v4610 = vrsqrt.pop %v4603
    %v4611 = vmul.f32 %v4603, %v4610
    %vm4612 = vcmp.eq.f32.partialorder %v4603, inf
    %v4613 = vsel %vm4612, %v4603, %v4611
    %vm4614 = vcmp.eq.f32.partialorder %v4603, 0.0
    %v4615 = vand.u32 %v4603, 2147483648
    %v4616 = vsel %vm4614, %v4615, %v4613
    %v4617 = vrsqrt.pop %v4604
    %v4618 = vmul.f32 %v4604, %v4617
    %vm4619 = vcmp.eq.f32.partialorder %v4604, inf
    %v4620 = vsel %vm4619, %v4604, %v4618
    %vm4621 = vcmp.eq.f32.partialorder %v4604, 0.0
    %v4622 = vand.u32 %v4604, 2147483648
    %v4623 = vsel %vm4621, %v4622, %v4620
    %v4624 = vrsqrt.pop %v4605
    %v4625 = vmul.f32 %v4605, %v4624
    %vm4626 = vcmp.eq.f32.partialorder %v4605, inf
    %v4627 = vsel %vm4626, %v4605, %v4625
    %vm4628 = vcmp.eq.f32.partialorder %v4605, 0.0
    %v4629 = vand.u32 %v4605, 2147483648
    %v4630 = vsel %vm4628, %v4629, %v4627
    %v4631 = vrsqrt.pop %v4606
    %v4632 = vmul.f32 %v4606, %v4631
    %vm4633 = vcmp.eq.f32.partialorder %v4606, inf
    %v4634 = vsel %vm4633, %v4606, %v4632
    %vm4635 = vcmp.eq.f32.partialorder %v4606, 0.0
    %v4636 = vand.u32 %v4606, 2147483648
    %v4637 = vsel %vm4635, %v4636, %v4634
    %v4638 = vrsqrt.pop %v4607
    %v4639 = vmul.f32 %v4607, %v4638
    %vm4640 = vcmp.eq.f32.partialorder %v4607, inf
    %v4641 = vsel %vm4640, %v4607, %v4639
    %vm4642 = vcmp.eq.f32.partialorder %v4607, 0.0
    %v4643 = vand.u32 %v4607, 2147483648
    %v4644 = vsel %vm4642, %v4643, %v4641
    %v4645 = vrsqrt.pop %v4608
    %v4646 = vmul.f32 %v4608, %v4645
    %vm4647 = vcmp.eq.f32.partialorder %v4608, inf
    %v4648 = vsel %vm4647, %v4608, %v4646
    %vm4649 = vcmp.eq.f32.partialorder %v4608, 0.0
    %v4650 = vand.u32 %v4608, 2147483648
    %v4651 = vsel %vm4649, %v4650, %v4648
    %v4652 = vrsqrt.pop %v4609
    %v4653 = vmul.f32 %v4609, %v4652
    %vm4654 = vcmp.eq.f32.partialorder %v4609, inf
    %v4655 = vsel %vm4654, %v4609, %v4653
    %vm4656 = vcmp.eq.f32.partialorder %v4609, 0.0
    %v4657 = vand.u32 %v4609, 2147483648
    %v4658 = vsel %vm4656, %v4657, %v4655
    %v4659 = vrcp.pop %v4616
    %v4660 = vmul.f32 %v4561, %v4659
    %v4661 = vrcp.pop %v4623
    %v4662 = vmul.f32 %v4562, %v4661
    %v4663 = vrcp.pop %v4630
    %v4664 = vmul.f32 %v4563, %v4663
    %v4665 = vrcp.pop %v4637
    %v4666 = vmul.f32 %v4564, %v4665
    %v4667 = vrcp.pop %v4644
    %v4668 = vmul.f32 %v4565, %v4667
    %v4669 = vrcp.pop %v4651
    %v4670 = vmul.f32 %v4566, %v4669
    %v4671 = vrcp.pop %v4658
    %v4672 = vmul.f32 %v4567, %v4671
    %v4674 = vlaneseq
    %v4675 = vshrl.u32 %v4674, 7
    %v4676 = vsub.s32 0, %v4675
    %v4677 = vrot.slane %v4530, %v4676
    %v4679 = vmul.f32 %v4660, %v4677
    %v4680 = vmul.f32 %v4662, %v4677
    %v4681 = vmul.f32 %v4664, %v4677
    %v4682 = vmul.f32 %v4666, %v4677
    %v4683 = vmul.f32 %v4668, %v4677
    %v4684 = vmul.f32 %v4670, %v4677
    %v4685 = vmul.f32 %v4672, %v4677
    %v4687 = vlaneseq
    %v4688 = vshrl.u32 %v4687, 7
    %v4689 = vsub.s32 0, %v4688
    %v4690 = vrot.slane %v4531, %v4689
    %v4692 = vadd.f32 %v4679, %v4690
    %v4693 = vadd.f32 %v4680, %v4690
    %v4694 = vadd.f32 %v4681, %v4690
    %v4695 = vadd.f32 %v4682, %v4690
    %v4696 = vadd.f32 %v4683, %v4690
    %v4697 = vadd.f32 %v4684, %v4690
    %v4698 = vadd.f32 %v4685, %v4690
    %v4699 = vld [vmem:[#allocation25] sm:$0xf]
    %v4700 = vld [vmem:[#allocation25 + $0x4] sm:$0xf]
    %v4701 = vld [vmem:[#allocation25 + $0x8] sm:$0xf]
    %v4702 = vld [vmem:[#allocation25 + $0xc] sm:$0xf]
    %v4703 = vpack.c.bf16 %v4693, %v4692
    %v4704 = vpack.c.bf16 %v4695, %v4694
    %v4705 = vpack.c.bf16 %v4697, %v4696
    %v4706 = vpack.c.bf16 %v4698, %v4698
    %v4707 = vld [vmem:[#allocation26] sm:$0x1]
    %v4709 = vlaneseq
    %v4710 = vshrl.u32 %v4709, 7
    %v4711 = vsub.s32 0, %v4710
    %v4712 = vrot.slane %v4707, %v4711
    %v4718 = vunpack.c.l.b16 %v4699
    %v4719 = vunpack.c.l.b16 %v4700
    %v4720 = vunpack.c.l.b16 %v4701
    %v4721 = vunpack.c.l.b16 %v4702
    %v4722 = vpack.c.b16 %v4719, %v4718
    %v4723 = vpack.c.b16 %v4721, %v4720
    %v4727 = vsel %vm849, %v4703, 0
    %v4730 = vsel %vm849, %v4704, 0
    %v4733 = vsel %vm849, %v4705, 0
    %v4736 = vsel %vm849, %v4706, 0
    %4738 = vmatprep.subr.bf16.mxu0 0
    %4739 = vmatpush1.bf16.msra.mxu0 %v4722
    %4740 = vmatprep.subr.bf16.mxu0 0
    %4741 = vmatpush1.bf16.msra.mxu0 %v4723
    %4742 = vmatprep.subr.bf16.mxu0 0
    %4743 = vmatpush1.bf16.msra.mxu0 0
    %4744 = vmatprep.subr.bf16.mxu0 0
    %4745 = vmatpush1.bf16.msra.mxu0 0
    %4746 = vmatprep.subr.bf16.mxu0 0
    %4747 = vmatpush1.bf16.msra.mxu0 0
    %4748 = vmatprep.subr.bf16.mxu0 0
    %4749 = vmatpush1.bf16.msra.mxu0 0
    %4750 = vmatprep.subr.bf16.mxu0 0
    %4751 = vmatpush1.bf16.msra.mxu0 0
    %4752 = vmatprep.subr.bf16.mxu0 0
    %4753 = vmatpush1.bf16.msra.mxu0 0
    %4754 = vmatprep.subr.bf16.mxu0 0
    %4755 = vmatpush1.bf16.msra.mxu0 0
    %4756 = vmatprep.subr.bf16.mxu0 0
    %4757 = vmatpush1.bf16.msra.mxu0 0
    %4758 = vmatprep.subr.bf16.mxu0 0
    %4759 = vmatpush1.bf16.msra.mxu0 0
    %4760 = vmatprep.subr.bf16.mxu0 0
    %4761 = vmatpush1.bf16.msra.mxu0 0
    %4762 = vmatprep.subr.bf16.mxu0 0
    %4763 = vmatpush1.bf16.msra.mxu0 0
    %4764 = vmatprep.subr.bf16.mxu0 0
    %4765 = vmatpush1.bf16.msra.mxu0 0
    %4766 = vmatprep.subr.bf16.mxu0 0
    %4767 = vmatpush1.bf16.msra.mxu0 0
    %4768 = vmatprep.subr.bf16.mxu0 0
    %4769 = vmatpush1.bf16.msra.mxu0 0
    %4770 = vmatprep.mubr.bf16.mxu0 0
    %4771 = vmatmul.mubr.bf16.gmra.mrb[0].mxu0 %v4727
    %v4772 = vpop.f32.mrb[0].mxu0
    %v4773 = vadd.f32 %v4712, %v4772
    %v4774 = vpop.f32.mrb[0].mxu0
    %v4775 = vpop.f32.mrb[0].mxu0
    %v4776 = vadd.f32 %v4712, %v4775
    %v4777 = vpop.f32.mrb[0].mxu0
    %4778 = vmatprep.mubr.bf16.mxu0 0
    %4779 = vmatmul.mubr.bf16.gmra.mrb[0].mxu0 %v4730
    %v4780 = vpop.f32.mrb[0].mxu0
    %v4781 = vadd.f32 %v4712, %v4780
    %v4782 = vpop.f32.mrb[0].mxu0
    %v4783 = vpop.f32.mrb[0].mxu0
    %v4784 = vadd.f32 %v4712, %v4783
    %v4785 = vpop.f32.mrb[0].mxu0
    %4786 = vmatprep.mubr.bf16.mxu0 0
    %4787 = vmatmul.mubr.bf16.gmra.mrb[0].mxu0 %v4733
    %v4788 = vpop.f32.mrb[0].mxu0
    %v4789 = vadd.f32 %v4712, %v4788
    %v4790 = vpop.f32.mrb[0].mxu0
    %v4791 = vpop.f32.mrb[0].mxu0
    %v4792 = vadd.f32 %v4712, %v4791
    %v4793 = vpop.f32.mrb[0].mxu0
    %4794 = vmatprep.mubr.bf16.mxu0 0
    %4795 = vmatmul.mubr.bf16.gmra.mrb[0].mxu0 %v4736
    %v4796 = vpop.f32.mrb[0].mxu0
    %v4797 = vadd.f32 %v4712, %v4796
    %v4798 = vpop.f32.mrb[0].mxu0
    %v4799 = vpop.f32.mrb[0].mxu0
    %v4800 = vpop.f32.mrb[0].mxu0
    %4801 = vdwg.mxu0
    %v4802 = vmax.f32 %v4773, 0.0
    %v4803 = vmax.f32 %v4776, 0.0
    %v4804 = vmax.f32 %v4781, 0.0
    %v4805 = vmax.f32 %v4784, 0.0
    %v4806 = vmax.f32 %v4789, 0.0
    %v4807 = vmax.f32 %v4792, 0.0
    %v4808 = vmax.f32 %v4797, 0.0
    %v4809 = vld [vmem:[#allocation28] sm:$0xf]
    %v4810 = vld [vmem:[#allocation28 + $0x4] sm:$0xf]
    %v4811 = vld [vmem:[#allocation28 + $0x8] sm:$0xf]
    %v4812 = vld [vmem:[#allocation28 + $0xc] sm:$0xf]
    %v4813 = vpack.c.bf16 %v4803, %v4802
    %v4814 = vpack.c.bf16 %v4805, %v4804
    %v4815 = vpack.c.bf16 %v4807, %v4806
    %v4816 = vpack.c.bf16 %v4808, %v4808
    %v4817 = vld [vmem:[#allocation29] sm:$0x1]
    %v4819 = vlaneseq
    %v4820 = vshrl.u32 %v4819, 7
    %v4821 = vsub.s32 0, %v4820
    %v4822 = vrot.slane %v4817, %v4821
    %v4828 = vunpack.c.l.b16 %v4809
    %v4829 = vunpack.c.l.b16 %v4810
    %v4830 = vunpack.c.l.b16 %v4811
    %v4831 = vunpack.c.l.b16 %v4812
    %v4832 = vpack.c.b16 %v4829, %v4828
    %v4833 = vpack.c.b16 %v4831, %v4830
    %v4837 = vsel %vm849, %v4813, 0
    %v4840 = vsel %vm849, %v4814, 0
    %v4843 = vsel %vm849, %v4815, 0
    %v4846 = vsel %vm849, %v4816, 0
    %4848 = vmatprep.subr.bf16.mxu0 0
    %4849 = vmatpush1.bf16.msra.mxu0 %v4832
    %4850 = vmatprep.subr.bf16.mxu0 0
    %4851 = vmatpush1.bf16.msra.mxu0 %v4833
    %4852 = vmatprep.subr.bf16.mxu0 0
    %4853 = vmatpush1.bf16.msra.mxu0 0
    %4854 = vmatprep.subr.bf16.mxu0 0
    %4855 = vmatpush1.bf16.msra.mxu0 0
    %4856 = vmatprep.subr.bf16.mxu0 0
    %4857 = vmatpush1.bf16.msra.mxu0 0
    %4858 = vmatprep.subr.bf16.mxu0 0
    %4859 = vmatpush1.bf16.msra.mxu0 0
    %4860 = vmatprep.subr.bf16.mxu0 0
    %4861 = vmatpush1.bf16.msra.mxu0 0
    %4862 = vmatprep.subr.bf16.mxu0 0
    %4863 = vmatpush1.bf16.msra.mxu0 0
    %4864 = vmatprep.subr.bf16.mxu0 0
    %4865 = vmatpush1.bf16.msra.mxu0 0
    %4866 = vmatprep.subr.bf16.mxu0 0
    %4867 = vmatpush1.bf16.msra.mxu0 0
    %4868 = vmatprep.subr.bf16.mxu0 0
    %4869 = vmatpush1.bf16.msra.mxu0 0
    %4870 = vmatprep.subr.bf16.mxu0 0
    %4871 = vmatpush1.bf16.msra.mxu0 0
    %4872 = vmatprep.subr.bf16.mxu0 0
    %4873 = vmatpush1.bf16.msra.mxu0 0
    %4874 = vmatprep.subr.bf16.mxu0 0
    %4875 = vmatpush1.bf16.msra.mxu0 0
    %4876 = vmatprep.subr.bf16.mxu0 0
    %4877 = vmatpush1.bf16.msra.mxu0 0
    %4878 = vmatprep.subr.bf16.mxu0 0
    %4879 = vmatpush1.bf16.msra.mxu0 0
    %4880 = vmatprep.mubr.bf16.mxu0 0
    %4881 = vmatmul.mubr.bf16.gmra.mrb[0].mxu0 %v4837
    %v4882 = vpop.f32.mrb[0].mxu0
    %v4883 = vadd.f32 %v4822, %v4882
    %v4884 = vpop.f32.mrb[0].mxu0
    %v4885 = vpop.f32.mrb[0].mxu0
    %v4886 = vadd.f32 %v4822, %v4885
    %v4887 = vpop.f32.mrb[0].mxu0
    %4888 = vmatprep.mubr.bf16.mxu0 0
    %4889 = vmatmul.mubr.bf16.gmra.mrb[0].mxu0 %v4840
    %v4890 = vpop.f32.mrb[0].mxu0
    %v4891 = vadd.f32 %v4822, %v4890
    %v4892 = vpop.f32.mrb[0].mxu0
    %v4893 = vpop.f32.mrb[0].mxu0
    %v4894 = vadd.f32 %v4822, %v4893
    %v4895 = vpop.f32.mrb[0].mxu0
    %4896 = vmatprep.mubr.bf16.mxu0 0
    %4897 = vmatmul.mubr.bf16.gmra.mrb[0].mxu0 %v4843
    %v4898 = vpop.f32.mrb[0].mxu0
    %v4899 = vadd.f32 %v4822, %v4898
    %v4900 = vpop.f32.mrb[0].mxu0
    %v4901 = vpop.f32.mrb[0].mxu0
    %v4902 = vadd.f32 %v4822, %v4901
    %v4903 = vpop.f32.mrb[0].mxu0
    %4904 = vmatprep.mubr.bf16.mxu0 0
    %4905 = vmatmul.mubr.bf16.gmra.mrb[0].mxu0 %v4846
    %v4906 = vpop.f32.mrb[0].mxu0
    %v4907 = vadd.f32 %v4822, %v4906
    %v4908 = vpop.f32.mrb[0].mxu0
    %v4909 = vpop.f32.mrb[0].mxu0
    %v4910 = vpop.f32.mrb[0].mxu0
    %4911 = vdwg.mxu0
    %v4912 = vadd.f32 %v4692, %v4883
    %v4913 = vadd.f32 %v4693, %v4886
    %v4914 = vadd.f32 %v4694, %v4891
    %v4915 = vadd.f32 %v4695, %v4894
    %v4916 = vadd.f32 %v4696, %v4899
    %v4917 = vadd.f32 %v4697, %v4902
    %v4918 = vadd.f32 %v4698, %v4907
    %v4919 = vld [vmem:[#allocation34] sm:$0x1]
    %v4920 = vld [vmem:[#allocation35] sm:$0x1]
    %v4921 = vsel %vm849, %v4912, 0.0
    %4922 = vadd.xlane.f32.xlu0 %v4921
    %v4923 = vpop.xlane.xlu0 %4922
    %v4924 = vsel %vm849, %v4913, 0.0
    %4925 = vadd.xlane.f32.xlu0 %v4924
    %v4926 = vpop.xlane.xlu0 %4925
    %v4927 = vsel %vm849, %v4914, 0.0
    %4928 = vadd.xlane.f32.xlu0 %v4927
    %v4929 = vpop.xlane.xlu0 %4928
    %v4930 = vsel %vm849, %v4915, 0.0
    %4931 = vadd.xlane.f32.xlu0 %v4930
    %v4932 = vpop.xlane.xlu0 %4931
    %v4933 = vsel %vm849, %v4916, 0.0
    %4934 = vadd.xlane.f32.xlu0 %v4933
    %v4935 = vpop.xlane.xlu0 %4934
    %v4936 = vsel %vm849, %v4917, 0.0
    %4937 = vadd.xlane.f32.xlu0 %v4936
    %v4938 = vpop.xlane.xlu0 %4937
    %v4939 = vsel %vm849, %v4918, 0.0
    %4940 = vadd.xlane.f32.xlu0 %v4939
    %v4941 = vpop.xlane.xlu0 %4940
    %v4942 = vmul.f32 %v4923, %v4553
    %v4943 = vmul.f32 %v4926, %v4553
    %v4944 = vmul.f32 %v4929, %v4553
    %v4945 = vmul.f32 %v4932, %v4553
    %v4946 = vmul.f32 %v4935, %v4553
    %v4947 = vmul.f32 %v4938, %v4553
    %v4948 = vmul.f32 %v4941, %v4553
    %v4949 = vsub.f32 %v4912, %v4942
    %v4950 = vsub.f32 %v4913, %v4943
    %v4951 = vsub.f32 %v4914, %v4944
    %v4952 = vsub.f32 %v4915, %v4945
    %v4953 = vsub.f32 %v4916, %v4946
    %v4954 = vsub.f32 %v4917, %v4947
    %v4955 = vsub.f32 %v4918, %v4948
    %v4956 = vmul.f32 %v4949, %v4949
    %v4957 = vmul.f32 %v4950, %v4950
    %v4958 = vmul.f32 %v4951, %v4951
    %v4959 = vmul.f32 %v4952, %v4952
    %v4960 = vmul.f32 %v4953, %v4953
    %v4961 = vmul.f32 %v4954, %v4954
    %v4962 = vmul.f32 %v4955, %v4955
    %v4963 = vsel %vm849, %v4956, 0.0
    %4964 = vadd.xlane.f32.xlu0 %v4963
    %v4965 = vpop.xlane.xlu0 %4964
    %v4966 = vsel %vm849, %v4957, 0.0
    %4967 = vadd.xlane.f32.xlu0 %v4966
    %v4968 = vpop.xlane.xlu0 %4967
    %v4969 = vsel %vm849, %v4958, 0.0
    %4970 = vadd.xlane.f32.xlu0 %v4969
    %v4971 = vpop.xlane.xlu0 %4970
    %v4972 = vsel %vm849, %v4959, 0.0
    %4973 = vadd.xlane.f32.xlu0 %v4972
    %v4974 = vpop.xlane.xlu0 %4973
    %v4975 = vsel %vm849, %v4960, 0.0
    %4976 = vadd.xlane.f32.xlu0 %v4975
    %v4977 = vpop.xlane.xlu0 %4976
    %v4978 = vsel %vm849, %v4961, 0.0
    %4979 = vadd.xlane.f32.xlu0 %v4978
    %v4980 = vpop.xlane.xlu0 %4979
    %v4981 = vsel %vm849, %v4962, 0.0
    %4982 = vadd.xlane.f32.xlu0 %v4981
    %v4983 = vpop.xlane.xlu0 %4982
    %v4984 = vmul.f32 %v4965, %v4553
    %v4985 = vmul.f32 %v4968, %v4553
    %v4986 = vmul.f32 %v4971, %v4553
    %v4987 = vmul.f32 %v4974, %v4553
    %v4988 = vmul.f32 %v4977, %v4553
    %v4989 = vmul.f32 %v4980, %v4553
    %v4990 = vmul.f32 %v4983, %v4553
    %v4991 = vadd.f32 %v4984, 1e-05
    %v4992 = vadd.f32 %v4985, 1e-05
    %v4993 = vadd.f32 %v4986, 1e-05
    %v4994 = vadd.f32 %v4987, 1e-05
    %v4995 = vadd.f32 %v4988, 1e-05
    %v4996 = vadd.f32 %v4989, 1e-05
    %v4997 = vadd.f32 %v4990, 1e-05
    %v4998 = vrsqrt.pop %v4991
    %v4999 = vmul.f32 %v4991, %v4998
    %vm5000 = vcmp.eq.f32.partialorder %v4991, inf
    %v5001 = vsel %vm5000, %v4991, %v4999
    %vm5002 = vcmp.eq.f32.partialorder %v4991, 0.0
    %v5003 = vand.u32 %v4991, 2147483648
    %v5004 = vsel %vm5002, %v5003, %v5001
    %v5005 = vrsqrt.pop %v4992
    %v5006 = vmul.f32 %v4992, %v5005
    %vm5007 = vcmp.eq.f32.partialorder %v4992, inf
    %v5008 = vsel %vm5007, %v4992, %v5006
    %vm5009 = vcmp.eq.f32.partialorder %v4992, 0.0
    %v5010 = vand.u32 %v4992, 2147483648
    %v5011 = vsel %vm5009, %v5010, %v5008
    %v5012 = vrsqrt.pop %v4993
    %v5013 = vmul.f32 %v4993, %v5012
    %vm5014 = vcmp.eq.f32.partialorder %v4993, inf
    %v5015 = vsel %vm5014, %v4993, %v5013
    %vm5016 = vcmp.eq.f32.partialorder %v4993, 0.0
    %v5017 = vand.u32 %v4993, 2147483648
    %v5018 = vsel %vm5016, %v5017, %v5015
    %v5019 = vrsqrt.pop %v4994
    %v5020 = vmul.f32 %v4994, %v5019
    %vm5021 = vcmp.eq.f32.partialorder %v4994, inf
    %v5022 = vsel %vm5021, %v4994, %v5020
    %vm5023 = vcmp.eq.f32.partialorder %v4994, 0.0
    %v5024 = vand.u32 %v4994, 2147483648
    %v5025 = vsel %vm5023, %v5024, %v5022
    %v5026 = vrsqrt.pop %v4995
    %v5027 = vmul.f32 %v4995, %v5026
    %vm5028 = vcmp.eq.f32.partialorder %v4995, inf
    %v5029 = vsel %vm5028, %v4995, %v5027
    %vm5030 = vcmp.eq.f32.partialorder %v4995, 0.0
    %v5031 = vand.u32 %v4995, 2147483648
    %v5032 = vsel %vm5030, %v5031, %v5029
    %v5033 = vrsqrt.pop %v4996
    %v5034 = vmul.f32 %v4996, %v5033
    %vm5035 = vcmp.eq.f32.partialorder %v4996, inf
    %v5036 = vsel %vm5035, %v4996, %v5034
    %vm5037 = vcmp.eq.f32.partialorder %v4996, 0.0
    %v5038 = vand.u32 %v4996, 2147483648
    %v5039 = vsel %vm5037, %v5038, %v5036
    %v5040 = vrsqrt.pop %v4997
    %v5041 = vmul.f32 %v4997, %v5040
    %vm5042 = vcmp.eq.f32.partialorder %v4997, inf
    %v5043 = vsel %vm5042, %v4997, %v5041
    %vm5044 = vcmp.eq.f32.partialorder %v4997, 0.0
    %v5045 = vand.u32 %v4997, 2147483648
    %v5046 = vsel %vm5044, %v5045, %v5043
    %v5047 = vrcp.pop %v5004
    %v5048 = vmul.f32 %v4949, %v5047
    %v5049 = vrcp.pop %v5011
    %v5050 = vmul.f32 %v4950, %v5049
    %v5051 = vrcp.pop %v5018
    %v5052 = vmul.f32 %v4951, %v5051
    %v5053 = vrcp.pop %v5025
    %v5054 = vmul.f32 %v4952, %v5053
    %v5055 = vrcp.pop %v5032
    %v5056 = vmul.f32 %v4953, %v5055
    %v5057 = vrcp.pop %v5039
    %v5058 = vmul.f32 %v4954, %v5057
    %v5059 = vrcp.pop %v5046
    %v5060 = vmul.f32 %v4955, %v5059
    %v5062 = vlaneseq
    %v5063 = vshrl.u32 %v5062, 7
    %v5064 = vsub.s32 0, %v5063
    %v5065 = vrot.slane %v4919, %v5064
    %v5067 = vmul.f32 %v5048, %v5065
    %v5068 = vmul.f32 %v5050, %v5065
    %v5069 = vmul.f32 %v5052, %v5065
    %v5070 = vmul.f32 %v5054, %v5065
    %v5071 = vmul.f32 %v5056, %v5065
    %v5072 = vmul.f32 %v5058, %v5065
    %v5073 = vmul.f32 %v5060, %v5065
    %v5075 = vlaneseq
    %v5076 = vshrl.u32 %v5075, 7
    %v5077 = vsub.s32 0, %v5076
    %v5078 = vrot.slane %v4920, %v5077
    %v5080 = vadd.f32 %v5067, %v5078
    %v5081 = vadd.f32 %v5068, %v5078
    %v5082 = vadd.f32 %v5069, %v5078
    %v5083 = vadd.f32 %v5070, %v5078
    %v5084 = vadd.f32 %v5071, %v5078
    %v5085 = vadd.f32 %v5072, %v5078
    %v5086 = vadd.f32 %v5073, %v5078
    %s5087 = scalar_lea.vmem [#allocation8], 16
    %v5088 = vld [vmem:[%s5087] sm:$0xf]
    %v5089 = vld [vmem:[%s5087 + $0x4] sm:$0xf]
    %v5090 = vld [vmem:[%s5087 + $0x8] sm:$0xf]
    %v5091 = vld [vmem:[%s5087 + $0xc] sm:$0xf]
    %v5092 = vpack.c.bf16 %v5081, %v5080
    %v5093 = vpack.c.bf16 %v5083, %v5082
    %v5094 = vpack.c.bf16 %v5085, %v5084
    %v5095 = vpack.c.bf16 %v5086, %v5086
    %v5100 = vunpack.c.l.b16 %v5088
    %v5101 = vunpack.c.l.b16 %v5089
    %v5102 = vunpack.c.l.b16 %v5090
    %v5103 = vunpack.c.l.b16 %v5091
    %v5104 = vpack.c.b16 %v5101, %v5100
    %v5105 = vpack.c.b16 %v5103, %v5102
    %v5109 = vsel %vm849, %v5092, 0
    %v5112 = vsel %vm849, %v5093, 0
    %v5115 = vsel %vm849, %v5094, 0
    %v5118 = vsel %vm849, %v5095, 0
    %5120 = vmatprep.subr.bf16.mxu0 0
    %5121 = vmatpush1.bf16.msra.mxu0 %v5104
    %5122 = vmatprep.subr.bf16.mxu0 0
    %5123 = vmatpush1.bf16.msra.mxu0 %v5105
    %5124 = vmatprep.subr.bf16.mxu0 0
    %5125 = vmatpush1.bf16.msra.mxu0 0
    %5126 = vmatprep.subr.bf16.mxu0 0
    %5127 = vmatpush1.bf16.msra.mxu0 0
    %5128 = vmatprep.subr.bf16.mxu0 0
    %5129 = vmatpush1.bf16.msra.mxu0 0
    %5130 = vmatprep.subr.bf16.mxu0 0
    %5131 = vmatpush1.bf16.msra.mxu0 0
    %5132 = vmatprep.subr.bf16.mxu0 0
    %5133 = vmatpush1.bf16.msra.mxu0 0
    %5134 = vmatprep.subr.bf16.mxu0 0
    %5135 = vmatpush1.bf16.msra.mxu0 0
    %5136 = vmatprep.subr.bf16.mxu0 0
    %5137 = vmatpush1.bf16.msra.mxu0 0
    %5138 = vmatprep.subr.bf16.mxu0 0
    %5139 = vmatpush1.bf16.msra.mxu0 0
    %5140 = vmatprep.subr.bf16.mxu0 0
    %5141 = vmatpush1.bf16.msra.mxu0 0
    %5142 = vmatprep.subr.bf16.mxu0 0
    %5143 = vmatpush1.bf16.msra.mxu0 0
    %5144 = vmatprep.subr.bf16.mxu0 0
    %5145 = vmatpush1.bf16.msra.mxu0 0
    %5146 = vmatprep.subr.bf16.mxu0 0
    %5147 = vmatpush1.bf16.msra.mxu0 0
    %5148 = vmatprep.subr.bf16.mxu0 0
    %5149 = vmatpush1.bf16.msra.mxu0 0
    %5150 = vmatprep.subr.bf16.mxu0 0
    %5151 = vmatpush1.bf16.msra.mxu0 0
    %5152 = vmatprep.mubr.bf16.mxu0 0
    %5153 = vmatmul.mubr.bf16.gmra.mrb[0].mxu0 %v5109
    %v5154 = vpop.f32.mrb[0].mxu0
    %v5155 = vadd.f32 0.0, %v5154
    %v5156 = vpop.f32.mrb[0].mxu0
    %v5157 = vpop.f32.mrb[0].mxu0
    %v5158 = vadd.f32 0.0, %v5157
    %v5159 = vpop.f32.mrb[0].mxu0
    %5160 = vmatprep.mubr.bf16.mxu0 0
    %5161 = vmatmul.mubr.bf16.gmra.mrb[0].mxu0 %v5112
    %v5162 = vpop.f32.mrb[0].mxu0
    %v5163 = vadd.f32 0.0, %v5162
    %v5164 = vpop.f32.mrb[0].mxu0
    %v5165 = vpop.f32.mrb[0].mxu0
    %v5166 = vadd.f32 0.0, %v5165
    %v5167 = vpop.f32.mrb[0].mxu0
    %5168 = vmatprep.mubr.bf16.mxu0 0
    %5169 = vmatmul.mubr.bf16.gmra.mrb[0].mxu0 %v5115
    %v5170 = vpop.f32.mrb[0].mxu0
    %v5171 = vadd.f32 0.0, %v5170
    %v5172 = vpop.f32.mrb[0].mxu0
    %v5173 = vpop.f32.mrb[0].mxu0
    %v5174 = vadd.f32 0.0, %v5173
    %v5175 = vpop.f32.mrb[0].mxu0
    %5176 = vmatprep.mubr.bf16.mxu0 0
    %5177 = vmatmul.mubr.bf16.gmra.mrb[0].mxu0 %v5118
    %v5178 = vpop.f32.mrb[0].mxu0
    %v5179 = vadd.f32 0.0, %v5178
    %v5180 = vpop.f32.mrb[0].mxu0
    %v5181 = vpop.f32.mrb[0].mxu0
    %v5182 = vpop.f32.mrb[0].mxu0
    %5183 = vdwg.mxu0
    %s5184 = scalar_lea.vmem [#allocation10], 4
    %v5185 = vld [vmem:[%s5184] sm:$0x3]
    %v5186 = vlaneseq
    %v5187 = vshrl.u32 %v5186, 7
    %v5188 = vsub.s32 1, %v5187
    %v5189 = vrot.slane %v5185, %v5188
    %v5190 = vmul.f32 %v5155, %v5189
    %v5191 = vmul.f32 %v5158, %v5189
    %v5192 = vmul.f32 %v5163, %v5189
    %v5193 = vmul.f32 %v5166, %v5189
    %v5194 = vmul.f32 %v5171, %v5189
    %v5195 = vmul.f32 %v5174, %v5189
    %v5196 = vmul.f32 %v5179, %v5189
    %v5197 = vlaneseq
    %v5198 = vshrl.u32 %v5197, 7
    %v5199 = vsub.s32 0, %v5198
    %v5200 = vrot.slane %v5185, %v5199
    %v5201 = vmul.f32 %v5200, 0.0
    %v5202 = vmul.f32 %v5155, %v5200
    %v5203 = vmul.f32 %v5158, %v5200
    %v5204 = vmul.f32 %v5163, %v5200
    %v5205 = vmul.f32 %v5166, %v5200
    %v5206 = vmul.f32 %v5171, %v5200
    %v5207 = vmul.f32 %v5174, %v5200
    %v5208 = vadd.f32 %v5190, %v5201
    %v5209 = vadd.f32 %v5191, %v5202
    %v5210 = vadd.f32 %v5192, %v5203
    %v5211 = vadd.f32 %v5193, %v5204
    %v5212 = vadd.f32 %v5194, %v5205
    %v5213 = vadd.f32 %v5195, %v5206
    %v5214 = vadd.f32 %v5196, %v5207
    %s5215 = scalar_lea.vmem [#allocation11], 2
    %v5216 = vld [vmem:[%s5215] sm:$0x1]
    %v5218 = vlaneseq
    %v5219 = vshrl.u32 %v5218, 7
    %v5220 = vsub.s32 0, %v5219
    %v5221 = vrot.slane %v5216, %v5220
    %v5223 = vadd.f32 %v5208, %v5221
    %v5224 = vadd.f32 %v5209, %v5221
    %v5225 = vadd.f32 %v5210, %v5221
    %v5226 = vadd.f32 %v5211, %v5221
    %v5227 = vadd.f32 %v5212, %v5221
    %v5228 = vadd.f32 %v5213, %v5221
    %v5229 = vadd.f32 %v5214, %v5221
    %v5230 = vxor.u32 %v5223, 2147483648
    %v5231 = vxor.u32 %v5224, 2147483648
    %v5232 = vxor.u32 %v5225, 2147483648
    %v5233 = vxor.u32 %v5226, 2147483648
    %v5234 = vxor.u32 %v5227, 2147483648
    %v5235 = vxor.u32 %v5228, 2147483648
    %v5236 = vxor.u32 %v5229, 2147483648
    %v5237 = vmul.f32 %v5230, 1.442695
    %v5238 = vpow.pop %v5237
    %v5239 = vmul.f32 %v5231, 1.442695
    %v5240 = vpow.pop %v5239
    %v5241 = vmul.f32 %v5232, 1.442695
    %v5242 = vpow.pop %v5241
    %v5243 = vmul.f32 %v5233, 1.442695
    %v5244 = vpow.pop %v5243
    %v5245 = vmul.f32 %v5234, 1.442695
    %v5246 = vpow.pop %v5245
    %v5247 = vmul.f32 %v5235, 1.442695
    %v5248 = vpow.pop %v5247
    %v5249 = vmul.f32 %v5236, 1.442695
    %v5250 = vpow.pop %v5249
    %v5251 = vadd.f32 %v5238, 1.0
    %v5252 = vadd.f32 %v5240, 1.0
    %v5253 = vadd.f32 %v5242, 1.0
    %v5254 = vadd.f32 %v5244, 1.0
    %v5255 = vadd.f32 %v5246, 1.0
    %v5256 = vadd.f32 %v5248, 1.0
    %v5257 = vadd.f32 %v5250, 1.0
    %v5258 = vrcp.pop %v5251
    %v5259 = vmul.f32 1.0, %v5258
    %v5260 = vrcp.pop %v5252
    %v5261 = vmul.f32 1.0, %v5260
    %v5262 = vrcp.pop %v5253
    %v5263 = vmul.f32 1.0, %v5262
    %v5264 = vrcp.pop %v5254
    %v5265 = vmul.f32 1.0, %v5264
    %v5266 = vrcp.pop %v5255
    %v5267 = vmul.f32 1.0, %v5266
    %v5268 = vrcp.pop %v5256
    %v5269 = vmul.f32 1.0, %v5268
    %v5270 = vrcp.pop %v5257
    %v5271 = vmul.f32 1.0, %v5270
    %v5272 = vmul.f32 %v5223, %v5259
    %v5273 = vmul.f32 %v5224, %v5261
    %v5274 = vmul.f32 %v5225, %v5263
    %v5275 = vmul.f32 %v5226, %v5265
    %v5276 = vmul.f32 %v5227, %v5267
    %v5277 = vmul.f32 %v5228, %v5269
    %v5278 = vmul.f32 %v5229, %v5271
    %s5279 = scalar_lea.vmem [#allocation13], 32
    %v5280 = vld [vmem:[%s5279] sm:$0xf]
    %v5281 = vld [vmem:[%s5279 + $0x4] sm:$0xf]
    %v5282 = vld [vmem:[%s5279 + $0x8] sm:$0xf]
    %v5283 = vld [vmem:[%s5279 + $0xc] sm:$0xf]
    %v5284 = vpack.c.bf16 %v5273, %v5272
    %v5285 = vpack.c.bf16 %v5275, %v5274
    %v5286 = vpack.c.bf16 %v5277, %v5276
    %v5287 = vpack.c.bf16 %v5278, %v5278
    %v5292 = vunpack.c.l.b16 %v5280
    %v5293 = vunpack.c.l.b16 %v5281
    %v5294 = vunpack.c.l.b16 %v5282
    %v5295 = vunpack.c.l.b16 %v5283
    %v5296 = vpack.c.b16 %v5293, %v5292
    %v5297 = vpack.c.b16 %v5295, %v5294
    %v5301 = vsel %vm849, %v5284, 0
    %v5304 = vsel %vm849, %v5285, 0
    %v5307 = vsel %vm849, %v5286, 0
    %v5310 = vsel %vm849, %v5287, 0
    %5312 = vmatprep.subr.bf16.mxu0 0
    %5313 = vmatpush1.bf16.msra.mxu0 %v5296
    %5314 = vmatprep.subr.bf16.mxu0 0
    %5315 = vmatpush1.bf16.msra.mxu0 %v5297
    %5316 = vmatprep.subr.bf16.mxu0 0
    %5317 = vmatpush1.bf16.msra.mxu0 0
    %5318 = vmatprep.subr.bf16.mxu0 0
    %5319 = vmatpush1.bf16.msra.mxu0 0
    %5320 = vmatprep.subr.bf16.mxu0 0
    %5321 = vmatpush1.bf16.msra.mxu0 0
    %5322 = vmatprep.subr.bf16.mxu0 0
    %5323 = vmatpush1.bf16.msra.mxu0 0
    %5324 = vmatprep.subr.bf16.mxu0 0
    %5325 = vmatpush1.bf16.msra.mxu0 0
    %5326 = vmatprep.subr.bf16.mxu0 0
    %5327 = vmatpush1.bf16.msra.mxu0 0
    %5328 = vmatprep.subr.bf16.mxu0 0
    %5329 = vmatpush1.bf16.msra.mxu0 0
    %5330 = vmatprep.subr.bf16.mxu0 0
    %5331 = vmatpush1.bf16.msra.mxu0 0
    %5332 = vmatprep.subr.bf16.mxu0 0
    %5333 = vmatpush1.bf16.msra.mxu0 0
    %5334 = vmatprep.subr.bf16.mxu0 0
    %5335 = vmatpush1.bf16.msra.mxu0 0
    %5336 = vmatprep.subr.bf16.mxu0 0
    %5337 = vmatpush1.bf16.msra.mxu0 0
    %5338 = vmatprep.subr.bf16.mxu0 0
    %5339 = vmatpush1.bf16.msra.mxu0 0
    %5340 = vmatprep.subr.bf16.mxu0 0
    %5341 = vmatpush1.bf16.msra.mxu0 0
    %5342 = vmatprep.subr.bf16.mxu0 0
    %5343 = vmatpush1.bf16.msra.mxu0 0
    %5344 = vmatprep.mubr.bf16.mxu0 0
    %5345 = vmatmul.mubr.bf16.gmra.mrb[0].mxu0 %v5301
    %v5346 = vpop.f32.mrb[0].mxu0
    %v5347 = vadd.f32 0.0, %v5346
    %v5348 = vpop.f32.mrb[0].mxu0
    %v5349 = vpop.f32.mrb[0].mxu0
    %v5350 = vadd.f32 0.0, %v5349
    %v5351 = vpop.f32.mrb[0].mxu0
    %5352 = vmatprep.mubr.bf16.mxu0 0
    %5353 = vmatmul.mubr.bf16.gmra.mrb[0].mxu0 %v5304
    %v5354 = vpop.f32.mrb[0].mxu0
    %v5355 = vadd.f32 0.0, %v5354
    %v5356 = vpop.f32.mrb[0].mxu0
    %v5357 = vpop.f32.mrb[0].mxu0
    %v5358 = vadd.f32 0.0, %v5357
    %v5359 = vpop.f32.mrb[0].mxu0
    %5360 = vmatprep.mubr.bf16.mxu0 0
    %5361 = vmatmul.mubr.bf16.gmra.mrb[0].mxu0 %v5307
    %v5362 = vpop.f32.mrb[0].mxu0
    %v5363 = vadd.f32 0.0, %v5362
    %v5364 = vpop.f32.mrb[0].mxu0
    %v5365 = vpop.f32.mrb[0].mxu0
    %v5366 = vadd.f32 0.0, %v5365
    %v5367 = vpop.f32.mrb[0].mxu0
    %5368 = vmatprep.mubr.bf16.mxu0 0
    %5369 = vmatmul.mubr.bf16.gmra.mrb[0].mxu0 %v5310
    %v5370 = vpop.f32.mrb[0].mxu0
    %v5371 = vadd.f32 0.0, %v5370
    %v5372 = vpop.f32.mrb[0].mxu0
    %v5373 = vpop.f32.mrb[0].mxu0
    %v5374 = vpop.f32.mrb[0].mxu0
    %5375 = vdwg.mxu0
    %s5376 = scalar_lea.vmem [#allocation14], 2
    %v5377 = vld [vmem:[%s5376] sm:$0x1]
    %v5379 = vlaneseq
    %v5380 = vshrl.u32 %v5379, 7
    %v5381 = vsub.s32 0, %v5380
    %v5382 = vrot.slane %v5377, %v5381
    %v5384 = vadd.f32 %v5347, %v5382
    %v5385 = vadd.f32 %v5350, %v5382
    %v5386 = vadd.f32 %v5355, %v5382
    %v5387 = vadd.f32 %v5358, %v5382
    %v5388 = vadd.f32 %v5363, %v5382
    %v5389 = vadd.f32 %v5366, %v5382
    %v5390 = vadd.f32 %v5371, %v5382
    %vm5391 = vcmp.gt.f32.partialorder %v5384, 20.0
    %vm5392 = vcmp.gt.f32.partialorder %v5385, 20.0
    %vm5393 = vcmp.gt.f32.partialorder %v5386, 20.0
    %vm5394 = vcmp.gt.f32.partialorder %v5387, 20.0
    %vm5395 = vcmp.gt.f32.partialorder %v5388, 20.0
    %vm5396 = vcmp.gt.f32.partialorder %v5389, 20.0
    %vm5397 = vcmp.gt.f32.partialorder %v5390, 20.0
    %v5398 = vmin.f32 %v5384, 20.0
    %v5399 = vmin.f32 %v5385, 20.0
    %v5400 = vmin.f32 %v5386, 20.0
    %v5401 = vmin.f32 %v5387, 20.0
    %v5402 = vmin.f32 %v5388, 20.0
    %v5403 = vmin.f32 %v5389, 20.0
    %v5404 = vmin.f32 %v5390, 20.0
    %v5405 = vmul.f32 %v5398, 1.442695
    %v5406 = vpow.pop %v5405
    %v5407 = vmul.f32 %v5399, 1.442695
    %v5408 = vpow.pop %v5407
    %v5409 = vmul.f32 %v5400, 1.442695
    %v5410 = vpow.pop %v5409
    %v5411 = vmul.f32 %v5401, 1.442695
    %v5412 = vpow.pop %v5411
    %v5413 = vmul.f32 %v5402, 1.442695
    %v5414 = vpow.pop %v5413
    %v5415 = vmul.f32 %v5403, 1.442695
    %v5416 = vpow.pop %v5415
    %v5417 = vmul.f32 %v5404, 1.442695
    %v5418 = vpow.pop %v5417
    %v5419 = vadd.f32 %v5406, 1.0
    %v5420 = vadd.f32 %v5408, 1.0
    %v5421 = vadd.f32 %v5410, 1.0
    %v5422 = vadd.f32 %v5412, 1.0
    %v5423 = vadd.f32 %v5414, 1.0
    %v5424 = vadd.f32 %v5416, 1.0
    %v5425 = vadd.f32 %v5418, 1.0
    %v5426 = vlog2.pop %v5419
    %v5427 = vmul.f32 %v5426, 0.6931472
    %v5428 = vlog2.pop %v5420
    %v5429 = vmul.f32 %v5428, 0.6931472
    %v5430 = vlog2.pop %v5421
    %v5431 = vmul.f32 %v5430, 0.6931472
    %v5432 = vlog2.pop %v5422
    %v5433 = vmul.f32 %v5432, 0.6931472
    %v5434 = vlog2.pop %v5423
    %v5435 = vmul.f32 %v5434, 0.6931472
    %v5436 = vlog2.pop %v5424
    %v5437 = vmul.f32 %v5436, 0.6931472
    %v5438 = vlog2.pop %v5425
    %v5439 = vmul.f32 %v5438, 0.6931472
    %v5440 = vsel %vm5391, %v5384, %v5427
    %v5441 = vsel %vm5392, %v5385, %v5429
    %v5442 = vsel %vm5393, %v5386, %v5431
    %v5443 = vsel %vm5394, %v5387, %v5433
    %v5444 = vsel %vm5395, %v5388, %v5435
    %v5445 = vsel %vm5396, %v5389, %v5437
    %v5446 = vsel %vm5397, %v5390, %v5439
    %s5447 = scalar_lea.vmem [#allocation16], 256
    %v5448 = vld [vmem:[%s5447] sm:$0xff]
    %v5449 = vld [vmem:[%s5447 + $0x8] sm:$0xff]
    %v5450 = vld [vmem:[%s5447 + $0x10] sm:$0xff]
    %v5451 = vld [vmem:[%s5447 + $0x18] sm:$0xff]
    %v5452 = vld [vmem:[%s5447 + $0x20] sm:$0xff]
    %v5453 = vld [vmem:[%s5447 + $0x28] sm:$0xff]
    %v5454 = vld [vmem:[%s5447 + $0x30] sm:$0xff]
    %v5455 = vld [vmem:[%s5447 + $0x38] sm:$0xff]
    %v5456 = vld [vmem:[%s5447 + $0x40] sm:$0xff]
    %v5457 = vld [vmem:[%s5447 + $0x48] sm:$0xff]
    %v5458 = vld [vmem:[%s5447 + $0x50] sm:$0xff]
    %v5459 = vld [vmem:[%s5447 + $0x58] sm:$0xff]
    %v5460 = vld [vmem:[%s5447 + $0x60] sm:$0xff]
    %v5461 = vld [vmem:[%s5447 + $0x68] sm:$0xff]
    %v5462 = vld [vmem:[%s5447 + $0x70] sm:$0xff]
    %v5463 = vld [vmem:[%s5447 + $0x78] sm:$0xff]
    %v5465 = vsel %vm849, %v5440, 0
    %v5468 = vsel %vm849, %v5441, 0
    %v5471 = vsel %vm849, %v5442, 0
    %v5474 = vsel %vm849, %v5443, 0
    %v5477 = vsel %vm849, %v5444, 0
    %v5480 = vsel %vm849, %v5445, 0
    %v5483 = vsel %vm849, %v5446, 0
    %5485 = vmatprep.subr.mxu0 %v5449
    %5486 = vmatpush1.msra.mxu0 %v5448
    %5487 = vmatprep.subr.mxu0 %v5453
    %5488 = vmatpush1.msra.mxu0 %v5452
    %5489 = vmatprep.subr.mxu0 %v5457
    %5490 = vmatpush1.msra.mxu0 %v5456
    %5491 = vmatprep.subr.mxu0 %v5461
    %5492 = vmatpush1.msra.mxu0 %v5460
    %5493 = vmatprep.subr.mxu0 0.0
    %5494 = vmatpush1.msra.mxu0 0.0
    %5495 = vmatprep.subr.mxu0 0.0
    %5496 = vmatpush1.msra.mxu0 0.0
    %5497 = vmatprep.subr.mxu0 0.0
    %5498 = vmatpush1.msra.mxu0 0.0
    %5499 = vmatprep.subr.mxu0 0.0
    %5500 = vmatpush1.msra.mxu0 0.0
    %5501 = vmatprep.subr.mxu0 0.0
    %5502 = vmatpush1.msra.mxu0 0.0
    %5503 = vmatprep.subr.mxu0 0.0
    %5504 = vmatpush1.msra.mxu0 0.0
    %5505 = vmatprep.subr.mxu0 0.0
    %5506 = vmatpush1.msra.mxu0 0.0
    %5507 = vmatprep.subr.mxu0 0.0
    %5508 = vmatpush1.msra.mxu0 0.0
    %5509 = vmatprep.subr.mxu0 0.0
    %5510 = vmatpush1.msra.mxu0 0.0
    %5511 = vmatprep.subr.mxu0 0.0
    %5512 = vmatpush1.msra.mxu0 0.0
    %5513 = vmatprep.subr.mxu0 0.0
    %5514 = vmatpush1.msra.mxu0 0.0
    %5515 = vmatprep.subr.mxu0 0.0
    %5516 = vmatpush1.msra.mxu0 0.0
    %5517 = vmatprep.subr.mxu0 0.0
    %5518 = vmatpush1.msra.mxu0 0.0
    %5519 = vmatprep.subr.mxu0 0.0
    %5520 = vmatpush1.msra.mxu0 0.0
    %5521 = vmatprep.subr.mxu0 0.0
    %5522 = vmatpush1.msra.mxu0 0.0
    %5523 = vmatprep.subr.mxu0 0.0
    %5524 = vmatpush1.msra.mxu0 0.0
    %5525 = vmatprep.subr.mxu0 0.0
    %5526 = vmatpush1.msra.mxu0 0.0
    %5527 = vmatprep.subr.mxu0 0.0
    %5528 = vmatpush1.msra.mxu0 0.0
    %5529 = vmatprep.subr.mxu0 0.0
    %5530 = vmatpush1.msra.mxu0 0.0
    %5531 = vmatprep.subr.mxu0 0.0
    %5532 = vmatpush1.msra.mxu0 0.0
    %5533 = vmatprep.subr.mxu0 0.0
    %5534 = vmatpush1.msra.mxu0 0.0
    %5535 = vmatprep.subr.mxu0 0.0
    %5536 = vmatpush1.msra.mxu0 0.0
    %5537 = vmatprep.subr.mxu0 0.0
    %5538 = vmatpush1.msra.mxu0 0.0
    %5539 = vmatprep.subr.mxu0 0.0
    %5540 = vmatpush1.msra.mxu0 0.0
    %5541 = vmatprep.subr.mxu0 0.0
    %5542 = vmatpush1.msra.mxu0 0.0
    %5543 = vmatprep.subr.mxu0 0.0
    %5544 = vmatpush1.msra.mxu0 0.0
    %5545 = vmatprep.subr.mxu0 0.0
    %5546 = vmatpush1.msra.mxu0 0.0
    %5547 = vmatprep.subr.mxu0 0.0
    %5548 = vmatpush1.msra.mxu0 0.0
    %5549 = vmatprep.mubr.f32.mxu0 0.0
    %5550 = vmatmul.mubr.f32.gmra.mrb[0].mxu0 %v5465
    %v5551 = vpop.f32.mrb[0].mxu0
    %v5552 = vadd.f32 0.0, %v5551
    %v5553 = vpop.f32.mrb[0].mxu0
    %v5554 = vadd.f32 0.0, %v5553
    %5555 = vmatprep.mubr.f32.mxu0 0.0
    %5556 = vmatmul.mubr.f32.gmra.mrb[0].mxu0 %v5468
    %v5557 = vpop.f32.mrb[0].mxu0
    %v5558 = vadd.f32 0.0, %v5557
    %v5559 = vpop.f32.mrb[0].mxu0
    %v5560 = vadd.f32 0.0, %v5559
    %5561 = vmatprep.mubr.f32.mxu0 0.0
    %5562 = vmatmul.mubr.f32.gmra.mrb[0].mxu0 %v5471
    %v5563 = vpop.f32.mrb[0].mxu0
    %v5564 = vadd.f32 0.0, %v5563
    %v5565 = vpop.f32.mrb[0].mxu0
    %v5566 = vadd.f32 0.0, %v5565
    %5567 = vmatprep.mubr.f32.mxu0 0.0
    %5568 = vmatmul.mubr.f32.gmra.mrb[0].mxu0 %v5474
    %v5569 = vpop.f32.mrb[0].mxu0
    %v5570 = vadd.f32 0.0, %v5569
    %v5571 = vpop.f32.mrb[0].mxu0
    %v5572 = vadd.f32 0.0, %v5571
    %5573 = vmatprep.mubr.f32.mxu0 0.0
    %5574 = vmatmul.mubr.f32.gmra.mrb[0].mxu0 %v5477
    %v5575 = vpop.f32.mrb[0].mxu0
    %v5576 = vadd.f32 0.0, %v5575
    %v5577 = vpop.f32.mrb[0].mxu0
    %v5578 = vadd.f32 0.0, %v5577
    %5579 = vmatprep.mubr.f32.mxu0 0.0
    %5580 = vmatmul.mubr.f32.gmra.mrb[0].mxu0 %v5480
    %v5581 = vpop.f32.mrb[0].mxu0
    %v5582 = vadd.f32 0.0, %v5581
    %v5583 = vpop.f32.mrb[0].mxu0
    %v5584 = vadd.f32 0.0, %v5583
    %5585 = vmatprep.mubr.f32.mxu0 0.0
    %5586 = vmatmul.mubr.f32.gmra.mrb[0].mxu0 %v5483
    %v5587 = vpop.f32.mrb[0].mxu0
    %v5588 = vadd.f32 0.0, %v5587
    %v5589 = vpop.f32.mrb[0].mxu0
    %v5590 = vadd.f32 0.0, %v5589
    %5591 = vdwg.mxu0
    %5592 = vmatprep.subr.mxu0 %v5451
    %5593 = vmatpush1.msra.mxu0 %v5450
    %5594 = vmatprep.subr.mxu0 %v5455
    %5595 = vmatpush1.msra.mxu0 %v5454
    %5596 = vmatprep.subr.mxu0 %v5459
    %5597 = vmatpush1.msra.mxu0 %v5458
    %5598 = vmatprep.subr.mxu0 %v5463
    %5599 = vmatpush1.msra.mxu0 %v5462
    %5600 = vmatprep.subr.mxu0 0.0
    %5601 = vmatpush1.msra.mxu0 0.0
    %5602 = vmatprep.subr.mxu0 0.0
    %5603 = vmatpush1.msra.mxu0 0.0
    %5604 = vmatprep.subr.mxu0 0.0
    %5605 = vmatpush1.msra.mxu0 0.0
    %5606 = vmatprep.subr.mxu0 0.0
    %5607 = vmatpush1.msra.mxu0 0.0
    %5608 = vmatprep.subr.mxu0 0.0
    %5609 = vmatpush1.msra.mxu0 0.0
    %5610 = vmatprep.subr.mxu0 0.0
    %5611 = vmatpush1.msra.mxu0 0.0
    %5612 = vmatprep.subr.mxu0 0.0
    %5613 = vmatpush1.msra.mxu0 0.0
    %5614 = vmatprep.subr.mxu0 0.0
    %5615 = vmatpush1.msra.mxu0 0.0
    %5616 = vmatprep.subr.mxu0 0.0
    %5617 = vmatpush1.msra.mxu0 0.0
    %5618 = vmatprep.subr.mxu0 0.0
    %5619 = vmatpush1.msra.mxu0 0.0
    %5620 = vmatprep.subr.mxu0 0.0
    %5621 = vmatpush1.msra.mxu0 0.0
    %5622 = vmatprep.subr.mxu0 0.0
    %5623 = vmatpush1.msra.mxu0 0.0
    %5624 = vmatprep.subr.mxu0 0.0
    %5625 = vmatpush1.msra.mxu0 0.0
    %5626 = vmatprep.subr.mxu0 0.0
    %5627 = vmatpush1.msra.mxu0 0.0
    %5628 = vmatprep.subr.mxu0 0.0
    %5629 = vmatpush1.msra.mxu0 0.0
    %5630 = vmatprep.subr.mxu0 0.0
    %5631 = vmatpush1.msra.mxu0 0.0
    %5632 = vmatprep.subr.mxu0 0.0
    %5633 = vmatpush1.msra.mxu0 0.0
    %5634 = vmatprep.subr.mxu0 0.0
    %5635 = vmatpush1.msra.mxu0 0.0
    %5636 = vmatprep.subr.mxu0 0.0
    %5637 = vmatpush1.msra.mxu0 0.0
    %5638 = vmatprep.subr.mxu0 0.0
    %5639 = vmatpush1.msra.mxu0 0.0
    %5640 = vmatprep.subr.mxu0 0.0
    %5641 = vmatpush1.msra.mxu0 0.0
    %5642 = vmatprep.subr.mxu0 0.0
    %5643 = vmatpush1.msra.mxu0 0.0
    %5644 = vmatprep.subr.mxu0 0.0
    %5645 = vmatpush1.msra.mxu0 0.0
    %5646 = vmatprep.subr.mxu0 0.0
    %5647 = vmatpush1.msra.mxu0 0.0
    %5648 = vmatprep.subr.mxu0 0.0
    %5649 = vmatpush1.msra.mxu0 0.0
    %5650 = vmatprep.subr.mxu0 0.0
    %5651 = vmatpush1.msra.mxu0 0.0
    %5652 = vmatprep.subr.mxu0 0.0
    %5653 = vmatpush1.msra.mxu0 0.0
    %5654 = vmatprep.subr.mxu0 0.0
    %5655 = vmatpush1.msra.mxu0 0.0
    %5656 = vmatprep.mubr.f32.mxu0 0.0
    %5657 = vmatmul.mubr.f32.gmra.mrb[0].mxu0 %v5465
    %v5658 = vpop.f32.mrb[0].mxu0
    %v5659 = vadd.f32 0.0, %v5658
    %v5660 = vpop.f32.mrb[0].mxu0
    %v5661 = vadd.f32 0.0, %v5660
    %5662 = vmatprep.mubr.f32.mxu0 0.0
    %5663 = vmatmul.mubr.f32.gmra.mrb[0].mxu0 %v5468
    %v5664 = vpop.f32.mrb[0].mxu0
    %v5665 = vadd.f32 0.0, %v5664
    %v5666 = vpop.f32.mrb[0].mxu0
    %v5667 = vadd.f32 0.0, %v5666
    %5668 = vmatprep.mubr.f32.mxu0 0.0
    %5669 = vmatmul.mubr.f32.gmra.mrb[0].mxu0 %v5471
    %v5670 = vpop.f32.mrb[0].mxu0
    %v5671 = vadd.f32 0.0, %v5670
    %v5672 = vpop.f32.mrb[0].mxu0
    %v5673 = vadd.f32 0.0, %v5672
    %5674 = vmatprep.mubr.f32.mxu0 0.0
    %5675 = vmatmul.mubr.f32.gmra.mrb[0].mxu0 %v5474
    %v5676 = vpop.f32.mrb[0].mxu0
    %v5677 = vadd.f32 0.0, %v5676
    %v5678 = vpop.f32.mrb[0].mxu0
    %v5679 = vadd.f32 0.0, %v5678
    %5680 = vmatprep.mubr.f32.mxu0 0.0
    %5681 = vmatmul.mubr.f32.gmra.mrb[0].mxu0 %v5477
    %v5682 = vpop.f32.mrb[0].mxu0
    %v5683 = vadd.f32 0.0, %v5682
    %v5684 = vpop.f32.mrb[0].mxu0
    %v5685 = vadd.f32 0.0, %v5684
    %5686 = vmatprep.mubr.f32.mxu0 0.0
    %5687 = vmatmul.mubr.f32.gmra.mrb[0].mxu0 %v5480
    %v5688 = vpop.f32.mrb[0].mxu0
    %v5689 = vadd.f32 0.0, %v5688
    %v5690 = vpop.f32.mrb[0].mxu0
    %v5691 = vadd.f32 0.0, %v5690
    %5692 = vmatprep.mubr.f32.mxu0 0.0
    %5693 = vmatmul.mubr.f32.gmra.mrb[0].mxu0 %v5483
    %v5694 = vpop.f32.mrb[0].mxu0
    %v5695 = vadd.f32 0.0, %v5694
    %v5696 = vpop.f32.mrb[0].mxu0
    %v5697 = vadd.f32 0.0, %v5696
    %5698 = vdwg.mxu0
    %v5699 = vmul.f32 %v5552, 1.442695
    %v5700 = vpow.pop %v5699
    %v5701 = vmul.f32 %v5554, 1.442695
    %v5702 = vpow.pop %v5701
    %v5703 = vmul.f32 %v5659, 1.442695
    %v5704 = vpow.pop %v5703
    %v5705 = vmul.f32 %v5661, 1.442695
    %v5706 = vpow.pop %v5705
    %v5707 = vmul.f32 %v5558, 1.442695
    %v5708 = vpow.pop %v5707
    %v5709 = vmul.f32 %v5560, 1.442695
    %v5710 = vpow.pop %v5709
    %v5711 = vmul.f32 %v5665, 1.442695
    %v5712 = vpow.pop %v5711
    %v5713 = vmul.f32 %v5667, 1.442695
    %v5714 = vpow.pop %v5713
    %v5715 = vmul.f32 %v5564, 1.442695
    %v5716 = vpow.pop %v5715
    %v5717 = vmul.f32 %v5566, 1.442695
    %v5718 = vpow.pop %v5717
    %v5719 = vmul.f32 %v5671, 1.442695
    %v5720 = vpow.pop %v5719
    %v5721 = vmul.f32 %v5673, 1.442695
    %v5722 = vpow.pop %v5721
    %v5723 = vmul.f32 %v5570, 1.442695
    %v5724 = vpow.pop %v5723
    %v5725 = vmul.f32 %v5572, 1.442695
    %v5726 = vpow.pop %v5725
    %v5727 = vmul.f32 %v5677, 1.442695
    %v5728 = vpow.pop %v5727
    %v5729 = vmul.f32 %v5679, 1.442695
    %v5730 = vpow.pop %v5729
    %v5731 = vmul.f32 %v5576, 1.442695
    %v5732 = vpow.pop %v5731
    %v5733 = vmul.f32 %v5578, 1.442695
    %v5734 = vpow.pop %v5733
    %v5735 = vmul.f32 %v5683, 1.442695
    %v5736 = vpow.pop %v5735
    %v5737 = vmul.f32 %v5685, 1.442695
    %v5738 = vpow.pop %v5737
    %v5739 = vmul.f32 %v5582, 1.442695
    %v5740 = vpow.pop %v5739
    %v5741 = vmul.f32 %v5584, 1.442695
    %v5742 = vpow.pop %v5741
    %v5743 = vmul.f32 %v5689, 1.442695
    %v5744 = vpow.pop %v5743
    %v5745 = vmul.f32 %v5691, 1.442695
    %v5746 = vpow.pop %v5745
    %v5747 = vmul.f32 %v5588, 1.442695
    %v5748 = vpow.pop %v5747
    %v5749 = vmul.f32 %v5590, 1.442695
    %v5750 = vpow.pop %v5749
    %v5751 = vmul.f32 %v5695, 1.442695
    %v5752 = vpow.pop %v5751
    %v5753 = vmul.f32 %v5697, 1.442695
    %v5754 = vpow.pop %v5753
    %v5755 = vmul.f32 %v5440, %v5272
    %v5756 = vmul.f32 %v5441, %v5273
    %v5757 = vmul.f32 %v5442, %v5274
    %v5758 = vmul.f32 %v5443, %v5275
    %v5759 = vmul.f32 %v5444, %v5276
    %v5760 = vmul.f32 %v5445, %v5277
    %v5761 = vmul.f32 %v5446, %v5278
    %v5763 = vsel %vm849, %v5755, 0
    %v5766 = vsel %vm849, %v5756, 0
    %v5769 = vsel %vm849, %v5757, 0
    %v5772 = vsel %vm849, %v5758, 0
    %v5775 = vsel %vm849, %v5759, 0
    %v5778 = vsel %vm849, %v5760, 0
    %v5781 = vsel %vm849, %v5761, 0
    %5783 = vmatprep.subr.mxu0 %v742
    %5784 = vmatpush1.msra.mxu0 %v741
    %5785 = vmatprep.subr.mxu0 %v746
    %5786 = vmatpush1.msra.mxu0 %v745
    %5787 = vmatprep.subr.mxu0 %v750
    %5788 = vmatpush1.msra.mxu0 %v749
    %5789 = vmatprep.subr.mxu0 %v754
    %5790 = vmatpush1.msra.mxu0 %v753
    %5791 = vmatprep.subr.mxu0 0.0
    %5792 = vmatpush1.msra.mxu0 0.0
    %5793 = vmatprep.subr.mxu0 0.0
    %5794 = vmatpush1.msra.mxu0 0.0
    %5795 = vmatprep.subr.mxu0 0.0
    %5796 = vmatpush1.msra.mxu0 0.0
    %5797 = vmatprep.subr.mxu0 0.0
    %5798 = vmatpush1.msra.mxu0 0.0
    %5799 = vmatprep.subr.mxu0 0.0
    %5800 = vmatpush1.msra.mxu0 0.0
    %5801 = vmatprep.subr.mxu0 0.0
    %5802 = vmatpush1.msra.mxu0 0.0
    %5803 = vmatprep.subr.mxu0 0.0
    %5804 = vmatpush1.msra.mxu0 0.0
    %5805 = vmatprep.subr.mxu0 0.0
    %5806 = vmatpush1.msra.mxu0 0.0
    %5807 = vmatprep.subr.mxu0 0.0
    %5808 = vmatpush1.msra.mxu0 0.0
    %5809 = vmatprep.subr.mxu0 0.0
    %5810 = vmatpush1.msra.mxu0 0.0
    %5811 = vmatprep.subr.mxu0 0.0
    %5812 = vmatpush1.msra.mxu0 0.0
    %5813 = vmatprep.subr.mxu0 0.0
    %5814 = vmatpush1.msra.mxu0 0.0
    %5815 = vmatprep.subr.mxu0 0.0
    %5816 = vmatpush1.msra.mxu0 0.0
    %5817 = vmatprep.subr.mxu0 0.0
    %5818 = vmatpush1.msra.mxu0 0.0
    %5819 = vmatprep.subr.mxu0 0.0
    %5820 = vmatpush1.msra.mxu0 0.0
    %5821 = vmatprep.subr.mxu0 0.0
    %5822 = vmatpush1.msra.mxu0 0.0
    %5823 = vmatprep.subr.mxu0 0.0
    %5824 = vmatpush1.msra.mxu0 0.0
    %5825 = vmatprep.subr.mxu0 0.0
    %5826 = vmatpush1.msra.mxu0 0.0
    %5827 = vmatprep.subr.mxu0 0.0
    %5828 = vmatpush1.msra.mxu0 0.0
    %5829 = vmatprep.subr.mxu0 0.0
    %5830 = vmatpush1.msra.mxu0 0.0
    %5831 = vmatprep.subr.mxu0 0.0
    %5832 = vmatpush1.msra.mxu0 0.0
    %5833 = vmatprep.subr.mxu0 0.0
    %5834 = vmatpush1.msra.mxu0 0.0
    %5835 = vmatprep.subr.mxu0 0.0
    %5836 = vmatpush1.msra.mxu0 0.0
    %5837 = vmatprep.subr.mxu0 0.0
    %5838 = vmatpush1.msra.mxu0 0.0
    %5839 = vmatprep.subr.mxu0 0.0
    %5840 = vmatpush1.msra.mxu0 0.0
    %5841 = vmatprep.subr.mxu0 0.0
    %5842 = vmatpush1.msra.mxu0 0.0
    %5843 = vmatprep.subr.mxu0 0.0
    %5844 = vmatpush1.msra.mxu0 0.0
    %5845 = vmatprep.subr.mxu0 0.0
    %5846 = vmatpush1.msra.mxu0 0.0
    %5847 = vmatprep.mubr.f32.mxu0 0.0
    %5848 = vmatmul.mubr.f32.gmra.mrb[0].mxu0 %v5763
    %v5849 = vpop.f32.mrb[0].mxu0
    %v5850 = vadd.f32 0.0, %v5849
    %v5851 = vpop.f32.mrb[0].mxu0
    %v5852 = vadd.f32 0.0, %v5851
    %5853 = vmatprep.mubr.f32.mxu0 0.0
    %5854 = vmatmul.mubr.f32.gmra.mrb[0].mxu0 %v5766
    %v5855 = vpop.f32.mrb[0].mxu0
    %v5856 = vadd.f32 0.0, %v5855
    %v5857 = vpop.f32.mrb[0].mxu0
    %v5858 = vadd.f32 0.0, %v5857
    %5859 = vmatprep.mubr.f32.mxu0 0.0
    %5860 = vmatmul.mubr.f32.gmra.mrb[0].mxu0 %v5769
    %v5861 = vpop.f32.mrb[0].mxu0
    %v5862 = vadd.f32 0.0, %v5861
    %v5863 = vpop.f32.mrb[0].mxu0
    %v5864 = vadd.f32 0.0, %v5863
    %5865 = vmatprep.mubr.f32.mxu0 0.0
    %5866 = vmatmul.mubr.f32.gmra.mrb[0].mxu0 %v5772
    %v5867 = vpop.f32.mrb[0].mxu0
    %v5868 = vadd.f32 0.0, %v5867
    %v5869 = vpop.f32.mrb[0].mxu0
    %v5870 = vadd.f32 0.0, %v5869
    %5871 = vmatprep.mubr.f32.mxu0 0.0
    %5872 = vmatmul.mubr.f32.gmra.mrb[0].mxu0 %v5775
    %v5873 = vpop.f32.mrb[0].mxu0
    %v5874 = vadd.f32 0.0, %v5873
    %v5875 = vpop.f32.mrb[0].mxu0
    %v5876 = vadd.f32 0.0, %v5875
    %5877 = vmatprep.mubr.f32.mxu0 0.0
    %5878 = vmatmul.mubr.f32.gmra.mrb[0].mxu0 %v5778
    %v5879 = vpop.f32.mrb[0].mxu0
    %v5880 = vadd.f32 0.0, %v5879
    %v5881 = vpop.f32.mrb[0].mxu0
    %v5882 = vadd.f32 0.0, %v5881
    %5883 = vmatprep.mubr.f32.mxu0 0.0
    %5884 = vmatmul.mubr.f32.gmra.mrb[0].mxu0 %v5781
    %v5885 = vpop.f32.mrb[0].mxu0
    %v5886 = vadd.f32 0.0, %v5885
    %v5887 = vpop.f32.mrb[0].mxu0
    %v5888 = vadd.f32 0.0, %v5887
    %5889 = vdwg.mxu0
    %5890 = vmatprep.subr.mxu0 %v744
    %5891 = vmatpush1.msra.mxu0 %v743
    %5892 = vmatprep.subr.mxu0 %v748
    %5893 = vmatpush1.msra.mxu0 %v747
    %5894 = vmatprep.subr.mxu0 %v752
    %5895 = vmatpush1.msra.mxu0 %v751
    %5896 = vmatprep.subr.mxu0 %v756
    %5897 = vmatpush1.msra.mxu0 %v755
    %5898 = vmatprep.subr.mxu0 0.0
    %5899 = vmatpush1.msra.mxu0 0.0
    %5900 = vmatprep.subr.mxu0 0.0
    %5901 = vmatpush1.msra.mxu0 0.0
    %5902 = vmatprep.subr.mxu0 0.0
    %5903 = vmatpush1.msra.mxu0 0.0
    %5904 = vmatprep.subr.mxu0 0.0
    %5905 = vmatpush1.msra.mxu0 0.0
    %5906 = vmatprep.subr.mxu0 0.0
    %5907 = vmatpush1.msra.mxu0 0.0
    %5908 = vmatprep.subr.mxu0 0.0
    %5909 = vmatpush1.msra.mxu0 0.0
    %5910 = vmatprep.subr.mxu0 0.0
    %5911 = vmatpush1.msra.mxu0 0.0
    %5912 = vmatprep.subr.mxu0 0.0
    %5913 = vmatpush1.msra.mxu0 0.0
    %5914 = vmatprep.subr.mxu0 0.0
    %5915 = vmatpush1.msra.mxu0 0.0
    %5916 = vmatprep.subr.mxu0 0.0
    %5917 = vmatpush1.msra.mxu0 0.0
    %5918 = vmatprep.subr.mxu0 0.0
    %5919 = vmatpush1.msra.mxu0 0.0
    %5920 = vmatprep.subr.mxu0 0.0
    %5921 = vmatpush1.msra.mxu0 0.0
    %5922 = vmatprep.subr.mxu0 0.0
    %5923 = vmatpush1.msra.mxu0 0.0
    %5924 = vmatprep.subr.mxu0 0.0
    %5925 = vmatpush1.msra.mxu0 0.0
    %5926 = vmatprep.subr.mxu0 0.0
    %5927 = vmatpush1.msra.mxu0 0.0
    %5928 = vmatprep.subr.mxu0 0.0
    %5929 = vmatpush1.msra.mxu0 0.0
    %5930 = vmatprep.subr.mxu0 0.0
    %5931 = vmatpush1.msra.mxu0 0.0
    %5932 = vmatprep.subr.mxu0 0.0
    %5933 = vmatpush1.msra.mxu0 0.0
    %5934 = vmatprep.subr.mxu0 0.0
    %5935 = vmatpush1.msra.mxu0 0.0
    %5936 = vmatprep.subr.mxu0 0.0
    %5937 = vmatpush1.msra.mxu0 0.0
    %5938 = vmatprep.subr.mxu0 0.0
    %5939 = vmatpush1.msra.mxu0 0.0
    %5940 = vmatprep.subr.mxu0 0.0
    %5941 = vmatpush1.msra.mxu0 0.0
    %5942 = vmatprep.subr.mxu0 0.0
    %5943 = vmatpush1.msra.mxu0 0.0
    %5944 = vmatprep.subr.mxu0 0.0
    %5945 = vmatpush1.msra.mxu0 0.0
    %5946 = vmatprep.subr.mxu0 0.0
    %5947 = vmatpush1.msra.mxu0 0.0
    %5948 = vmatprep.subr.mxu0 0.0
    %5949 = vmatpush1.msra.mxu0 0.0
    %5950 = vmatprep.subr.mxu0 0.0
    %5951 = vmatpush1.msra.mxu0 0.0
    %5952 = vmatprep.subr.mxu0 0.0
    %5953 = vmatpush1.msra.mxu0 0.0
    %5954 = vmatprep.mubr.f32.mxu0 0.0
    %5955 = vmatmul.mubr.f32.gmra.mrb[0].mxu0 %v5763
    %v5956 = vpop.f32.mrb[0].mxu0
    %v5957 = vadd.f32 0.0, %v5956
    %v5958 = vpop.f32.mrb[0].mxu0
    %v5959 = vadd.f32 0.0, %v5958
    %5960 = vmatprep.mubr.f32.mxu0 0.0
    %5961 = vmatmul.mubr.f32.gmra.mrb[0].mxu0 %v5766
    %v5962 = vpop.f32.mrb[0].mxu0
    %v5963 = vadd.f32 0.0, %v5962
    %v5964 = vpop.f32.mrb[0].mxu0
    %v5965 = vadd.f32 0.0, %v5964
    %5966 = vmatprep.mubr.f32.mxu0 0.0
    %5967 = vmatmul.mubr.f32.gmra.mrb[0].mxu0 %v5769
    %v5968 = vpop.f32.mrb[0].mxu0
    %v5969 = vadd.f32 0.0, %v5968
    %v5970 = vpop.f32.mrb[0].mxu0
    %v5971 = vadd.f32 0.0, %v5970
    %5972 = vmatprep.mubr.f32.mxu0 0.0
    %5973 = vmatmul.mubr.f32.gmra.mrb[0].mxu0 %v5772
    %v5974 = vpop.f32.mrb[0].mxu0
    %v5975 = vadd.f32 0.0, %v5974
    %v5976 = vpop.f32.mrb[0].mxu0
    %v5977 = vadd.f32 0.0, %v5976
    %5978 = vmatprep.mubr.f32.mxu0 0.0
    %5979 = vmatmul.mubr.f32.gmra.mrb[0].mxu0 %v5775
    %v5980 = vpop.f32.mrb[0].mxu0
    %v5981 = vadd.f32 0.0, %v5980
    %v5982 = vpop.f32.mrb[0].mxu0
    %v5983 = vadd.f32 0.0, %v5982
    %5984 = vmatprep.mubr.f32.mxu0 0.0
    %5985 = vmatmul.mubr.f32.gmra.mrb[0].mxu0 %v5778
    %v5986 = vpop.f32.mrb[0].mxu0
    %v5987 = vadd.f32 0.0, %v5986
    %v5988 = vpop.f32.mrb[0].mxu0
    %v5989 = vadd.f32 0.0, %v5988
    %5990 = vmatprep.mubr.f32.mxu0 0.0
    %5991 = vmatmul.mubr.f32.gmra.mrb[0].mxu0 %v5781
    %v5992 = vpop.f32.mrb[0].mxu0
    %v5993 = vadd.f32 0.0, %v5992
    %v5994 = vpop.f32.mrb[0].mxu0
    %v5995 = vadd.f32 0.0, %v5994
    %5996 = vdwg.mxu0
    %6004 = vrot.lane.b32.xlu0 %v5347, 96
    %v6005 = vpop.permute.xlu0 %6004
    %6006 = vrot.lane.b32.xlu0 %v5350, 96
    %v6007 = vpop.permute.xlu0 %6006
    %6008 = vrot.lane.b32.xlu0 %v5355, 96
    %v6009 = vpop.permute.xlu0 %6008
    %6010 = vrot.lane.b32.xlu0 %v5358, 96
    %v6011 = vpop.permute.xlu0 %6010
    %6012 = vrot.lane.b32.xlu0 %v5363, 96
    %v6013 = vpop.permute.xlu0 %6012
    %6014 = vrot.lane.b32.xlu0 %v5366, 96
    %v6015 = vpop.permute.xlu0 %6014
    %6016 = vrot.lane.b32.xlu0 %v5371, 96
    %v6017 = vpop.permute.xlu0 %6016
    %v6018 = vsel %vm1755, %v6005, 0
    %v6020 = vsel %vm1755, %v6007, 0
    %v6022 = vsel %vm1755, %v6009, 0
    %v6024 = vsel %vm1755, %v6011, 0
    %v6026 = vsel %vm1755, %v6013, 0
    %v6028 = vsel %vm1755, %v6015, 0
    %v6030 = vsel %vm1755, %v6017, 0
    %6032 = vmatprep.subr.mxu0 %v758
    %6033 = vmatpush1.msra.mxu0 %v757
    %6034 = vmatprep.subr.mxu0 %v762
    %6035 = vmatpush1.msra.mxu0 %v761
    %6036 = vmatprep.subr.mxu0 0.0
    %6037 = vmatpush1.msra.mxu0 0.0
    %6038 = vmatprep.subr.mxu0 0.0
    %6039 = vmatpush1.msra.mxu0 0.0
    %6040 = vmatprep.subr.mxu0 0.0
    %6041 = vmatpush1.msra.mxu0 0.0
    %6042 = vmatprep.subr.mxu0 0.0
    %6043 = vmatpush1.msra.mxu0 0.0
    %6044 = vmatprep.subr.mxu0 0.0
    %6045 = vmatpush1.msra.mxu0 0.0
    %6046 = vmatprep.subr.mxu0 0.0
    %6047 = vmatpush1.msra.mxu0 0.0
    %6048 = vmatprep.subr.mxu0 0.0
    %6049 = vmatpush1.msra.mxu0 0.0
    %6050 = vmatprep.subr.mxu0 0.0
    %6051 = vmatpush1.msra.mxu0 0.0
    %6052 = vmatprep.subr.mxu0 0.0
    %6053 = vmatpush1.msra.mxu0 0.0
    %6054 = vmatprep.subr.mxu0 0.0
    %6055 = vmatpush1.msra.mxu0 0.0
    %6056 = vmatprep.subr.mxu0 0.0
    %6057 = vmatpush1.msra.mxu0 0.0
    %6058 = vmatprep.subr.mxu0 0.0
    %6059 = vmatpush1.msra.mxu0 0.0
    %6060 = vmatprep.subr.mxu0 0.0
    %6061 = vmatpush1.msra.mxu0 0.0
    %6062 = vmatprep.subr.mxu0 0.0
    %6063 = vmatpush1.msra.mxu0 0.0
    %6064 = vmatprep.subr.mxu0 0.0
    %6065 = vmatpush1.msra.mxu0 0.0
    %6066 = vmatprep.subr.mxu0 0.0
    %6067 = vmatpush1.msra.mxu0 0.0
    %6068 = vmatprep.subr.mxu0 0.0
    %6069 = vmatpush1.msra.mxu0 0.0
    %6070 = vmatprep.subr.mxu0 0.0
    %6071 = vmatpush1.msra.mxu0 0.0
    %6072 = vmatprep.subr.mxu0 0.0
    %6073 = vmatpush1.msra.mxu0 0.0
    %6074 = vmatprep.subr.mxu0 0.0
    %6075 = vmatpush1.msra.mxu0 0.0
    %6076 = vmatprep.subr.mxu0 0.0
    %6077 = vmatpush1.msra.mxu0 0.0
    %6078 = vmatprep.subr.mxu0 0.0
    %6079 = vmatpush1.msra.mxu0 0.0
    %6080 = vmatprep.subr.mxu0 0.0
    %6081 = vmatpush1.msra.mxu0 0.0
    %6082 = vmatprep.subr.mxu0 0.0
    %6083 = vmatpush1.msra.mxu0 0.0
    %6084 = vmatprep.subr.mxu0 0.0
    %6085 = vmatpush1.msra.mxu0 0.0
    %6086 = vmatprep.subr.mxu0 0.0
    %6087 = vmatpush1.msra.mxu0 0.0
    %6088 = vmatprep.subr.mxu0 0.0
    %6089 = vmatpush1.msra.mxu0 0.0
    %6090 = vmatprep.subr.mxu0 0.0
    %6091 = vmatpush1.msra.mxu0 0.0
    %6092 = vmatprep.subr.mxu0 0.0
    %6093 = vmatpush1.msra.mxu0 0.0
    %6094 = vmatprep.subr.mxu0 0.0
    %6095 = vmatpush1.msra.mxu0 0.0
    %6096 = vmatprep.mubr.f32.mxu0 0.0
    %6097 = vmatmul.mubr.f32.gmra.mrb[0].mxu0 %v6018
    %v6098 = vpop.f32.mrb[0].mxu0
    %v6099 = vadd.f32 0.0, %v6098
    %v6100 = vpop.f32.mrb[0].mxu0
    %v6101 = vadd.f32 0.0, %v6100
    %6102 = vmatprep.mubr.f32.mxu0 0.0
    %6103 = vmatmul.mubr.f32.gmra.mrb[0].mxu0 %v6020
    %v6104 = vpop.f32.mrb[0].mxu0
    %v6105 = vadd.f32 0.0, %v6104
    %v6106 = vpop.f32.mrb[0].mxu0
    %v6107 = vadd.f32 0.0, %v6106
    %6108 = vmatprep.mubr.f32.mxu0 0.0
    %6109 = vmatmul.mubr.f32.gmra.mrb[0].mxu0 %v6022
    %v6110 = vpop.f32.mrb[0].mxu0
    %v6111 = vadd.f32 0.0, %v6110
    %v6112 = vpop.f32.mrb[0].mxu0
    %v6113 = vadd.f32 0.0, %v6112
    %6114 = vmatprep.mubr.f32.mxu0 0.0
    %6115 = vmatmul.mubr.f32.gmra.mrb[0].mxu0 %v6024
    %v6116 = vpop.f32.mrb[0].mxu0
    %v6117 = vadd.f32 0.0, %v6116
    %v6118 = vpop.f32.mrb[0].mxu0
    %v6119 = vadd.f32 0.0, %v6118
    %6120 = vmatprep.mubr.f32.mxu0 0.0
    %6121 = vmatmul.mubr.f32.gmra.mrb[0].mxu0 %v6026
    %v6122 = vpop.f32.mrb[0].mxu0
    %v6123 = vadd.f32 0.0, %v6122
    %v6124 = vpop.f32.mrb[0].mxu0
    %v6125 = vadd.f32 0.0, %v6124
    %6126 = vmatprep.mubr.f32.mxu0 0.0
    %6127 = vmatmul.mubr.f32.gmra.mrb[0].mxu0 %v6028
    %v6128 = vpop.f32.mrb[0].mxu0
    %v6129 = vadd.f32 0.0, %v6128
    %v6130 = vpop.f32.mrb[0].mxu0
    %v6131 = vadd.f32 0.0, %v6130
    %6132 = vmatprep.mubr.f32.mxu0 0.0
    %6133 = vmatmul.mubr.f32.gmra.mrb[0].mxu0 %v6030
    %v6134 = vpop.f32.mrb[0].mxu0
    %v6135 = vadd.f32 0.0, %v6134
    %v6136 = vpop.f32.mrb[0].mxu0
    %v6137 = vadd.f32 0.0, %v6136
    %6138 = vdwg.mxu0
    %6139 = vmatprep.subr.mxu0 %v760
    %6140 = vmatpush1.msra.mxu0 %v759
    %6141 = vmatprep.subr.mxu0 %v764
    %6142 = vmatpush1.msra.mxu0 %v763
    %6143 = vmatprep.subr.mxu0 0.0
    %6144 = vmatpush1.msra.mxu0 0.0
    %6145 = vmatprep.subr.mxu0 0.0
    %6146 = vmatpush1.msra.mxu0 0.0
    %6147 = vmatprep.subr.mxu0 0.0
    %6148 = vmatpush1.msra.mxu0 0.0
    %6149 = vmatprep.subr.mxu0 0.0
    %6150 = vmatpush1.msra.mxu0 0.0
    %6151 = vmatprep.subr.mxu0 0.0
    %6152 = vmatpush1.msra.mxu0 0.0
    %6153 = vmatprep.subr.mxu0 0.0
    %6154 = vmatpush1.msra.mxu0 0.0
    %6155 = vmatprep.subr.mxu0 0.0
    %6156 = vmatpush1.msra.mxu0 0.0
    %6157 = vmatprep.subr.mxu0 0.0
    %6158 = vmatpush1.msra.mxu0 0.0
    %6159 = vmatprep.subr.mxu0 0.0
    %6160 = vmatpush1.msra.mxu0 0.0
    %6161 = vmatprep.subr.mxu0 0.0
    %6162 = vmatpush1.msra.mxu0 0.0
    %6163 = vmatprep.subr.mxu0 0.0
    %6164 = vmatpush1.msra.mxu0 0.0
    %6165 = vmatprep.subr.mxu0 0.0
    %6166 = vmatpush1.msra.mxu0 0.0
    %6167 = vmatprep.subr.mxu0 0.0
    %6168 = vmatpush1.msra.mxu0 0.0
    %6169 = vmatprep.subr.mxu0 0.0
    %6170 = vmatpush1.msra.mxu0 0.0
    %6171 = vmatprep.subr.mxu0 0.0
    %6172 = vmatpush1.msra.mxu0 0.0
    %6173 = vmatprep.subr.mxu0 0.0
    %6174 = vmatpush1.msra.mxu0 0.0
    %6175 = vmatprep.subr.mxu0 0.0
    %6176 = vmatpush1.msra.mxu0 0.0
    %6177 = vmatprep.subr.mxu0 0.0
    %6178 = vmatpush1.msra.mxu0 0.0
    %6179 = vmatprep.subr.mxu0 0.0
    %6180 = vmatpush1.msra.mxu0 0.0
    %6181 = vmatprep.subr.mxu0 0.0
    %6182 = vmatpush1.msra.mxu0 0.0
    %6183 = vmatprep.subr.mxu0 0.0
    %6184 = vmatpush1.msra.mxu0 0.0
    %6185 = vmatprep.subr.mxu0 0.0
    %6186 = vmatpush1.msra.mxu0 0.0
    %6187 = vmatprep.subr.mxu0 0.0
    %6188 = vmatpush1.msra.mxu0 0.0
    %6189 = vmatprep.subr.mxu0 0.0
    %6190 = vmatpush1.msra.mxu0 0.0
    %6191 = vmatprep.subr.mxu0 0.0
    %6192 = vmatpush1.msra.mxu0 0.0
    %6193 = vmatprep.subr.mxu0 0.0
    %6194 = vmatpush1.msra.mxu0 0.0
    %6195 = vmatprep.subr.mxu0 0.0
    %6196 = vmatpush1.msra.mxu0 0.0
    %6197 = vmatprep.subr.mxu0 0.0
    %6198 = vmatpush1.msra.mxu0 0.0
    %6199 = vmatprep.subr.mxu0 0.0
    %6200 = vmatpush1.msra.mxu0 0.0
    %6201 = vmatprep.subr.mxu0 0.0
    %6202 = vmatpush1.msra.mxu0 0.0
    %6203 = vmatprep.mubr.f32.mxu0 0.0
    %6204 = vmatmul.mubr.f32.gmra.mrb[0].mxu0 %v6018
    %v6205 = vpop.f32.mrb[0].mxu0
    %v6206 = vadd.f32 0.0, %v6205
    %v6207 = vpop.f32.mrb[0].mxu0
    %v6208 = vadd.f32 0.0, %v6207
    %6209 = vmatprep.mubr.f32.mxu0 0.0
    %6210 = vmatmul.mubr.f32.gmra.mrb[0].mxu0 %v6020
    %v6211 = vpop.f32.mrb[0].mxu0
    %v6212 = vadd.f32 0.0, %v6211
    %v6213 = vpop.f32.mrb[0].mxu0
    %v6214 = vadd.f32 0.0, %v6213
    %6215 = vmatprep.mubr.f32.mxu0 0.0
    %6216 = vmatmul.mubr.f32.gmra.mrb[0].mxu0 %v6022
    %v6217 = vpop.f32.mrb[0].mxu0
    %v6218 = vadd.f32 0.0, %v6217
    %v6219 = vpop.f32.mrb[0].mxu0
    %v6220 = vadd.f32 0.0, %v6219
    %6221 = vmatprep.mubr.f32.mxu0 0.0
    %6222 = vmatmul.mubr.f32.gmra.mrb[0].mxu0 %v6024
    %v6223 = vpop.f32.mrb[0].mxu0
    %v6224 = vadd.f32 0.0, %v6223
    %v6225 = vpop.f32.mrb[0].mxu0
    %v6226 = vadd.f32 0.0, %v6225
    %6227 = vmatprep.mubr.f32.mxu0 0.0
    %6228 = vmatmul.mubr.f32.gmra.mrb[0].mxu0 %v6026
    %v6229 = vpop.f32.mrb[0].mxu0
    %v6230 = vadd.f32 0.0, %v6229
    %v6231 = vpop.f32.mrb[0].mxu0
    %v6232 = vadd.f32 0.0, %v6231
    %6233 = vmatprep.mubr.f32.mxu0 0.0
    %6234 = vmatmul.mubr.f32.gmra.mrb[0].mxu0 %v6028
    %v6235 = vpop.f32.mrb[0].mxu0
    %v6236 = vadd.f32 0.0, %v6235
    %v6237 = vpop.f32.mrb[0].mxu0
    %v6238 = vadd.f32 0.0, %v6237
    %6239 = vmatprep.mubr.f32.mxu0 0.0
    %6240 = vmatmul.mubr.f32.gmra.mrb[0].mxu0 %v6030
    %v6241 = vpop.f32.mrb[0].mxu0
    %v6242 = vadd.f32 0.0, %v6241
    %v6243 = vpop.f32.mrb[0].mxu0
    %v6244 = vadd.f32 0.0, %v6243
    %6245 = vdwg.mxu0
    %v6246 = vmul.f32 %v5850, %v6099
    %v6247 = vmul.f32 %v5852, %v6101
    %v6248 = vmul.f32 %v5957, %v6206
    %v6249 = vmul.f32 %v5959, %v6208
    %v6250 = vmul.f32 %v5856, %v6105
    %v6251 = vmul.f32 %v5858, %v6107
    %v6252 = vmul.f32 %v5963, %v6212
    %v6253 = vmul.f32 %v5965, %v6214
    %v6254 = vmul.f32 %v5862, %v6111
    %v6255 = vmul.f32 %v5864, %v6113
    %v6256 = vmul.f32 %v5969, %v6218
    %v6257 = vmul.f32 %v5971, %v6220
    %v6258 = vmul.f32 %v5868, %v6117
    %v6259 = vmul.f32 %v5870, %v6119
    %v6260 = vmul.f32 %v5975, %v6224
    %v6261 = vmul.f32 %v5977, %v6226
    %v6262 = vmul.f32 %v5874, %v6123
    %v6263 = vmul.f32 %v5876, %v6125
    %v6264 = vmul.f32 %v5981, %v6230
    %v6265 = vmul.f32 %v5983, %v6232
    %v6266 = vmul.f32 %v5880, %v6129
    %v6267 = vmul.f32 %v5882, %v6131
    %v6268 = vmul.f32 %v5987, %v6236
    %v6269 = vmul.f32 %v5989, %v6238
    %v6270 = vmul.f32 %v5886, %v6135
    %v6271 = vmul.f32 %v5888, %v6137
    %v6272 = vmul.f32 %v5993, %v6242
    %v6273 = vmul.f32 %v5995, %v6244
    %6274 = vrot.lane.b32.xlu0 %v5347, 80
    %v6275 = vpop.permute.xlu0 %6274
    %6276 = vrot.lane.b32.xlu0 %v5350, 80
    %v6277 = vpop.permute.xlu0 %6276
    %6278 = vrot.lane.b32.xlu0 %v5355, 80
    %v6279 = vpop.permute.xlu0 %6278
    %6280 = vrot.lane.b32.xlu0 %v5358, 80
    %v6281 = vpop.permute.xlu0 %6280
    %6282 = vrot.lane.b32.xlu0 %v5363, 80
    %v6283 = vpop.permute.xlu0 %6282
    %6284 = vrot.lane.b32.xlu0 %v5366, 80
    %v6285 = vpop.permute.xlu0 %6284
    %6286 = vrot.lane.b32.xlu0 %v5371, 80
    %v6287 = vpop.permute.xlu0 %6286
    %v6288 = vsel %vm1755, %v6275, 0
    %v6290 = vsel %vm1755, %v6277, 0
    %v6292 = vsel %vm1755, %v6279, 0
    %v6294 = vsel %vm1755, %v6281, 0
    %v6296 = vsel %vm1755, %v6283, 0
    %v6298 = vsel %vm1755, %v6285, 0
    %v6300 = vsel %vm1755, %v6287, 0
    %6302 = vmatprep.subr.mxu0 %v758
    %6303 = vmatpush1.msra.mxu0 %v757
    %6304 = vmatprep.subr.mxu0 %v762
    %6305 = vmatpush1.msra.mxu0 %v761
    %6306 = vmatprep.subr.mxu0 0.0
    %6307 = vmatpush1.msra.mxu0 0.0
    %6308 = vmatprep.subr.mxu0 0.0
    %6309 = vmatpush1.msra.mxu0 0.0
    %6310 = vmatprep.subr.mxu0 0.0
    %6311 = vmatpush1.msra.mxu0 0.0
    %6312 = vmatprep.subr.mxu0 0.0
    %6313 = vmatpush1.msra.mxu0 0.0
    %6314 = vmatprep.subr.mxu0 0.0
    %6315 = vmatpush1.msra.mxu0 0.0
    %6316 = vmatprep.subr.mxu0 0.0
    %6317 = vmatpush1.msra.mxu0 0.0
    %6318 = vmatprep.subr.mxu0 0.0
    %6319 = vmatpush1.msra.mxu0 0.0
    %6320 = vmatprep.subr.mxu0 0.0
    %6321 = vmatpush1.msra.mxu0 0.0
    %6322 = vmatprep.subr.mxu0 0.0
    %6323 = vmatpush1.msra.mxu0 0.0
    %6324 = vmatprep.subr.mxu0 0.0
    %6325 = vmatpush1.msra.mxu0 0.0
    %6326 = vmatprep.subr.mxu0 0.0
    %6327 = vmatpush1.msra.mxu0 0.0
    %6328 = vmatprep.subr.mxu0 0.0
    %6329 = vmatpush1.msra.mxu0 0.0
    %6330 = vmatprep.subr.mxu0 0.0
    %6331 = vmatpush1.msra.mxu0 0.0
    %6332 = vmatprep.subr.mxu0 0.0
    %6333 = vmatpush1.msra.mxu0 0.0
    %6334 = vmatprep.subr.mxu0 0.0
    %6335 = vmatpush1.msra.mxu0 0.0
    %6336 = vmatprep.subr.mxu0 0.0
    %6337 = vmatpush1.msra.mxu0 0.0
    %6338 = vmatprep.subr.mxu0 0.0
    %6339 = vmatpush1.msra.mxu0 0.0
    %6340 = vmatprep.subr.mxu0 0.0
    %6341 = vmatpush1.msra.mxu0 0.0
    %6342 = vmatprep.subr.mxu0 0.0
    %6343 = vmatpush1.msra.mxu0 0.0
    %6344 = vmatprep.subr.mxu0 0.0
    %6345 = vmatpush1.msra.mxu0 0.0
    %6346 = vmatprep.subr.mxu0 0.0
    %6347 = vmatpush1.msra.mxu0 0.0
    %6348 = vmatprep.subr.mxu0 0.0
    %6349 = vmatpush1.msra.mxu0 0.0
    %6350 = vmatprep.subr.mxu0 0.0
    %6351 = vmatpush1.msra.mxu0 0.0
    %6352 = vmatprep.subr.mxu0 0.0
    %6353 = vmatpush1.msra.mxu0 0.0
    %6354 = vmatprep.subr.mxu0 0.0
    %6355 = vmatpush1.msra.mxu0 0.0
    %6356 = vmatprep.subr.mxu0 0.0
    %6357 = vmatpush1.msra.mxu0 0.0
    %6358 = vmatprep.subr.mxu0 0.0
    %6359 = vmatpush1.msra.mxu0 0.0
    %6360 = vmatprep.subr.mxu0 0.0
    %6361 = vmatpush1.msra.mxu0 0.0
    %6362 = vmatprep.subr.mxu0 0.0
    %6363 = vmatpush1.msra.mxu0 0.0
    %6364 = vmatprep.subr.mxu0 0.0
    %6365 = vmatpush1.msra.mxu0 0.0
    %6366 = vmatprep.mubr.f32.mxu0 0.0
    %6367 = vmatmul.mubr.f32.gmra.mrb[0].mxu0 %v6288
    %v6368 = vpop.f32.mrb[0].mxu0
    %v6369 = vadd.f32 0.0, %v6368
    %v6370 = vpop.f32.mrb[0].mxu0
    %v6371 = vadd.f32 0.0, %v6370
    %6372 = vmatprep.mubr.f32.mxu0 0.0
    %6373 = vmatmul.mubr.f32.gmra.mrb[0].mxu0 %v6290
    %v6374 = vpop.f32.mrb[0].mxu0
    %v6375 = vadd.f32 0.0, %v6374
    %v6376 = vpop.f32.mrb[0].mxu0
    %v6377 = vadd.f32 0.0, %v6376
    %6378 = vmatprep.mubr.f32.mxu0 0.0
    %6379 = vmatmul.mubr.f32.gmra.mrb[0].mxu0 %v6292
    %v6380 = vpop.f32.mrb[0].mxu0
    %v6381 = vadd.f32 0.0, %v6380
    %v6382 = vpop.f32.mrb[0].mxu0
    %v6383 = vadd.f32 0.0, %v6382
    %6384 = vmatprep.mubr.f32.mxu0 0.0
    %6385 = vmatmul.mubr.f32.gmra.mrb[0].mxu0 %v6294
    %v6386 = vpop.f32.mrb[0].mxu0
    %v6387 = vadd.f32 0.0, %v6386
    %v6388 = vpop.f32.mrb[0].mxu0
    %v6389 = vadd.f32 0.0, %v6388
    %6390 = vmatprep.mubr.f32.mxu0 0.0
    %6391 = vmatmul.mubr.f32.gmra.mrb[0].mxu0 %v6296
    %v6392 = vpop.f32.mrb[0].mxu0
    %v6393 = vadd.f32 0.0, %v6392
    %v6394 = vpop.f32.mrb[0].mxu0
    %v6395 = vadd.f32 0.0, %v6394
    %6396 = vmatprep.mubr.f32.mxu0 0.0
    %6397 = vmatmul.mubr.f32.gmra.mrb[0].mxu0 %v6298
    %v6398 = vpop.f32.mrb[0].mxu0
    %v6399 = vadd.f32 0.0, %v6398
    %v6400 = vpop.f32.mrb[0].mxu0
    %v6401 = vadd.f32 0.0, %v6400
    %6402 = vmatprep.mubr.f32.mxu0 0.0
    %6403 = vmatmul.mubr.f32.gmra.mrb[0].mxu0 %v6300
    %v6404 = vpop.f32.mrb[0].mxu0
    %v6405 = vadd.f32 0.0, %v6404
    %v6406 = vpop.f32.mrb[0].mxu0
    %v6407 = vadd.f32 0.0, %v6406
    %6408 = vdwg.mxu0
    %6409 = vmatprep.subr.mxu0 %v760
    %6410 = vmatpush1.msra.mxu0 %v759
    %6411 = vmatprep.subr.mxu0 %v764
    %6412 = vmatpush1.msra.mxu0 %v763
    %6413 = vmatprep.subr.mxu0 0.0
    %6414 = vmatpush1.msra.mxu0 0.0
    %6415 = vmatprep.subr.mxu0 0.0
    %6416 = vmatpush1.msra.mxu0 0.0
    %6417 = vmatprep.subr.mxu0 0.0
    %6418 = vmatpush1.msra.mxu0 0.0
    %6419 = vmatprep.subr.mxu0 0.0
    %6420 = vmatpush1.msra.mxu0 0.0
    %6421 = vmatprep.subr.mxu0 0.0
    %6422 = vmatpush1.msra.mxu0 0.0
    %6423 = vmatprep.subr.mxu0 0.0
    %6424 = vmatpush1.msra.mxu0 0.0
    %6425 = vmatprep.subr.mxu0 0.0
    %6426 = vmatpush1.msra.mxu0 0.0
    %6427 = vmatprep.subr.mxu0 0.0
    %6428 = vmatpush1.msra.mxu0 0.0
    %6429 = vmatprep.subr.mxu0 0.0
    %6430 = vmatpush1.msra.mxu0 0.0
    %6431 = vmatprep.subr.mxu0 0.0
    %6432 = vmatpush1.msra.mxu0 0.0
    %6433 = vmatprep.subr.mxu0 0.0
    %6434 = vmatpush1.msra.mxu0 0.0
    %6435 = vmatprep.subr.mxu0 0.0
    %6436 = vmatpush1.msra.mxu0 0.0
    %6437 = vmatprep.subr.mxu0 0.0
    %6438 = vmatpush1.msra.mxu0 0.0
    %6439 = vmatprep.subr.mxu0 0.0
    %6440 = vmatpush1.msra.mxu0 0.0
    %6441 = vmatprep.subr.mxu0 0.0
    %6442 = vmatpush1.msra.mxu0 0.0
    %6443 = vmatprep.subr.mxu0 0.0
    %6444 = vmatpush1.msra.mxu0 0.0
    %6445 = vmatprep.subr.mxu0 0.0
    %6446 = vmatpush1.msra.mxu0 0.0
    %6447 = vmatprep.subr.mxu0 0.0
    %6448 = vmatpush1.msra.mxu0 0.0
    %6449 = vmatprep.subr.mxu0 0.0
    %6450 = vmatpush1.msra.mxu0 0.0
    %6451 = vmatprep.subr.mxu0 0.0
    %6452 = vmatpush1.msra.mxu0 0.0
    %6453 = vmatprep.subr.mxu0 0.0
    %6454 = vmatpush1.msra.mxu0 0.0
    %6455 = vmatprep.subr.mxu0 0.0
    %6456 = vmatpush1.msra.mxu0 0.0
    %6457 = vmatprep.subr.mxu0 0.0
    %6458 = vmatpush1.msra.mxu0 0.0
    %6459 = vmatprep.subr.mxu0 0.0
    %6460 = vmatpush1.msra.mxu0 0.0
    %6461 = vmatprep.subr.mxu0 0.0
    %6462 = vmatpush1.msra.mxu0 0.0
    %6463 = vmatprep.subr.mxu0 0.0
    %6464 = vmatpush1.msra.mxu0 0.0
    %6465 = vmatprep.subr.mxu0 0.0
    %6466 = vmatpush1.msra.mxu0 0.0
    %6467 = vmatprep.subr.mxu0 0.0
    %6468 = vmatpush1.msra.mxu0 0.0
    %6469 = vmatprep.subr.mxu0 0.0
    %6470 = vmatpush1.msra.mxu0 0.0
    %6471 = vmatprep.subr.mxu0 0.0
    %6472 = vmatpush1.msra.mxu0 0.0
    %6473 = vmatprep.mubr.f32.mxu0 0.0
    %6474 = vmatmul.mubr.f32.gmra.mrb[0].mxu0 %v6288
    %v6475 = vpop.f32.mrb[0].mxu0
    %v6476 = vadd.f32 0.0, %v6475
    %v6477 = vpop.f32.mrb[0].mxu0
    %v6478 = vadd.f32 0.0, %v6477
    %6479 = vmatprep.mubr.f32.mxu0 0.0
    %6480 = vmatmul.mubr.f32.gmra.mrb[0].mxu0 %v6290
    %v6481 = vpop.f32.mrb[0].mxu0
    %v6482 = vadd.f32 0.0, %v6481
    %v6483 = vpop.f32.mrb[0].mxu0
    %v6484 = vadd.f32 0.0, %v6483
    %6485 = vmatprep.mubr.f32.mxu0 0.0
    %6486 = vmatmul.mubr.f32.gmra.mrb[0].mxu0 %v6292
    %v6487 = vpop.f32.mrb[0].mxu0
    %v6488 = vadd.f32 0.0, %v6487
    %v6489 = vpop.f32.mrb[0].mxu0
    %v6490 = vadd.f32 0.0, %v6489
    %6491 = vmatprep.mubr.f32.mxu0 0.0
    %6492 = vmatmul.mubr.f32.gmra.mrb[0].mxu0 %v6294
    %v6493 = vpop.f32.mrb[0].mxu0
    %v6494 = vadd.f32 0.0, %v6493
    %v6495 = vpop.f32.mrb[0].mxu0
    %v6496 = vadd.f32 0.0, %v6495
    %6497 = vmatprep.mubr.f32.mxu0 0.0
    %6498 = vmatmul.mubr.f32.gmra.mrb[0].mxu0 %v6296
    %v6499 = vpop.f32.mrb[0].mxu0
    %v6500 = vadd.f32 0.0, %v6499
    %v6501 = vpop.f32.mrb[0].mxu0
    %v6502 = vadd.f32 0.0, %v6501
    %6503 = vmatprep.mubr.f32.mxu0 0.0
    %6504 = vmatmul.mubr.f32.gmra.mrb[0].mxu0 %v6298
    %v6505 = vpop.f32.mrb[0].mxu0
    %v6506 = vadd.f32 0.0, %v6505
    %v6507 = vpop.f32.mrb[0].mxu0
    %v6508 = vadd.f32 0.0, %v6507
    %6509 = vmatprep.mubr.f32.mxu0 0.0
    %6510 = vmatmul.mubr.f32.gmra.mrb[0].mxu0 %v6300
    %v6511 = vpop.f32.mrb[0].mxu0
    %v6512 = vadd.f32 0.0, %v6511
    %v6513 = vpop.f32.mrb[0].mxu0
    %v6514 = vadd.f32 0.0, %v6513
    %6515 = vdwg.mxu0
    %s6516 = scalar_lea.vmem [#allocation10], 6
    %v6517 = vld [vmem:[%s6516] sm:$0x3]
    %v6518 = vlaneseq
    %v6519 = vshrl.u32 %v6518, 7
    %v6520 = vsub.s32 1, %v6519
    %v6521 = vrot.slane %v6517, %v6520
    %6523 = vrot.lane.b32.xlu0 %v6521, 64
    %v6524 = vpop.permute.xlu0 %6523
    %v6526 = vmul.f32 %v5155, %v6524
    %v6527 = vmul.f32 %v5158, %v6524
    %v6528 = vmul.f32 %v5163, %v6524
    %v6529 = vmul.f32 %v5166, %v6524
    %v6530 = vmul.f32 %v5171, %v6524
    %v6531 = vmul.f32 %v5174, %v6524
    %v6532 = vmul.f32 %v5179, %v6524
    %v6533 = vlaneseq
    %v6534 = vshrl.u32 %v6533, 7
    %v6535 = vsub.s32 0, %v6534
    %v6536 = vrot.slane %v6517, %v6535
    %6538 = vrot.lane.b32.xlu0 %v6536, 64
    %v6539 = vpop.permute.xlu0 %6538
    %v6541 = vmul.f32 %v5158, %v6539
    %v6542 = vmul.f32 %v5163, %v6539
    %v6543 = vmul.f32 %v5166, %v6539
    %v6544 = vmul.f32 %v5171, %v6539
    %v6545 = vmul.f32 %v5174, %v6539
    %v6546 = vmul.f32 %v5179, %v6539
    %v6547 = vmul.f32 %v6539, 0.0
    %v6548 = vadd.f32 %v6526, %v6541
    %v6549 = vadd.f32 %v6527, %v6542
    %v6550 = vadd.f32 %v6528, %v6543
    %v6551 = vadd.f32 %v6529, %v6544
    %v6552 = vadd.f32 %v6530, %v6545
    %v6553 = vadd.f32 %v6531, %v6546
    %v6554 = vadd.f32 %v6532, %v6547
    %s6555 = scalar_lea.vmem [#allocation11], 3
    %v6556 = vld [vmem:[%s6555] sm:$0x1]
    %v6558 = vlaneseq
    %v6559 = vshrl.u32 %v6558, 7
    %v6560 = vsub.s32 0, %v6559
    %v6561 = vrot.slane %v6556, %v6560
    %6562 = vrot.lane.b32.xlu0 %v6561, 64
    %v6563 = vpop.permute.xlu0 %6562
    %v6565 = vadd.f32 %v6548, %v6563
    %v6566 = vadd.f32 %v6549, %v6563
    %v6567 = vadd.f32 %v6550, %v6563
    %v6568 = vadd.f32 %v6551, %v6563
    %v6569 = vadd.f32 %v6552, %v6563
    %v6570 = vadd.f32 %v6553, %v6563
    %v6571 = vadd.f32 %v6554, %v6563
    %v6572 = vxor.u32 %v6565, 2147483648
    %v6573 = vxor.u32 %v6566, 2147483648
    %v6574 = vxor.u32 %v6567, 2147483648
    %v6575 = vxor.u32 %v6568, 2147483648
    %v6576 = vxor.u32 %v6569, 2147483648
    %v6577 = vxor.u32 %v6570, 2147483648
    %v6578 = vxor.u32 %v6571, 2147483648
    %v6579 = vmul.f32 %v6572, 1.442695
    %v6580 = vpow.pop %v6579
    %v6581 = vmul.f32 %v6573, 1.442695
    %v6582 = vpow.pop %v6581
    %v6583 = vmul.f32 %v6574, 1.442695
    %v6584 = vpow.pop %v6583
    %v6585 = vmul.f32 %v6575, 1.442695
    %v6586 = vpow.pop %v6585
    %v6587 = vmul.f32 %v6576, 1.442695
    %v6588 = vpow.pop %v6587
    %v6589 = vmul.f32 %v6577, 1.442695
    %v6590 = vpow.pop %v6589
    %v6591 = vmul.f32 %v6578, 1.442695
    %v6592 = vpow.pop %v6591
    %v6593 = vadd.f32 %v6580, 1.0
    %v6594 = vadd.f32 %v6582, 1.0
    %v6595 = vadd.f32 %v6584, 1.0
    %v6596 = vadd.f32 %v6586, 1.0
    %v6597 = vadd.f32 %v6588, 1.0
    %v6598 = vadd.f32 %v6590, 1.0
    %v6599 = vadd.f32 %v6592, 1.0
    %v6600 = vrcp.pop %v6593
    %v6601 = vmul.f32 1.0, %v6600
    %v6602 = vrcp.pop %v6594
    %v6603 = vmul.f32 1.0, %v6602
    %v6604 = vrcp.pop %v6595
    %v6605 = vmul.f32 1.0, %v6604
    %v6606 = vrcp.pop %v6596
    %v6607 = vmul.f32 1.0, %v6606
    %v6608 = vrcp.pop %v6597
    %v6609 = vmul.f32 1.0, %v6608
    %v6610 = vrcp.pop %v6598
    %v6611 = vmul.f32 1.0, %v6610
    %v6612 = vrcp.pop %v6599
    %v6613 = vmul.f32 1.0, %v6612
    %v6614 = vmul.f32 %v6565, %v6601
    %v6615 = vmul.f32 %v6566, %v6603
    %v6616 = vmul.f32 %v6567, %v6605
    %v6617 = vmul.f32 %v6568, %v6607
    %v6618 = vmul.f32 %v6569, %v6609
    %v6619 = vmul.f32 %v6570, %v6611
    %v6620 = vmul.f32 %v6571, %v6613
    %s6621 = scalar_lea.vmem [#allocation13], 48
    %v6622 = vld [vmem:[%s6621] sm:$0xf]
    %v6623 = vld [vmem:[%s6621 + $0x4] sm:$0xf]
    %v6624 = vld [vmem:[%s6621 + $0x8] sm:$0xf]
    %v6625 = vld [vmem:[%s6621 + $0xc] sm:$0xf]
    %v6626 = vpack.c.bf16 %v6615, %v6614
    %v6627 = vpack.c.bf16 %v6617, %v6616
    %v6628 = vpack.c.bf16 %v6619, %v6618
    %v6629 = vpack.c.bf16 %v6620, %v6620
    %6634 = vrot.lane.b32.xlu0 %v6626, 64
    %v6635 = vpop.permute.xlu0 %6634
    %6636 = vrot.lane.b32.xlu0 %v6627, 64
    %v6637 = vpop.permute.xlu0 %6636
    %6638 = vrot.lane.b32.xlu0 %v6628, 64
    %v6639 = vpop.permute.xlu0 %6638
    %6640 = vrot.lane.b32.xlu0 %v6629, 64
    %v6641 = vpop.permute.xlu0 %6640
    %v6646 = vunpack.c.l.b16 %v6622
    %v6647 = vunpack.c.l.b16 %v6623
    %v6648 = vunpack.c.l.b16 %v6624
    %v6649 = vunpack.c.l.b16 %v6625
    %v6650 = vpack.c.b16 %v6647, %v6646
    %v6651 = vpack.c.b16 %v6649, %v6648
    %v6655 = vsel %vm849, %v6635, 0
    %v6658 = vsel %vm849, %v6637, 0
    %v6661 = vsel %vm849, %v6639, 0
    %v6664 = vsel %vm849, %v6641, 0
    %6666 = vmatprep.subr.bf16.mxu0 0
    %6667 = vmatpush1.bf16.msra.mxu0 %v6650
    %6668 = vmatprep.subr.bf16.mxu0 0
    %6669 = vmatpush1.bf16.msra.mxu0 %v6651
    %6670 = vmatprep.subr.bf16.mxu0 0
    %6671 = vmatpush1.bf16.msra.mxu0 0
    %6672 = vmatprep.subr.bf16.mxu0 0
    %6673 = vmatpush1.bf16.msra.mxu0 0
    %6674 = vmatprep.subr.bf16.mxu0 0
    %6675 = vmatpush1.bf16.msra.mxu0 0
    %6676 = vmatprep.subr.bf16.mxu0 0
    %6677 = vmatpush1.bf16.msra.mxu0 0
    %6678 = vmatprep.subr.bf16.mxu0 0
    %6679 = vmatpush1.bf16.msra.mxu0 0
    %6680 = vmatprep.subr.bf16.mxu0 0
    %6681 = vmatpush1.bf16.msra.mxu0 0
    %6682 = vmatprep.subr.bf16.mxu0 0
    %6683 = vmatpush1.bf16.msra.mxu0 0
    %6684 = vmatprep.subr.bf16.mxu0 0
    %6685 = vmatpush1.bf16.msra.mxu0 0
    %6686 = vmatprep.subr.bf16.mxu0 0
    %6687 = vmatpush1.bf16.msra.mxu0 0
    %6688 = vmatprep.subr.bf16.mxu0 0
    %6689 = vmatpush1.bf16.msra.mxu0 0
    %6690 = vmatprep.subr.bf16.mxu0 0
    %6691 = vmatpush1.bf16.msra.mxu0 0
    %6692 = vmatprep.subr.bf16.mxu0 0
    %6693 = vmatpush1.bf16.msra.mxu0 0
    %6694 = vmatprep.subr.bf16.mxu0 0
    %6695 = vmatpush1.bf16.msra.mxu0 0
    %6696 = vmatprep.subr.bf16.mxu0 0
    %6697 = vmatpush1.bf16.msra.mxu0 0
    %6698 = vmatprep.mubr.bf16.mxu0 0
    %6699 = vmatmul.mubr.bf16.gmra.mrb[0].mxu0 %v6655
    %v6700 = vpop.f32.mrb[0].mxu0
    %v6701 = vadd.f32 0.0, %v6700
    %v6702 = vpop.f32.mrb[0].mxu0
    %v6703 = vpop.f32.mrb[0].mxu0
    %v6704 = vadd.f32 0.0, %v6703
    %v6705 = vpop.f32.mrb[0].mxu0
    %6706 = vmatprep.mubr.bf16.mxu0 0
    %6707 = vmatmul.mubr.bf16.gmra.mrb[0].mxu0 %v6658
    %v6708 = vpop.f32.mrb[0].mxu0
    %v6709 = vadd.f32 0.0, %v6708
    %v6710 = vpop.f32.mrb[0].mxu0
    %v6711 = vpop.f32.mrb[0].mxu0
    %v6712 = vadd.f32 0.0, %v6711
    %v6713 = vpop.f32.mrb[0].mxu0
    %6714 = vmatprep.mubr.bf16.mxu0 0
    %6715 = vmatmul.mubr.bf16.gmra.mrb[0].mxu0 %v6661
    %v6716 = vpop.f32.mrb[0].mxu0
    %v6717 = vadd.f32 0.0, %v6716
    %v6718 = vpop.f32.mrb[0].mxu0
    %v6719 = vpop.f32.mrb[0].mxu0
    %v6720 = vadd.f32 0.0, %v6719
    %v6721 = vpop.f32.mrb[0].mxu0
    %6722 = vmatprep.mubr.bf16.mxu0 0
    %6723 = vmatmul.mubr.bf16.gmra.mrb[0].mxu0 %v6664
    %v6724 = vpop.f32.mrb[0].mxu0
    %v6725 = vadd.f32 0.0, %v6724
    %v6726 = vpop.f32.mrb[0].mxu0
    %v6727 = vpop.f32.mrb[0].mxu0
    %v6728 = vpop.f32.mrb[0].mxu0
    %6729 = vdwg.mxu0
    %s6730 = scalar_lea.vmem [#allocation14], 3
    %v6731 = vld [vmem:[%s6730] sm:$0x1]
    %v6733 = vlaneseq
    %v6734 = vshrl.u32 %v6733, 7
    %v6735 = vsub.s32 0, %v6734
    %v6736 = vrot.slane %v6731, %v6735
    %v6738 = vadd.f32 %v6701, %v6736
    %v6739 = vadd.f32 %v6704, %v6736
    %v6740 = vadd.f32 %v6709, %v6736
    %v6741 = vadd.f32 %v6712, %v6736
    %v6742 = vadd.f32 %v6717, %v6736
    %v6743 = vadd.f32 %v6720, %v6736
    %v6744 = vadd.f32 %v6725, %v6736
    %vm6745 = vcmp.gt.f32.partialorder %v6738, 20.0
    %vm6746 = vcmp.gt.f32.partialorder %v6739, 20.0
    %vm6747 = vcmp.gt.f32.partialorder %v6740, 20.0
    %vm6748 = vcmp.gt.f32.partialorder %v6741, 20.0
    %vm6749 = vcmp.gt.f32.partialorder %v6742, 20.0
    %vm6750 = vcmp.gt.f32.partialorder %v6743, 20.0
    %vm6751 = vcmp.gt.f32.partialorder %v6744, 20.0
    %v6752 = vmin.f32 %v6738, 20.0
    %v6753 = vmin.f32 %v6739, 20.0
    %v6754 = vmin.f32 %v6740, 20.0
    %v6755 = vmin.f32 %v6741, 20.0
    %v6756 = vmin.f32 %v6742, 20.0
    %v6757 = vmin.f32 %v6743, 20.0
    %v6758 = vmin.f32 %v6744, 20.0
    %v6759 = vmul.f32 %v6752, 1.442695
    %v6760 = vpow.pop %v6759
    %v6761 = vmul.f32 %v6753, 1.442695
    %v6762 = vpow.pop %v6761
    %v6763 = vmul.f32 %v6754, 1.442695
    %v6764 = vpow.pop %v6763
    %v6765 = vmul.f32 %v6755, 1.442695
    %v6766 = vpow.pop %v6765
    %v6767 = vmul.f32 %v6756, 1.442695
    %v6768 = vpow.pop %v6767
    %v6769 = vmul.f32 %v6757, 1.442695
    %v6770 = vpow.pop %v6769
    %v6771 = vmul.f32 %v6758, 1.442695
    %v6772 = vpow.pop %v6771
    %v6773 = vadd.f32 %v6760, 1.0
    %v6774 = vadd.f32 %v6762, 1.0
    %v6775 = vadd.f32 %v6764, 1.0
    %v6776 = vadd.f32 %v6766, 1.0
    %v6777 = vadd.f32 %v6768, 1.0
    %v6778 = vadd.f32 %v6770, 1.0
    %v6779 = vadd.f32 %v6772, 1.0
    %v6780 = vlog2.pop %v6773
    %v6781 = vmul.f32 %v6780, 0.6931472
    %v6782 = vlog2.pop %v6774
    %v6783 = vmul.f32 %v6782, 0.6931472
    %v6784 = vlog2.pop %v6775
    %v6785 = vmul.f32 %v6784, 0.6931472
    %v6786 = vlog2.pop %v6776
    %v6787 = vmul.f32 %v6786, 0.6931472
    %v6788 = vlog2.pop %v6777
    %v6789 = vmul.f32 %v6788, 0.6931472
    %v6790 = vlog2.pop %v6778
    %v6791 = vmul.f32 %v6790, 0.6931472
    %v6792 = vlog2.pop %v6779
    %v6793 = vmul.f32 %v6792, 0.6931472
    %v6794 = vsel %vm6745, %v6738, %v6781
    %v6795 = vsel %vm6746, %v6739, %v6783
    %v6796 = vsel %vm6747, %v6740, %v6785
    %v6797 = vsel %vm6748, %v6741, %v6787
    %v6798 = vsel %vm6749, %v6742, %v6789
    %v6799 = vsel %vm6750, %v6743, %v6791
    %v6800 = vsel %vm6751, %v6744, %v6793
    %s6801 = scalar_lea.vmem [#allocation16], 384
    %v6802 = vld [vmem:[%s6801] sm:$0xff]
    %v6803 = vld [vmem:[%s6801 + $0x8] sm:$0xff]
    %v6804 = vld [vmem:[%s6801 + $0x10] sm:$0xff]
    %v6805 = vld [vmem:[%s6801 + $0x18] sm:$0xff]
    %v6806 = vld [vmem:[%s6801 + $0x20] sm:$0xff]
    %v6807 = vld [vmem:[%s6801 + $0x28] sm:$0xff]
    %v6808 = vld [vmem:[%s6801 + $0x30] sm:$0xff]
    %v6809 = vld [vmem:[%s6801 + $0x38] sm:$0xff]
    %v6810 = vld [vmem:[%s6801 + $0x40] sm:$0xff]
    %v6811 = vld [vmem:[%s6801 + $0x48] sm:$0xff]
    %v6812 = vld [vmem:[%s6801 + $0x50] sm:$0xff]
    %v6813 = vld [vmem:[%s6801 + $0x58] sm:$0xff]
    %v6814 = vld [vmem:[%s6801 + $0x60] sm:$0xff]
    %v6815 = vld [vmem:[%s6801 + $0x68] sm:$0xff]
    %v6816 = vld [vmem:[%s6801 + $0x70] sm:$0xff]
    %v6817 = vld [vmem:[%s6801 + $0x78] sm:$0xff]
    %v6819 = vsel %vm849, %v6794, 0
    %v6822 = vsel %vm849, %v6795, 0
    %v6825 = vsel %vm849, %v6796, 0
    %v6828 = vsel %vm849, %v6797, 0
    %v6831 = vsel %vm849, %v6798, 0
    %v6834 = vsel %vm849, %v6799, 0
    %v6837 = vsel %vm849, %v6800, 0
    %6839 = vmatprep.subr.mxu0 %v6803
    %6840 = vmatpush1.msra.mxu0 %v6802
    %6841 = vmatprep.subr.mxu0 %v6807
    %6842 = vmatpush1.msra.mxu0 %v6806
    %6843 = vmatprep.subr.mxu0 %v6811
    %6844 = vmatpush1.msra.mxu0 %v6810
    %6845 = vmatprep.subr.mxu0 %v6815
    %6846 = vmatpush1.msra.mxu0 %v6814
    %6847 = vmatprep.subr.mxu0 0.0
    %6848 = vmatpush1.msra.mxu0 0.0
    %6849 = vmatprep.subr.mxu0 0.0
    %6850 = vmatpush1.msra.mxu0 0.0
    %6851 = vmatprep.subr.mxu0 0.0
    %6852 = vmatpush1.msra.mxu0 0.0
    %6853 = vmatprep.subr.mxu0 0.0
    %6854 = vmatpush1.msra.mxu0 0.0
    %6855 = vmatprep.subr.mxu0 0.0
    %6856 = vmatpush1.msra.mxu0 0.0
    %6857 = vmatprep.subr.mxu0 0.0
    %6858 = vmatpush1.msra.mxu0 0.0
    %6859 = vmatprep.subr.mxu0 0.0
    %6860 = vmatpush1.msra.mxu0 0.0
    %6861 = vmatprep.subr.mxu0 0.0
    %6862 = vmatpush1.msra.mxu0 0.0
    %6863 = vmatprep.subr.mxu0 0.0
    %6864 = vmatpush1.msra.mxu0 0.0
    %6865 = vmatprep.subr.mxu0 0.0
    %6866 = vmatpush1.msra.mxu0 0.0
    %6867 = vmatprep.subr.mxu0 0.0
    %6868 = vmatpush1.msra.mxu0 0.0
    %6869 = vmatprep.subr.mxu0 0.0
    %6870 = vmatpush1.msra.mxu0 0.0
    %6871 = vmatprep.subr.mxu0 0.0
    %6872 = vmatpush1.msra.mxu0 0.0
    %6873 = vmatprep.subr.mxu0 0.0
    %6874 = vmatpush1.msra.mxu0 0.0
    %6875 = vmatprep.subr.mxu0 0.0
    %6876 = vmatpush1.msra.mxu0 0.0
    %6877 = vmatprep.subr.mxu0 0.0
    %6878 = vmatpush1.msra.mxu0 0.0
    %6879 = vmatprep.subr.mxu0 0.0
    %6880 = vmatpush1.msra.mxu0 0.0
    %6881 = vmatprep.subr.mxu0 0.0
    %6882 = vmatpush1.msra.mxu0 0.0
    %6883 = vmatprep.subr.mxu0 0.0
    %6884 = vmatpush1.msra.mxu0 0.0
    %6885 = vmatprep.subr.mxu0 0.0
    %6886 = vmatpush1.msra.mxu0 0.0
    %6887 = vmatprep.subr.mxu0 0.0
    %6888 = vmatpush1.msra.mxu0 0.0
    %6889 = vmatprep.subr.mxu0 0.0
    %6890 = vmatpush1.msra.mxu0 0.0
    %6891 = vmatprep.subr.mxu0 0.0
    %6892 = vmatpush1.msra.mxu0 0.0
    %6893 = vmatprep.subr.mxu0 0.0
    %6894 = vmatpush1.msra.mxu0 0.0
    %6895 = vmatprep.subr.mxu0 0.0
    %6896 = vmatpush1.msra.mxu0 0.0
    %6897 = vmatprep.subr.mxu0 0.0
    %6898 = vmatpush1.msra.mxu0 0.0
    %6899 = vmatprep.subr.mxu0 0.0
    %6900 = vmatpush1.msra.mxu0 0.0
    %6901 = vmatprep.subr.mxu0 0.0
    %6902 = vmatpush1.msra.mxu0 0.0
    %6903 = vmatprep.mubr.f32.mxu0 0.0
    %6904 = vmatmul.mubr.f32.gmra.mrb[0].mxu0 %v6819
    %v6905 = vpop.f32.mrb[0].mxu0
    %v6906 = vadd.f32 0.0, %v6905
    %v6907 = vpop.f32.mrb[0].mxu0
    %v6908 = vadd.f32 0.0, %v6907
    %6909 = vmatprep.mubr.f32.mxu0 0.0
    %6910 = vmatmul.mubr.f32.gmra.mrb[0].mxu0 %v6822
    %v6911 = vpop.f32.mrb[0].mxu0
    %v6912 = vadd.f32 0.0, %v6911
    %v6913 = vpop.f32.mrb[0].mxu0
    %v6914 = vadd.f32 0.0, %v6913
    %6915 = vmatprep.mubr.f32.mxu0 0.0
    %6916 = vmatmul.mubr.f32.gmra.mrb[0].mxu0 %v6825
    %v6917 = vpop.f32.mrb[0].mxu0
    %v6918 = vadd.f32 0.0, %v6917
    %v6919 = vpop.f32.mrb[0].mxu0
    %v6920 = vadd.f32 0.0, %v6919
    %6921 = vmatprep.mubr.f32.mxu0 0.0
    %6922 = vmatmul.mubr.f32.gmra.mrb[0].mxu0 %v6828
    %v6923 = vpop.f32.mrb[0].mxu0
    %v6924 = vadd.f32 0.0, %v6923
    %v6925 = vpop.f32.mrb[0].mxu0
    %v6926 = vadd.f32 0.0, %v6925
    %6927 = vmatprep.mubr.f32.mxu0 0.0
    %6928 = vmatmul.mubr.f32.gmra.mrb[0].mxu0 %v6831
    %v6929 = vpop.f32.mrb[0].mxu0
    %v6930 = vadd.f32 0.0, %v6929
    %v6931 = vpop.f32.mrb[0].mxu0
    %v6932 = vadd.f32 0.0, %v6931
    %6933 = vmatprep.mubr.f32.mxu0 0.0
    %6934 = vmatmul.mubr.f32.gmra.mrb[0].mxu0 %v6834
    %v6935 = vpop.f32.mrb[0].mxu0
    %v6936 = vadd.f32 0.0, %v6935
    %v6937 = vpop.f32.mrb[0].mxu0
    %v6938 = vadd.f32 0.0, %v6937
    %6939 = vmatprep.mubr.f32.mxu0 0.0
    %6940 = vmatmul.mubr.f32.gmra.mrb[0].mxu0 %v6837
    %v6941 = vpop.f32.mrb[0].mxu0
    %v6942 = vadd.f32 0.0, %v6941
    %v6943 = vpop.f32.mrb[0].mxu0
    %v6944 = vadd.f32 0.0, %v6943
    %6945 = vdwg.mxu0
    %6946 = vmatprep.subr.mxu0 %v6805
    %6947 = vmatpush1.msra.mxu0 %v6804
    %6948 = vmatprep.subr.mxu0 %v6809
    %6949 = vmatpush1.msra.mxu0 %v6808
    %6950 = vmatprep.subr.mxu0 %v6813
    %6951 = vmatpush1.msra.mxu0 %v6812
    %6952 = vmatprep.subr.mxu0 %v6817
    %6953 = vmatpush1.msra.mxu0 %v6816
    %6954 = vmatprep.subr.mxu0 0.0
    %6955 = vmatpush1.msra.mxu0 0.0
    %6956 = vmatprep.subr.mxu0 0.0
    %6957 = vmatpush1.msra.mxu0 0.0
    %6958 = vmatprep.subr.mxu0 0.0
    %6959 = vmatpush1.msra.mxu0 0.0
    %6960 = vmatprep.subr.mxu0 0.0
    %6961 = vmatpush1.msra.mxu0 0.0
    %6962 = vmatprep.subr.mxu0 0.0
    %6963 = vmatpush1.msra.mxu0 0.0
    %6964 = vmatprep.subr.mxu0 0.0
    %6965 = vmatpush1.msra.mxu0 0.0
    %6966 = vmatprep.subr.mxu0 0.0
    %6967 = vmatpush1.msra.mxu0 0.0
    %6968 = vmatprep.subr.mxu0 0.0
    %6969 = vmatpush1.msra.mxu0 0.0
    %6970 = vmatprep.subr.mxu0 0.0
    %6971 = vmatpush1.msra.mxu0 0.0
    %6972 = vmatprep.subr.mxu0 0.0
    %6973 = vmatpush1.msra.mxu0 0.0
    %6974 = vmatprep.subr.mxu0 0.0
    %6975 = vmatpush1.msra.mxu0 0.0
    %6976 = vmatprep.subr.mxu0 0.0
    %6977 = vmatpush1.msra.mxu0 0.0
    %6978 = vmatprep.subr.mxu0 0.0
    %6979 = vmatpush1.msra.mxu0 0.0
    %6980 = vmatprep.subr.mxu0 0.0
    %6981 = vmatpush1.msra.mxu0 0.0
    %6982 = vmatprep.subr.mxu0 0.0
    %6983 = vmatpush1.msra.mxu0 0.0
    %6984 = vmatprep.subr.mxu0 0.0
    %6985 = vmatpush1.msra.mxu0 0.0
    %6986 = vmatprep.subr.mxu0 0.0
    %6987 = vmatpush1.msra.mxu0 0.0
    %6988 = vmatprep.subr.mxu0 0.0
    %6989 = vmatpush1.msra.mxu0 0.0
    %6990 = vmatprep.subr.mxu0 0.0
    %6991 = vmatpush1.msra.mxu0 0.0
    %6992 = vmatprep.subr.mxu0 0.0
    %6993 = vmatpush1.msra.mxu0 0.0
    %6994 = vmatprep.subr.mxu0 0.0
    %6995 = vmatpush1.msra.mxu0 0.0
    %6996 = vmatprep.subr.mxu0 0.0
    %6997 = vmatpush1.msra.mxu0 0.0
    %6998 = vmatprep.subr.mxu0 0.0
    %6999 = vmatpush1.msra.mxu0 0.0
    %7000 = vmatprep.subr.mxu0 0.0
    %7001 = vmatpush1.msra.mxu0 0.0
    %7002 = vmatprep.subr.mxu0 0.0
    %7003 = vmatpush1.msra.mxu0 0.0
    %7004 = vmatprep.subr.mxu0 0.0
    %7005 = vmatpush1.msra.mxu0 0.0
    %7006 = vmatprep.subr.mxu0 0.0
    %7007 = vmatpush1.msra.mxu0 0.0
    %7008 = vmatprep.subr.mxu0 0.0
    %7009 = vmatpush1.msra.mxu0 0.0
    %7010 = vmatprep.mubr.f32.mxu0 0.0
    %7011 = vmatmul.mubr.f32.gmra.mrb[0].mxu0 %v6819
    %v7012 = vpop.f32.mrb[0].mxu0
    %v7013 = vadd.f32 0.0, %v7012
    %v7014 = vpop.f32.mrb[0].mxu0
    %v7015 = vadd.f32 0.0, %v7014
    %7016 = vmatprep.mubr.f32.mxu0 0.0
    %7017 = vmatmul.mubr.f32.gmra.mrb[0].mxu0 %v6822
    %v7018 = vpop.f32.mrb[0].mxu0
    %v7019 = vadd.f32 0.0, %v7018
    %v7020 = vpop.f32.mrb[0].mxu0
    %v7021 = vadd.f32 0.0, %v7020
    %7022 = vmatprep.mubr.f32.mxu0 0.0
    %7023 = vmatmul.mubr.f32.gmra.mrb[0].mxu0 %v6825
    %v7024 = vpop.f32.mrb[0].mxu0
    %v7025 = vadd.f32 0.0, %v7024
    %v7026 = vpop.f32.mrb[0].mxu0
    %v7027 = vadd.f32 0.0, %v7026
    %7028 = vmatprep.mubr.f32.mxu0 0.0
    %7029 = vmatmul.mubr.f32.gmra.mrb[0].mxu0 %v6828
    %v7030 = vpop.f32.mrb[0].mxu0
    %v7031 = vadd.f32 0.0, %v7030
    %v7032 = vpop.f32.mrb[0].mxu0
    %v7033 = vadd.f32 0.0, %v7032
    %7034 = vmatprep.mubr.f32.mxu0 0.0
    %7035 = vmatmul.mubr.f32.gmra.mrb[0].mxu0 %v6831
    %v7036 = vpop.f32.mrb[0].mxu0
    %v7037 = vadd.f32 0.0, %v7036
    %v7038 = vpop.f32.mrb[0].mxu0
    %v7039 = vadd.f32 0.0, %v7038
    %7040 = vmatprep.mubr.f32.mxu0 0.0
    %7041 = vmatmul.mubr.f32.gmra.mrb[0].mxu0 %v6834
    %v7042 = vpop.f32.mrb[0].mxu0
    %v7043 = vadd.f32 0.0, %v7042
    %v7044 = vpop.f32.mrb[0].mxu0
    %v7045 = vadd.f32 0.0, %v7044
    %7046 = vmatprep.mubr.f32.mxu0 0.0
    %7047 = vmatmul.mubr.f32.gmra.mrb[0].mxu0 %v6837
    %v7048 = vpop.f32.mrb[0].mxu0
    %v7049 = vadd.f32 0.0, %v7048
    %v7050 = vpop.f32.mrb[0].mxu0
    %v7051 = vadd.f32 0.0, %v7050
    %7052 = vdwg.mxu0
    %v7053 = vmul.f32 %v6906, 1.442695
    %v7054 = vpow.pop %v7053
    %v7055 = vmul.f32 %v6908, 1.442695
    %v7056 = vpow.pop %v7055
    %v7057 = vmul.f32 %v7013, 1.442695
    %v7058 = vpow.pop %v7057
    %v7059 = vmul.f32 %v7015, 1.442695
    %v7060 = vpow.pop %v7059
    %v7061 = vmul.f32 %v6912, 1.442695
    %v7062 = vpow.pop %v7061
    %v7063 = vmul.f32 %v6914, 1.442695
    %v7064 = vpow.pop %v7063
    %v7065 = vmul.f32 %v7019, 1.442695
    %v7066 = vpow.pop %v7065
    %v7067 = vmul.f32 %v7021, 1.442695
    %v7068 = vpow.pop %v7067
    %v7069 = vmul.f32 %v6918, 1.442695
    %v7070 = vpow.pop %v7069
    %v7071 = vmul.f32 %v6920, 1.442695
    %v7072 = vpow.pop %v7071
    %v7073 = vmul.f32 %v7025, 1.442695
    %v7074 = vpow.pop %v7073
    %v7075 = vmul.f32 %v7027, 1.442695
    %v7076 = vpow.pop %v7075
    %v7077 = vmul.f32 %v6924, 1.442695
    %v7078 = vpow.pop %v7077
    %v7079 = vmul.f32 %v6926, 1.442695
    %v7080 = vpow.pop %v7079
    %v7081 = vmul.f32 %v7031, 1.442695
    %v7082 = vpow.pop %v7081
    %v7083 = vmul.f32 %v7033, 1.442695
    %v7084 = vpow.pop %v7083
    %v7085 = vmul.f32 %v6930, 1.442695
    %v7086 = vpow.pop %v7085
    %v7087 = vmul.f32 %v6932, 1.442695
    %v7088 = vpow.pop %v7087
    %v7089 = vmul.f32 %v7037, 1.442695
    %v7090 = vpow.pop %v7089
    %v7091 = vmul.f32 %v7039, 1.442695
    %v7092 = vpow.pop %v7091
    %v7093 = vmul.f32 %v6936, 1.442695
    %v7094 = vpow.pop %v7093
    %v7095 = vmul.f32 %v6938, 1.442695
    %v7096 = vpow.pop %v7095
    %v7097 = vmul.f32 %v7043, 1.442695
    %v7098 = vpow.pop %v7097
    %v7099 = vmul.f32 %v7045, 1.442695
    %v7100 = vpow.pop %v7099
    %v7101 = vmul.f32 %v6942, 1.442695
    %v7102 = vpow.pop %v7101
    %v7103 = vmul.f32 %v6944, 1.442695
    %v7104 = vpow.pop %v7103
    %v7105 = vmul.f32 %v7049, 1.442695
    %v7106 = vpow.pop %v7105
    %v7107 = vmul.f32 %v7051, 1.442695
    %v7108 = vpow.pop %v7107
    %7116 = vrot.lane.b32.xlu0 %v6614, 64
    %v7117 = vpop.permute.xlu0 %7116
    %7118 = vrot.lane.b32.xlu0 %v6615, 64
    %v7119 = vpop.permute.xlu0 %7118
    %7120 = vrot.lane.b32.xlu0 %v6616, 64
    %v7121 = vpop.permute.xlu0 %7120
    %7122 = vrot.lane.b32.xlu0 %v6617, 64
    %v7123 = vpop.permute.xlu0 %7122
    %7124 = vrot.lane.b32.xlu0 %v6618, 64
    %v7125 = vpop.permute.xlu0 %7124
    %7126 = vrot.lane.b32.xlu0 %v6619, 64
    %v7127 = vpop.permute.xlu0 %7126
    %7128 = vrot.lane.b32.xlu0 %v6620, 64
    %v7129 = vpop.permute.xlu0 %7128
    %v7137 = vmul.f32 %v6794, %v7117
    %v7138 = vmul.f32 %v6795, %v7119
    %v7139 = vmul.f32 %v6796, %v7121
    %v7140 = vmul.f32 %v6797, %v7123
    %v7141 = vmul.f32 %v6798, %v7125
    %v7142 = vmul.f32 %v6799, %v7127
    %v7143 = vmul.f32 %v6800, %v7129
    %v7145 = vsel %vm849, %v7137, 0
    %v7148 = vsel %vm849, %v7138, 0
    %v7151 = vsel %vm849, %v7139, 0
    %v7154 = vsel %vm849, %v7140, 0
    %v7157 = vsel %vm849, %v7141, 0
    %v7160 = vsel %vm849, %v7142, 0
    %v7163 = vsel %vm849, %v7143, 0
    %7165 = vmatprep.subr.mxu0 %v742
    %7166 = vmatpush1.msra.mxu0 %v741
    %7167 = vmatprep.subr.mxu0 %v746
    %7168 = vmatpush1.msra.mxu0 %v745
    %7169 = vmatprep.subr.mxu0 %v750
    %7170 = vmatpush1.msra.mxu0 %v749
    %7171 = vmatprep.subr.mxu0 %v754
    %7172 = vmatpush1.msra.mxu0 %v753
    %7173 = vmatprep.subr.mxu0 0.0
    %7174 = vmatpush1.msra.mxu0 0.0
    %7175 = vmatprep.subr.mxu0 0.0
    %7176 = vmatpush1.msra.mxu0 0.0
    %7177 = vmatprep.subr.mxu0 0.0
    %7178 = vmatpush1.msra.mxu0 0.0
    %7179 = vmatprep.subr.mxu0 0.0
    %7180 = vmatpush1.msra.mxu0 0.0
    %7181 = vmatprep.subr.mxu0 0.0
    %7182 = vmatpush1.msra.mxu0 0.0
    %7183 = vmatprep.subr.mxu0 0.0
    %7184 = vmatpush1.msra.mxu0 0.0
    %7185 = vmatprep.subr.mxu0 0.0
    %7186 = vmatpush1.msra.mxu0 0.0
    %7187 = vmatprep.subr.mxu0 0.0
    %7188 = vmatpush1.msra.mxu0 0.0
    %7189 = vmatprep.subr.mxu0 0.0
    %7190 = vmatpush1.msra.mxu0 0.0
    %7191 = vmatprep.subr.mxu0 0.0
    %7192 = vmatpush1.msra.mxu0 0.0
    %7193 = vmatprep.subr.mxu0 0.0
    %7194 = vmatpush1.msra.mxu0 0.0
    %7195 = vmatprep.subr.mxu0 0.0
    %7196 = vmatpush1.msra.mxu0 0.0
    %7197 = vmatprep.subr.mxu0 0.0
    %7198 = vmatpush1.msra.mxu0 0.0
    %7199 = vmatprep.subr.mxu0 0.0
    %7200 = vmatpush1.msra.mxu0 0.0
    %7201 = vmatprep.subr.mxu0 0.0
    %7202 = vmatpush1.msra.mxu0 0.0
    %7203 = vmatprep.subr.mxu0 0.0
    %7204 = vmatpush1.msra.mxu0 0.0
    %7205 = vmatprep.subr.mxu0 0.0
    %7206 = vmatpush1.msra.mxu0 0.0
    %7207 = vmatprep.subr.mxu0 0.0
    %7208 = vmatpush1.msra.mxu0 0.0
    %7209 = vmatprep.subr.mxu0 0.0
    %7210 = vmatpush1.msra.mxu0 0.0
    %7211 = vmatprep.subr.mxu0 0.0
    %7212 = vmatpush1.msra.mxu0 0.0
    %7213 = vmatprep.subr.mxu0 0.0
    %7214 = vmatpush1.msra.mxu0 0.0
    %7215 = vmatprep.subr.mxu0 0.0
    %7216 = vmatpush1.msra.mxu0 0.0
    %7217 = vmatprep.subr.mxu0 0.0
    %7218 = vmatpush1.msra.mxu0 0.0
    %7219 = vmatprep.subr.mxu0 0.0
    %7220 = vmatpush1.msra.mxu0 0.0
    %7221 = vmatprep.subr.mxu0 0.0
    %7222 = vmatpush1.msra.mxu0 0.0
    %7223 = vmatprep.subr.mxu0 0.0
    %7224 = vmatpush1.msra.mxu0 0.0
    %7225 = vmatprep.subr.mxu0 0.0
    %7226 = vmatpush1.msra.mxu0 0.0
    %7227 = vmatprep.subr.mxu0 0.0
    %7228 = vmatpush1.msra.mxu0 0.0
    %7229 = vmatprep.mubr.f32.mxu0 0.0
    %7230 = vmatmul.mubr.f32.gmra.mrb[0].mxu0 %v7145
    %v7231 = vpop.f32.mrb[0].mxu0
    %v7232 = vadd.f32 0.0, %v7231
    %v7233 = vpop.f32.mrb[0].mxu0
    %v7234 = vadd.f32 0.0, %v7233
    %7235 = vmatprep.mubr.f32.mxu0 0.0
    %7236 = vmatmul.mubr.f32.gmra.mrb[0].mxu0 %v7148
    %v7237 = vpop.f32.mrb[0].mxu0
    %v7238 = vadd.f32 0.0, %v7237
    %v7239 = vpop.f32.mrb[0].mxu0
    %v7240 = vadd.f32 0.0, %v7239
    %7241 = vmatprep.mubr.f32.mxu0 0.0
    %7242 = vmatmul.mubr.f32.gmra.mrb[0].mxu0 %v7151
    %v7243 = vpop.f32.mrb[0].mxu0
    %v7244 = vadd.f32 0.0, %v7243
    %v7245 = vpop.f32.mrb[0].mxu0
    %v7246 = vadd.f32 0.0, %v7245
    %7247 = vmatprep.mubr.f32.mxu0 0.0
    %7248 = vmatmul.mubr.f32.gmra.mrb[0].mxu0 %v7154
    %v7249 = vpop.f32.mrb[0].mxu0
    %v7250 = vadd.f32 0.0, %v7249
    %v7251 = vpop.f32.mrb[0].mxu0
    %v7252 = vadd.f32 0.0, %v7251
    %7253 = vmatprep.mubr.f32.mxu0 0.0
    %7254 = vmatmul.mubr.f32.gmra.mrb[0].mxu0 %v7157
    %v7255 = vpop.f32.mrb[0].mxu0
    %v7256 = vadd.f32 0.0, %v7255
    %v7257 = vpop.f32.mrb[0].mxu0
    %v7258 = vadd.f32 0.0, %v7257
    %7259 = vmatprep.mubr.f32.mxu0 0.0
    %7260 = vmatmul.mubr.f32.gmra.mrb[0].mxu0 %v7160
    %v7261 = vpop.f32.mrb[0].mxu0
    %v7262 = vadd.f32 0.0, %v7261
    %v7263 = vpop.f32.mrb[0].mxu0
    %v7264 = vadd.f32 0.0, %v7263
    %7265 = vmatprep.mubr.f32.mxu0 0.0
    %7266 = vmatmul.mubr.f32.gmra.mrb[0].mxu0 %v7163
    %v7267 = vpop.f32.mrb[0].mxu0
    %v7268 = vadd.f32 0.0, %v7267
    %v7269 = vpop.f32.mrb[0].mxu0
    %v7270 = vadd.f32 0.0, %v7269
    %7271 = vdwg.mxu0
    %7272 = vmatprep.subr.mxu0 %v744
    %7273 = vmatpush1.msra.mxu0 %v743
    %7274 = vmatprep.subr.mxu0 %v748
    %7275 = vmatpush1.msra.mxu0 %v747
    %7276 = vmatprep.subr.mxu0 %v752
    %7277 = vmatpush1.msra.mxu0 %v751
    %7278 = vmatprep.subr.mxu0 %v756
    %7279 = vmatpush1.msra.mxu0 %v755
    %7280 = vmatprep.subr.mxu0 0.0
    %7281 = vmatpush1.msra.mxu0 0.0
    %7282 = vmatprep.subr.mxu0 0.0
    %7283 = vmatpush1.msra.mxu0 0.0
    %7284 = vmatprep.subr.mxu0 0.0
    %7285 = vmatpush1.msra.mxu0 0.0
    %7286 = vmatprep.subr.mxu0 0.0
    %7287 = vmatpush1.msra.mxu0 0.0
    %7288 = vmatprep.subr.mxu0 0.0
    %7289 = vmatpush1.msra.mxu0 0.0
    %7290 = vmatprep.subr.mxu0 0.0
    %7291 = vmatpush1.msra.mxu0 0.0
    %7292 = vmatprep.subr.mxu0 0.0
    %7293 = vmatpush1.msra.mxu0 0.0
    %7294 = vmatprep.subr.mxu0 0.0
    %7295 = vmatpush1.msra.mxu0 0.0
    %7296 = vmatprep.subr.mxu0 0.0
    %7297 = vmatpush1.msra.mxu0 0.0
    %7298 = vmatprep.subr.mxu0 0.0
    %7299 = vmatpush1.msra.mxu0 0.0
    %7300 = vmatprep.subr.mxu0 0.0
    %7301 = vmatpush1.msra.mxu0 0.0
    %7302 = vmatprep.subr.mxu0 0.0
    %7303 = vmatpush1.msra.mxu0 0.0
    %7304 = vmatprep.subr.mxu0 0.0
    %7305 = vmatpush1.msra.mxu0 0.0
    %7306 = vmatprep.subr.mxu0 0.0
    %7307 = vmatpush1.msra.mxu0 0.0
    %7308 = vmatprep.subr.mxu0 0.0
    %7309 = vmatpush1.msra.mxu0 0.0
    %7310 = vmatprep.subr.mxu0 0.0
    %7311 = vmatpush1.msra.mxu0 0.0
    %7312 = vmatprep.subr.mxu0 0.0
    %7313 = vmatpush1.msra.mxu0 0.0
    %7314 = vmatprep.subr.mxu0 0.0
    %7315 = vmatpush1.msra.mxu0 0.0
    %7316 = vmatprep.subr.mxu0 0.0
    %7317 = vmatpush1.msra.mxu0 0.0
    %7318 = vmatprep.subr.mxu0 0.0
    %7319 = vmatpush1.msra.mxu0 0.0
    %7320 = vmatprep.subr.mxu0 0.0
    %7321 = vmatpush1.msra.mxu0 0.0
    %7322 = vmatprep.subr.mxu0 0.0
    %7323 = vmatpush1.msra.mxu0 0.0
    %7324 = vmatprep.subr.mxu0 0.0
    %7325 = vmatpush1.msra.mxu0 0.0
    %7326 = vmatprep.subr.mxu0 0.0
    %7327 = vmatpush1.msra.mxu0 0.0
    %7328 = vmatprep.subr.mxu0 0.0
    %7329 = vmatpush1.msra.mxu0 0.0
    %7330 = vmatprep.subr.mxu0 0.0
    %7331 = vmatpush1.msra.mxu0 0.0
    %7332 = vmatprep.subr.mxu0 0.0
    %7333 = vmatpush1.msra.mxu0 0.0
    %7334 = vmatprep.subr.mxu0 0.0
    %7335 = vmatpush1.msra.mxu0 0.0
    %7336 = vmatprep.mubr.f32.mxu0 0.0
    %7337 = vmatmul.mubr.f32.gmra.mrb[0].mxu0 %v7145
    %v7338 = vpop.f32.mrb[0].mxu0
    %v7339 = vadd.f32 0.0, %v7338
    %v7340 = vpop.f32.mrb[0].mxu0
    %v7341 = vadd.f32 0.0, %v7340
    %7342 = vmatprep.mubr.f32.mxu0 0.0
    %7343 = vmatmul.mubr.f32.gmra.mrb[0].mxu0 %v7148
    %v7344 = vpop.f32.mrb[0].mxu0
    %v7345 = vadd.f32 0.0, %v7344
    %v7346 = vpop.f32.mrb[0].mxu0
    %v7347 = vadd.f32 0.0, %v7346
    %7348 = vmatprep.mubr.f32.mxu0 0.0
    %7349 = vmatmul.mubr.f32.gmra.mrb[0].mxu0 %v7151
    %v7350 = vpop.f32.mrb[0].mxu0
    %v7351 = vadd.f32 0.0, %v7350
    %v7352 = vpop.f32.mrb[0].mxu0
    %v7353 = vadd.f32 0.0, %v7352
    %7354 = vmatprep.mubr.f32.mxu0 0.0
    %7355 = vmatmul.mubr.f32.gmra.mrb[0].mxu0 %v7154
    %v7356 = vpop.f32.mrb[0].mxu0
    %v7357 = vadd.f32 0.0, %v7356
    %v7358 = vpop.f32.mrb[0].mxu0
    %v7359 = vadd.f32 0.0, %v7358
    %7360 = vmatprep.mubr.f32.mxu0 0.0
    %7361 = vmatmul.mubr.f32.gmra.mrb[0].mxu0 %v7157
    %v7362 = vpop.f32.mrb[0].mxu0
    %v7363 = vadd.f32 0.0, %v7362
    %v7364 = vpop.f32.mrb[0].mxu0
    %v7365 = vadd.f32 0.0, %v7364
    %7366 = vmatprep.mubr.f32.mxu0 0.0
    %7367 = vmatmul.mubr.f32.gmra.mrb[0].mxu0 %v7160
    %v7368 = vpop.f32.mrb[0].mxu0
    %v7369 = vadd.f32 0.0, %v7368
    %v7370 = vpop.f32.mrb[0].mxu0
    %v7371 = vadd.f32 0.0, %v7370
    %7372 = vmatprep.mubr.f32.mxu0 0.0
    %7373 = vmatmul.mubr.f32.gmra.mrb[0].mxu0 %v7163
    %v7374 = vpop.f32.mrb[0].mxu0
    %v7375 = vadd.f32 0.0, %v7374
    %v7376 = vpop.f32.mrb[0].mxu0
    %v7377 = vadd.f32 0.0, %v7376
    %7378 = vdwg.mxu0
    %7386 = vrot.lane.b32.xlu0 %v6701, 96
    %v7387 = vpop.permute.xlu0 %7386
    %7388 = vrot.lane.b32.xlu0 %v6704, 96
    %v7389 = vpop.permute.xlu0 %7388
    %7390 = vrot.lane.b32.xlu0 %v6709, 96
    %v7391 = vpop.permute.xlu0 %7390
    %7392 = vrot.lane.b32.xlu0 %v6712, 96
    %v7393 = vpop.permute.xlu0 %7392
    %7394 = vrot.lane.b32.xlu0 %v6717, 96
    %v7395 = vpop.permute.xlu0 %7394
    %7396 = vrot.lane.b32.xlu0 %v6720, 96
    %v7397 = vpop.permute.xlu0 %7396
    %7398 = vrot.lane.b32.xlu0 %v6725, 96
    %v7399 = vpop.permute.xlu0 %7398
    %v7400 = vsel %vm1755, %v7387, 0
    %v7402 = vsel %vm1755, %v7389, 0
    %v7404 = vsel %vm1755, %v7391, 0
    %v7406 = vsel %vm1755, %v7393, 0
    %v7408 = vsel %vm1755, %v7395, 0
    %v7410 = vsel %vm1755, %v7397, 0
    %v7412 = vsel %vm1755, %v7399, 0
    %7414 = vmatprep.subr.mxu0 %v758
    %7415 = vmatpush1.msra.mxu0 %v757
    %7416 = vmatprep.subr.mxu0 %v762
    %7417 = vmatpush1.msra.mxu0 %v761
    %7418 = vmatprep.subr.mxu0 0.0
    %7419 = vmatpush1.msra.mxu0 0.0
    %7420 = vmatprep.subr.mxu0 0.0
    %7421 = vmatpush1.msra.mxu0 0.0
    %7422 = vmatprep.subr.mxu0 0.0
    %7423 = vmatpush1.msra.mxu0 0.0
    %7424 = vmatprep.subr.mxu0 0.0
    %7425 = vmatpush1.msra.mxu0 0.0
    %7426 = vmatprep.subr.mxu0 0.0
    %7427 = vmatpush1.msra.mxu0 0.0
    %7428 = vmatprep.subr.mxu0 0.0
    %7429 = vmatpush1.msra.mxu0 0.0
    %7430 = vmatprep.subr.mxu0 0.0
    %7431 = vmatpush1.msra.mxu0 0.0
    %7432 = vmatprep.subr.mxu0 0.0
    %7433 = vmatpush1.msra.mxu0 0.0
    %7434 = vmatprep.subr.mxu0 0.0
    %7435 = vmatpush1.msra.mxu0 0.0
    %7436 = vmatprep.subr.mxu0 0.0
    %7437 = vmatpush1.msra.mxu0 0.0
    %7438 = vmatprep.subr.mxu0 0.0
    %7439 = vmatpush1.msra.mxu0 0.0
    %7440 = vmatprep.subr.mxu0 0.0
    %7441 = vmatpush1.msra.mxu0 0.0
    %7442 = vmatprep.subr.mxu0 0.0
    %7443 = vmatpush1.msra.mxu0 0.0
    %7444 = vmatprep.subr.mxu0 0.0
    %7445 = vmatpush1.msra.mxu0 0.0
    %7446 = vmatprep.subr.mxu0 0.0
    %7447 = vmatpush1.msra.mxu0 0.0
    %7448 = vmatprep.subr.mxu0 0.0
    %7449 = vmatpush1.msra.mxu0 0.0
    %7450 = vmatprep.subr.mxu0 0.0
    %7451 = vmatpush1.msra.mxu0 0.0
    %7452 = vmatprep.subr.mxu0 0.0
    %7453 = vmatpush1.msra.mxu0 0.0
    %7454 = vmatprep.subr.mxu0 0.0
    %7455 = vmatpush1.msra.mxu0 0.0
    %7456 = vmatprep.subr.mxu0 0.0
    %7457 = vmatpush1.msra.mxu0 0.0
    %7458 = vmatprep.subr.mxu0 0.0
    %7459 = vmatpush1.msra.mxu0 0.0
    %7460 = vmatprep.subr.mxu0 0.0
    %7461 = vmatpush1.msra.mxu0 0.0
    %7462 = vmatprep.subr.mxu0 0.0
    %7463 = vmatpush1.msra.mxu0 0.0
    %7464 = vmatprep.subr.mxu0 0.0
    %7465 = vmatpush1.msra.mxu0 0.0
    %7466 = vmatprep.subr.mxu0 0.0
    %7467 = vmatpush1.msra.mxu0 0.0
    %7468 = vmatprep.subr.mxu0 0.0
    %7469 = vmatpush1.msra.mxu0 0.0
    %7470 = vmatprep.subr.mxu0 0.0
    %7471 = vmatpush1.msra.mxu0 0.0
    %7472 = vmatprep.subr.mxu0 0.0
    %7473 = vmatpush1.msra.mxu0 0.0
    %7474 = vmatprep.subr.mxu0 0.0
    %7475 = vmatpush1.msra.mxu0 0.0
    %7476 = vmatprep.subr.mxu0 0.0
    %7477 = vmatpush1.msra.mxu0 0.0
    %7478 = vmatprep.mubr.f32.mxu0 0.0
    %7479 = vmatmul.mubr.f32.gmra.mrb[0].mxu0 %v7400
    %v7480 = vpop.f32.mrb[0].mxu0
    %v7481 = vadd.f32 0.0, %v7480
    %v7482 = vpop.f32.mrb[0].mxu0
    %v7483 = vadd.f32 0.0, %v7482
    %7484 = vmatprep.mubr.f32.mxu0 0.0
    %7485 = vmatmul.mubr.f32.gmra.mrb[0].mxu0 %v7402
    %v7486 = vpop.f32.mrb[0].mxu0
    %v7487 = vadd.f32 0.0, %v7486
    %v7488 = vpop.f32.mrb[0].mxu0
    %v7489 = vadd.f32 0.0, %v7488
    %7490 = vmatprep.mubr.f32.mxu0 0.0
    %7491 = vmatmul.mubr.f32.gmra.mrb[0].mxu0 %v7404
    %v7492 = vpop.f32.mrb[0].mxu0
    %v7493 = vadd.f32 0.0, %v7492
    %v7494 = vpop.f32.mrb[0].mxu0
    %v7495 = vadd.f32 0.0, %v7494
    %7496 = vmatprep.mubr.f32.mxu0 0.0
    %7497 = vmatmul.mubr.f32.gmra.mrb[0].mxu0 %v7406
    %v7498 = vpop.f32.mrb[0].mxu0
    %v7499 = vadd.f32 0.0, %v7498
    %v7500 = vpop.f32.mrb[0].mxu0
    %v7501 = vadd.f32 0.0, %v7500
    %7502 = vmatprep.mubr.f32.mxu0 0.0
    %7503 = vmatmul.mubr.f32.gmra.mrb[0].mxu0 %v7408
    %v7504 = vpop.f32.mrb[0].mxu0
    %v7505 = vadd.f32 0.0, %v7504
    %v7506 = vpop.f32.mrb[0].mxu0
    %v7507 = vadd.f32 0.0, %v7506
    %7508 = vmatprep.mubr.f32.mxu0 0.0
    %7509 = vmatmul.mubr.f32.gmra.mrb[0].mxu0 %v7410
    %v7510 = vpop.f32.mrb[0].mxu0
    %v7511 = vadd.f32 0.0, %v7510
    %v7512 = vpop.f32.mrb[0].mxu0
    %v7513 = vadd.f32 0.0, %v7512
    %7514 = vmatprep.mubr.f32.mxu0 0.0
    %7515 = vmatmul.mubr.f32.gmra.mrb[0].mxu0 %v7412
    %v7516 = vpop.f32.mrb[0].mxu0
    %v7517 = vadd.f32 0.0, %v7516
    %v7518 = vpop.f32.mrb[0].mxu0
    %v7519 = vadd.f32 0.0, %v7518
    %7520 = vdwg.mxu0
    %7521 = vmatprep.subr.mxu0 %v760
    %7522 = vmatpush1.msra.mxu0 %v759
    %7523 = vmatprep.subr.mxu0 %v764
    %7524 = vmatpush1.msra.mxu0 %v763
    %7525 = vmatprep.subr.mxu0 0.0
    %7526 = vmatpush1.msra.mxu0 0.0
    %7527 = vmatprep.subr.mxu0 0.0
    %7528 = vmatpush1.msra.mxu0 0.0
    %7529 = vmatprep.subr.mxu0 0.0
    %7530 = vmatpush1.msra.mxu0 0.0
    %7531 = vmatprep.subr.mxu0 0.0
    %7532 = vmatpush1.msra.mxu0 0.0
    %7533 = vmatprep.subr.mxu0 0.0
    %7534 = vmatpush1.msra.mxu0 0.0
    %7535 = vmatprep.subr.mxu0 0.0
    %7536 = vmatpush1.msra.mxu0 0.0
    %7537 = vmatprep.subr.mxu0 0.0
    %7538 = vmatpush1.msra.mxu0 0.0
    %7539 = vmatprep.subr.mxu0 0.0
    %7540 = vmatpush1.msra.mxu0 0.0
    %7541 = vmatprep.subr.mxu0 0.0
    %7542 = vmatpush1.msra.mxu0 0.0
    %7543 = vmatprep.subr.mxu0 0.0
    %7544 = vmatpush1.msra.mxu0 0.0
    %7545 = vmatprep.subr.mxu0 0.0
    %7546 = vmatpush1.msra.mxu0 0.0
    %7547 = vmatprep.subr.mxu0 0.0
    %7548 = vmatpush1.msra.mxu0 0.0
    %7549 = vmatprep.subr.mxu0 0.0
    %7550 = vmatpush1.msra.mxu0 0.0
    %7551 = vmatprep.subr.mxu0 0.0
    %7552 = vmatpush1.msra.mxu0 0.0
    %7553 = vmatprep.subr.mxu0 0.0
    %7554 = vmatpush1.msra.mxu0 0.0
    %7555 = vmatprep.subr.mxu0 0.0
    %7556 = vmatpush1.msra.mxu0 0.0
    %7557 = vmatprep.subr.mxu0 0.0
    %7558 = vmatpush1.msra.mxu0 0.0
    %7559 = vmatprep.subr.mxu0 0.0
    %7560 = vmatpush1.msra.mxu0 0.0
    %7561 = vmatprep.subr.mxu0 0.0
    %7562 = vmatpush1.msra.mxu0 0.0
    %7563 = vmatprep.subr.mxu0 0.0
    %7564 = vmatpush1.msra.mxu0 0.0
    %7565 = vmatprep.subr.mxu0 0.0
    %7566 = vmatpush1.msra.mxu0 0.0
    %7567 = vmatprep.subr.mxu0 0.0
    %7568 = vmatpush1.msra.mxu0 0.0
    %7569 = vmatprep.subr.mxu0 0.0
    %7570 = vmatpush1.msra.mxu0 0.0
    %7571 = vmatprep.subr.mxu0 0.0
    %7572 = vmatpush1.msra.mxu0 0.0
    %7573 = vmatprep.subr.mxu0 0.0
    %7574 = vmatpush1.msra.mxu0 0.0
    %7575 = vmatprep.subr.mxu0 0.0
    %7576 = vmatpush1.msra.mxu0 0.0
    %7577 = vmatprep.subr.mxu0 0.0
    %7578 = vmatpush1.msra.mxu0 0.0
    %7579 = vmatprep.subr.mxu0 0.0
    %7580 = vmatpush1.msra.mxu0 0.0
    %7581 = vmatprep.subr.mxu0 0.0
    %7582 = vmatpush1.msra.mxu0 0.0
    %7583 = vmatprep.subr.mxu0 0.0
    %7584 = vmatpush1.msra.mxu0 0.0
    %7585 = vmatprep.mubr.f32.mxu0 0.0
    %7586 = vmatmul.mubr.f32.gmra.mrb[0].mxu0 %v7400
    %v7587 = vpop.f32.mrb[0].mxu0
    %v7588 = vadd.f32 0.0, %v7587
    %v7589 = vpop.f32.mrb[0].mxu0
    %v7590 = vadd.f32 0.0, %v7589
    %7591 = vmatprep.mubr.f32.mxu0 0.0
    %7592 = vmatmul.mubr.f32.gmra.mrb[0].mxu0 %v7402
    %v7593 = vpop.f32.mrb[0].mxu0
    %v7594 = vadd.f32 0.0, %v7593
    %v7595 = vpop.f32.mrb[0].mxu0
    %v7596 = vadd.f32 0.0, %v7595
    %7597 = vmatprep.mubr.f32.mxu0 0.0
    %7598 = vmatmul.mubr.f32.gmra.mrb[0].mxu0 %v7404
    %v7599 = vpop.f32.mrb[0].mxu0
    %v7600 = vadd.f32 0.0, %v7599
    %v7601 = vpop.f32.mrb[0].mxu0
    %v7602 = vadd.f32 0.0, %v7601
    %7603 = vmatprep.mubr.f32.mxu0 0.0
    %7604 = vmatmul.mubr.f32.gmra.mrb[0].mxu0 %v7406
    %v7605 = vpop.f32.mrb[0].mxu0
    %v7606 = vadd.f32 0.0, %v7605
    %v7607 = vpop.f32.mrb[0].mxu0
    %v7608 = vadd.f32 0.0, %v7607
    %7609 = vmatprep.mubr.f32.mxu0 0.0
    %7610 = vmatmul.mubr.f32.gmra.mrb[0].mxu0 %v7408
    %v7611 = vpop.f32.mrb[0].mxu0
    %v7612 = vadd.f32 0.0, %v7611
    %v7613 = vpop.f32.mrb[0].mxu0
    %v7614 = vadd.f32 0.0, %v7613
    %7615 = vmatprep.mubr.f32.mxu0 0.0
    %7616 = vmatmul.mubr.f32.gmra.mrb[0].mxu0 %v7410
    %v7617 = vpop.f32.mrb[0].mxu0
    %v7618 = vadd.f32 0.0, %v7617
    %v7619 = vpop.f32.mrb[0].mxu0
    %v7620 = vadd.f32 0.0, %v7619
    %7621 = vmatprep.mubr.f32.mxu0 0.0
    %7622 = vmatmul.mubr.f32.gmra.mrb[0].mxu0 %v7412
    %v7623 = vpop.f32.mrb[0].mxu0
    %v7624 = vadd.f32 0.0, %v7623
    %v7625 = vpop.f32.mrb[0].mxu0
    %v7626 = vadd.f32 0.0, %v7625
    %7627 = vdwg.mxu0
    %v7628 = vmul.f32 %v7232, %v7481
    %v7629 = vmul.f32 %v7234, %v7483
    %v7630 = vmul.f32 %v7339, %v7588
    %v7631 = vmul.f32 %v7341, %v7590
    %v7632 = vmul.f32 %v7238, %v7487
    %v7633 = vmul.f32 %v7240, %v7489
    %v7634 = vmul.f32 %v7345, %v7594
    %v7635 = vmul.f32 %v7347, %v7596
    %v7636 = vmul.f32 %v7244, %v7493
    %v7637 = vmul.f32 %v7246, %v7495
    %v7638 = vmul.f32 %v7351, %v7600
    %v7639 = vmul.f32 %v7353, %v7602
    %v7640 = vmul.f32 %v7250, %v7499
    %v7641 = vmul.f32 %v7252, %v7501
    %v7642 = vmul.f32 %v7357, %v7606
    %v7643 = vmul.f32 %v7359, %v7608
    %v7644 = vmul.f32 %v7256, %v7505
    %v7645 = vmul.f32 %v7258, %v7507
    %v7646 = vmul.f32 %v7363, %v7612
    %v7647 = vmul.f32 %v7365, %v7614
    %v7648 = vmul.f32 %v7262, %v7511
    %v7649 = vmul.f32 %v7264, %v7513
    %v7650 = vmul.f32 %v7369, %v7618
    %v7651 = vmul.f32 %v7371, %v7620
    %v7652 = vmul.f32 %v7268, %v7517
    %v7653 = vmul.f32 %v7270, %v7519
    %v7654 = vmul.f32 %v7375, %v7624
    %v7655 = vmul.f32 %v7377, %v7626
    %7656 = vrot.lane.b32.xlu0 %v6701, 80
    %v7657 = vpop.permute.xlu0 %7656
    %7658 = vrot.lane.b32.xlu0 %v6704, 80
    %v7659 = vpop.permute.xlu0 %7658
    %7660 = vrot.lane.b32.xlu0 %v6709, 80
    %v7661 = vpop.permute.xlu0 %7660
    %7662 = vrot.lane.b32.xlu0 %v6712, 80
    %v7663 = vpop.permute.xlu0 %7662
    %7664 = vrot.lane.b32.xlu0 %v6717, 80
    %v7665 = vpop.permute.xlu0 %7664
    %7666 = vrot.lane.b32.xlu0 %v6720, 80
    %v7667 = vpop.permute.xlu0 %7666
    %7668 = vrot.lane.b32.xlu0 %v6725, 80
    %v7669 = vpop.permute.xlu0 %7668
    %v7670 = vsel %vm1755, %v7657, 0
    %v7672 = vsel %vm1755, %v7659, 0
    %v7674 = vsel %vm1755, %v7661, 0
    %v7676 = vsel %vm1755, %v7663, 0
    %v7678 = vsel %vm1755, %v7665, 0
    %v7680 = vsel %vm1755, %v7667, 0
    %v7682 = vsel %vm1755, %v7669, 0
    %7684 = vmatprep.subr.mxu0 %v758
    %7685 = vmatpush1.msra.mxu0 %v757
    %7686 = vmatprep.subr.mxu0 %v762
    %7687 = vmatpush1.msra.mxu0 %v761
    %7688 = vmatprep.subr.mxu0 0.0
    %7689 = vmatpush1.msra.mxu0 0.0
    %7690 = vmatprep.subr.mxu0 0.0
    %7691 = vmatpush1.msra.mxu0 0.0
    %7692 = vmatprep.subr.mxu0 0.0
    %7693 = vmatpush1.msra.mxu0 0.0
    %7694 = vmatprep.subr.mxu0 0.0
    %7695 = vmatpush1.msra.mxu0 0.0
    %7696 = vmatprep.subr.mxu0 0.0
    %7697 = vmatpush1.msra.mxu0 0.0
    %7698 = vmatprep.subr.mxu0 0.0
    %7699 = vmatpush1.msra.mxu0 0.0
    %7700 = vmatprep.subr.mxu0 0.0
    %7701 = vmatpush1.msra.mxu0 0.0
    %7702 = vmatprep.subr.mxu0 0.0
    %7703 = vmatpush1.msra.mxu0 0.0
    %7704 = vmatprep.subr.mxu0 0.0
    %7705 = vmatpush1.msra.mxu0 0.0
    %7706 = vmatprep.subr.mxu0 0.0
    %7707 = vmatpush1.msra.mxu0 0.0
    %7708 = vmatprep.subr.mxu0 0.0
    %7709 = vmatpush1.msra.mxu0 0.0
    %7710 = vmatprep.subr.mxu0 0.0
    %7711 = vmatpush1.msra.mxu0 0.0
    %7712 = vmatprep.subr.mxu0 0.0
    %7713 = vmatpush1.msra.mxu0 0.0
    %7714 = vmatprep.subr.mxu0 0.0
    %7715 = vmatpush1.msra.mxu0 0.0
    %7716 = vmatprep.subr.mxu0 0.0
    %7717 = vmatpush1.msra.mxu0 0.0
    %7718 = vmatprep.subr.mxu0 0.0
    %7719 = vmatpush1.msra.mxu0 0.0
    %7720 = vmatprep.subr.mxu0 0.0
    %7721 = vmatpush1.msra.mxu0 0.0
    %7722 = vmatprep.subr.mxu0 0.0
    %7723 = vmatpush1.msra.mxu0 0.0
    %7724 = vmatprep.subr.mxu0 0.0
    %7725 = vmatpush1.msra.mxu0 0.0
    %7726 = vmatprep.subr.mxu0 0.0
    %7727 = vmatpush1.msra.mxu0 0.0
    %7728 = vmatprep.subr.mxu0 0.0
    %7729 = vmatpush1.msra.mxu0 0.0
    %7730 = vmatprep.subr.mxu0 0.0
    %7731 = vmatpush1.msra.mxu0 0.0
    %7732 = vmatprep.subr.mxu0 0.0
    %7733 = vmatpush1.msra.mxu0 0.0
    %7734 = vmatprep.subr.mxu0 0.0
    %7735 = vmatpush1.msra.mxu0 0.0
    %7736 = vmatprep.subr.mxu0 0.0
    %7737 = vmatpush1.msra.mxu0 0.0
    %7738 = vmatprep.subr.mxu0 0.0
    %7739 = vmatpush1.msra.mxu0 0.0
    %7740 = vmatprep.subr.mxu0 0.0
    %7741 = vmatpush1.msra.mxu0 0.0
    %7742 = vmatprep.subr.mxu0 0.0
    %7743 = vmatpush1.msra.mxu0 0.0
    %7744 = vmatprep.subr.mxu0 0.0
    %7745 = vmatpush1.msra.mxu0 0.0
    %7746 = vmatprep.subr.mxu0 0.0
    %7747 = vmatpush1.msra.mxu0 0.0
    %7748 = vmatprep.mubr.f32.mxu0 0.0
    %7749 = vmatmul.mubr.f32.gmra.mrb[0].mxu0 %v7670
    %v7750 = vpop.f32.mrb[0].mxu0
    %v7751 = vadd.f32 0.0, %v7750
    %v7752 = vpop.f32.mrb[0].mxu0
    %v7753 = vadd.f32 0.0, %v7752
    %7754 = vmatprep.mubr.f32.mxu0 0.0
    %7755 = vmatmul.mubr.f32.gmra.mrb[0].mxu0 %v7672
    %v7756 = vpop.f32.mrb[0].mxu0
    %v7757 = vadd.f32 0.0, %v7756
    %v7758 = vpop.f32.mrb[0].mxu0
    %v7759 = vadd.f32 0.0, %v7758
    %7760 = vmatprep.mubr.f32.mxu0 0.0
    %7761 = vmatmul.mubr.f32.gmra.mrb[0].mxu0 %v7674
    %v7762 = vpop.f32.mrb[0].mxu0
    %v7763 = vadd.f32 0.0, %v7762
    %v7764 = vpop.f32.mrb[0].mxu0
    %v7765 = vadd.f32 0.0, %v7764
    %7766 = vmatprep.mubr.f32.mxu0 0.0
    %7767 = vmatmul.mubr.f32.gmra.mrb[0].mxu0 %v7676
    %v7768 = vpop.f32.mrb[0].mxu0
    %v7769 = vadd.f32 0.0, %v7768
    %v7770 = vpop.f32.mrb[0].mxu0
    %v7771 = vadd.f32 0.0, %v7770
    %7772 = vmatprep.mubr.f32.mxu0 0.0
    %7773 = vmatmul.mubr.f32.gmra.mrb[0].mxu0 %v7678
    %v7774 = vpop.f32.mrb[0].mxu0
    %v7775 = vadd.f32 0.0, %v7774
    %v7776 = vpop.f32.mrb[0].mxu0
    %v7777 = vadd.f32 0.0, %v7776
    %7778 = vmatprep.mubr.f32.mxu0 0.0
    %7779 = vmatmul.mubr.f32.gmra.mrb[0].mxu0 %v7680
    %v7780 = vpop.f32.mrb[0].mxu0
    %v7781 = vadd.f32 0.0, %v7780
    %v7782 = vpop.f32.mrb[0].mxu0
    %v7783 = vadd.f32 0.0, %v7782
    %7784 = vmatprep.mubr.f32.mxu0 0.0
    %7785 = vmatmul.mubr.f32.gmra.mrb[0].mxu0 %v7682
    %v7786 = vpop.f32.mrb[0].mxu0
    %v7787 = vadd.f32 0.0, %v7786
    %v7788 = vpop.f32.mrb[0].mxu0
    %v7789 = vadd.f32 0.0, %v7788
    %7790 = vdwg.mxu0
    %7791 = vmatprep.subr.mxu0 %v760
    %7792 = vmatpush1.msra.mxu0 %v759
    %7793 = vmatprep.subr.mxu0 %v764
    %7794 = vmatpush1.msra.mxu0 %v763
    %7795 = vmatprep.subr.mxu0 0.0
    %7796 = vmatpush1.msra.mxu0 0.0
    %7797 = vmatprep.subr.mxu0 0.0
    %7798 = vmatpush1.msra.mxu0 0.0
    %7799 = vmatprep.subr.mxu0 0.0
    %7800 = vmatpush1.msra.mxu0 0.0
    %7801 = vmatprep.subr.mxu0 0.0
    %7802 = vmatpush1.msra.mxu0 0.0
    %7803 = vmatprep.subr.mxu0 0.0
    %7804 = vmatpush1.msra.mxu0 0.0
    %7805 = vmatprep.subr.mxu0 0.0
    %7806 = vmatpush1.msra.mxu0 0.0
    %7807 = vmatprep.subr.mxu0 0.0
    %7808 = vmatpush1.msra.mxu0 0.0
    %7809 = vmatprep.subr.mxu0 0.0
    %7810 = vmatpush1.msra.mxu0 0.0
    %7811 = vmatprep.subr.mxu0 0.0
    %7812 = vmatpush1.msra.mxu0 0.0
    %7813 = vmatprep.subr.mxu0 0.0
    %7814 = vmatpush1.msra.mxu0 0.0
    %7815 = vmatprep.subr.mxu0 0.0
    %7816 = vmatpush1.msra.mxu0 0.0
    %7817 = vmatprep.subr.mxu0 0.0
    %7818 = vmatpush1.msra.mxu0 0.0
    %7819 = vmatprep.subr.mxu0 0.0
    %7820 = vmatpush1.msra.mxu0 0.0
    %7821 = vmatprep.subr.mxu0 0.0
    %7822 = vmatpush1.msra.mxu0 0.0
    %7823 = vmatprep.subr.mxu0 0.0
    %7824 = vmatpush1.msra.mxu0 0.0
    %7825 = vmatprep.subr.mxu0 0.0
    %7826 = vmatpush1.msra.mxu0 0.0
    %7827 = vmatprep.subr.mxu0 0.0
    %7828 = vmatpush1.msra.mxu0 0.0
    %7829 = vmatprep.subr.mxu0 0.0
    %7830 = vmatpush1.msra.mxu0 0.0
    %7831 = vmatprep.subr.mxu0 0.0
    %7832 = vmatpush1.msra.mxu0 0.0
    %7833 = vmatprep.subr.mxu0 0.0
    %7834 = vmatpush1.msra.mxu0 0.0
    %7835 = vmatprep.subr.mxu0 0.0
    %7836 = vmatpush1.msra.mxu0 0.0
    %7837 = vmatprep.subr.mxu0 0.0
    %7838 = vmatpush1.msra.mxu0 0.0
    %7839 = vmatprep.subr.mxu0 0.0
    %7840 = vmatpush1.msra.mxu0 0.0
    %7841 = vmatprep.subr.mxu0 0.0
    %7842 = vmatpush1.msra.mxu0 0.0
    %7843 = vmatprep.subr.mxu0 0.0
    %7844 = vmatpush1.msra.mxu0 0.0
    %7845 = vmatprep.subr.mxu0 0.0
    %7846 = vmatpush1.msra.mxu0 0.0
    %7847 = vmatprep.subr.mxu0 0.0
    %7848 = vmatpush1.msra.mxu0 0.0
    %7849 = vmatprep.subr.mxu0 0.0
    %7850 = vmatpush1.msra.mxu0 0.0
    %7851 = vmatprep.subr.mxu0 0.0
    %7852 = vmatpush1.msra.mxu0 0.0
    %7853 = vmatprep.subr.mxu0 0.0
    %7854 = vmatpush1.msra.mxu0 0.0
    %7855 = vmatprep.mubr.f32.mxu0 0.0
    %7856 = vmatmul.mubr.f32.gmra.mrb[0].mxu0 %v7670
    %v7857 = vpop.f32.mrb[0].mxu0
    %v7858 = vadd.f32 0.0, %v7857
    %v7859 = vpop.f32.mrb[0].mxu0
    %v7860 = vadd.f32 0.0, %v7859
    %7861 = vmatprep.mubr.f32.mxu0 0.0
    %7862 = vmatmul.mubr.f32.gmra.mrb[0].mxu0 %v7672
    %v7863 = vpop.f32.mrb[0].mxu0
    %v7864 = vadd.f32 0.0, %v7863
    %v7865 = vpop.f32.mrb[0].mxu0
    %v7866 = vadd.f32 0.0, %v7865
    %7867 = vmatprep.mubr.f32.mxu0 0.0
    %7868 = vmatmul.mubr.f32.gmra.mrb[0].mxu0 %v7674
    %v7869 = vpop.f32.mrb[0].mxu0
    %v7870 = vadd.f32 0.0, %v7869
    %v7871 = vpop.f32.mrb[0].mxu0
    %v7872 = vadd.f32 0.0, %v7871
    %7873 = vmatprep.mubr.f32.mxu0 0.0
    %7874 = vmatmul.mubr.f32.gmra.mrb[0].mxu0 %v7676
    %v7875 = vpop.f32.mrb[0].mxu0
    %v7876 = vadd.f32 0.0, %v7875
    %v7877 = vpop.f32.mrb[0].mxu0
    %v7878 = vadd.f32 0.0, %v7877
    %7879 = vmatprep.mubr.f32.mxu0 0.0
    %7880 = vmatmul.mubr.f32.gmra.mrb[0].mxu0 %v7678
    %v7881 = vpop.f32.mrb[0].mxu0
    %v7882 = vadd.f32 0.0, %v7881
    %v7883 = vpop.f32.mrb[0].mxu0
    %v7884 = vadd.f32 0.0, %v7883
    %7885 = vmatprep.mubr.f32.mxu0 0.0
    %7886 = vmatmul.mubr.f32.gmra.mrb[0].mxu0 %v7680
    %v7887 = vpop.f32.mrb[0].mxu0
    %v7888 = vadd.f32 0.0, %v7887
    %v7889 = vpop.f32.mrb[0].mxu0
    %v7890 = vadd.f32 0.0, %v7889
    %7891 = vmatprep.mubr.f32.mxu0 0.0
    %7892 = vmatmul.mubr.f32.gmra.mrb[0].mxu0 %v7682
    %v7893 = vpop.f32.mrb[0].mxu0
    %v7894 = vadd.f32 0.0, %v7893
    %v7895 = vpop.f32.mrb[0].mxu0
    %v7896 = vadd.f32 0.0, %v7895
    %7897 = vdwg.mxu0
    %v7898 = vmul.f32 %v5700, 0.0
    %v7899 = vmul.f32 %v5702, 0.0
    %v7900 = vmul.f32 %v5704, 0.0
    %v7901 = vmul.f32 %v5706, 0.0
    %v7902 = vadd.f32 %v7898, %v6246
    %v7903 = vadd.f32 %v7899, %v6247
    %v7904 = vadd.f32 %v7900, %v6248
    %v7905 = vadd.f32 %v7901, %v6249
    %v7906 = vmul.f32 %v7102, 0.0
    %v7907 = vmul.f32 %v7104, 0.0
    %v7908 = vmul.f32 %v7106, 0.0
    %v7909 = vmul.f32 %v7108, 0.0
    %v7910 = vadd.f32 %v7906, %v7652
    %v7911 = vadd.f32 %v7907, %v7653
    %v7912 = vadd.f32 %v7908, %v7654
    %v7913 = vadd.f32 %v7909, %v7655
    %v7914 = vmul.f32 %v5708, %v7902
    %v7915 = vmul.f32 %v5710, %v7903
    %v7916 = vmul.f32 %v5712, %v7904
    %v7917 = vmul.f32 %v5714, %v7905
    %v7918 = vadd.f32 %v7914, %v6250
    %v7919 = vadd.f32 %v7915, %v6251
    %v7920 = vadd.f32 %v7916, %v6252
    %v7921 = vadd.f32 %v7917, %v6253
    %v7922 = vmul.f32 %v7094, %v7910
    %v7923 = vmul.f32 %v7096, %v7911
    %v7924 = vmul.f32 %v7098, %v7912
    %v7925 = vmul.f32 %v7100, %v7913
    %v7926 = vadd.f32 %v7922, %v7648
    %v7927 = vadd.f32 %v7923, %v7649
    %v7928 = vadd.f32 %v7924, %v7650
    %v7929 = vadd.f32 %v7925, %v7651
    %v7930 = vmul.f32 %v5716, %v7918
    %v7931 = vmul.f32 %v5718, %v7919
    %v7932 = vmul.f32 %v5720, %v7920
    %v7933 = vmul.f32 %v5722, %v7921
    %v7934 = vadd.f32 %v7930, %v6254
    %v7935 = vadd.f32 %v7931, %v6255
    %v7936 = vadd.f32 %v7932, %v6256
    %v7937 = vadd.f32 %v7933, %v6257
    %v7938 = vmul.f32 %v7086, %v7926
    %v7939 = vmul.f32 %v7088, %v7927
    %v7940 = vmul.f32 %v7090, %v7928
    %v7941 = vmul.f32 %v7092, %v7929
    %v7942 = vadd.f32 %v7938, %v7644
    %v7943 = vadd.f32 %v7939, %v7645
    %v7944 = vadd.f32 %v7940, %v7646
    %v7945 = vadd.f32 %v7941, %v7647
    %v7946 = vmul.f32 %v5724, %v7934
    %v7947 = vmul.f32 %v5726, %v7935
    %v7948 = vmul.f32 %v5728, %v7936
    %v7949 = vmul.f32 %v5730, %v7937
    %v7950 = vadd.f32 %v7946, %v6258
    %v7951 = vadd.f32 %v7947, %v6259
    %v7952 = vadd.f32 %v7948, %v6260
    %v7953 = vadd.f32 %v7949, %v6261
    %v7954 = vmul.f32 %v7078, %v7942
    %v7955 = vmul.f32 %v7080, %v7943
    %v7956 = vmul.f32 %v7082, %v7944
    %v7957 = vmul.f32 %v7084, %v7945
    %v7958 = vadd.f32 %v7954, %v7640
    %v7959 = vadd.f32 %v7955, %v7641
    %v7960 = vadd.f32 %v7956, %v7642
    %v7961 = vadd.f32 %v7957, %v7643
    %v7962 = vmul.f32 %v5732, %v7950
    %v7963 = vmul.f32 %v5734, %v7951
    %v7964 = vmul.f32 %v5736, %v7952
    %v7965 = vmul.f32 %v5738, %v7953
    %v7966 = vadd.f32 %v7962, %v6262
    %v7967 = vadd.f32 %v7963, %v6263
    %v7968 = vadd.f32 %v7964, %v6264
    %v7969 = vadd.f32 %v7965, %v6265
    %v7970 = vmul.f32 %v7070, %v7958
    %v7971 = vmul.f32 %v7072, %v7959
    %v7972 = vmul.f32 %v7074, %v7960
    %v7973 = vmul.f32 %v7076, %v7961
    %v7974 = vadd.f32 %v7970, %v7636
    %v7975 = vadd.f32 %v7971, %v7637
    %v7976 = vadd.f32 %v7972, %v7638
    %v7977 = vadd.f32 %v7973, %v7639
    %v7978 = vmul.f32 %v5740, %v7966
    %v7979 = vmul.f32 %v5742, %v7967
    %v7980 = vmul.f32 %v5744, %v7968
    %v7981 = vmul.f32 %v5746, %v7969
    %v7982 = vadd.f32 %v7978, %v6266
    %v7983 = vadd.f32 %v7979, %v6267
    %v7984 = vadd.f32 %v7980, %v6268
    %v7985 = vadd.f32 %v7981, %v6269
    %v7986 = vmul.f32 %v7062, %v7974
    %v7987 = vmul.f32 %v7064, %v7975
    %v7988 = vmul.f32 %v7066, %v7976
    %v7989 = vmul.f32 %v7068, %v7977
    %v7990 = vadd.f32 %v7986, %v7632
    %v7991 = vadd.f32 %v7987, %v7633
    %v7992 = vadd.f32 %v7988, %v7634
    %v7993 = vadd.f32 %v7989, %v7635
    %v7994 = vmul.f32 %v5748, %v7982
    %v7995 = vmul.f32 %v5750, %v7983
    %v7996 = vmul.f32 %v5752, %v7984
    %v7997 = vmul.f32 %v5754, %v7985
    %v7998 = vadd.f32 %v7994, %v6270
    %v7999 = vadd.f32 %v7995, %v6271
    %v8000 = vadd.f32 %v7996, %v6272
    %v8001 = vadd.f32 %v7997, %v6273
    %v8002 = vmul.f32 %v7054, %v7990
    %v8003 = vmul.f32 %v7056, %v7991
    %v8004 = vmul.f32 %v7058, %v7992
    %v8005 = vmul.f32 %v7060, %v7993
    %v8006 = vadd.f32 %v8002, %v7628
    %v8007 = vadd.f32 %v8003, %v7629
    %v8008 = vadd.f32 %v8004, %v7630
    %v8009 = vadd.f32 %v8005, %v7631
    %v8010 = vmul.f32 %v7902, %v6369
    %v8011 = vmul.f32 %v7903, %v6371
    %v8012 = vmul.f32 %v7904, %v6476
    %v8013 = vmul.f32 %v7905, %v6478
    %v8014 = vmul.f32 %v7918, %v6375
    %v8015 = vmul.f32 %v7919, %v6377
    %v8016 = vmul.f32 %v7920, %v6482
    %v8017 = vmul.f32 %v7921, %v6484
    %v8018 = vmul.f32 %v7934, %v6381
    %v8019 = vmul.f32 %v7935, %v6383
    %v8020 = vmul.f32 %v7936, %v6488
    %v8021 = vmul.f32 %v7937, %v6490
    %v8022 = vmul.f32 %v7950, %v6387
    %v8023 = vmul.f32 %v7951, %v6389
    %v8024 = vmul.f32 %v7952, %v6494
    %v8025 = vmul.f32 %v7953, %v6496
    %v8026 = vmul.f32 %v7966, %v6393
    %v8027 = vmul.f32 %v7967, %v6395
    %v8028 = vmul.f32 %v7968, %v6500
    %v8029 = vmul.f32 %v7969, %v6502
    %v8030 = vmul.f32 %v7982, %v6399
    %v8031 = vmul.f32 %v7983, %v6401
    %v8032 = vmul.f32 %v7984, %v6506
    %v8033 = vmul.f32 %v7985, %v6508
    %v8034 = vmul.f32 %v7998, %v6405
    %v8035 = vmul.f32 %v7999, %v6407
    %v8036 = vmul.f32 %v8000, %v6512
    %v8037 = vmul.f32 %v8001, %v6514
    %v8038 = vmul.f32 %v8006, %v7751
    %v8039 = vmul.f32 %v8007, %v7753
    %v8040 = vmul.f32 %v8008, %v7858
    %v8041 = vmul.f32 %v8009, %v7860
    %v8042 = vmul.f32 %v7990, %v7757
    %v8043 = vmul.f32 %v7991, %v7759
    %v8044 = vmul.f32 %v7992, %v7864
    %v8045 = vmul.f32 %v7993, %v7866
    %v8046 = vmul.f32 %v7974, %v7763
    %v8047 = vmul.f32 %v7975, %v7765
    %v8048 = vmul.f32 %v7976, %v7870
    %v8049 = vmul.f32 %v7977, %v7872
    %v8050 = vmul.f32 %v7958, %v7769
    %v8051 = vmul.f32 %v7959, %v7771
    %v8052 = vmul.f32 %v7960, %v7876
    %v8053 = vmul.f32 %v7961, %v7878
    %v8054 = vmul.f32 %v7942, %v7775
    %v8055 = vmul.f32 %v7943, %v7777
    %v8056 = vmul.f32 %v7944, %v7882
    %v8057 = vmul.f32 %v7945, %v7884
    %v8058 = vmul.f32 %v7926, %v7781
    %v8059 = vmul.f32 %v7927, %v7783
    %v8060 = vmul.f32 %v7928, %v7888
    %v8061 = vmul.f32 %v7929, %v7890
    %v8062 = vmul.f32 %v7910, %v7787
    %v8063 = vmul.f32 %v7911, %v7789
    %v8064 = vmul.f32 %v7912, %v7894
    %v8065 = vmul.f32 %v7913, %v7896
    %s8066 = scalar_lea.vmem [#allocation22], 2
    %v8067 = vld [vmem:[%s8066] sm:$0x1]
    %v8069 = vlaneseq
    %v8070 = vshrl.u32 %v8069, 7
    %v8071 = vsub.s32 0, %v8070
    %v8072 = vrot.slane %v8067, %v8071
    %v8074 = vmul.f32 %v5272, %v8072
    %v8075 = vmul.f32 %v5273, %v8072
    %v8076 = vmul.f32 %v5274, %v8072
    %v8077 = vmul.f32 %v5275, %v8072
    %v8078 = vmul.f32 %v5276, %v8072
    %v8079 = vmul.f32 %v5277, %v8072
    %v8080 = vmul.f32 %v5278, %v8072
    %8081 = vmatprep.subr.mxu0 0.0
    %8082 = vmatpush1.msra.mxu0 %v765
    %8083 = vmatprep.subr.mxu0 0.0
    %8084 = vmatpush1.msra.mxu0 %v766
    %8085 = vmatprep.subr.mxu0 0.0
    %8086 = vmatpush1.msra.mxu0 %v767
    %8087 = vmatprep.subr.mxu0 0.0
    %8088 = vmatpush1.msra.mxu0 %v768
    %8089 = vmatprep.subr.mxu0 0.0
    %8090 = vmatpush1.msra.mxu0 %v769
    %8091 = vmatprep.subr.mxu0 0.0
    %8092 = vmatpush1.msra.mxu0 %v770
    %8093 = vmatprep.subr.mxu0 0.0
    %8094 = vmatpush1.msra.mxu0 %v771
    %8095 = vmatprep.subr.mxu0 0.0
    %8096 = vmatpush1.msra.mxu0 %v772
    %8097 = vmatprep.subr.mxu0 0.0
    %8098 = vmatpush1.msra.mxu0 %v773
    %8099 = vmatprep.subr.mxu0 0.0
    %8100 = vmatpush1.msra.mxu0 %v774
    %8101 = vmatprep.subr.mxu0 0.0
    %8102 = vmatpush1.msra.mxu0 %v775
    %8103 = vmatprep.subr.mxu0 0.0
    %8104 = vmatpush1.msra.mxu0 %v776
    %8105 = vmatprep.subr.mxu0 0.0
    %8106 = vmatpush1.msra.mxu0 %v777
    %8107 = vmatprep.subr.mxu0 0.0
    %8108 = vmatpush1.msra.mxu0 %v778
    %8109 = vmatprep.subr.mxu0 0.0
    %8110 = vmatpush1.msra.mxu0 %v779
    %8111 = vmatprep.subr.mxu0 0.0
    %8112 = vmatpush1.msra.mxu0 %v780
    %8113 = vmatprep.subr.mxu0 0.0
    %8114 = vmatpush1.msra.mxu0 %v781
    %8115 = vmatprep.subr.mxu0 0.0
    %8116 = vmatpush1.msra.mxu0 %v782
    %8117 = vmatprep.subr.mxu0 0.0
    %8118 = vmatpush1.msra.mxu0 %v783
    %8119 = vmatprep.subr.mxu0 0.0
    %8120 = vmatpush1.msra.mxu0 %v784
    %8121 = vmatprep.subr.mxu0 0.0
    %8122 = vmatpush1.msra.mxu0 %v785
    %8123 = vmatprep.subr.mxu0 0.0
    %8124 = vmatpush1.msra.mxu0 %v786
    %8125 = vmatprep.subr.mxu0 0.0
    %8126 = vmatpush1.msra.mxu0 %v787
    %8127 = vmatprep.subr.mxu0 0.0
    %8128 = vmatpush1.msra.mxu0 %v788
    %8129 = vmatprep.subr.mxu0 0.0
    %8130 = vmatpush1.msra.mxu0 %v789
    %8131 = vmatprep.subr.mxu0 0.0
    %8132 = vmatpush1.msra.mxu0 %v790
    %8133 = vmatprep.subr.mxu0 0.0
    %8134 = vmatpush1.msra.mxu0 %v791
    %8135 = vmatprep.subr.mxu0 0.0
    %8136 = vmatpush1.msra.mxu0 %v792
    %8137 = vmatprep.subr.mxu0 0.0
    %8138 = vmatpush1.msra.mxu0 %v793
    %8139 = vmatprep.subr.mxu0 0.0
    %8140 = vmatpush1.msra.mxu0 %v794
    %8141 = vmatprep.subr.mxu0 0.0
    %8142 = vmatpush1.msra.mxu0 %v795
    %8143 = vmatprep.subr.mxu0 0.0
    %8144 = vmatpush1.msra.mxu0 %v796
    %8145 = vmatprep.mubr.f32.mxu0 %v8011
    %8146 = vmatmul.mubr.f32.gmra.mrb[0].mxu0 %v8010
    %v8147 = vpop.f32.mrb[0].mxu0
    %v8148 = vadd.f32 %v8074, %v8147
    %v8149 = vpop.f32.mrb[0].mxu0
    %8150 = vmatprep.mubr.f32.mxu0 %v8015
    %8151 = vmatmul.mubr.f32.gmra.mrb[0].mxu0 %v8014
    %v8152 = vpop.f32.mrb[0].mxu0
    %v8153 = vadd.f32 %v8075, %v8152
    %v8154 = vpop.f32.mrb[0].mxu0
    %8155 = vmatprep.mubr.f32.mxu0 %v8019
    %8156 = vmatmul.mubr.f32.gmra.mrb[0].mxu0 %v8018
    %v8157 = vpop.f32.mrb[0].mxu0
    %v8158 = vadd.f32 %v8076, %v8157
    %v8159 = vpop.f32.mrb[0].mxu0
    %8160 = vmatprep.mubr.f32.mxu0 %v8023
    %8161 = vmatmul.mubr.f32.gmra.mrb[0].mxu0 %v8022
    %v8162 = vpop.f32.mrb[0].mxu0
    %v8163 = vadd.f32 %v8077, %v8162
    %v8164 = vpop.f32.mrb[0].mxu0
    %8165 = vmatprep.mubr.f32.mxu0 %v8027
    %8166 = vmatmul.mubr.f32.gmra.mrb[0].mxu0 %v8026
    %v8167 = vpop.f32.mrb[0].mxu0
    %v8168 = vadd.f32 %v8078, %v8167
    %v8169 = vpop.f32.mrb[0].mxu0
    %8170 = vmatprep.mubr.f32.mxu0 %v8031
    %8171 = vmatmul.mubr.f32.gmra.mrb[0].mxu0 %v8030
    %v8172 = vpop.f32.mrb[0].mxu0
    %v8173 = vadd.f32 %v8079, %v8172
    %v8174 = vpop.f32.mrb[0].mxu0
    %8175 = vmatprep.mubr.f32.mxu0 %v8035
    %8176 = vmatmul.mubr.f32.gmra.mrb[0].mxu0 %v8034
    %v8177 = vpop.f32.mrb[0].mxu0
    %v8178 = vadd.f32 %v8080, %v8177
    %v8179 = vpop.f32.mrb[0].mxu0
    %8180 = vdwg.mxu0
    %8181 = vmatprep.subr.mxu0 0.0
    %8182 = vmatpush1.msra.mxu0 %v797
    %8183 = vmatprep.subr.mxu0 0.0
    %8184 = vmatpush1.msra.mxu0 %v798
    %8185 = vmatprep.subr.mxu0 0.0
    %8186 = vmatpush1.msra.mxu0 %v799
    %8187 = vmatprep.subr.mxu0 0.0
    %8188 = vmatpush1.msra.mxu0 %v800
    %8189 = vmatprep.subr.mxu0 0.0
    %8190 = vmatpush1.msra.mxu0 %v801
    %8191 = vmatprep.subr.mxu0 0.0
    %8192 = vmatpush1.msra.mxu0 %v802
    %8193 = vmatprep.subr.mxu0 0.0
    %8194 = vmatpush1.msra.mxu0 %v803
    %8195 = vmatprep.subr.mxu0 0.0
    %8196 = vmatpush1.msra.mxu0 %v804
    %8197 = vmatprep.subr.mxu0 0.0
    %8198 = vmatpush1.msra.mxu0 %v805
    %8199 = vmatprep.subr.mxu0 0.0
    %8200 = vmatpush1.msra.mxu0 %v806
    %8201 = vmatprep.subr.mxu0 0.0
    %8202 = vmatpush1.msra.mxu0 %v807
    %8203 = vmatprep.subr.mxu0 0.0
    %8204 = vmatpush1.msra.mxu0 %v808
    %8205 = vmatprep.subr.mxu0 0.0
    %8206 = vmatpush1.msra.mxu0 %v809
    %8207 = vmatprep.subr.mxu0 0.0
    %8208 = vmatpush1.msra.mxu0 %v810
    %8209 = vmatprep.subr.mxu0 0.0
    %8210 = vmatpush1.msra.mxu0 %v811
    %8211 = vmatprep.subr.mxu0 0.0
    %8212 = vmatpush1.msra.mxu0 %v812
    %8213 = vmatprep.subr.mxu0 0.0
    %8214 = vmatpush1.msra.mxu0 %v813
    %8215 = vmatprep.subr.mxu0 0.0
    %8216 = vmatpush1.msra.mxu0 %v814
    %8217 = vmatprep.subr.mxu0 0.0
    %8218 = vmatpush1.msra.mxu0 %v815
    %8219 = vmatprep.subr.mxu0 0.0
    %8220 = vmatpush1.msra.mxu0 %v816
    %8221 = vmatprep.subr.mxu0 0.0
    %8222 = vmatpush1.msra.mxu0 %v817
    %8223 = vmatprep.subr.mxu0 0.0
    %8224 = vmatpush1.msra.mxu0 %v818
    %8225 = vmatprep.subr.mxu0 0.0
    %8226 = vmatpush1.msra.mxu0 %v819
    %8227 = vmatprep.subr.mxu0 0.0
    %8228 = vmatpush1.msra.mxu0 %v820
    %8229 = vmatprep.subr.mxu0 0.0
    %8230 = vmatpush1.msra.mxu0 %v821
    %8231 = vmatprep.subr.mxu0 0.0
    %8232 = vmatpush1.msra.mxu0 %v822
    %8233 = vmatprep.subr.mxu0 0.0
    %8234 = vmatpush1.msra.mxu0 %v823
    %8235 = vmatprep.subr.mxu0 0.0
    %8236 = vmatpush1.msra.mxu0 %v824
    %8237 = vmatprep.subr.mxu0 0.0
    %8238 = vmatpush1.msra.mxu0 %v825
    %8239 = vmatprep.subr.mxu0 0.0
    %8240 = vmatpush1.msra.mxu0 %v826
    %8241 = vmatprep.subr.mxu0 0.0
    %8242 = vmatpush1.msra.mxu0 %v827
    %8243 = vmatprep.subr.mxu0 0.0
    %8244 = vmatpush1.msra.mxu0 %v828
    %8245 = vmatprep.mubr.f32.mxu0 %v8013
    %8246 = vmatmul.mubr.f32.gmra.mrb[0].mxu0 %v8012
    %v8247 = vpop.f32.mrb[0].mxu0
    %v8248 = vadd.f32 %v8148, %v8247
    %v8249 = vpop.f32.mrb[0].mxu0
    %8250 = vmatprep.mubr.f32.mxu0 %v8017
    %8251 = vmatmul.mubr.f32.gmra.mrb[0].mxu0 %v8016
    %v8252 = vpop.f32.mrb[0].mxu0
    %v8253 = vadd.f32 %v8153, %v8252
    %v8254 = vpop.f32.mrb[0].mxu0
    %8255 = vmatprep.mubr.f32.mxu0 %v8021
    %8256 = vmatmul.mubr.f32.gmra.mrb[0].mxu0 %v8020
    %v8257 = vpop.f32.mrb[0].mxu0
    %v8258 = vadd.f32 %v8158, %v8257
    %v8259 = vpop.f32.mrb[0].mxu0
    %8260 = vmatprep.mubr.f32.mxu0 %v8025
    %8261 = vmatmul.mubr.f32.gmra.mrb[0].mxu0 %v8024
    %v8262 = vpop.f32.mrb[0].mxu0
    %v8263 = vadd.f32 %v8163, %v8262
    %v8264 = vpop.f32.mrb[0].mxu0
    %8265 = vmatprep.mubr.f32.mxu0 %v8029
    %8266 = vmatmul.mubr.f32.gmra.mrb[0].mxu0 %v8028
    %v8267 = vpop.f32.mrb[0].mxu0
    %v8268 = vadd.f32 %v8168, %v8267
    %v8269 = vpop.f32.mrb[0].mxu0
    %8270 = vmatprep.mubr.f32.mxu0 %v8033
    %8271 = vmatmul.mubr.f32.gmra.mrb[0].mxu0 %v8032
    %v8272 = vpop.f32.mrb[0].mxu0
    %v8273 = vadd.f32 %v8173, %v8272
    %v8274 = vpop.f32.mrb[0].mxu0
    %8275 = vmatprep.mubr.f32.mxu0 %v8037
    %8276 = vmatmul.mubr.f32.gmra.mrb[0].mxu0 %v8036
    %v8277 = vpop.f32.mrb[0].mxu0
    %v8278 = vadd.f32 %v8178, %v8277
    %v8279 = vpop.f32.mrb[0].mxu0
    %8280 = vdwg.mxu0
    %v8281 = vxor.u32 %v5155, 2147483648
    %v8282 = vxor.u32 %v5158, 2147483648
    %v8283 = vxor.u32 %v5163, 2147483648
    %v8284 = vxor.u32 %v5166, 2147483648
    %v8285 = vxor.u32 %v5171, 2147483648
    %v8286 = vxor.u32 %v5174, 2147483648
    %v8287 = vxor.u32 %v5179, 2147483648
    %v8288 = vmul.f32 %v8281, 1.442695
    %v8289 = vpow.pop %v8288
    %v8290 = vmul.f32 %v8282, 1.442695
    %v8291 = vpow.pop %v8290
    %v8292 = vmul.f32 %v8283, 1.442695
    %v8293 = vpow.pop %v8292
    %v8294 = vmul.f32 %v8284, 1.442695
    %v8295 = vpow.pop %v8294
    %v8296 = vmul.f32 %v8285, 1.442695
    %v8297 = vpow.pop %v8296
    %v8298 = vmul.f32 %v8286, 1.442695
    %v8299 = vpow.pop %v8298
    %v8300 = vmul.f32 %v8287, 1.442695
    %v8301 = vpow.pop %v8300
    %v8302 = vadd.f32 %v8289, 1.0
    %v8303 = vadd.f32 %v8291, 1.0
    %v8304 = vadd.f32 %v8293, 1.0
    %v8305 = vadd.f32 %v8295, 1.0
    %v8306 = vadd.f32 %v8297, 1.0
    %v8307 = vadd.f32 %v8299, 1.0
    %v8308 = vadd.f32 %v8301, 1.0
    %v8309 = vrcp.pop %v8302
    %v8310 = vmul.f32 1.0, %v8309
    %v8311 = vrcp.pop %v8303
    %v8312 = vmul.f32 1.0, %v8311
    %v8313 = vrcp.pop %v8304
    %v8314 = vmul.f32 1.0, %v8313
    %v8315 = vrcp.pop %v8305
    %v8316 = vmul.f32 1.0, %v8315
    %v8317 = vrcp.pop %v8306
    %v8318 = vmul.f32 1.0, %v8317
    %v8319 = vrcp.pop %v8307
    %v8320 = vmul.f32 1.0, %v8319
    %v8321 = vrcp.pop %v8308
    %v8322 = vmul.f32 1.0, %v8321
    %v8323 = vmul.f32 %v5155, %v8310
    %v8324 = vmul.f32 %v5158, %v8312
    %v8325 = vmul.f32 %v5163, %v8314
    %v8326 = vmul.f32 %v5166, %v8316
    %v8327 = vmul.f32 %v5171, %v8318
    %v8328 = vmul.f32 %v5174, %v8320
    %v8329 = vmul.f32 %v5179, %v8322
    %8337 = vrot.lane.b32.xlu0 %v8323, 96
    %v8338 = vpop.permute.xlu0 %8337
    %8339 = vrot.lane.b32.xlu0 %v8324, 96
    %v8340 = vpop.permute.xlu0 %8339
    %8341 = vrot.lane.b32.xlu0 %v8325, 96
    %v8342 = vpop.permute.xlu0 %8341
    %8343 = vrot.lane.b32.xlu0 %v8326, 96
    %v8344 = vpop.permute.xlu0 %8343
    %8345 = vrot.lane.b32.xlu0 %v8327, 96
    %v8346 = vpop.permute.xlu0 %8345
    %8347 = vrot.lane.b32.xlu0 %v8328, 96
    %v8348 = vpop.permute.xlu0 %8347
    %8349 = vrot.lane.b32.xlu0 %v8329, 96
    %v8350 = vpop.permute.xlu0 %8349
    %v8358 = vmul.f32 %v8248, %v8338
    %v8359 = vmul.f32 %v8253, %v8340
    %v8360 = vmul.f32 %v8258, %v8342
    %v8361 = vmul.f32 %v8263, %v8344
    %v8362 = vmul.f32 %v8268, %v8346
    %v8363 = vmul.f32 %v8273, %v8348
    %v8364 = vmul.f32 %v8278, %v8350
    %s8365 = scalar_lea.vmem [#allocation22], 3
    %v8366 = vld [vmem:[%s8365] sm:$0x1]
    %v8368 = vlaneseq
    %v8369 = vshrl.u32 %v8368, 7
    %v8370 = vsub.s32 0, %v8369
    %v8371 = vrot.slane %v8366, %v8370
    %8372 = vrot.lane.b32.xlu0 %v8371, 64
    %v8373 = vpop.permute.xlu0 %8372
    %v8375 = vmul.f32 %v6614, %v8373
    %v8376 = vmul.f32 %v6615, %v8373
    %v8377 = vmul.f32 %v6616, %v8373
    %v8378 = vmul.f32 %v6617, %v8373
    %v8379 = vmul.f32 %v6618, %v8373
    %v8380 = vmul.f32 %v6619, %v8373
    %v8381 = vmul.f32 %v6620, %v8373
    %8389 = vrot.lane.b32.xlu0 %v8375, 64
    %v8390 = vpop.permute.xlu0 %8389
    %8391 = vrot.lane.b32.xlu0 %v8376, 64
    %v8392 = vpop.permute.xlu0 %8391
    %8393 = vrot.lane.b32.xlu0 %v8377, 64
    %v8394 = vpop.permute.xlu0 %8393
    %8395 = vrot.lane.b32.xlu0 %v8378, 64
    %v8396 = vpop.permute.xlu0 %8395
    %8397 = vrot.lane.b32.xlu0 %v8379, 64
    %v8398 = vpop.permute.xlu0 %8397
    %8399 = vrot.lane.b32.xlu0 %v8380, 64
    %v8400 = vpop.permute.xlu0 %8399
    %8401 = vrot.lane.b32.xlu0 %v8381, 64
    %v8402 = vpop.permute.xlu0 %8401
    %8410 = vmatprep.subr.mxu0 0.0
    %8411 = vmatpush1.msra.mxu0 %v765
    %8412 = vmatprep.subr.mxu0 0.0
    %8413 = vmatpush1.msra.mxu0 %v766
    %8414 = vmatprep.subr.mxu0 0.0
    %8415 = vmatpush1.msra.mxu0 %v767
    %8416 = vmatprep.subr.mxu0 0.0
    %8417 = vmatpush1.msra.mxu0 %v768
    %8418 = vmatprep.subr.mxu0 0.0
    %8419 = vmatpush1.msra.mxu0 %v769
    %8420 = vmatprep.subr.mxu0 0.0
    %8421 = vmatpush1.msra.mxu0 %v770
    %8422 = vmatprep.subr.mxu0 0.0
    %8423 = vmatpush1.msra.mxu0 %v771
    %8424 = vmatprep.subr.mxu0 0.0
    %8425 = vmatpush1.msra.mxu0 %v772
    %8426 = vmatprep.subr.mxu0 0.0
    %8427 = vmatpush1.msra.mxu0 %v773
    %8428 = vmatprep.subr.mxu0 0.0
    %8429 = vmatpush1.msra.mxu0 %v774
    %8430 = vmatprep.subr.mxu0 0.0
    %8431 = vmatpush1.msra.mxu0 %v775
    %8432 = vmatprep.subr.mxu0 0.0
    %8433 = vmatpush1.msra.mxu0 %v776
    %8434 = vmatprep.subr.mxu0 0.0
    %8435 = vmatpush1.msra.mxu0 %v777
    %8436 = vmatprep.subr.mxu0 0.0
    %8437 = vmatpush1.msra.mxu0 %v778
    %8438 = vmatprep.subr.mxu0 0.0
    %8439 = vmatpush1.msra.mxu0 %v779
    %8440 = vmatprep.subr.mxu0 0.0
    %8441 = vmatpush1.msra.mxu0 %v780
    %8442 = vmatprep.subr.mxu0 0.0
    %8443 = vmatpush1.msra.mxu0 %v781
    %8444 = vmatprep.subr.mxu0 0.0
    %8445 = vmatpush1.msra.mxu0 %v782
    %8446 = vmatprep.subr.mxu0 0.0
    %8447 = vmatpush1.msra.mxu0 %v783
    %8448 = vmatprep.subr.mxu0 0.0
    %8449 = vmatpush1.msra.mxu0 %v784
    %8450 = vmatprep.subr.mxu0 0.0
    %8451 = vmatpush1.msra.mxu0 %v785
    %8452 = vmatprep.subr.mxu0 0.0
    %8453 = vmatpush1.msra.mxu0 %v786
    %8454 = vmatprep.subr.mxu0 0.0
    %8455 = vmatpush1.msra.mxu0 %v787
    %8456 = vmatprep.subr.mxu0 0.0
    %8457 = vmatpush1.msra.mxu0 %v788
    %8458 = vmatprep.subr.mxu0 0.0
    %8459 = vmatpush1.msra.mxu0 %v789
    %8460 = vmatprep.subr.mxu0 0.0
    %8461 = vmatpush1.msra.mxu0 %v790
    %8462 = vmatprep.subr.mxu0 0.0
    %8463 = vmatpush1.msra.mxu0 %v791
    %8464 = vmatprep.subr.mxu0 0.0
    %8465 = vmatpush1.msra.mxu0 %v792
    %8466 = vmatprep.subr.mxu0 0.0
    %8467 = vmatpush1.msra.mxu0 %v793
    %8468 = vmatprep.subr.mxu0 0.0
    %8469 = vmatpush1.msra.mxu0 %v794
    %8470 = vmatprep.subr.mxu0 0.0
    %8471 = vmatpush1.msra.mxu0 %v795
    %8472 = vmatprep.subr.mxu0 0.0
    %8473 = vmatpush1.msra.mxu0 %v796
    %8474 = vmatprep.mubr.f32.mxu0 %v8039
    %8475 = vmatmul.mubr.f32.gmra.mrb[0].mxu0 %v8038
    %v8476 = vpop.f32.mrb[0].mxu0
    %v8477 = vadd.f32 %v8390, %v8476
    %v8478 = vpop.f32.mrb[0].mxu0
    %8479 = vmatprep.mubr.f32.mxu0 %v8043
    %8480 = vmatmul.mubr.f32.gmra.mrb[0].mxu0 %v8042
    %v8481 = vpop.f32.mrb[0].mxu0
    %v8482 = vadd.f32 %v8392, %v8481
    %v8483 = vpop.f32.mrb[0].mxu0
    %8484 = vmatprep.mubr.f32.mxu0 %v8047
    %8485 = vmatmul.mubr.f32.gmra.mrb[0].mxu0 %v8046
    %v8486 = vpop.f32.mrb[0].mxu0
    %v8487 = vadd.f32 %v8394, %v8486
    %v8488 = vpop.f32.mrb[0].mxu0
    %8489 = vmatprep.mubr.f32.mxu0 %v8051
    %8490 = vmatmul.mubr.f32.gmra.mrb[0].mxu0 %v8050
    %v8491 = vpop.f32.mrb[0].mxu0
    %v8492 = vadd.f32 %v8396, %v8491
    %v8493 = vpop.f32.mrb[0].mxu0
    %8494 = vmatprep.mubr.f32.mxu0 %v8055
    %8495 = vmatmul.mubr.f32.gmra.mrb[0].mxu0 %v8054
    %v8496 = vpop.f32.mrb[0].mxu0
    %v8497 = vadd.f32 %v8398, %v8496
    %v8498 = vpop.f32.mrb[0].mxu0
    %8499 = vmatprep.mubr.f32.mxu0 %v8059
    %8500 = vmatmul.mubr.f32.gmra.mrb[0].mxu0 %v8058
    %v8501 = vpop.f32.mrb[0].mxu0
    %v8502 = vadd.f32 %v8400, %v8501
    %v8503 = vpop.f32.mrb[0].mxu0
    %8504 = vmatprep.mubr.f32.mxu0 %v8063
    %8505 = vmatmul.mubr.f32.gmra.mrb[0].mxu0 %v8062
    %v8506 = vpop.f32.mrb[0].mxu0
    %v8507 = vadd.f32 %v8402, %v8506
    %v8508 = vpop.f32.mrb[0].mxu0
    %8509 = vdwg.mxu0
    %8510 = vmatprep.subr.mxu0 0.0
    %8511 = vmatpush1.msra.mxu0 %v797
    %8512 = vmatprep.subr.mxu0 0.0
    %8513 = vmatpush1.msra.mxu0 %v798
    %8514 = vmatprep.subr.mxu0 0.0
    %8515 = vmatpush1.msra.mxu0 %v799
    %8516 = vmatprep.subr.mxu0 0.0
    %8517 = vmatpush1.msra.mxu0 %v800
    %8518 = vmatprep.subr.mxu0 0.0
    %8519 = vmatpush1.msra.mxu0 %v801
    %8520 = vmatprep.subr.mxu0 0.0
    %8521 = vmatpush1.msra.mxu0 %v802
    %8522 = vmatprep.subr.mxu0 0.0
    %8523 = vmatpush1.msra.mxu0 %v803
    %8524 = vmatprep.subr.mxu0 0.0
    %8525 = vmatpush1.msra.mxu0 %v804
    %8526 = vmatprep.subr.mxu0 0.0
    %8527 = vmatpush1.msra.mxu0 %v805
    %8528 = vmatprep.subr.mxu0 0.0
    %8529 = vmatpush1.msra.mxu0 %v806
    %8530 = vmatprep.subr.mxu0 0.0
    %8531 = vmatpush1.msra.mxu0 %v807
    %8532 = vmatprep.subr.mxu0 0.0
    %8533 = vmatpush1.msra.mxu0 %v808
    %8534 = vmatprep.subr.mxu0 0.0
    %8535 = vmatpush1.msra.mxu0 %v809
    %8536 = vmatprep.subr.mxu0 0.0
    %8537 = vmatpush1.msra.mxu0 %v810
    %8538 = vmatprep.subr.mxu0 0.0
    %8539 = vmatpush1.msra.mxu0 %v811
    %8540 = vmatprep.subr.mxu0 0.0
    %8541 = vmatpush1.msra.mxu0 %v812
    %8542 = vmatprep.subr.mxu0 0.0
    %8543 = vmatpush1.msra.mxu0 %v813
    %8544 = vmatprep.subr.mxu0 0.0
    %8545 = vmatpush1.msra.mxu0 %v814
    %8546 = vmatprep.subr.mxu0 0.0
    %8547 = vmatpush1.msra.mxu0 %v815
    %8548 = vmatprep.subr.mxu0 0.0
    %8549 = vmatpush1.msra.mxu0 %v816
    %8550 = vmatprep.subr.mxu0 0.0
    %8551 = vmatpush1.msra.mxu0 %v817
    %8552 = vmatprep.subr.mxu0 0.0
    %8553 = vmatpush1.msra.mxu0 %v818
    %8554 = vmatprep.subr.mxu0 0.0
    %8555 = vmatpush1.msra.mxu0 %v819
    %8556 = vmatprep.subr.mxu0 0.0
    %8557 = vmatpush1.msra.mxu0 %v820
    %8558 = vmatprep.subr.mxu0 0.0
    %8559 = vmatpush1.msra.mxu0 %v821
    %8560 = vmatprep.subr.mxu0 0.0
    %8561 = vmatpush1.msra.mxu0 %v822
    %8562 = vmatprep.subr.mxu0 0.0
    %8563 = vmatpush1.msra.mxu0 %v823
    %8564 = vmatprep.subr.mxu0 0.0
    %8565 = vmatpush1.msra.mxu0 %v824
    %8566 = vmatprep.subr.mxu0 0.0
    %8567 = vmatpush1.msra.mxu0 %v825
    %8568 = vmatprep.subr.mxu0 0.0
    %8569 = vmatpush1.msra.mxu0 %v826
    %8570 = vmatprep.subr.mxu0 0.0
    %8571 = vmatpush1.msra.mxu0 %v827
    %8572 = vmatprep.subr.mxu0 0.0
    %8573 = vmatpush1.msra.mxu0 %v828
    %8574 = vmatprep.mubr.f32.mxu0 %v8041
    %8575 = vmatmul.mubr.f32.gmra.mrb[0].mxu0 %v8040
    %v8576 = vpop.f32.mrb[0].mxu0
    %v8577 = vadd.f32 %v8477, %v8576
    %v8578 = vpop.f32.mrb[0].mxu0
    %8579 = vmatprep.mubr.f32.mxu0 %v8045
    %8580 = vmatmul.mubr.f32.gmra.mrb[0].mxu0 %v8044
    %v8581 = vpop.f32.mrb[0].mxu0
    %v8582 = vadd.f32 %v8482, %v8581
    %v8583 = vpop.f32.mrb[0].mxu0
    %8584 = vmatprep.mubr.f32.mxu0 %v8049
    %8585 = vmatmul.mubr.f32.gmra.mrb[0].mxu0 %v8048
    %v8586 = vpop.f32.mrb[0].mxu0
    %v8587 = vadd.f32 %v8487, %v8586
    %v8588 = vpop.f32.mrb[0].mxu0
    %8589 = vmatprep.mubr.f32.mxu0 %v8053
    %8590 = vmatmul.mubr.f32.gmra.mrb[0].mxu0 %v8052
    %v8591 = vpop.f32.mrb[0].mxu0
    %v8592 = vadd.f32 %v8492, %v8591
    %v8593 = vpop.f32.mrb[0].mxu0
    %8594 = vmatprep.mubr.f32.mxu0 %v8057
    %8595 = vmatmul.mubr.f32.gmra.mrb[0].mxu0 %v8056
    %v8596 = vpop.f32.mrb[0].mxu0
    %v8597 = vadd.f32 %v8497, %v8596
    %v8598 = vpop.f32.mrb[0].mxu0
    %8599 = vmatprep.mubr.f32.mxu0 %v8061
    %8600 = vmatmul.mubr.f32.gmra.mrb[0].mxu0 %v8060
    %v8601 = vpop.f32.mrb[0].mxu0
    %v8602 = vadd.f32 %v8502, %v8601
    %v8603 = vpop.f32.mrb[0].mxu0
    %8604 = vmatprep.mubr.f32.mxu0 %v8065
    %8605 = vmatmul.mubr.f32.gmra.mrb[0].mxu0 %v8064
    %v8606 = vpop.f32.mrb[0].mxu0
    %v8607 = vadd.f32 %v8507, %v8606
    %v8608 = vpop.f32.mrb[0].mxu0
    %8609 = vdwg.mxu0
    %8610 = vrot.lane.b32.xlu0 %v8323, 32
    %v8611 = vpop.permute.xlu0 %8610
    %8612 = vrot.lane.b32.xlu0 %v8324, 32
    %v8613 = vpop.permute.xlu0 %8612
    %8614 = vrot.lane.b32.xlu0 %v8325, 32
    %v8615 = vpop.permute.xlu0 %8614
    %8616 = vrot.lane.b32.xlu0 %v8326, 32
    %v8617 = vpop.permute.xlu0 %8616
    %8618 = vrot.lane.b32.xlu0 %v8327, 32
    %v8619 = vpop.permute.xlu0 %8618
    %8620 = vrot.lane.b32.xlu0 %v8328, 32
    %v8621 = vpop.permute.xlu0 %8620
    %8622 = vrot.lane.b32.xlu0 %v8329, 32
    %v8623 = vpop.permute.xlu0 %8622
    %v8631 = vmul.f32 %v8577, %v8611
    %v8632 = vmul.f32 %v8582, %v8613
    %v8633 = vmul.f32 %v8587, %v8615
    %v8634 = vmul.f32 %v8592, %v8617
    %v8635 = vmul.f32 %v8597, %v8619
    %v8636 = vmul.f32 %v8602, %v8621
    %v8637 = vmul.f32 %v8607, %v8623
    %8645 = vrot.lane.b32.xlu0 %v8631, 32
    %v8646 = vpop.permute.xlu0 %8645
    %8647 = vrot.lane.b32.xlu0 %v8632, 32
    %v8648 = vpop.permute.xlu0 %8647
    %8649 = vrot.lane.b32.xlu0 %v8633, 32
    %v8650 = vpop.permute.xlu0 %8649
    %8651 = vrot.lane.b32.xlu0 %v8634, 32
    %v8652 = vpop.permute.xlu0 %8651
    %8653 = vrot.lane.b32.xlu0 %v8635, 32
    %v8654 = vpop.permute.xlu0 %8653
    %8655 = vrot.lane.b32.xlu0 %v8636, 32
    %v8656 = vpop.permute.xlu0 %8655
    %8657 = vrot.lane.b32.xlu0 %v8637, 32
    %v8658 = vpop.permute.xlu0 %8657
    %v8666 = vsel %vm849, %v8358, %v8646
    %v8667 = vsel %vm849, %v8359, %v8648
    %v8668 = vsel %vm849, %v8360, %v8650
    %v8669 = vsel %vm849, %v8361, %v8652
    %v8670 = vsel %vm849, %v8362, %v8654
    %v8671 = vsel %vm849, %v8363, %v8656
    %v8672 = vsel %vm849, %v8364, %v8658
    %s8673 = scalar_lea.vmem [#allocation23], 32
    %v8674 = vld [vmem:[%s8673] sm:$0xf]
    %v8675 = vld [vmem:[%s8673 + $0x4] sm:$0xf]
    %v8676 = vld [vmem:[%s8673 + $0x8] sm:$0xf]
    %v8677 = vld [vmem:[%s8673 + $0xc] sm:$0xf]
    %v8678 = vld [vmem:[%s8673 + $0x10] sm:$0xf]
    %v8679 = vld [vmem:[%s8673 + $0x14] sm:$0xf]
    %v8680 = vld [vmem:[%s8673 + $0x18] sm:$0xf]
    %v8681 = vld [vmem:[%s8673 + $0x1c] sm:$0xf]
    %v8682 = vpack.c.bf16 %v8667, %v8666
    %v8683 = vpack.c.bf16 %v8669, %v8668
    %v8684 = vpack.c.bf16 %v8671, %v8670
    %v8685 = vpack.c.bf16 %v8672, %v8672
    %v8694 = vunpack.c.l.b16 %v8674
    %v8695 = vunpack.c.l.b16 %v8675
    %v8696 = vunpack.c.l.b16 %v8676
    %v8697 = vunpack.c.l.b16 %v8677
    %v8698 = vunpack.c.l.b16 %v8678
    %v8699 = vunpack.c.l.b16 %v8679
    %v8700 = vunpack.c.l.b16 %v8680
    %v8701 = vunpack.c.l.b16 %v8681
    %v8702 = vpack.c.b16 %v8695, %v8694
    %v8703 = vpack.c.b16 %v8697, %v8696
    %v8704 = vpack.c.b16 %v8699, %v8698
    %v8705 = vpack.c.b16 %v8701, %v8700
    %v8711 = vsel %vm4446, %v8682, 0
    %v8714 = vsel %vm4446, %v8683, 0
    %v8717 = vsel %vm4446, %v8684, 0
    %v8720 = vsel %vm4446, %v8685, 0
    %8722 = vmatprep.subr.bf16.mxu0 0
    %8723 = vmatpush1.bf16.msra.mxu0 %v8702
    %8724 = vmatprep.subr.bf16.mxu0 0
    %8725 = vmatpush1.bf16.msra.mxu0 %v8703
    %8726 = vmatprep.subr.bf16.mxu0 0
    %8727 = vmatpush1.bf16.msra.mxu0 %v8704
    %8728 = vmatprep.subr.bf16.mxu0 0
    %8729 = vmatpush1.bf16.msra.mxu0 %v8705
    %8730 = vmatprep.subr.bf16.mxu0 0
    %8731 = vmatpush1.bf16.msra.mxu0 0
    %8732 = vmatprep.subr.bf16.mxu0 0
    %8733 = vmatpush1.bf16.msra.mxu0 0
    %8734 = vmatprep.subr.bf16.mxu0 0
    %8735 = vmatpush1.bf16.msra.mxu0 0
    %8736 = vmatprep.subr.bf16.mxu0 0
    %8737 = vmatpush1.bf16.msra.mxu0 0
    %8738 = vmatprep.subr.bf16.mxu0 0
    %8739 = vmatpush1.bf16.msra.mxu0 0
    %8740 = vmatprep.subr.bf16.mxu0 0
    %8741 = vmatpush1.bf16.msra.mxu0 0
    %8742 = vmatprep.subr.bf16.mxu0 0
    %8743 = vmatpush1.bf16.msra.mxu0 0
    %8744 = vmatprep.subr.bf16.mxu0 0
    %8745 = vmatpush1.bf16.msra.mxu0 0
    %8746 = vmatprep.subr.bf16.mxu0 0
    %8747 = vmatpush1.bf16.msra.mxu0 0
    %8748 = vmatprep.subr.bf16.mxu0 0
    %8749 = vmatpush1.bf16.msra.mxu0 0
    %8750 = vmatprep.subr.bf16.mxu0 0
    %8751 = vmatpush1.bf16.msra.mxu0 0
    %8752 = vmatprep.subr.bf16.mxu0 0
    %8753 = vmatpush1.bf16.msra.mxu0 0
    %8754 = vmatprep.mubr.bf16.mxu0 0
    %8755 = vmatmul.mubr.bf16.gmra.mrb[0].mxu0 %v8711
    %v8756 = vpop.f32.mrb[0].mxu0
    %v8757 = vadd.f32 0.0, %v8756
    %v8758 = vpop.f32.mrb[0].mxu0
    %v8759 = vpop.f32.mrb[0].mxu0
    %v8760 = vadd.f32 0.0, %v8759
    %v8761 = vpop.f32.mrb[0].mxu0
    %8762 = vmatprep.mubr.bf16.mxu0 0
    %8763 = vmatmul.mubr.bf16.gmra.mrb[0].mxu0 %v8714
    %v8764 = vpop.f32.mrb[0].mxu0
    %v8765 = vadd.f32 0.0, %v8764
    %v8766 = vpop.f32.mrb[0].mxu0
    %v8767 = vpop.f32.mrb[0].mxu0
    %v8768 = vadd.f32 0.0, %v8767
    %v8769 = vpop.f32.mrb[0].mxu0
    %8770 = vmatprep.mubr.bf16.mxu0 0
    %8771 = vmatmul.mubr.bf16.gmra.mrb[0].mxu0 %v8717
    %v8772 = vpop.f32.mrb[0].mxu0
    %v8773 = vadd.f32 0.0, %v8772
    %v8774 = vpop.f32.mrb[0].mxu0
    %v8775 = vpop.f32.mrb[0].mxu0
    %v8776 = vadd.f32 0.0, %v8775
    %v8777 = vpop.f32.mrb[0].mxu0
    %8778 = vmatprep.mubr.bf16.mxu0 0
    %8779 = vmatmul.mubr.bf16.gmra.mrb[0].mxu0 %v8720
    %v8780 = vpop.f32.mrb[0].mxu0
    %v8781 = vadd.f32 0.0, %v8780
    %v8782 = vpop.f32.mrb[0].mxu0
    %v8783 = vpop.f32.mrb[0].mxu0
    %v8784 = vpop.f32.mrb[0].mxu0
    %8785 = vdwg.mxu0
    %v8786 = vadd.f32 %v5080, %v8757
    %v8787 = vadd.f32 %v5081, %v8760
    %v8788 = vadd.f32 %v5082, %v8765
    %v8789 = vadd.f32 %v5083, %v8768
    %v8790 = vadd.f32 %v5084, %v8773
    %v8791 = vadd.f32 %v5085, %v8776
    %v8792 = vadd.f32 %v5086, %v8781
    %s8793 = scalar_lea.vmem [#allocation31], 1
    %v8794 = vld [vmem:[%s8793] sm:$0x1]
    %s8795 = scalar_lea.vmem [#allocation32], 1
    %v8796 = vld [vmem:[%s8795] sm:$0x1]
    %v8797 = vsel %vm849, %v8786, 0.0
    %8798 = vadd.xlane.f32.xlu0 %v8797
    %v8799 = vpop.xlane.xlu0 %8798
    %v8800 = vsel %vm849, %v8787, 0.0
    %8801 = vadd.xlane.f32.xlu0 %v8800
    %v8802 = vpop.xlane.xlu0 %8801
    %v8803 = vsel %vm849, %v8788, 0.0
    %8804 = vadd.xlane.f32.xlu0 %v8803
    %v8805 = vpop.xlane.xlu0 %8804
    %v8806 = vsel %vm849, %v8789, 0.0
    %8807 = vadd.xlane.f32.xlu0 %v8806
    %v8808 = vpop.xlane.xlu0 %8807
    %v8809 = vsel %vm849, %v8790, 0.0
    %8810 = vadd.xlane.f32.xlu0 %v8809
    %v8811 = vpop.xlane.xlu0 %8810
    %v8812 = vsel %vm849, %v8791, 0.0
    %8813 = vadd.xlane.f32.xlu0 %v8812
    %v8814 = vpop.xlane.xlu0 %8813
    %v8815 = vsel %vm849, %v8792, 0.0
    %8816 = vadd.xlane.f32.xlu0 %v8815
    %v8817 = vpop.xlane.xlu0 %8816
    %v8818 = vmul.f32 %v8799, %v4553
    %v8819 = vmul.f32 %v8802, %v4553
    %v8820 = vmul.f32 %v8805, %v4553
    %v8821 = vmul.f32 %v8808, %v4553
    %v8822 = vmul.f32 %v8811, %v4553
    %v8823 = vmul.f32 %v8814, %v4553
    %v8824 = vmul.f32 %v8817, %v4553
    %v8825 = vsub.f32 %v8786, %v8818
    %v8826 = vsub.f32 %v8787, %v8819
    %v8827 = vsub.f32 %v8788, %v8820
    %v8828 = vsub.f32 %v8789, %v8821
    %v8829 = vsub.f32 %v8790, %v8822
    %v8830 = vsub.f32 %v8791, %v8823
    %v8831 = vsub.f32 %v8792, %v8824
    %v8832 = vmul.f32 %v8825, %v8825
    %v8833 = vmul.f32 %v8826, %v8826
    %v8834 = vmul.f32 %v8827, %v8827
    %v8835 = vmul.f32 %v8828, %v8828
    %v8836 = vmul.f32 %v8829, %v8829
    %v8837 = vmul.f32 %v8830, %v8830
    %v8838 = vmul.f32 %v8831, %v8831
    %v8839 = vsel %vm849, %v8832, 0.0
    %8840 = vadd.xlane.f32.xlu0 %v8839
    %v8841 = vpop.xlane.xlu0 %8840
    %v8842 = vsel %vm849, %v8833, 0.0
    %8843 = vadd.xlane.f32.xlu0 %v8842
    %v8844 = vpop.xlane.xlu0 %8843
    %v8845 = vsel %vm849, %v8834, 0.0
    %8846 = vadd.xlane.f32.xlu0 %v8845
    %v8847 = vpop.xlane.xlu0 %8846
    %v8848 = vsel %vm849, %v8835, 0.0
    %8849 = vadd.xlane.f32.xlu0 %v8848
    %v8850 = vpop.xlane.xlu0 %8849
    %v8851 = vsel %vm849, %v8836, 0.0
    %8852 = vadd.xlane.f32.xlu0 %v8851
    %v8853 = vpop.xlane.xlu0 %8852
    %v8854 = vsel %vm849, %v8837, 0.0
    %8855 = vadd.xlane.f32.xlu0 %v8854
    %v8856 = vpop.xlane.xlu0 %8855
    %v8857 = vsel %vm849, %v8838, 0.0
    %8858 = vadd.xlane.f32.xlu0 %v8857
    %v8859 = vpop.xlane.xlu0 %8858
    %v8860 = vmul.f32 %v8841, %v4553
    %v8861 = vmul.f32 %v8844, %v4553
    %v8862 = vmul.f32 %v8847, %v4553
    %v8863 = vmul.f32 %v8850, %v4553
    %v8864 = vmul.f32 %v8853, %v4553
    %v8865 = vmul.f32 %v8856, %v4553
    %v8866 = vmul.f32 %v8859, %v4553
    %v8867 = vadd.f32 %v8860, 1e-05
    %v8868 = vadd.f32 %v8861, 1e-05
    %v8869 = vadd.f32 %v8862, 1e-05
    %v8870 = vadd.f32 %v8863, 1e-05
    %v8871 = vadd.f32 %v8864, 1e-05
    %v8872 = vadd.f32 %v8865, 1e-05
    %v8873 = vadd.f32 %v8866, 1e-05
    %v8874 = vrsqrt.pop %v8867
    %v8875 = vmul.f32 %v8867, %v8874
    %vm8876 = vcmp.eq.f32.partialorder %v8867, inf
    %v8877 = vsel %vm8876, %v8867, %v8875
    %vm8878 = vcmp.eq.f32.partialorder %v8867, 0.0
    %v8879 = vand.u32 %v8867, 2147483648
    %v8880 = vsel %vm8878, %v8879, %v8877
    %v8881 = vrsqrt.pop %v8868
    %v8882 = vmul.f32 %v8868, %v8881
    %vm8883 = vcmp.eq.f32.partialorder %v8868, inf
    %v8884 = vsel %vm8883, %v8868, %v8882
    %vm8885 = vcmp.eq.f32.partialorder %v8868, 0.0
    %v8886 = vand.u32 %v8868, 2147483648
    %v8887 = vsel %vm8885, %v8886, %v8884
    %v8888 = vrsqrt.pop %v8869
    %v8889 = vmul.f32 %v8869, %v8888
    %vm8890 = vcmp.eq.f32.partialorder %v8869, inf
    %v8891 = vsel %vm8890, %v8869, %v8889
    %vm8892 = vcmp.eq.f32.partialorder %v8869, 0.0
    %v8893 = vand.u32 %v8869, 2147483648
    %v8894 = vsel %vm8892, %v8893, %v8891
    %v8895 = vrsqrt.pop %v8870
    %v8896 = vmul.f32 %v8870, %v8895
    %vm8897 = vcmp.eq.f32.partialorder %v8870, inf
    %v8898 = vsel %vm8897, %v8870, %v8896
    %vm8899 = vcmp.eq.f32.partialorder %v8870, 0.0
    %v8900 = vand.u32 %v8870, 2147483648
    %v8901 = vsel %vm8899, %v8900, %v8898
    %v8902 = vrsqrt.pop %v8871
    %v8903 = vmul.f32 %v8871, %v8902
    %vm8904 = vcmp.eq.f32.partialorder %v8871, inf
    %v8905 = vsel %vm8904, %v8871, %v8903
    %vm8906 = vcmp.eq.f32.partialorder %v8871, 0.0
    %v8907 = vand.u32 %v8871, 2147483648
    %v8908 = vsel %vm8906, %v8907, %v8905
    %v8909 = vrsqrt.pop %v8872
    %v8910 = vmul.f32 %v8872, %v8909
    %vm8911 = vcmp.eq.f32.partialorder %v8872, inf
    %v8912 = vsel %vm8911, %v8872, %v8910
    %vm8913 = vcmp.eq.f32.partialorder %v8872, 0.0
    %v8914 = vand.u32 %v8872, 2147483648
    %v8915 = vsel %vm8913, %v8914, %v8912
    %v8916 = vrsqrt.pop %v8873
    %v8917 = vmul.f32 %v8873, %v8916
    %vm8918 = vcmp.eq.f32.partialorder %v8873, inf
    %v8919 = vsel %vm8918, %v8873, %v8917
    %vm8920 = vcmp.eq.f32.partialorder %v8873, 0.0
    %v8921 = vand.u32 %v8873, 2147483648
    %v8922 = vsel %vm8920, %v8921, %v8919
    %v8923 = vrcp.pop %v8880
    %v8924 = vmul.f32 %v8825, %v8923
    %v8925 = vrcp.pop %v8887
    %v8926 = vmul.f32 %v8826, %v8925
    %v8927 = vrcp.pop %v8894
    %v8928 = vmul.f32 %v8827, %v8927
    %v8929 = vrcp.pop %v8901
    %v8930 = vmul.f32 %v8828, %v8929
    %v8931 = vrcp.pop %v8908
    %v8932 = vmul.f32 %v8829, %v8931
    %v8933 = vrcp.pop %v8915
    %v8934 = vmul.f32 %v8830, %v8933
    %v8935 = vrcp.pop %v8922
    %v8936 = vmul.f32 %v8831, %v8935
    %v8938 = vlaneseq
    %v8939 = vshrl.u32 %v8938, 7
    %v8940 = vsub.s32 0, %v8939
    %v8941 = vrot.slane %v8794, %v8940
    %v8943 = vmul.f32 %v8924, %v8941
    %v8944 = vmul.f32 %v8926, %v8941
    %v8945 = vmul.f32 %v8928, %v8941
    %v8946 = vmul.f32 %v8930, %v8941
    %v8947 = vmul.f32 %v8932, %v8941
    %v8948 = vmul.f32 %v8934, %v8941
    %v8949 = vmul.f32 %v8936, %v8941
    %v8951 = vlaneseq
    %v8952 = vshrl.u32 %v8951, 7
    %v8953 = vsub.s32 0, %v8952
    %v8954 = vrot.slane %v8796, %v8953
    %v8956 = vadd.f32 %v8943, %v8954
    %v8957 = vadd.f32 %v8944, %v8954
    %v8958 = vadd.f32 %v8945, %v8954
    %v8959 = vadd.f32 %v8946, %v8954
    %v8960 = vadd.f32 %v8947, %v8954
    %v8961 = vadd.f32 %v8948, %v8954
    %v8962 = vadd.f32 %v8949, %v8954
    %s8963 = scalar_lea.vmem [#allocation25], 16
    %v8964 = vld [vmem:[%s8963] sm:$0xf]
    %v8965 = vld [vmem:[%s8963 + $0x4] sm:$0xf]
    %v8966 = vld [vmem:[%s8963 + $0x8] sm:$0xf]
    %v8967 = vld [vmem:[%s8963 + $0xc] sm:$0xf]
    %v8968 = vpack.c.bf16 %v8957, %v8956
    %v8969 = vpack.c.bf16 %v8959, %v8958
    %v8970 = vpack.c.bf16 %v8961, %v8960
    %v8971 = vpack.c.bf16 %v8962, %v8962
    %s8972 = scalar_lea.vmem [#allocation26], 1
    %v8973 = vld [vmem:[%s8972] sm:$0x1]
    %v8975 = vlaneseq
    %v8976 = vshrl.u32 %v8975, 7
    %v8977 = vsub.s32 0, %v8976
    %v8978 = vrot.slane %v8973, %v8977
    %v8984 = vunpack.c.l.b16 %v8964
    %v8985 = vunpack.c.l.b16 %v8965
    %v8986 = vunpack.c.l.b16 %v8966
    %v8987 = vunpack.c.l.b16 %v8967
    %v8988 = vpack.c.b16 %v8985, %v8984
    %v8989 = vpack.c.b16 %v8987, %v8986
    %v8993 = vsel %vm849, %v8968, 0
    %v8996 = vsel %vm849, %v8969, 0
    %v8999 = vsel %vm849, %v8970, 0
    %v9002 = vsel %vm849, %v8971, 0
    %9004 = vmatprep.subr.bf16.mxu0 0
    %9005 = vmatpush1.bf16.msra.mxu0 %v8988
    %9006 = vmatprep.subr.bf16.mxu0 0
    %9007 = vmatpush1.bf16.msra.mxu0 %v8989
    %9008 = vmatprep.subr.bf16.mxu0 0
    %9009 = vmatpush1.bf16.msra.mxu0 0
    %9010 = vmatprep.subr.bf16.mxu0 0
    %9011 = vmatpush1.bf16.msra.mxu0 0
    %9012 = vmatprep.subr.bf16.mxu0 0
    %9013 = vmatpush1.bf16.msra.mxu0 0
    %9014 = vmatprep.subr.bf16.mxu0 0
    %9015 = vmatpush1.bf16.msra.mxu0 0
    %9016 = vmatprep.subr.bf16.mxu0 0
    %9017 = vmatpush1.bf16.msra.mxu0 0
    %9018 = vmatprep.subr.bf16.mxu0 0
    %9019 = vmatpush1.bf16.msra.mxu0 0
    %9020 = vmatprep.subr.bf16.mxu0 0
    %9021 = vmatpush1.bf16.msra.mxu0 0
    %9022 = vmatprep.subr.bf16.mxu0 0
    %9023 = vmatpush1.bf16.msra.mxu0 0
    %9024 = vmatprep.subr.bf16.mxu0 0
    %9025 = vmatpush1.bf16.msra.mxu0 0
    %9026 = vmatprep.subr.bf16.mxu0 0
    %9027 = vmatpush1.bf16.msra.mxu0 0
    %9028 = vmatprep.subr.bf16.mxu0 0
    %9029 = vmatpush1.bf16.msra.mxu0 0
    %9030 = vmatprep.subr.bf16.mxu0 0
    %9031 = vmatpush1.bf16.msra.mxu0 0
    %9032 = vmatprep.subr.bf16.mxu0 0
    %9033 = vmatpush1.bf16.msra.mxu0 0
    %9034 = vmatprep.subr.bf16.mxu0 0
    %9035 = vmatpush1.bf16.msra.mxu0 0
    %9036 = vmatprep.mubr.bf16.mxu0 0
    %9037 = vmatmul.mubr.bf16.gmra.mrb[0].mxu0 %v8993
    %v9038 = vpop.f32.mrb[0].mxu0
    %v9039 = vadd.f32 %v8978, %v9038
    %v9040 = vpop.f32.mrb[0].mxu0
    %v9041 = vpop.f32.mrb[0].mxu0
    %v9042 = vadd.f32 %v8978, %v9041
    %v9043 = vpop.f32.mrb[0].mxu0
    %9044 = vmatprep.mubr.bf16.mxu0 0
    %9045 = vmatmul.mubr.bf16.gmra.mrb[0].mxu0 %v8996
    %v9046 = vpop.f32.mrb[0].mxu0
    %v9047 = vadd.f32 %v8978, %v9046
    %v9048 = vpop.f32.mrb[0].mxu0
    %v9049 = vpop.f32.mrb[0].mxu0
    %v9050 = vadd.f32 %v8978, %v9049
    %v9051 = vpop.f32.mrb[0].mxu0
    %9052 = vmatprep.mubr.bf16.mxu0 0
    %9053 = vmatmul.mubr.bf16.gmra.mrb[0].mxu0 %v8999
    %v9054 = vpop.f32.mrb[0].mxu0
    %v9055 = vadd.f32 %v8978, %v9054
    %v9056 = vpop.f32.mrb[0].mxu0
    %v9057 = vpop.f32.mrb[0].mxu0
    %v9058 = vadd.f32 %v8978, %v9057
    %v9059 = vpop.f32.mrb[0].mxu0
    %9060 = vmatprep.mubr.bf16.mxu0 0
    %9061 = vmatmul.mubr.bf16.gmra.mrb[0].mxu0 %v9002
    %v9062 = vpop.f32.mrb[0].mxu0
    %v9063 = vadd.f32 %v8978, %v9062
    %v9064 = vpop.f32.mrb[0].mxu0
    %v9065 = vpop.f32.mrb[0].mxu0
    %v9066 = vpop.f32.mrb[0].mxu0
    %9067 = vdwg.mxu0
    %v9068 = vmax.f32 %v9039, 0.0
    %v9069 = vmax.f32 %v9042, 0.0
    %v9070 = vmax.f32 %v9047, 0.0
    %v9071 = vmax.f32 %v9050, 0.0
    %v9072 = vmax.f32 %v9055, 0.0
    %v9073 = vmax.f32 %v9058, 0.0
    %v9074 = vmax.f32 %v9063, 0.0
    %s9075 = scalar_lea.vmem [#allocation28], 16
    %v9076 = vld [vmem:[%s9075] sm:$0xf]
    %v9077 = vld [vmem:[%s9075 + $0x4] sm:$0xf]
    %v9078 = vld [vmem:[%s9075 + $0x8] sm:$0xf]
    %v9079 = vld [vmem:[%s9075 + $0xc] sm:$0xf]
    %v9080 = vpack.c.bf16 %v9069, %v9068
    %v9081 = vpack.c.bf16 %v9071, %v9070
    %v9082 = vpack.c.bf16 %v9073, %v9072
    %v9083 = vpack.c.bf16 %v9074, %v9074
    %s9084 = scalar_lea.vmem [#allocation29], 1
    %v9085 = vld [vmem:[%s9084] sm:$0x1]
    %v9087 = vlaneseq
    %v9088 = vshrl.u32 %v9087, 7
    %v9089 = vsub.s32 0, %v9088
    %v9090 = vrot.slane %v9085, %v9089
    %v9096 = vunpack.c.l.b16 %v9076
    %v9097 = vunpack.c.l.b16 %v9077
    %v9098 = vunpack.c.l.b16 %v9078
    %v9099 = vunpack.c.l.b16 %v9079
    %v9100 = vpack.c.b16 %v9097, %v9096
    %v9101 = vpack.c.b16 %v9099, %v9098
    %v9105 = vsel %vm849, %v9080, 0
    %v9108 = vsel %vm849, %v9081, 0
    %v9111 = vsel %vm849, %v9082, 0
    %v9114 = vsel %vm849, %v9083, 0
    %9116 = vmatprep.subr.bf16.mxu0 0
    %9117 = vmatpush1.bf16.msra.mxu0 %v9100
    %9118 = vmatprep.subr.bf16.mxu0 0
    %9119 = vmatpush1.bf16.msra.mxu0 %v9101
    %9120 = vmatprep.subr.bf16.mxu0 0
    %9121 = vmatpush1.bf16.msra.mxu0 0
    %9122 = vmatprep.subr.bf16.mxu0 0
    %9123 = vmatpush1.bf16.msra.mxu0 0
    %9124 = vmatprep.subr.bf16.mxu0 0
    %9125 = vmatpush1.bf16.msra.mxu0 0
    %9126 = vmatprep.subr.bf16.mxu0 0
    %9127 = vmatpush1.bf16.msra.mxu0 0
    %9128 = vmatprep.subr.bf16.mxu0 0
    %9129 = vmatpush1.bf16.msra.mxu0 0
    %9130 = vmatprep.subr.bf16.mxu0 0
    %9131 = vmatpush1.bf16.msra.mxu0 0
    %9132 = vmatprep.subr.bf16.mxu0 0
    %9133 = vmatpush1.bf16.msra.mxu0 0
    %9134 = vmatprep.subr.bf16.mxu0 0
    %9135 = vmatpush1.bf16.msra.mxu0 0
    %9136 = vmatprep.subr.bf16.mxu0 0
    %9137 = vmatpush1.bf16.msra.mxu0 0
    %9138 = vmatprep.subr.bf16.mxu0 0
    %9139 = vmatpush1.bf16.msra.mxu0 0
    %9140 = vmatprep.subr.bf16.mxu0 0
    %9141 = vmatpush1.bf16.msra.mxu0 0
    %9142 = vmatprep.subr.bf16.mxu0 0
    %9143 = vmatpush1.bf16.msra.mxu0 0
    %9144 = vmatprep.subr.bf16.mxu0 0
    %9145 = vmatpush1.bf16.msra.mxu0 0
    %9146 = vmatprep.subr.bf16.mxu0 0
    %9147 = vmatpush1.bf16.msra.mxu0 0
    %9148 = vmatprep.mubr.bf16.mxu0 0
    %9149 = vmatmul.mubr.bf16.gmra.mrb[0].mxu0 %v9105
    %v9150 = vpop.f32.mrb[0].mxu0
    %v9151 = vadd.f32 %v9090, %v9150
    %v9152 = vpop.f32.mrb[0].mxu0
    %v9153 = vpop.f32.mrb[0].mxu0
    %v9154 = vadd.f32 %v9090, %v9153
    %v9155 = vpop.f32.mrb[0].mxu0
    %9156 = vmatprep.mubr.bf16.mxu0 0
    %9157 = vmatmul.mubr.bf16.gmra.mrb[0].mxu0 %v9108
    %v9158 = vpop.f32.mrb[0].mxu0
    %v9159 = vadd.f32 %v9090, %v9158
    %v9160 = vpop.f32.mrb[0].mxu0
    %v9161 = vpop.f32.mrb[0].mxu0
    %v9162 = vadd.f32 %v9090, %v9161
    %v9163 = vpop.f32.mrb[0].mxu0
    %9164 = vmatprep.mubr.bf16.mxu0 0
    %9165 = vmatmul.mubr.bf16.gmra.mrb[0].mxu0 %v9111
    %v9166 = vpop.f32.mrb[0].mxu0
    %v9167 = vadd.f32 %v9090, %v9166
    %v9168 = vpop.f32.mrb[0].mxu0
    %v9169 = vpop.f32.mrb[0].mxu0
    %v9170 = vadd.f32 %v9090, %v9169
    %v9171 = vpop.f32.mrb[0].mxu0
    %9172 = vmatprep.mubr.bf16.mxu0 0
    %9173 = vmatmul.mubr.bf16.gmra.mrb[0].mxu0 %v9114
    %v9174 = vpop.f32.mrb[0].mxu0
    %v9175 = vadd.f32 %v9090, %v9174
    %v9176 = vpop.f32.mrb[0].mxu0
    %v9177 = vpop.f32.mrb[0].mxu0
    %v9178 = vpop.f32.mrb[0].mxu0
    %9179 = vdwg.mxu0
    %v9180 = vadd.f32 %v8956, %v9151
    %v9181 = vadd.f32 %v8957, %v9154
    %v9182 = vadd.f32 %v8958, %v9159
    %v9183 = vadd.f32 %v8959, %v9162
    %v9184 = vadd.f32 %v8960, %v9167
    %v9185 = vadd.f32 %v8961, %v9170
    %v9186 = vadd.f32 %v8962, %v9175
    %s9187 = scalar_lea.vmem [#allocation34], 1
    %v9188 = vld [vmem:[%s9187] sm:$0x1]
    %s9189 = scalar_lea.vmem [#allocation35], 1
    %v9190 = vld [vmem:[%s9189] sm:$0x1]
    %v9191 = vsel %vm849, %v9180, 0.0
    %9192 = vadd.xlane.f32.xlu0 %v9191
    %v9193 = vpop.xlane.xlu0 %9192
    %v9194 = vsel %vm849, %v9181, 0.0
    %9195 = vadd.xlane.f32.xlu0 %v9194
    %v9196 = vpop.xlane.xlu0 %9195
    %v9197 = vsel %vm849, %v9182, 0.0
    %9198 = vadd.xlane.f32.xlu0 %v9197
    %v9199 = vpop.xlane.xlu0 %9198
    %v9200 = vsel %vm849, %v9183, 0.0
    %9201 = vadd.xlane.f32.xlu0 %v9200
    %v9202 = vpop.xlane.xlu0 %9201
    %v9203 = vsel %vm849, %v9184, 0.0
    %9204 = vadd.xlane.f32.xlu0 %v9203
    %v9205 = vpop.xlane.xlu0 %9204
    %v9206 = vsel %vm849, %v9185, 0.0
    %9207 = vadd.xlane.f32.xlu0 %v9206
    %v9208 = vpop.xlane.xlu0 %9207
    %v9209 = vsel %vm849, %v9186, 0.0
    %9210 = vadd.xlane.f32.xlu0 %v9209
    %v9211 = vpop.xlane.xlu0 %9210
    %v9212 = vmul.f32 %v9193, %v4553
    %v9213 = vmul.f32 %v9196, %v4553
    %v9214 = vmul.f32 %v9199, %v4553
    %v9215 = vmul.f32 %v9202, %v4553
    %v9216 = vmul.f32 %v9205, %v4553
    %v9217 = vmul.f32 %v9208, %v4553
    %v9218 = vmul.f32 %v9211, %v4553
    %v9219 = vsub.f32 %v9180, %v9212
    %v9220 = vsub.f32 %v9181, %v9213
    %v9221 = vsub.f32 %v9182, %v9214
    %v9222 = vsub.f32 %v9183, %v9215
    %v9223 = vsub.f32 %v9184, %v9216
    %v9224 = vsub.f32 %v9185, %v9217
    %v9225 = vsub.f32 %v9186, %v9218
    %v9226 = vmul.f32 %v9219, %v9219
    %v9227 = vmul.f32 %v9220, %v9220
    %v9228 = vmul.f32 %v9221, %v9221
    %v9229 = vmul.f32 %v9222, %v9222
    %v9230 = vmul.f32 %v9223, %v9223
    %v9231 = vmul.f32 %v9224, %v9224
    %v9232 = vmul.f32 %v9225, %v9225
    %v9233 = vsel %vm849, %v9226, 0.0
    %9234 = vadd.xlane.f32.xlu0 %v9233
    %v9235 = vpop.xlane.xlu0 %9234
    %v9236 = vsel %vm849, %v9227, 0.0
    %9237 = vadd.xlane.f32.xlu0 %v9236
    %v9238 = vpop.xlane.xlu0 %9237
    %v9239 = vsel %vm849, %v9228, 0.0
    %9240 = vadd.xlane.f32.xlu0 %v9239
    %v9241 = vpop.xlane.xlu0 %9240
    %v9242 = vsel %vm849, %v9229, 0.0
    %9243 = vadd.xlane.f32.xlu0 %v9242
    %v9244 = vpop.xlane.xlu0 %9243
    %v9245 = vsel %vm849, %v9230, 0.0
    %9246 = vadd.xlane.f32.xlu0 %v9245
    %v9247 = vpop.xlane.xlu0 %9246
    %v9248 = vsel %vm849, %v9231, 0.0
    %9249 = vadd.xlane.f32.xlu0 %v9248
    %v9250 = vpop.xlane.xlu0 %9249
    %v9251 = vsel %vm849, %v9232, 0.0
    %9252 = vadd.xlane.f32.xlu0 %v9251
    %v9253 = vpop.xlane.xlu0 %9252
    %v9254 = vmul.f32 %v9235, %v4553
    %v9255 = vmul.f32 %v9238, %v4553
    %v9256 = vmul.f32 %v9241, %v4553
    %v9257 = vmul.f32 %v9244, %v4553
    %v9258 = vmul.f32 %v9247, %v4553
    %v9259 = vmul.f32 %v9250, %v4553
    %v9260 = vmul.f32 %v9253, %v4553
    %v9261 = vadd.f32 %v9254, 1e-05
    %v9262 = vadd.f32 %v9255, 1e-05
    %v9263 = vadd.f32 %v9256, 1e-05
    %v9264 = vadd.f32 %v9257, 1e-05
    %v9265 = vadd.f32 %v9258, 1e-05
    %v9266 = vadd.f32 %v9259, 1e-05
    %v9267 = vadd.f32 %v9260, 1e-05
    %v9268 = vrsqrt.pop %v9261
    %v9269 = vmul.f32 %v9261, %v9268
    %vm9270 = vcmp.eq.f32.partialorder %v9261, inf
    %v9271 = vsel %vm9270, %v9261, %v9269
    %vm9272 = vcmp.eq.f32.partialorder %v9261, 0.0
    %v9273 = vand.u32 %v9261, 2147483648
    %v9274 = vsel %vm9272, %v9273, %v9271
    %v9275 = vrsqrt.pop %v9262
    %v9276 = vmul.f32 %v9262, %v9275
    %vm9277 = vcmp.eq.f32.partialorder %v9262, inf
    %v9278 = vsel %vm9277, %v9262, %v9276
    %vm9279 = vcmp.eq.f32.partialorder %v9262, 0.0
    %v9280 = vand.u32 %v9262, 2147483648
    %v9281 = vsel %vm9279, %v9280, %v9278
    %v9282 = vrsqrt.pop %v9263
    %v9283 = vmul.f32 %v9263, %v9282
    %vm9284 = vcmp.eq.f32.partialorder %v9263, inf
    %v9285 = vsel %vm9284, %v9263, %v9283
    %vm9286 = vcmp.eq.f32.partialorder %v9263, 0.0
    %v9287 = vand.u32 %v9263, 2147483648
    %v9288 = vsel %vm9286, %v9287, %v9285
    %v9289 = vrsqrt.pop %v9264
    %v9290 = vmul.f32 %v9264, %v9289
    %vm9291 = vcmp.eq.f32.partialorder %v9264, inf
    %v9292 = vsel %vm9291, %v9264, %v9290
    %vm9293 = vcmp.eq.f32.partialorder %v9264, 0.0
    %v9294 = vand.u32 %v9264, 2147483648
    %v9295 = vsel %vm9293, %v9294, %v9292
    %v9296 = vrsqrt.pop %v9265
    %v9297 = vmul.f32 %v9265, %v9296
    %vm9298 = vcmp.eq.f32.partialorder %v9265, inf
    %v9299 = vsel %vm9298, %v9265, %v9297
    %vm9300 = vcmp.eq.f32.partialorder %v9265, 0.0
    %v9301 = vand.u32 %v9265, 2147483648
    %v9302 = vsel %vm9300, %v9301, %v9299
    %v9303 = vrsqrt.pop %v9266
    %v9304 = vmul.f32 %v9266, %v9303
    %vm9305 = vcmp.eq.f32.partialorder %v9266, inf
    %v9306 = vsel %vm9305, %v9266, %v9304
    %vm9307 = vcmp.eq.f32.partialorder %v9266, 0.0
    %v9308 = vand.u32 %v9266, 2147483648
    %v9309 = vsel %vm9307, %v9308, %v9306
    %v9310 = vrsqrt.pop %v9267
    %v9311 = vmul.f32 %v9267, %v9310
    %vm9312 = vcmp.eq.f32.partialorder %v9267, inf
    %v9313 = vsel %vm9312, %v9267, %v9311
    %vm9314 = vcmp.eq.f32.partialorder %v9267, 0.0
    %v9315 = vand.u32 %v9267, 2147483648
    %v9316 = vsel %vm9314, %v9315, %v9313
    %v9317 = vrcp.pop %v9274
    %v9318 = vmul.f32 %v9219, %v9317
    %v9319 = vrcp.pop %v9281
    %v9320 = vmul.f32 %v9220, %v9319
    %v9321 = vrcp.pop %v9288
    %v9322 = vmul.f32 %v9221, %v9321
    %v9323 = vrcp.pop %v9295
    %v9324 = vmul.f32 %v9222, %v9323
    %v9325 = vrcp.pop %v9302
    %v9326 = vmul.f32 %v9223, %v9325
    %v9327 = vrcp.pop %v9309
    %v9328 = vmul.f32 %v9224, %v9327
    %v9329 = vrcp.pop %v9316
    %v9330 = vmul.f32 %v9225, %v9329
    %v9332 = vlaneseq
    %v9333 = vshrl.u32 %v9332, 7
    %v9334 = vsub.s32 0, %v9333
    %v9335 = vrot.slane %v9188, %v9334
    %v9337 = vmul.f32 %v9318, %v9335
    %v9338 = vmul.f32 %v9320, %v9335
    %v9339 = vmul.f32 %v9322, %v9335
    %v9340 = vmul.f32 %v9324, %v9335
    %v9341 = vmul.f32 %v9326, %v9335
    %v9342 = vmul.f32 %v9328, %v9335
    %v9343 = vmul.f32 %v9330, %v9335
    %v9345 = vlaneseq
    %v9346 = vshrl.u32 %v9345, 7
    %v9347 = vsub.s32 0, %v9346
    %v9348 = vrot.slane %v9190, %v9347
    %v9350 = vadd.f32 %v9337, %v9348
    %v9351 = vadd.f32 %v9338, %v9348
    %v9352 = vadd.f32 %v9339, %v9348
    %v9353 = vadd.f32 %v9340, %v9348
    %v9354 = vadd.f32 %v9341, %v9348
    %v9355 = vadd.f32 %v9342, %v9348
    %v9356 = vadd.f32 %v9343, %v9348
    %v9357 = vld [vmem:[#allocation37] sm:$0x1]
    %v9358 = vld [vmem:[#allocation38] sm:$0x1]
    %v9359 = vsel %vm849, %v9350, 0.0
    %9360 = vadd.xlane.f32.xlu0 %v9359
    %v9361 = vpop.xlane.xlu0 %9360
    %v9362 = vsel %vm849, %v9351, 0.0
    %9363 = vadd.xlane.f32.xlu0 %v9362
    %v9364 = vpop.xlane.xlu0 %9363
    %v9365 = vsel %vm849, %v9352, 0.0
    %9366 = vadd.xlane.f32.xlu0 %v9365
    %v9367 = vpop.xlane.xlu0 %9366
    %v9368 = vsel %vm849, %v9353, 0.0
    %9369 = vadd.xlane.f32.xlu0 %v9368
    %v9370 = vpop.xlane.xlu0 %9369
    %v9371 = vsel %vm849, %v9354, 0.0
    %9372 = vadd.xlane.f32.xlu0 %v9371
    %v9373 = vpop.xlane.xlu0 %9372
    %v9374 = vsel %vm849, %v9355, 0.0
    %9375 = vadd.xlane.f32.xlu0 %v9374
    %v9376 = vpop.xlane.xlu0 %9375
    %v9377 = vsel %vm849, %v9356, 0.0
    %9378 = vadd.xlane.f32.xlu0 %v9377
    %v9379 = vpop.xlane.xlu0 %9378
    %v9380 = vmul.f32 %v9361, %v4553
    %v9381 = vmul.f32 %v9364, %v4553
    %v9382 = vmul.f32 %v9367, %v4553
    %v9383 = vmul.f32 %v9370, %v4553
    %v9384 = vmul.f32 %v9373, %v4553
    %v9385 = vmul.f32 %v9376, %v4553
    %v9386 = vmul.f32 %v9379, %v4553
    %v9387 = vsub.f32 %v9350, %v9380
    %v9388 = vsub.f32 %v9351, %v9381
    %v9389 = vsub.f32 %v9352, %v9382
    %v9390 = vsub.f32 %v9353, %v9383
    %v9391 = vsub.f32 %v9354, %v9384
    %v9392 = vsub.f32 %v9355, %v9385
    %v9393 = vsub.f32 %v9356, %v9386
    %v9394 = vmul.f32 %v9387, %v9387
    %v9395 = vmul.f32 %v9388, %v9388
    %v9396 = vmul.f32 %v9389, %v9389
    %v9397 = vmul.f32 %v9390, %v9390
    %v9398 = vmul.f32 %v9391, %v9391
    %v9399 = vmul.f32 %v9392, %v9392
    %v9400 = vmul.f32 %v9393, %v9393
    %v9401 = vsel %vm849, %v9394, 0.0
    %9402 = vadd.xlane.f32.xlu0 %v9401
    %v9403 = vpop.xlane.xlu0 %9402
    %v9404 = vsel %vm849, %v9395, 0.0
    %9405 = vadd.xlane.f32.xlu0 %v9404
    %v9406 = vpop.xlane.xlu0 %9405
    %v9407 = vsel %vm849, %v9396, 0.0
    %9408 = vadd.xlane.f32.xlu0 %v9407
    %v9409 = vpop.xlane.xlu0 %9408
    %v9410 = vsel %vm849, %v9397, 0.0
    %9411 = vadd.xlane.f32.xlu0 %v9410
    %v9412 = vpop.xlane.xlu0 %9411
    %v9413 = vsel %vm849, %v9398, 0.0
    %9414 = vadd.xlane.f32.xlu0 %v9413
    %v9415 = vpop.xlane.xlu0 %9414
    %v9416 = vsel %vm849, %v9399, 0.0
    %9417 = vadd.xlane.f32.xlu0 %v9416
    %v9418 = vpop.xlane.xlu0 %9417
    %v9419 = vsel %vm849, %v9400, 0.0
    %9420 = vadd.xlane.f32.xlu0 %v9419
    %v9421 = vpop.xlane.xlu0 %9420
    %v9422 = vmul.f32 %v9403, %v4553
    %v9423 = vmul.f32 %v9406, %v4553
    %v9424 = vmul.f32 %v9409, %v4553
    %v9425 = vmul.f32 %v9412, %v4553
    %v9426 = vmul.f32 %v9415, %v4553
    %v9427 = vmul.f32 %v9418, %v4553
    %v9428 = vmul.f32 %v9421, %v4553
    %v9429 = vadd.f32 %v9422, 1e-05
    %v9430 = vadd.f32 %v9423, 1e-05
    %v9431 = vadd.f32 %v9424, 1e-05
    %v9432 = vadd.f32 %v9425, 1e-05
    %v9433 = vadd.f32 %v9426, 1e-05
    %v9434 = vadd.f32 %v9427, 1e-05
    %v9435 = vadd.f32 %v9428, 1e-05
    %v9436 = vrsqrt.pop %v9429
    %v9437 = vmul.f32 %v9429, %v9436
    %vm9438 = vcmp.eq.f32.partialorder %v9429, inf
    %v9439 = vsel %vm9438, %v9429, %v9437
    %vm9440 = vcmp.eq.f32.partialorder %v9429, 0.0
    %v9441 = vand.u32 %v9429, 2147483648
    %v9442 = vsel %vm9440, %v9441, %v9439
    %v9443 = vrsqrt.pop %v9430
    %v9444 = vmul.f32 %v9430, %v9443
    %vm9445 = vcmp.eq.f32.partialorder %v9430, inf
    %v9446 = vsel %vm9445, %v9430, %v9444
    %vm9447 = vcmp.eq.f32.partialorder %v9430, 0.0
    %v9448 = vand.u32 %v9430, 2147483648
    %v9449 = vsel %vm9447, %v9448, %v9446
    %v9450 = vrsqrt.pop %v9431
    %v9451 = vmul.f32 %v9431, %v9450
    %vm9452 = vcmp.eq.f32.partialorder %v9431, inf
    %v9453 = vsel %vm9452, %v9431, %v9451
    %vm9454 = vcmp.eq.f32.partialorder %v9431, 0.0
    %v9455 = vand.u32 %v9431, 2147483648
    %v9456 = vsel %vm9454, %v9455, %v9453
    %v9457 = vrsqrt.pop %v9432
    %v9458 = vmul.f32 %v9432, %v9457
    %vm9459 = vcmp.eq.f32.partialorder %v9432, inf
    %v9460 = vsel %vm9459, %v9432, %v9458
    %vm9461 = vcmp.eq.f32.partialorder %v9432, 0.0
    %v9462 = vand.u32 %v9432, 2147483648
    %v9463 = vsel %vm9461, %v9462, %v9460
    %v9464 = vrsqrt.pop %v9433
    %v9465 = vmul.f32 %v9433, %v9464
    %vm9466 = vcmp.eq.f32.partialorder %v9433, inf
    %v9467 = vsel %vm9466, %v9433, %v9465
    %vm9468 = vcmp.eq.f32.partialorder %v9433, 0.0
    %v9469 = vand.u32 %v9433, 2147483648
    %v9470 = vsel %vm9468, %v9469, %v9467
    %v9471 = vrsqrt.pop %v9434
    %v9472 = vmul.f32 %v9434, %v9471
    %vm9473 = vcmp.eq.f32.partialorder %v9434, inf
    %v9474 = vsel %vm9473, %v9434, %v9472
    %vm9475 = vcmp.eq.f32.partialorder %v9434, 0.0
    %v9476 = vand.u32 %v9434, 2147483648
    %v9477 = vsel %vm9475, %v9476, %v9474
    %v9478 = vrsqrt.pop %v9435
    %v9479 = vmul.f32 %v9435, %v9478
    %vm9480 = vcmp.eq.f32.partialorder %v9435, inf
    %v9481 = vsel %vm9480, %v9435, %v9479
    %vm9482 = vcmp.eq.f32.partialorder %v9435, 0.0
    %v9483 = vand.u32 %v9435, 2147483648
    %v9484 = vsel %vm9482, %v9483, %v9481
    %v9485 = vrcp.pop %v9442
    %v9486 = vmul.f32 %v9387, %v9485
    %v9487 = vrcp.pop %v9449
    %v9488 = vmul.f32 %v9388, %v9487
    %v9489 = vrcp.pop %v9456
    %v9490 = vmul.f32 %v9389, %v9489
    %v9491 = vrcp.pop %v9463
    %v9492 = vmul.f32 %v9390, %v9491
    %v9493 = vrcp.pop %v9470
    %v9494 = vmul.f32 %v9391, %v9493
    %v9495 = vrcp.pop %v9477
    %v9496 = vmul.f32 %v9392, %v9495
    %v9497 = vrcp.pop %v9484
    %v9498 = vmul.f32 %v9393, %v9497
    %v9500 = vlaneseq
    %v9501 = vshrl.u32 %v9500, 7
    %v9502 = vsub.s32 0, %v9501
    %v9503 = vrot.slane %v9357, %v9502
    %v9505 = vmul.f32 %v9486, %v9503
    %v9506 = vmul.f32 %v9488, %v9503
    %v9507 = vmul.f32 %v9490, %v9503
    %v9508 = vmul.f32 %v9492, %v9503
    %v9509 = vmul.f32 %v9494, %v9503
    %v9510 = vmul.f32 %v9496, %v9503
    %v9511 = vmul.f32 %v9498, %v9503
    %v9513 = vlaneseq
    %v9514 = vshrl.u32 %v9513, 7
    %v9515 = vsub.s32 0, %v9514
    %v9516 = vrot.slane %v9358, %v9515
    %v9518 = vadd.f32 %v9505, %v9516
    %v9519 = vadd.f32 %v9506, %v9516
    %v9520 = vadd.f32 %v9507, %v9516
    %v9521 = vadd.f32 %v9508, %v9516
    %v9522 = vadd.f32 %v9509, %v9516
    %v9523 = vadd.f32 %v9510, %v9516
    %v9524 = vadd.f32 %v9511, %v9516
    %v9525 = vld [vmem:[#allocation40] sm:$0xff]
    %v9526 = vld [vmem:[#allocation40 + $0x8] sm:$0xff]
    %v9527 = vld [vmem:[#allocation40 + $0x10] sm:$0xff]
    %v9528 = vld [vmem:[#allocation40 + $0x18] sm:$0xff]
    %v9529 = vld [vmem:[#allocation41] sm:$0x1]
    %v9531 = vlaneseq
    %v9532 = vshrl.u32 %v9531, 7
    %v9533 = vsub.s32 0, %v9532
    %v9534 = vrot.slane %v9529, %v9533
    %v9537 = vsel %vm849, %v9518, 0
    %v9540 = vsel %vm849, %v9519, 0
    %v9543 = vsel %vm849, %v9520, 0
    %v9546 = vsel %vm849, %v9521, 0
    %v9549 = vsel %vm849, %v9522, 0
    %v9552 = vsel %vm849, %v9523, 0
    %v9555 = vsel %vm849, %v9524, 0
    %9557 = vmatprep.subr.mxu0 0.0
    %9558 = vmatpush1.msra.mxu0 %v9525
    %9559 = vmatprep.subr.mxu0 0.0
    %9560 = vmatpush1.msra.mxu0 %v9526
    %9561 = vmatprep.subr.mxu0 0.0
    %9562 = vmatpush1.msra.mxu0 %v9527
    %9563 = vmatprep.subr.mxu0 0.0
    %9564 = vmatpush1.msra.mxu0 %v9528
    %9565 = vmatprep.subr.mxu0 0.0
    %9566 = vmatpush1.msra.mxu0 0.0
    %9567 = vmatprep.subr.mxu0 0.0
    %9568 = vmatpush1.msra.mxu0 0.0
    %9569 = vmatprep.subr.mxu0 0.0
    %9570 = vmatpush1.msra.mxu0 0.0
    %9571 = vmatprep.subr.mxu0 0.0
    %9572 = vmatpush1.msra.mxu0 0.0
    %9573 = vmatprep.subr.mxu0 0.0
    %9574 = vmatpush1.msra.mxu0 0.0
    %9575 = vmatprep.subr.mxu0 0.0
    %9576 = vmatpush1.msra.mxu0 0.0
    %9577 = vmatprep.subr.mxu0 0.0
    %9578 = vmatpush1.msra.mxu0 0.0
    %9579 = vmatprep.subr.mxu0 0.0
    %9580 = vmatpush1.msra.mxu0 0.0
    %9581 = vmatprep.subr.mxu0 0.0
    %9582 = vmatpush1.msra.mxu0 0.0
    %9583 = vmatprep.subr.mxu0 0.0
    %9584 = vmatpush1.msra.mxu0 0.0
    %9585 = vmatprep.subr.mxu0 0.0
    %9586 = vmatpush1.msra.mxu0 0.0
    %9587 = vmatprep.subr.mxu0 0.0
    %9588 = vmatpush1.msra.mxu0 0.0
    %9589 = vmatprep.subr.mxu0 0.0
    %9590 = vmatpush1.msra.mxu0 0.0
    %9591 = vmatprep.subr.mxu0 0.0
    %9592 = vmatpush1.msra.mxu0 0.0
    %9593 = vmatprep.subr.mxu0 0.0
    %9594 = vmatpush1.msra.mxu0 0.0
    %9595 = vmatprep.subr.mxu0 0.0
    %9596 = vmatpush1.msra.mxu0 0.0
    %9597 = vmatprep.subr.mxu0 0.0
    %9598 = vmatpush1.msra.mxu0 0.0
    %9599 = vmatprep.subr.mxu0 0.0
    %9600 = vmatpush1.msra.mxu0 0.0
    %9601 = vmatprep.subr.mxu0 0.0
    %9602 = vmatpush1.msra.mxu0 0.0
    %9603 = vmatprep.subr.mxu0 0.0
    %9604 = vmatpush1.msra.mxu0 0.0
    %9605 = vmatprep.subr.mxu0 0.0
    %9606 = vmatpush1.msra.mxu0 0.0
    %9607 = vmatprep.subr.mxu0 0.0
    %9608 = vmatpush1.msra.mxu0 0.0
    %9609 = vmatprep.subr.mxu0 0.0
    %9610 = vmatpush1.msra.mxu0 0.0
    %9611 = vmatprep.subr.mxu0 0.0
    %9612 = vmatpush1.msra.mxu0 0.0
    %9613 = vmatprep.subr.mxu0 0.0
    %9614 = vmatpush1.msra.mxu0 0.0
    %9615 = vmatprep.subr.mxu0 0.0
    %9616 = vmatpush1.msra.mxu0 0.0
    %9617 = vmatprep.subr.mxu0 0.0
    %9618 = vmatpush1.msra.mxu0 0.0
    %9619 = vmatprep.subr.mxu0 0.0
    %9620 = vmatpush1.msra.mxu0 0.0
    %9621 = vmatprep.mubr.f32.mxu0 0.0
    %9622 = vmatmul.mubr.f32.gmra.mrb[0].mxu0 %v9537
    %v9623 = vpop.f32.mrb[0].mxu0
    %v9624 = vadd.f32 %v9534, %v9623
    %v9625 = vpop.f32.mrb[0].mxu0
    %9626 = vmatprep.mubr.f32.mxu0 0.0
    %9627 = vmatmul.mubr.f32.gmra.mrb[0].mxu0 %v9540
    %v9628 = vpop.f32.mrb[0].mxu0
    %v9629 = vadd.f32 %v9534, %v9628
    %v9630 = vpop.f32.mrb[0].mxu0
    %9631 = vmatprep.mubr.f32.mxu0 0.0
    %9632 = vmatmul.mubr.f32.gmra.mrb[0].mxu0 %v9543
    %v9633 = vpop.f32.mrb[0].mxu0
    %v9634 = vadd.f32 %v9534, %v9633
    %v9635 = vpop.f32.mrb[0].mxu0
    %9636 = vmatprep.mubr.f32.mxu0 0.0
    %9637 = vmatmul.mubr.f32.gmra.mrb[0].mxu0 %v9546
    %v9638 = vpop.f32.mrb[0].mxu0
    %v9639 = vadd.f32 %v9534, %v9638
    %v9640 = vpop.f32.mrb[0].mxu0
    %9641 = vmatprep.mubr.f32.mxu0 0.0
    %9642 = vmatmul.mubr.f32.gmra.mrb[0].mxu0 %v9549
    %v9643 = vpop.f32.mrb[0].mxu0
    %v9644 = vadd.f32 %v9534, %v9643
    %v9645 = vpop.f32.mrb[0].mxu0
    %9646 = vmatprep.mubr.f32.mxu0 0.0
    %9647 = vmatmul.mubr.f32.gmra.mrb[0].mxu0 %v9552
    %v9648 = vpop.f32.mrb[0].mxu0
    %v9649 = vadd.f32 %v9534, %v9648
    %v9650 = vpop.f32.mrb[0].mxu0
    %9651 = vmatprep.mubr.f32.mxu0 0.0
    %9652 = vmatmul.mubr.f32.gmra.mrb[0].mxu0 %v9555
    %v9653 = vpop.f32.mrb[0].mxu0
    %v9654 = vadd.f32 %v9534, %v9653
    %v9655 = vpop.f32.mrb[0].mxu0
    %9656 = vdwg.mxu0
    %v9657 = vmul.f32 %v9624, %v584
    %v9658 = vmul.f32 %v9629, %v585
    %v9659 = vmul.f32 %v9634, %v586
    %v9660 = vmul.f32 %v9639, %v587
    %v9661 = vmul.f32 %v9644, %v588
    %v9662 = vmul.f32 %v9649, %v589
    %v9663 = vmul.f32 %v9654, %v590
    %v9664 = vadd.f32 %v9657, %v577
    %v9665 = vadd.f32 %v9658, %v578
    %v9666 = vadd.f32 %v9659, %v579
    %v9667 = vadd.f32 %v9660, %v580
    %v9668 = vadd.f32 %v9661, %v581
    %v9669 = vadd.f32 %v9662, %v582
    %v9670 = vadd.f32 %v9663, %v583
    %9671 = vxpose.xlu0.b32.start [1/16] %v9664, 128
    %9672 = vxpose.xlu0.b32.cont [2/16] %v9665, 128
    %9673 = vxpose.xlu0.b32.cont [3/16] %v9666, 128
    %9674 = vxpose.xlu0.b32.cont [4/16] %v9667, 128
    %9675 = vxpose.xlu0.b32.cont [5/16] %v9668, 128
    %9676 = vxpose.xlu0.b32.cont [6/16] %v9669, 128
    %9677 = vxpose.xlu0.b32.cont [7/16] %v9670, 128
    %9678 = vxpose.xlu0.b32.cont [8/16] 0.0, 128
    %9679 = vxpose.xlu0.b32.cont [9/16] 0.0, 128
    %9680 = vxpose.xlu0.b32.cont [10/16] 0.0, 128
    %9681 = vxpose.xlu0.b32.cont [11/16] 0.0, 128
    %9682 = vxpose.xlu0.b32.cont [12/16] 0.0, 128
    %9683 = vxpose.xlu0.b32.cont [13/16] 0.0, 128
    %9684 = vxpose.xlu0.b32.cont [14/16] 0.0, 128
    %9685 = vxpose.xlu0.b32.cont [15/16] 0.0, 128
    %9686 = vxpose.xlu0.b32.end [16/16] 0.0, 128
    %v9687 = vpop.trf.xlu0
    %v9688 = vpop.trf.xlu0
    %v9689 = vpop.trf.xlu0
    %v9690 = vpop.trf.xlu0
    %v9691 = vpop.trf.xlu0
    %v9692 = vpop.trf.xlu0
    %v9693 = vpop.trf.xlu0
    %v9694 = vpop.trf.xlu0
    %v9695 = vpop.trf.xlu0
    %v9696 = vpop.trf.xlu0
    %v9697 = vpop.trf.xlu0
    %v9698 = vpop.trf.xlu0
    %v9699 = vpop.trf.xlu0
    %v9700 = vpop.trf.xlu0
    %v9701 = vpop.trf.xlu0
    %v9702 = vpop.trf.xlu0
    %vm9703 = vcmask 457728
    %9704 = vst.msk [vmem:[#allocation43] sm:$0xff] %vm9703, %v9687
    // Predicated region
    $region210: #{s_mamba_forward.1} parent=1 // pred_check
      _
    $region211: #{s_mamba_forward.1} parent=1 // pred_check_branch
      %9706 = sbr.rel (0) target = $region213
    $region212: #{s_mamba_forward.1} parent=1 // pred_region
      %s9708 = ssub.s32 128, 128
      %9709 = vsyncadd [#allocation4], %s9708
      %s9711 = sshll.u32 [#allocation43], 4
      %s9712 = int_to_ptr.vmem [resolvable:$true] %s9711
      %9714 = dma.vmem_to_hbm [thread:$0]  %s9712, 128, %s26, [#allocation4]
    $region213: #{s_mamba_forward.1} parent=1 // pred_fallthru
      _
    // Predicated region
    $region214: #{s_mamba_forward.1} parent=1 // pred_check
      _
    $region215: #{s_mamba_forward.1} parent=1 // pred_check_branch
      %9716 = sbr.rel (0) target = $region217
    $region216: #{s_mamba_forward.1} parent=1 // pred_region
      %9717 = dma.done [#allocation4], 128
    $region217: #{s_mamba_forward.1} parent=1 // pred_fallthru
      _
    %9718 = vsyncpa [#allocation3], 1
    %9719 = vsyncpa [#allocation6], 1
    %9720 = vsyncpa [#allocation9], 1
    %9721 = vsyncpa [#allocation12], 1
    %9722 = vsyncpa [#allocation15], 1
    %9723 = vsyncpa [#allocation18], 1
    %9724 = vsyncpa [#allocation21], 1
    %9725 = vsyncpa [#allocation24], 1
    %9726 = vsyncpa [#allocation27], 1
    %9727 = vsyncpa [#allocation30], 1
    %9728 = vsyncpa [#allocation33], 1
    %9729 = vsyncpa [#allocation36], 1
    %9730 = vsyncpa [#allocation39], 1
    %9731 = vsyncpa [#allocation42], 1
    %9732 = vsyncpa [#allocation4], 1

</llo_original>
